<compile_context>
chip_gen: v7x
topology: tpu7x:2x2x1
jax: 0.10.0
libtpu: 0.0.40
codegen_flags: <defaults>
</compile_context>

<pallas_src>
import functools
import math

import jax
import jax.numpy as jnp
from jax import lax
from jax.experimental import pallas as pl
from jax.experimental.pallas import tpu as pltpu


# ----------------------------------------------------------------------------
# Conv kernels: whole-layer im2col GEMM, single grid step (everything in VMEM).
# ----------------------------------------------------------------------------
def _conv_lrelu_kernel(a_ref, w_ref, b_ref, o_ref, *, alpha):
    y = jnp.dot(a_ref[...], w_ref[...], preferred_element_type=jnp.float32)
    y = y + b_ref[...]
    o_ref[...] = jnp.where(y >= 0.0, y, alpha * y)


def _conv_bn_lrelu_kernel(a_ref, w_ref, b_ref, g_ref, bt_ref, o_ref, *, alpha, eps):
    y = jnp.dot(a_ref[...], w_ref[...], preferred_element_type=jnp.float32)
    y = y + b_ref[...]
    # BatchNorm2d (training mode): per-channel batch stats over N*Ho*Wo (= rows),
    # biased variance, subtract-mean formulation for numerical stability.
    mean = jnp.mean(y, axis=0, keepdims=True)
    cent = y - mean
    var = jnp.mean(cent * cent, axis=0, keepdims=True)
    scale = g_ref[...] * lax.rsqrt(var + eps)
    z = cent * scale + bt_ref[...]
    o_ref[...] = jnp.where(z >= 0.0, z, alpha * z)


def extract_patches(x_nhwc, ksize, stride):
    """im2col: (N,H,W,C) -> (N*Ho*Wo, k*k*C) with (kh, kw, cin) feature order."""
    n, h, w, c = x_nhwc.shape
    ho = (h - ksize) // stride + 1
    wo = (w - ksize) // stride + 1
    cols = []
    for kh in range(ksize):
        for kw in range(ksize):
            sl = lax.slice(x_nhwc,
                           (0, kh, kw, 0),
                           (n, kh + (ho - 1) * stride + 1,
                            kw + (wo - 1) * stride + 1, c),
                           (1, stride, stride, 1))
            cols.append(sl)
    patches = jnp.concatenate(cols, axis=-1)             # (N, Ho, Wo, k*k*C)
    return patches.reshape(n * ho * wo, ksize * ksize * c), (n, ho, wo)


def conv2d_layer(x_nhwc, w_oihw, b, *, stride, bn_params=None, alpha=0.2, eps=1e-5):
    cout, cin, ksize, _ = w_oihw.shape
    patches, (n, ho, wo) = extract_patches(x_nhwc, ksize, stride)
    m, _ = patches.shape
    # (Cout,Cin,kh,kw) -> (kh,kw,Cin,Cout) -> (k*k*Cin, Cout), matching patch order.
    w_mat = jnp.transpose(w_oihw, (2, 3, 1, 0)).reshape(ksize * ksize * cin, cout)
    bias = b.reshape(1, cout)

    if bn_params is None:
        kernel = functools.partial(_conv_lrelu_kernel, alpha=alpha)
        out = pl.pallas_call(
            kernel,
            out_shape=jax.ShapeDtypeStruct((m, cout), jnp.float32),
        )(patches, w_mat, bias)
    else:
        gamma, beta = bn_params
        kernel = functools.partial(_conv_bn_lrelu_kernel, alpha=alpha, eps=eps)
        out = pl.pallas_call(
            kernel,
            out_shape=jax.ShapeDtypeStruct((m, cout), jnp.float32),
        )(patches, w_mat, bias, gamma.reshape(1, cout), beta.reshape(1, cout))
    return out.reshape(n, ho, wo, cout)


# ----------------------------------------------------------------------------
# Fully-connected kernel: F-tiled ("parallel") x K-tiled ("arbitrary") matmul,
# native (F, K) weight layout, accumulation directly into the resident output
# block, fused bias + activation on the last K step.
# ----------------------------------------------------------------------------
def _fc_kernel(x_ref, w_ref, b_ref, o_ref, *, act, alpha):
    k = pl.program_id(1)
    nk = pl.num_programs(1)
    part = lax.dot_general(x_ref[...], w_ref[...],
                           dimension_numbers=(((1,), (1,)), ((), ())),
                           preferred_element_type=jnp.float32)

    @pl.when(k == 0)
    def _():
        o_ref[...] = part

    @pl.when(k != 0)
    def _():
        o_ref[...] += part

    @pl.when(k == nk - 1)
    def _():
        y = o_ref[...] + b_ref[...]
        if act == "lrelu":
            y = jnp.where(y >= 0.0, y, alpha * y)
        elif act == "sigmoid":
            y = jax.nn.sigmoid(y)
        o_ref[...] = y


def fc_layer(x, w_fk, bias, *, act, alpha=0.2, tk=None, tf=None,
             vmem_limit_bytes=None):
    b, k = x.shape
    f = w_fk.shape[0]
    tk = k if tk is None else tk
    tf = f if tf is None else tf
    assert k % tk == 0 and f % tf == 0, (k, tk, f, tf)
    nk, nf = k // tk, f // tf

    kernel = functools.partial(_fc_kernel, act=act, alpha=alpha)
    cp_kwargs = dict(dimension_semantics=("parallel", "arbitrary"))
    if vmem_limit_bytes is not None:
        cp_kwargs["vmem_limit_bytes"] = vmem_limit_bytes

    return pl.pallas_call(
        kernel,
        out_shape=jax.ShapeDtypeStruct((b, f), jnp.float32),
        grid_spec=pltpu.PrefetchScalarGridSpec(
            num_scalar_prefetch=0,
            grid=(nf, nk),
            in_specs=[pl.BlockSpec((b, tk), lambda j, i: (0, i)),
                      pl.BlockSpec((tf, tk), lambda j, i: (j, i)),   # native (F, K)
                      pl.BlockSpec((1, tf), lambda j, i: (0, j))],
            out_specs=pl.BlockSpec((b, tf), lambda j, i: (0, j))),
        compiler_params=pltpu.CompilerParams(**cp_kwargs),
    )(x, w_fk, bias)


# ----------------------------------------------------------------------------
# Forward pass.
# ----------------------------------------------------------------------------
def discriminator_forward(x_nchw, params, strides, alpha=0.2):
    x = jnp.transpose(x_nchw, (0, 2, 3, 1))              # NCHW -> NHWC
    # conv1 + LeakyReLU (no BatchNorm)
    x = conv2d_layer(x, params["conv1_w"], params["conv1_b"],
                     stride=strides[0], bn_params=None, alpha=alpha)
    # DiscriminatorBlocks: conv -> BatchNorm(train stats) -> LeakyReLU
    for i, blk in enumerate(params["blocks"]):
        x = conv2d_layer(x, blk["w"], blk["b"], stride=strides[i + 1],
                         bn_params=(blk["gamma"], blk["beta"]), alpha=alpha)
    # Flatten in PyTorch NCHW order so fc1's feature ordering matches.
    n, ho, wo, c = x.shape
    flat = jnp.transpose(x, (0, 3, 1, 2)).reshape(n, c * ho * wo)
    # fc1: 41472 = 18 * 2304; F = 1024 split into 2 x 512 (parallel axis for v7x
    # megacore). Weight tile = 512*2304*4B = 4.7 MB (double-buffered ~9.4 MB).
    h = fc_layer(flat, params["fc1_w"], params["fc1_b"].reshape(1, -1),
                 act="lrelu", alpha=alpha, tk=2304, tf=512,
                 vmem_limit_bytes=32 << 20)
    # fc2: single grid step (K=1024, F=1).
    pred = fc_layer(h, params["fc2_w"], params["fc2_b"].reshape(1, -1),
                    act="sigmoid", alpha=alpha)
    return pred


if __name__ == "__main__":
    key = jax.random.PRNGKey(0)
    ks = jax.random.split(key, 9)

    in_channels = 4
    hidden = [32, 128]          # Discriminator(4, hidden_channels=[32,128], stride=[1,2])
    strides = [1, 2]
    H = W = 40                  # chosen so flatten == 41472 (hard-coded fc1 in_features)
    flat_dim = 41472

    # Deterministic synthetic parameters (PyTorch shapes: conv OIHW, linear (out,in)).
    params = {
        "conv1_w": jax.random.normal(ks[0], (hidden[0], in_channels, 3, 3),
                                     jnp.float32) / math.sqrt(in_channels * 9),
        "conv1_b": 0.01 * jax.random.normal(ks[1], (hidden[0],), jnp.float32),
        "blocks": [{
            "w": jax.random.normal(ks[2], (hidden[1], hidden[0], 3, 3),
                                   jnp.float32) / math.sqrt(hidden[0] * 9),
            "b": 0.01 * jax.random.normal(ks[3], (hidden[1],), jnp.float32),
            "gamma": jnp.ones((hidden[1],), jnp.float32),   # BatchNorm2d default init
            "beta": jnp.zeros((hidden[1],), jnp.float32),
        }],
        # Kept in native PyTorch (out_features, in_features) layout — no transpose.
        "fc1_w": jax.random.normal(ks[4], (1024, flat_dim), jnp.float32) / math.sqrt(flat_dim),
        "fc1_b": 0.01 * jax.random.normal(ks[5], (1024,), jnp.float32),
        "fc2_w": jax.random.normal(ks[6], (1, 1024), jnp.float32) / math.sqrt(1024),
        "fc2_b": 0.01 * jax.random.normal(ks[7], (1,), jnp.float32),
    }

    x = jax.random.normal(ks[8], (2, in_channels, H, W), jnp.float32)

    fwd = jax.jit(lambda xx, pp: discriminator_forward(xx, pp, strides))
    pred = jax.block_until_ready(fwd(x, params))

    assert pred.shape == (2, 1), pred.shape
    assert bool(jnp.all(jnp.isfinite(pred)))
    assert bool(jnp.all((pred > 0.0) & (pred < 1.0)))
    print("KERNEL_OK")
</pallas_src>

<mosaic_0001>
module attributes {stable_mosaic.version = 11 : i64} {
  func.func @_conv_lrelu_kernel(%arg0: memref<2888x36xf32, #tpu.memory_space<vmem>>, %arg1: memref<36x32xf32, #tpu.memory_space<vmem>>, %arg2: memref<1x32xf32, #tpu.memory_space<vmem>>, %arg3: memref<2888x32xf32, #tpu.memory_space<vmem>>) attributes {dimension_semantics = [], scalar_prefetch = 0 : i64, scratch_operands = 0 : i64, tpu.core_type = #tpu.core_type<tc>} {
    %c0 = arith.constant 0 : index
    %c0_0 = arith.constant 0 : index
    %0 = vector.load %arg0[%c0, %c0_0] : memref<2888x36xf32, #tpu.memory_space<vmem>>, vector<2888x36xf32>
    %c0_1 = arith.constant 0 : index
    %c0_2 = arith.constant 0 : index
    %1 = vector.load %arg1[%c0_1, %c0_2] : memref<36x32xf32, #tpu.memory_space<vmem>>, vector<36x32xf32>
    %cst = arith.constant dense<0.000000e+00> : vector<2888x32xf32>
    %2 = tpu.matmul %0, %1, %cst {dimension_numbers = #tpu.dot_dimension_numbers<[1], [0], [0], [1], [0, 0, 1, 1], [], []>} : vector<2888x36xf32>, vector<36x32xf32>, vector<2888x32xf32> -> vector<2888x32xf32>
    %c0_3 = arith.constant 0 : index
    %c0_4 = arith.constant 0 : index
    %3 = vector.load %arg2[%c0_3, %c0_4] : memref<1x32xf32, #tpu.memory_space<vmem>>, vector<1x32xf32>
    %4 = vector.broadcast %3 : vector<1x32xf32> to vector<2888x32xf32>
    %5 = arith.addf %2, %4 : vector<2888x32xf32>
    %cst_5 = arith.constant 0.000000e+00 : f32
    %6 = vector.broadcast %cst_5 : f32 to vector<2888x32xf32>
    %7 = arith.cmpf oge, %5, %6 : vector<2888x32xf32>
    %cst_6 = arith.constant 2.000000e-01 : f32
    %8 = vector.broadcast %cst_6 : f32 to vector<2888x32xf32>
    %9 = arith.mulf %8, %5 : vector<2888x32xf32>
    %10 = arith.select %7, %5, %9 : vector<2888x32xi1>, vector<2888x32xf32>
    %c0_7 = arith.constant 0 : index
    %c0_8 = arith.constant 0 : index
    %11 = vector.load %arg3[%c0_7, %c0_8] : memref<2888x32xf32, #tpu.memory_space<vmem>>, vector<2888x32xf32>
    tpu.vector_store %arg3[%c0_7, %c0_8], %10 {strides = array<i32>} : memref<2888x32xf32, #tpu.memory_space<vmem>>, vector<2888x32xf32>,
    return
  }
}

module attributes {stable_mosaic.version = 11 : i64} {
  func.func @_conv_bn_lrelu_kernel(%arg0: memref<648x288xf32, #tpu.memory_space<vmem>>, %arg1: memref<288x128xf32, #tpu.memory_space<vmem>>, %arg2: memref<1x128xf32, #tpu.memory_space<vmem>>, %arg3: memref<1x128xf32, #tpu.memory_space<vmem>>, %arg4: memref<1x128xf32, #tpu.memory_space<vmem>>, %arg5: memref<648x128xf32, #tpu.memory_space<vmem>>) attributes {dimension_semantics = [], scalar_prefetch = 0 : i64, scratch_operands = 0 : i64, tpu.core_type = #tpu.core_type<tc>} {
    %c0 = arith.constant 0 : index
    %c0_0 = arith.constant 0 : index
    %0 = vector.load %arg0[%c0, %c0_0] : memref<648x288xf32, #tpu.memory_space<vmem>>, vector<648x288xf32>
    %c0_1 = arith.constant 0 : index
    %c0_2 = arith.constant 0 : index
    %1 = vector.load %arg1[%c0_1, %c0_2] : memref<288x128xf32, #tpu.memory_space<vmem>>, vector<288x128xf32>
    %cst = arith.constant dense<0.000000e+00> : vector<648x128xf32>
    %2 = tpu.matmul %0, %1, %cst {dimension_numbers = #tpu.dot_dimension_numbers<[1], [0], [0], [1], [0, 0, 1, 1], [], []>} : vector<648x288xf32>, vector<288x128xf32>, vector<648x128xf32> -> vector<648x128xf32>
    %c0_3 = arith.constant 0 : index
    %c0_4 = arith.constant 0 : index
    %3 = vector.load %arg2[%c0_3, %c0_4] : memref<1x128xf32, #tpu.memory_space<vmem>>, vector<1x128xf32>
    %4 = vector.broadcast %3 : vector<1x128xf32> to vector<648x128xf32>
    %5 = arith.addf %2, %4 : vector<648x128xf32>
    %cst_5 = arith.constant dense<0.000000e+00> : vector<128xf32>
    %6 = vector.multi_reduction <add>, %5, %cst_5 [0] : vector<648x128xf32> to vector<128xf32>
    %7 = vector.shape_cast %6 : vector<128xf32> to vector<1x128xf32>
    %cst_6 = arith.constant 6.480000e+02 : f32
    %8 = vector.broadcast %cst_6 : f32 to vector<1x128xf32>
    %9 = arith.divf %7, %8 : vector<1x128xf32>
    %10 = vector.broadcast %9 : vector<1x128xf32> to vector<648x128xf32>
    %11 = arith.subf %5, %10 : vector<648x128xf32>
    %12 = arith.mulf %11, %11 : vector<648x128xf32>
    %cst_7 = arith.constant dense<0.000000e+00> : vector<128xf32>
    %13 = vector.multi_reduction <add>, %12, %cst_7 [0] : vector<648x128xf32> to vector<128xf32>
    %14 = vector.shape_cast %13 : vector<128xf32> to vector<1x128xf32>
    %cst_8 = arith.constant 6.480000e+02 : f32
    %15 = vector.broadcast %cst_8 : f32 to vector<1x128xf32>
    %16 = arith.divf %14, %15 : vector<1x128xf32>
    %c0_9 = arith.constant 0 : index
    %c0_10 = arith.constant 0 : index
    %17 = vector.load %arg3[%c0_9, %c0_10] : memref<1x128xf32, #tpu.memory_space<vmem>>, vector<1x128xf32>
    %cst_11 = arith.constant 9.99999974E-6 : f32
    %18 = vector.broadcast %cst_11 : f32 to vector<1x128xf32>
    %19 = arith.addf %16, %18 : vector<1x128xf32>
    %20 = math.rsqrt %19 : vector<1x128xf32>
    %21 = arith.mulf %17, %20 : vector<1x128xf32>
    %22 = vector.broadcast %21 : vector<1x128xf32> to vector<648x128xf32>
    %23 = arith.mulf %11, %22 : vector<648x128xf32>
    %c0_12 = arith.constant 0 : index
    %c0_13 = arith.constant 0 : index
    %24 = vector.load %arg4[%c0_12, %c0_13] : memref<1x128xf32, #tpu.memory_space<vmem>>, vector<1x128xf32>
    %25 = vector.broadcast %24 : vector<1x128xf32> to vector<648x128xf32>
    %26 = arith.addf %23, %25 : vector<648x128xf32>
    %cst_14 = arith.constant 0.000000e+00 : f32
    %27 = vector.broadcast %cst_14 : f32 to vector<648x128xf32>
    %28 = arith.cmpf oge, %26, %27 : vector<648x128xf32>
    %cst_15 = arith.constant 2.000000e-01 : f32
    %29 = vector.broadcast %cst_15 : f32 to vector<648x128xf32>
    %30 = arith.mulf %29, %26 : vector<648x128xf32>
    %31 = arith.select %28, %26, %30 : vector<648x128xi1>, vector<648x128xf32>
    %c0_16 = arith.constant 0 : index
    %c0_17 = arith.constant 0 : index
    %32 = vector.load %arg5[%c0_16, %c0_17] : memref<648x128xf32, #tpu.memory_space<vmem>>, vector<648x128xf32>
    tpu.vector_store %arg5[%c0_16, %c0_17], %31 {strides = array<i32>} : memref<648x128xf32, #tpu.memory_space<vmem>>, vector<648x128xf32>,
    return
  }
}

module attributes {stable_mosaic.version = 11 : i64} {
  func.func @_fc_kernel(%arg0: i32, %arg1: i32, %arg2: memref<2x2304xf32, #tpu.memory_space<vmem>>, %arg3: memref<512x2304xf32, #tpu.memory_space<vmem>>, %arg4: memref<1x512xf32, #tpu.memory_space<vmem>>, %arg5: memref<2x512xf32, #tpu.memory_space<vmem>>) attributes {dimension_semantics = [#tpu.dimension_semantics<parallel>, #tpu.dimension_semantics<arbitrary>], iteration_bounds = array<i64: 2, 18>, scalar_prefetch = 0 : i64, scratch_operands = 0 : i64, tpu.core_type = #tpu.core_type<tc>, window_params = [{transform_indices = @transform_0, window_bounds = array<i64: 2, 2304>}, {transform_indices = @transform_1, window_bounds = array<i64: 512, 2304>}, {transform_indices = @transform_2, window_bounds = array<i64: 1, 512>}, {transform_indices = @transform_3, window_bounds = array<i64: 2, 512>}]} {
    %c0 = arith.constant 0 : index
    %c0_0 = arith.constant 0 : index
    %0 = vector.load %arg2[%c0, %c0_0] : memref<2x2304xf32, #tpu.memory_space<vmem>>, vector<2x2304xf32>
    %c0_1 = arith.constant 0 : index
    %c0_2 = arith.constant 0 : index
    %1 = vector.load %arg3[%c0_1, %c0_2] : memref<512x2304xf32, #tpu.memory_space<vmem>>, vector<512x2304xf32>
    %cst = arith.constant dense<0.000000e+00> : vector<2x512xf32>
    %2 = tpu.matmul %0, %1, %cst {dimension_numbers = #tpu.dot_dimension_numbers<[1], [1], [0], [0], [0, 0, 1, 0], [], []>} : vector<2x2304xf32>, vector<512x2304xf32>, vector<2x512xf32> -> vector<2x512xf32>
    %c0_i32 = arith.constant 0 : i32
    %3 = arith.cmpi eq, %arg1, %c0_i32 : i32
    %4 = arith.extui %3 : i1 to i32
    %c0_i32_3 = arith.constant 0 : i32
    %5 = arith.cmpi ne, %4, %c0_i32_3 : i32
    scf.if %5 {
      %c0_7 = arith.constant 0 : index
      %c0_8 = arith.constant 0 : index
      %12 = vector.load %arg5[%c0_7, %c0_8] : memref<2x512xf32, #tpu.memory_space<vmem>>, vector<2x512xf32>
      tpu.vector_store %arg5[%c0_7, %c0_8], %2 {strides = array<i32>} : memref<2x512xf32, #tpu.memory_space<vmem>>, vector<2x512xf32>,
    } else {
    }
    %c0_i32_4 = arith.constant 0 : i32
    %6 = arith.cmpi ne, %arg1, %c0_i32_4 : i32
    %7 = arith.extui %6 : i1 to i32
    %c0_i32_5 = arith.constant 0 : i32
    %8 = arith.cmpi ne, %7, %c0_i32_5 : i32
    scf.if %8 {
      %c0_7 = arith.constant 0 : index
      %c0_8 = arith.constant 0 : index
      %12 = vector.load %arg5[%c0_7, %c0_8] : memref<2x512xf32, #tpu.memory_space<vmem>>, vector<2x512xf32>
      %13 = arith.addf %12, %2 : vector<2x512xf32>
      %c0_9 = arith.constant 0 : index
      %c0_10 = arith.constant 0 : index
      %14 = vector.load %arg5[%c0_9, %c0_10] : memref<2x512xf32, #tpu.memory_space<vmem>>, vector<2x512xf32>
      tpu.vector_store %arg5[%c0_9, %c0_10], %13 {strides = array<i32>} : memref<2x512xf32, #tpu.memory_space<vmem>>, vector<2x512xf32>,
    } else {
    }
    %c17_i32 = arith.constant 17 : i32
    %9 = arith.cmpi eq, %arg1, %c17_i32 : i32
    %10 = arith.extui %9 : i1 to i32
    %c0_i32_6 = arith.constant 0 : i32
    %11 = arith.cmpi ne, %10, %c0_i32_6 : i32
    scf.if %11 {
      %c0_7 = arith.constant 0 : index
      %c0_8 = arith.constant 0 : index
      %12 = vector.load %arg5[%c0_7, %c0_8] : memref<2x512xf32, #tpu.memory_space<vmem>>, vector<2x512xf32>
      %c0_9 = arith.constant 0 : index
      %c0_10 = arith.constant 0 : index
      %13 = vector.load %arg4[%c0_9, %c0_10] : memref<1x512xf32, #tpu.memory_space<vmem>>, vector<1x512xf32>
      %14 = vector.broadcast %13 : vector<1x512xf32> to vector<2x512xf32>
      %15 = arith.addf %12, %14 : vector<2x512xf32>
      %cst_11 = arith.constant 0.000000e+00 : f32
      %16 = vector.broadcast %cst_11 : f32 to vector<2x512xf32>
      %17 = arith.cmpf oge, %15, %16 : vector<2x512xf32>
      %cst_12 = arith.constant 2.000000e-01 : f32
      %18 = vector.broadcast %cst_12 : f32 to vector<2x512xf32>
      %19 = arith.mulf %18, %15 : vector<2x512xf32>
      %20 = arith.select %17, %15, %19 : vector<2x512xi1>, vector<2x512xf32>
      %c0_13 = arith.constant 0 : index
      %c0_14 = arith.constant 0 : index
      %21 = vector.load %arg5[%c0_13, %c0_14] : memref<2x512xf32, #tpu.memory_space<vmem>>, vector<2x512xf32>
      tpu.vector_store %arg5[%c0_13, %c0_14], %20 {strides = array<i32>} : memref<2x512xf32, #tpu.memory_space<vmem>>, vector<2x512xf32>,
    } else {
    }
    return
  }
  func.func @transform_0(%arg0: i32, %arg1: i32) -> (i32, i32) {
    %c0_i32 = arith.constant 0 : i32
    %c0_i32_0 = arith.constant 0 : i32
    return %c0_i32, %arg1 : i32, i32
  }
  func.func @transform_1(%arg0: i32, %arg1: i32) -> (i32, i32) {
    %c0_i32 = arith.constant 0 : i32
    return %arg0, %arg1 : i32, i32
  }
  func.func @transform_2(%arg0: i32, %arg1: i32) -> (i32, i32) {
    %c0_i32 = arith.constant 0 : i32
    %c0_i32_0 = arith.constant 0 : i32
    return %c0_i32, %arg0 : i32, i32
  }
  func.func @transform_3(%arg0: i32, %arg1: i32) -> (i32, i32) {
    %c0_i32 = arith.constant 0 : i32
    %c0_i32_0 = arith.constant 0 : i32
    return %c0_i32, %arg0 : i32, i32
  }
}

module attributes {stable_mosaic.version = 11 : i64} {
  func.func @_fc_kernel(%arg0: i32, %arg1: i32, %arg2: memref<2x1024xf32, #tpu.memory_space<vmem>>, %arg3: memref<1x1024xf32, #tpu.memory_space<vmem>>, %arg4: memref<1x1xf32, #tpu.memory_space<vmem>>, %arg5: memref<2x1xf32, #tpu.memory_space<vmem>>) attributes {dimension_semantics = [#tpu.dimension_semantics<parallel>, #tpu.dimension_semantics<arbitrary>], iteration_bounds = array<i64: 1, 1>, scalar_prefetch = 0 : i64, scratch_operands = 0 : i64, tpu.core_type = #tpu.core_type<tc>, window_params = [{transform_indices = @transform_0, window_bounds = array<i64: 2, 1024>}, {transform_indices = @transform_1, window_bounds = array<i64: 1, 1024>}, {transform_indices = @transform_2, window_bounds = array<i64: 1, 1>}, {transform_indices = @transform_3, window_bounds = array<i64: 2, 1>}]} {
    %c0 = arith.constant 0 : index
    %c0_0 = arith.constant 0 : index
    %0 = vector.load %arg2[%c0, %c0_0] : memref<2x1024xf32, #tpu.memory_space<vmem>>, vector<2x1024xf32>
    %c0_1 = arith.constant 0 : index
    %c0_2 = arith.constant 0 : index
    %1 = vector.load %arg3[%c0_1, %c0_2] : memref<1x1024xf32, #tpu.memory_space<vmem>>, vector<1x1024xf32>
    %cst = arith.constant dense<0.000000e+00> : vector<2x1xf32>
    %2 = tpu.matmul %0, %1, %cst {dimension_numbers = #tpu.dot_dimension_numbers<[1], [1], [0], [0], [0, 0, 1, 0], [], []>} : vector<2x1024xf32>, vector<1x1024xf32>, vector<2x1xf32> -> vector<2x1xf32>
    %c0_i32 = arith.constant 0 : i32
    %3 = arith.cmpi eq, %arg1, %c0_i32 : i32
    %4 = arith.extui %3 : i1 to i32
    %c0_i32_3 = arith.constant 0 : i32
    %5 = arith.cmpi ne, %4, %c0_i32_3 : i32
    scf.if %5 {
      %c0_8 = arith.constant 0 : index
      %c0_9 = arith.constant 0 : index
      %12 = vector.load %arg5[%c0_8, %c0_9] : memref<2x1xf32, #tpu.memory_space<vmem>>, vector<2x1xf32>
      tpu.vector_store %arg5[%c0_8, %c0_9], %2 {strides = array<i32>} : memref<2x1xf32, #tpu.memory_space<vmem>>, vector<2x1xf32>,
    } else {
    }
    %c0_i32_4 = arith.constant 0 : i32
    %6 = arith.cmpi ne, %arg1, %c0_i32_4 : i32
    %7 = arith.extui %6 : i1 to i32
    %c0_i32_5 = arith.constant 0 : i32
    %8 = arith.cmpi ne, %7, %c0_i32_5 : i32
    scf.if %8 {
      %c0_8 = arith.constant 0 : index
      %c0_9 = arith.constant 0 : index
      %12 = vector.load %arg5[%c0_8, %c0_9] : memref<2x1xf32, #tpu.memory_space<vmem>>, vector<2x1xf32>
      %13 = arith.addf %12, %2 : vector<2x1xf32>
      %c0_10 = arith.constant 0 : index
      %c0_11 = arith.constant 0 : index
      %14 = vector.load %arg5[%c0_10, %c0_11] : memref<2x1xf32, #tpu.memory_space<vmem>>, vector<2x1xf32>
      tpu.vector_store %arg5[%c0_10, %c0_11], %13 {strides = array<i32>} : memref<2x1xf32, #tpu.memory_space<vmem>>, vector<2x1xf32>,
    } else {
    }
    %c0_i32_6 = arith.constant 0 : i32
    %9 = arith.cmpi eq, %arg1, %c0_i32_6 : i32
    %10 = arith.extui %9 : i1 to i32
    %c0_i32_7 = arith.constant 0 : i32
    %11 = arith.cmpi ne, %10, %c0_i32_7 : i32
    scf.if %11 {
      %c0_8 = arith.constant 0 : index
      %c0_9 = arith.constant 0 : index
      %12 = vector.load %arg5[%c0_8, %c0_9] : memref<2x1xf32, #tpu.memory_space<vmem>>, vector<2x1xf32>
      %c0_10 = arith.constant 0 : index
      %c0_11 = arith.constant 0 : index
      %13 = vector.load %arg4[%c0_10, %c0_11] : memref<1x1xf32, #tpu.memory_space<vmem>>, vector<1x1xf32>
      %14 = vector.broadcast %13 : vector<1x1xf32> to vector<2x1xf32>
      %15 = arith.addf %12, %14 : vector<2x1xf32>
      %16 = arith.negf %15 : vector<2x1xf32>
      %17 = math.exp %16 : vector<2x1xf32>
      %cst_12 = arith.constant 1.000000e+00 : f32
      %18 = vector.broadcast %cst_12 : f32 to vector<2x1xf32>
      %19 = arith.addf %18, %17 : vector<2x1xf32>
      %20 = arith.divf %18, %19 : vector<2x1xf32>
      %c0_13 = arith.constant 0 : index
      %c0_14 = arith.constant 0 : index
      %21 = vector.load %arg5[%c0_13, %c0_14] : memref<2x1xf32, #tpu.memory_space<vmem>>, vector<2x1xf32>
      tpu.vector_store %arg5[%c0_13, %c0_14], %20 {strides = array<i32>} : memref<2x1xf32, #tpu.memory_space<vmem>>, vector<2x1xf32>,
    } else {
    }
    return
  }
  func.func @transform_0(%arg0: i32, %arg1: i32) -> (i32, i32) {
    %c0_i32 = arith.constant 0 : i32
    %c0_i32_0 = arith.constant 0 : i32
    return %c0_i32, %arg1 : i32, i32
  }
  func.func @transform_1(%arg0: i32, %arg1: i32) -> (i32, i32) {
    %c0_i32 = arith.constant 0 : i32
    return %arg0, %arg1 : i32, i32
  }
  func.func @transform_2(%arg0: i32, %arg1: i32) -> (i32, i32) {
    %c0_i32 = arith.constant 0 : i32
    %c0_i32_0 = arith.constant 0 : i32
    return %c0_i32, %arg0 : i32, i32
  }
  func.func @transform_3(%arg0: i32, %arg1: i32) -> (i32, i32) {
    %c0_i32 = arith.constant 0 : i32
    %c0_i32_0 = arith.constant 0 : i32
    return %c0_i32, %arg0 : i32, i32
  }
}

</mosaic_0001>

<llo_original>
// kernel: _lambda_.4
$region0: #{_lambda_.4}
  #allocation0 [shape = 'u32[]', space=smem, size = 0x4, offset = 0x4, fixed_abs, tag = 'smem constant byte address 0x4 - core index']
  #allocation1 [shape = 'u32[144,128]{1,0:T(1,128)}', space=vmem, size = 0x12000, scoped, tag = 'internal scratch']
  %s0 = inlined_call_operand.vmem [shape: f32[2888,36], index: 0, kind: input, shape index: {}]
  %s1 = inlined_call_operand.vmem [shape: f32[36,32], index: 1, kind: input, shape index: {}]
  %s2 = inlined_call_operand.vmem [shape: f32[1,32], index: 2, kind: input, shape index: {}]
  %s3 = inlined_call_operand.vmem [shape: f32[2888,32], index: 3, kind: output, shape index: {}]
  %s4 = sld [smem:[#allocation0]]
  $region22: #{_lambda_.4} parent=0
    _
  %s6 = ssub.s32 1, %s4
  %s7 = scalar_select 0, %s6, %s4
  // Predicated region
  $region2: #{_lambda_.4} parent=0 // pred_check
    _
  $region3: #{_lambda_.4} parent=0 // pred_check_branch
    %9 = sbr.rel (0) target = $region5
  $region4: #{_lambda_.4} parent=0 // pred_region
    _
  $region5: #{_lambda_.4} parent=0 // pred_fallthru
    _
  // Predicated region
  $region6: #{_lambda_.4} parent=0 // pred_check
    _
  $region7: #{_lambda_.4} parent=0 // pred_check_branch
    %11 = sbr.rel (0) target = $region9
  $region8: #{_lambda_.4} parent=0 // pred_region
    _
  $region9: #{_lambda_.4} parent=0 // pred_fallthru
    _
  // Predicated region
  $region10: #{_lambda_.4} parent=0 // pred_check
    _
  $region11: #{_lambda_.4} parent=0 // pred_check_branch
    %13 = sbr.rel (0) target = $region13
  $region12: #{_lambda_.4} parent=0 // pred_region
    _
  $region13: #{_lambda_.4} parent=0 // pred_fallthru
    _
  %v14 = vld [vmem:[%s0] sm:$0xff]
  %v15 = vld [vmem:[%s0 + $0x8] sm:$0xff]
  %v16 = vld [vmem:[%s0 + $0x10] sm:$0xff]
  %v17 = vld [vmem:[%s0 + $0x18] sm:$0xff]
  %v18 = vld [vmem:[%s0 + $0x20] sm:$0xff]
  %v19 = vld [vmem:[%s0 + $0x28] sm:$0xff]
  %v20 = vld [vmem:[%s0 + $0x30] sm:$0xff]
  %v21 = vld [vmem:[%s0 + $0x38] sm:$0xff]
  %v22 = vld [vmem:[%s0 + $0x40] sm:$0xff]
  %v23 = vld [vmem:[%s0 + $0x48] sm:$0xff]
  %v24 = vld [vmem:[%s0 + $0x50] sm:$0xff]
  %v25 = vld [vmem:[%s0 + $0x58] sm:$0xff]
  %v26 = vld [vmem:[%s0 + $0x60] sm:$0xff]
  %v27 = vld [vmem:[%s0 + $0x68] sm:$0xff]
  %v28 = vld [vmem:[%s0 + $0x70] sm:$0xff]
  %v29 = vld [vmem:[%s0 + $0x78] sm:$0xff]
  %v30 = vld [vmem:[%s0 + $0x80] sm:$0xff]
  %v31 = vld [vmem:[%s0 + $0x88] sm:$0xff]
  %v32 = vld [vmem:[%s0 + $0x90] sm:$0xff]
  %v33 = vld [vmem:[%s0 + $0x98] sm:$0xff]
  %v34 = vld [vmem:[%s0 + $0xa0] sm:$0xff]
  %v35 = vld [vmem:[%s0 + $0xa8] sm:$0xff]
  %v36 = vld [vmem:[%s0 + $0xb0] sm:$0xff]
  %v37 = vld [vmem:[%s0 + $0xb8] sm:$0xff]
  %v38 = vld [vmem:[%s0 + $0xc0] sm:$0xff]
  %v39 = vld [vmem:[%s0 + $0xc8] sm:$0xff]
  %v40 = vld [vmem:[%s0 + $0xd0] sm:$0xff]
  %v41 = vld [vmem:[%s0 + $0xd8] sm:$0xff]
  %v42 = vld [vmem:[%s0 + $0xe0] sm:$0xff]
  %v43 = vld [vmem:[%s0 + $0xe8] sm:$0xff]
  %v44 = vld [vmem:[%s0 + $0xf0] sm:$0xff]
  %v45 = vld [vmem:[%s0 + $0xf8] sm:$0xff]
  %v46 = vld [vmem:[%s0 + $0x100] sm:$0xff]
  %v47 = vld [vmem:[%s0 + $0x108] sm:$0xff]
  %v48 = vld [vmem:[%s0 + $0x110] sm:$0xff]
  %v49 = vld [vmem:[%s0 + $0x118] sm:$0xff]
  %v50 = vld [vmem:[%s0 + $0x120] sm:$0xff]
  %v51 = vld [vmem:[%s0 + $0x128] sm:$0xff]
  %v52 = vld [vmem:[%s0 + $0x130] sm:$0xff]
  %v53 = vld [vmem:[%s0 + $0x138] sm:$0xff]
  %v54 = vld [vmem:[%s0 + $0x140] sm:$0xff]
  %v55 = vld [vmem:[%s0 + $0x148] sm:$0xff]
  %v56 = vld [vmem:[%s0 + $0x150] sm:$0xff]
  %v57 = vld [vmem:[%s0 + $0x158] sm:$0xff]
  %v58 = vld [vmem:[%s0 + $0x160] sm:$0xff]
  %v59 = vld [vmem:[%s0 + $0x168] sm:$0xff]
  %v60 = vld [vmem:[%s0 + $0x170] sm:$0xff]
  %v61 = vld [vmem:[%s0 + $0x178] sm:$0xff]
  %v62 = vld [vmem:[%s0 + $0x180] sm:$0xff]
  %v63 = vld [vmem:[%s0 + $0x188] sm:$0xff]
  %v64 = vld [vmem:[%s0 + $0x190] sm:$0xff]
  %v65 = vld [vmem:[%s0 + $0x198] sm:$0xff]
  %v66 = vld [vmem:[%s0 + $0x1a0] sm:$0xff]
  %v67 = vld [vmem:[%s0 + $0x1a8] sm:$0xff]
  %v68 = vld [vmem:[%s0 + $0x1b0] sm:$0xff]
  %v69 = vld [vmem:[%s0 + $0x1b8] sm:$0xff]
  %v70 = vld [vmem:[%s0 + $0x1c0] sm:$0xff]
  %v71 = vld [vmem:[%s0 + $0x1c8] sm:$0xff]
  %v72 = vld [vmem:[%s0 + $0x1d0] sm:$0xff]
  %v73 = vld [vmem:[%s0 + $0x1d8] sm:$0xff]
  %v74 = vld [vmem:[%s0 + $0x1e0] sm:$0xff]
  %v75 = vld [vmem:[%s0 + $0x1e8] sm:$0xff]
  %v76 = vld [vmem:[%s0 + $0x1f0] sm:$0xff]
  %v77 = vld [vmem:[%s0 + $0x1f8] sm:$0xff]
  %v78 = vld [vmem:[%s0 + $0x200] sm:$0xff]
  %v79 = vld [vmem:[%s0 + $0x208] sm:$0xff]
  %v80 = vld [vmem:[%s0 + $0x210] sm:$0xff]
  %v81 = vld [vmem:[%s0 + $0x218] sm:$0xff]
  %v82 = vld [vmem:[%s0 + $0x220] sm:$0xff]
  %v83 = vld [vmem:[%s0 + $0x228] sm:$0xff]
  %v84 = vld [vmem:[%s0 + $0x230] sm:$0xff]
  %v85 = vld [vmem:[%s0 + $0x238] sm:$0xff]
  %v86 = vld [vmem:[%s0 + $0x240] sm:$0xff]
  %v87 = vld [vmem:[%s0 + $0x248] sm:$0xff]
  %v88 = vld [vmem:[%s0 + $0x250] sm:$0xff]
  %v89 = vld [vmem:[%s0 + $0x258] sm:$0xff]
  %v90 = vld [vmem:[%s0 + $0x260] sm:$0xff]
  %v91 = vld [vmem:[%s0 + $0x268] sm:$0xff]
  %v92 = vld [vmem:[%s0 + $0x270] sm:$0xff]
  %v93 = vld [vmem:[%s0 + $0x278] sm:$0xff]
  %v94 = vld [vmem:[%s0 + $0x280] sm:$0xff]
  %v95 = vld [vmem:[%s0 + $0x288] sm:$0xff]
  %v96 = vld [vmem:[%s0 + $0x290] sm:$0xff]
  %v97 = vld [vmem:[%s0 + $0x298] sm:$0xff]
  %v98 = vld [vmem:[%s0 + $0x2a0] sm:$0xff]
  %v99 = vld [vmem:[%s0 + $0x2a8] sm:$0xff]
  %v100 = vld [vmem:[%s0 + $0x2b0] sm:$0xff]
  %v101 = vld [vmem:[%s0 + $0x2b8] sm:$0xff]
  %v102 = vld [vmem:[%s0 + $0x2c0] sm:$0xff]
  %v103 = vld [vmem:[%s0 + $0x2c8] sm:$0xff]
  %v104 = vld [vmem:[%s0 + $0x2d0] sm:$0xff]
  %v105 = vld [vmem:[%s0 + $0x2d8] sm:$0xff]
  %v106 = vld [vmem:[%s0 + $0x2e0] sm:$0xff]
  %v107 = vld [vmem:[%s0 + $0x2e8] sm:$0xff]
  %v108 = vld [vmem:[%s0 + $0x2f0] sm:$0xff]
  %v109 = vld [vmem:[%s0 + $0x2f8] sm:$0xff]
  %v110 = vld [vmem:[%s0 + $0x300] sm:$0xff]
  %v111 = vld [vmem:[%s0 + $0x308] sm:$0xff]
  %v112 = vld [vmem:[%s0 + $0x310] sm:$0xff]
  %v113 = vld [vmem:[%s0 + $0x318] sm:$0xff]
  %v114 = vld [vmem:[%s0 + $0x320] sm:$0xff]
  %v115 = vld [vmem:[%s0 + $0x328] sm:$0xff]
  %v116 = vld [vmem:[%s0 + $0x330] sm:$0xff]
  %v117 = vld [vmem:[%s0 + $0x338] sm:$0xff]
  %v118 = vld [vmem:[%s0 + $0x340] sm:$0xff]
  %v119 = vld [vmem:[%s0 + $0x348] sm:$0xff]
  %v120 = vld [vmem:[%s0 + $0x350] sm:$0xff]
  %v121 = vld [vmem:[%s0 + $0x358] sm:$0xff]
  %v122 = vld [vmem:[%s0 + $0x360] sm:$0xff]
  %v123 = vld [vmem:[%s0 + $0x368] sm:$0xff]
  %v124 = vld [vmem:[%s0 + $0x370] sm:$0xff]
  %v125 = vld [vmem:[%s0 + $0x378] sm:$0xff]
  %v126 = vld [vmem:[%s0 + $0x380] sm:$0xff]
  %v127 = vld [vmem:[%s0 + $0x388] sm:$0xff]
  %v128 = vld [vmem:[%s0 + $0x390] sm:$0xff]
  %v129 = vld [vmem:[%s0 + $0x398] sm:$0xff]
  %v130 = vld [vmem:[%s0 + $0x3a0] sm:$0xff]
  %v131 = vld [vmem:[%s0 + $0x3a8] sm:$0xff]
  %v132 = vld [vmem:[%s0 + $0x3b0] sm:$0xff]
  %v133 = vld [vmem:[%s0 + $0x3b8] sm:$0xff]
  %v134 = vld [vmem:[%s0 + $0x3c0] sm:$0xff]
  %v135 = vld [vmem:[%s0 + $0x3c8] sm:$0xff]
  %v136 = vld [vmem:[%s0 + $0x3d0] sm:$0xff]
  %v137 = vld [vmem:[%s0 + $0x3d8] sm:$0xff]
  %v138 = vld [vmem:[%s0 + $0x3e0] sm:$0xff]
  %v139 = vld [vmem:[%s0 + $0x3e8] sm:$0xff]
  %v140 = vld [vmem:[%s0 + $0x3f0] sm:$0xff]
  %v141 = vld [vmem:[%s0 + $0x3f8] sm:$0xff]
  %v142 = vld [vmem:[%s0 + $0x400] sm:$0xff]
  %v143 = vld [vmem:[%s0 + $0x408] sm:$0xff]
  %v144 = vld [vmem:[%s0 + $0x410] sm:$0xff]
  %v145 = vld [vmem:[%s0 + $0x418] sm:$0xff]
  %v146 = vld [vmem:[%s0 + $0x420] sm:$0xff]
  %v147 = vld [vmem:[%s0 + $0x428] sm:$0xff]
  %v148 = vld [vmem:[%s0 + $0x430] sm:$0xff]
  %v149 = vld [vmem:[%s0 + $0x438] sm:$0xff]
  %v150 = vld [vmem:[%s0 + $0x440] sm:$0xff]
  %v151 = vld [vmem:[%s0 + $0x448] sm:$0xff]
  %v152 = vld [vmem:[%s0 + $0x450] sm:$0xff]
  %v153 = vld [vmem:[%s0 + $0x458] sm:$0xff]
  %v154 = vld [vmem:[%s0 + $0x460] sm:$0xff]
  %v155 = vld [vmem:[%s0 + $0x468] sm:$0xff]
  %v156 = vld [vmem:[%s0 + $0x470] sm:$0xff]
  %v157 = vld [vmem:[%s0 + $0x478] sm:$0xff]
  %v158 = vld [vmem:[%s0 + $0x480] sm:$0xff]
  %v159 = vld [vmem:[%s0 + $0x488] sm:$0xff]
  %v160 = vld [vmem:[%s0 + $0x490] sm:$0xff]
  %v161 = vld [vmem:[%s0 + $0x498] sm:$0xff]
  %v162 = vld [vmem:[%s0 + $0x4a0] sm:$0xff]
  %v163 = vld [vmem:[%s0 + $0x4a8] sm:$0xff]
  %v164 = vld [vmem:[%s0 + $0x4b0] sm:$0xff]
  %v165 = vld [vmem:[%s0 + $0x4b8] sm:$0xff]
  %v166 = vld [vmem:[%s0 + $0x4c0] sm:$0xff]
  %v167 = vld [vmem:[%s0 + $0x4c8] sm:$0xff]
  %v168 = vld [vmem:[%s0 + $0x4d0] sm:$0xff]
  %v169 = vld [vmem:[%s0 + $0x4d8] sm:$0xff]
  %v170 = vld [vmem:[%s0 + $0x4e0] sm:$0xff]
  %v171 = vld [vmem:[%s0 + $0x4e8] sm:$0xff]
  %v172 = vld [vmem:[%s0 + $0x4f0] sm:$0xff]
  %v173 = vld [vmem:[%s0 + $0x4f8] sm:$0xff]
  %v174 = vld [vmem:[%s0 + $0x500] sm:$0xff]
  %v175 = vld [vmem:[%s0 + $0x508] sm:$0xff]
  %v176 = vld [vmem:[%s0 + $0x510] sm:$0xff]
  %v177 = vld [vmem:[%s0 + $0x518] sm:$0xff]
  %v178 = vld [vmem:[%s0 + $0x520] sm:$0xff]
  %v179 = vld [vmem:[%s0 + $0x528] sm:$0xff]
  %v180 = vld [vmem:[%s0 + $0x530] sm:$0xff]
  %v181 = vld [vmem:[%s0 + $0x538] sm:$0xff]
  %v182 = vld [vmem:[%s0 + $0x540] sm:$0xff]
  %v183 = vld [vmem:[%s0 + $0x548] sm:$0xff]
  %v184 = vld [vmem:[%s0 + $0x550] sm:$0xff]
  %v185 = vld [vmem:[%s0 + $0x558] sm:$0xff]
  %v186 = vld [vmem:[%s0 + $0x560] sm:$0xff]
  %v187 = vld [vmem:[%s0 + $0x568] sm:$0xff]
  %v188 = vld [vmem:[%s0 + $0x570] sm:$0xff]
  %v189 = vld [vmem:[%s0 + $0x578] sm:$0xff]
  %v190 = vld [vmem:[%s0 + $0x580] sm:$0xff]
  %v191 = vld [vmem:[%s0 + $0x588] sm:$0xff]
  %v192 = vld [vmem:[%s0 + $0x590] sm:$0xff]
  %v193 = vld [vmem:[%s0 + $0x598] sm:$0xff]
  %v194 = vld [vmem:[%s0 + $0x5a0] sm:$0xff]
  %v195 = vld [vmem:[%s0 + $0x5a8] sm:$0xff]
  %v196 = vld [vmem:[%s0 + $0x5b0] sm:$0xff]
  %v197 = vld [vmem:[%s0 + $0x5b8] sm:$0xff]
  %v198 = vld [vmem:[%s0 + $0x5c0] sm:$0xff]
  %v199 = vld [vmem:[%s0 + $0x5c8] sm:$0xff]
  %v200 = vld [vmem:[%s0 + $0x5d0] sm:$0xff]
  %v201 = vld [vmem:[%s0 + $0x5d8] sm:$0xff]
  %v202 = vld [vmem:[%s0 + $0x5e0] sm:$0xff]
  %v203 = vld [vmem:[%s0 + $0x5e8] sm:$0xff]
  %v204 = vld [vmem:[%s0 + $0x5f0] sm:$0xff]
  %v205 = vld [vmem:[%s0 + $0x5f8] sm:$0xff]
  %v206 = vld [vmem:[%s0 + $0x600] sm:$0xff]
  %v207 = vld [vmem:[%s0 + $0x608] sm:$0xff]
  %v208 = vld [vmem:[%s0 + $0x610] sm:$0xff]
  %v209 = vld [vmem:[%s0 + $0x618] sm:$0xff]
  %v210 = vld [vmem:[%s0 + $0x620] sm:$0xff]
  %v211 = vld [vmem:[%s0 + $0x628] sm:$0xff]
  %v212 = vld [vmem:[%s0 + $0x630] sm:$0xff]
  %v213 = vld [vmem:[%s0 + $0x638] sm:$0xff]
  %v214 = vld [vmem:[%s0 + $0x640] sm:$0xff]
  %v215 = vld [vmem:[%s0 + $0x648] sm:$0xff]
  %v216 = vld [vmem:[%s0 + $0x650] sm:$0xff]
  %v217 = vld [vmem:[%s0 + $0x658] sm:$0xff]
  %v218 = vld [vmem:[%s0 + $0x660] sm:$0xff]
  %v219 = vld [vmem:[%s0 + $0x668] sm:$0xff]
  %v220 = vld [vmem:[%s0 + $0x670] sm:$0xff]
  %v221 = vld [vmem:[%s0 + $0x678] sm:$0xff]
  %v222 = vld [vmem:[%s0 + $0x680] sm:$0xff]
  %v223 = vld [vmem:[%s0 + $0x688] sm:$0xff]
  %v224 = vld [vmem:[%s0 + $0x690] sm:$0xff]
  %v225 = vld [vmem:[%s0 + $0x698] sm:$0xff]
  %v226 = vld [vmem:[%s0 + $0x6a0] sm:$0xff]
  %v227 = vld [vmem:[%s0 + $0x6a8] sm:$0xff]
  %v228 = vld [vmem:[%s0 + $0x6b0] sm:$0xff]
  %v229 = vld [vmem:[%s0 + $0x6b8] sm:$0xff]
  %v230 = vld [vmem:[%s0 + $0x6c0] sm:$0xff]
  %v231 = vld [vmem:[%s0 + $0x6c8] sm:$0xff]
  %v232 = vld [vmem:[%s0 + $0x6d0] sm:$0xff]
  %v233 = vld [vmem:[%s0 + $0x6d8] sm:$0xff]
  %v234 = vld [vmem:[%s0 + $0x6e0] sm:$0xff]
  %v235 = vld [vmem:[%s0 + $0x6e8] sm:$0xff]
  %v236 = vld [vmem:[%s0 + $0x6f0] sm:$0xff]
  %v237 = vld [vmem:[%s0 + $0x6f8] sm:$0xff]
  %v238 = vld [vmem:[%s0 + $0x700] sm:$0xff]
  %v239 = vld [vmem:[%s0 + $0x708] sm:$0xff]
  %v240 = vld [vmem:[%s0 + $0x710] sm:$0xff]
  %v241 = vld [vmem:[%s0 + $0x718] sm:$0xff]
  %v242 = vld [vmem:[%s0 + $0x720] sm:$0xff]
  %v243 = vld [vmem:[%s0 + $0x728] sm:$0xff]
  %v244 = vld [vmem:[%s0 + $0x730] sm:$0xff]
  %v245 = vld [vmem:[%s0 + $0x738] sm:$0xff]
  %v246 = vld [vmem:[%s0 + $0x740] sm:$0xff]
  %v247 = vld [vmem:[%s0 + $0x748] sm:$0xff]
  %v248 = vld [vmem:[%s0 + $0x750] sm:$0xff]
  %v249 = vld [vmem:[%s0 + $0x758] sm:$0xff]
  %v250 = vld [vmem:[%s0 + $0x760] sm:$0xff]
  %v251 = vld [vmem:[%s0 + $0x768] sm:$0xff]
  %v252 = vld [vmem:[%s0 + $0x770] sm:$0xff]
  %v253 = vld [vmem:[%s0 + $0x778] sm:$0xff]
  %v254 = vld [vmem:[%s0 + $0x780] sm:$0xff]
  %v255 = vld [vmem:[%s0 + $0x788] sm:$0xff]
  %v256 = vld [vmem:[%s0 + $0x790] sm:$0xff]
  %v257 = vld [vmem:[%s0 + $0x798] sm:$0xff]
  %v258 = vld [vmem:[%s0 + $0x7a0] sm:$0xff]
  %v259 = vld [vmem:[%s0 + $0x7a8] sm:$0xff]
  %v260 = vld [vmem:[%s0 + $0x7b0] sm:$0xff]
  %v261 = vld [vmem:[%s0 + $0x7b8] sm:$0xff]
  %v262 = vld [vmem:[%s0 + $0x7c0] sm:$0xff]
  %v263 = vld [vmem:[%s0 + $0x7c8] sm:$0xff]
  %v264 = vld [vmem:[%s0 + $0x7d0] sm:$0xff]
  %v265 = vld [vmem:[%s0 + $0x7d8] sm:$0xff]
  %v266 = vld [vmem:[%s0 + $0x7e0] sm:$0xff]
  %v267 = vld [vmem:[%s0 + $0x7e8] sm:$0xff]
  %v268 = vld [vmem:[%s0 + $0x7f0] sm:$0xff]
  %v269 = vld [vmem:[%s0 + $0x7f8] sm:$0xff]
  %v270 = vld [vmem:[%s0 + $0x800] sm:$0xff]
  %v271 = vld [vmem:[%s0 + $0x808] sm:$0xff]
  %v272 = vld [vmem:[%s0 + $0x810] sm:$0xff]
  %v273 = vld [vmem:[%s0 + $0x818] sm:$0xff]
  %v274 = vld [vmem:[%s0 + $0x820] sm:$0xff]
  %v275 = vld [vmem:[%s0 + $0x828] sm:$0xff]
  %v276 = vld [vmem:[%s0 + $0x830] sm:$0xff]
  %v277 = vld [vmem:[%s0 + $0x838] sm:$0xff]
  %v278 = vld [vmem:[%s0 + $0x840] sm:$0xff]
  %v279 = vld [vmem:[%s0 + $0x848] sm:$0xff]
  %v280 = vld [vmem:[%s0 + $0x850] sm:$0xff]
  %v281 = vld [vmem:[%s0 + $0x858] sm:$0xff]
  %v282 = vld [vmem:[%s0 + $0x860] sm:$0xff]
  %v283 = vld [vmem:[%s0 + $0x868] sm:$0xff]
  %v284 = vld [vmem:[%s0 + $0x870] sm:$0xff]
  %v285 = vld [vmem:[%s0 + $0x878] sm:$0xff]
  %v286 = vld [vmem:[%s0 + $0x880] sm:$0xff]
  %v287 = vld [vmem:[%s0 + $0x888] sm:$0xff]
  %v288 = vld [vmem:[%s0 + $0x890] sm:$0xff]
  %v289 = vld [vmem:[%s0 + $0x898] sm:$0xff]
  %v290 = vld [vmem:[%s0 + $0x8a0] sm:$0xff]
  %v291 = vld [vmem:[%s0 + $0x8a8] sm:$0xff]
  %v292 = vld [vmem:[%s0 + $0x8b0] sm:$0xff]
  %v293 = vld [vmem:[%s0 + $0x8b8] sm:$0xff]
  %v294 = vld [vmem:[%s0 + $0x8c0] sm:$0xff]
  %v295 = vld [vmem:[%s0 + $0x8c8] sm:$0xff]
  %v296 = vld [vmem:[%s0 + $0x8d0] sm:$0xff]
  %v297 = vld [vmem:[%s0 + $0x8d8] sm:$0xff]
  %v298 = vld [vmem:[%s0 + $0x8e0] sm:$0xff]
  %v299 = vld [vmem:[%s0 + $0x8e8] sm:$0xff]
  %v300 = vld [vmem:[%s0 + $0x8f0] sm:$0xff]
  %v301 = vld [vmem:[%s0 + $0x8f8] sm:$0xff]
  %v302 = vld [vmem:[%s0 + $0x900] sm:$0xff]
  %v303 = vld [vmem:[%s0 + $0x908] sm:$0xff]
  %v304 = vld [vmem:[%s0 + $0x910] sm:$0xff]
  %v305 = vld [vmem:[%s0 + $0x918] sm:$0xff]
  %v306 = vld [vmem:[%s0 + $0x920] sm:$0xff]
  %v307 = vld [vmem:[%s0 + $0x928] sm:$0xff]
  %v308 = vld [vmem:[%s0 + $0x930] sm:$0xff]
  %v309 = vld [vmem:[%s0 + $0x938] sm:$0xff]
  %v310 = vld [vmem:[%s0 + $0x940] sm:$0xff]
  %v311 = vld [vmem:[%s0 + $0x948] sm:$0xff]
  %v312 = vld [vmem:[%s0 + $0x950] sm:$0xff]
  %v313 = vld [vmem:[%s0 + $0x958] sm:$0xff]
  %v314 = vld [vmem:[%s0 + $0x960] sm:$0xff]
  %v315 = vld [vmem:[%s0 + $0x968] sm:$0xff]
  %v316 = vld [vmem:[%s0 + $0x970] sm:$0xff]
  %v317 = vld [vmem:[%s0 + $0x978] sm:$0xff]
  %v318 = vld [vmem:[%s0 + $0x980] sm:$0xff]
  %v319 = vld [vmem:[%s0 + $0x988] sm:$0xff]
  %v320 = vld [vmem:[%s0 + $0x990] sm:$0xff]
  %v321 = vld [vmem:[%s0 + $0x998] sm:$0xff]
  %v322 = vld [vmem:[%s0 + $0x9a0] sm:$0xff]
  %v323 = vld [vmem:[%s0 + $0x9a8] sm:$0xff]
  %v324 = vld [vmem:[%s0 + $0x9b0] sm:$0xff]
  %v325 = vld [vmem:[%s0 + $0x9b8] sm:$0xff]
  %v326 = vld [vmem:[%s0 + $0x9c0] sm:$0xff]
  %v327 = vld [vmem:[%s0 + $0x9c8] sm:$0xff]
  %v328 = vld [vmem:[%s0 + $0x9d0] sm:$0xff]
  %v329 = vld [vmem:[%s0 + $0x9d8] sm:$0xff]
  %v330 = vld [vmem:[%s0 + $0x9e0] sm:$0xff]
  %v331 = vld [vmem:[%s0 + $0x9e8] sm:$0xff]
  %v332 = vld [vmem:[%s0 + $0x9f0] sm:$0xff]
  %v333 = vld [vmem:[%s0 + $0x9f8] sm:$0xff]
  %v334 = vld [vmem:[%s0 + $0xa00] sm:$0xff]
  %v335 = vld [vmem:[%s0 + $0xa08] sm:$0xff]
  %v336 = vld [vmem:[%s0 + $0xa10] sm:$0xff]
  %v337 = vld [vmem:[%s0 + $0xa18] sm:$0xff]
  %v338 = vld [vmem:[%s0 + $0xa20] sm:$0xff]
  %v339 = vld [vmem:[%s0 + $0xa28] sm:$0xff]
  %v340 = vld [vmem:[%s0 + $0xa30] sm:$0xff]
  %v341 = vld [vmem:[%s0 + $0xa38] sm:$0xff]
  %v342 = vld [vmem:[%s0 + $0xa40] sm:$0xff]
  %v343 = vld [vmem:[%s0 + $0xa48] sm:$0xff]
  %v344 = vld [vmem:[%s0 + $0xa50] sm:$0xff]
  %v345 = vld [vmem:[%s0 + $0xa58] sm:$0xff]
  %v346 = vld [vmem:[%s0 + $0xa60] sm:$0xff]
  %v347 = vld [vmem:[%s0 + $0xa68] sm:$0xff]
  %v348 = vld [vmem:[%s0 + $0xa70] sm:$0xff]
  %v349 = vld [vmem:[%s0 + $0xa78] sm:$0xff]
  %v350 = vld [vmem:[%s0 + $0xa80] sm:$0xff]
  %v351 = vld [vmem:[%s0 + $0xa88] sm:$0xff]
  %v352 = vld [vmem:[%s0 + $0xa90] sm:$0xff]
  %v353 = vld [vmem:[%s0 + $0xa98] sm:$0xff]
  %v354 = vld [vmem:[%s0 + $0xaa0] sm:$0xff]
  %v355 = vld [vmem:[%s0 + $0xaa8] sm:$0xff]
  %v356 = vld [vmem:[%s0 + $0xab0] sm:$0xff]
  %v357 = vld [vmem:[%s0 + $0xab8] sm:$0xff]
  %v358 = vld [vmem:[%s0 + $0xac0] sm:$0xff]
  %v359 = vld [vmem:[%s0 + $0xac8] sm:$0xff]
  %v360 = vld [vmem:[%s0 + $0xad0] sm:$0xff]
  %v361 = vld [vmem:[%s0 + $0xad8] sm:$0xff]
  %v362 = vld [vmem:[%s0 + $0xae0] sm:$0xff]
  %v363 = vld [vmem:[%s0 + $0xae8] sm:$0xff]
  %v364 = vld [vmem:[%s0 + $0xaf0] sm:$0xff]
  %v365 = vld [vmem:[%s0 + $0xaf8] sm:$0xff]
  %v366 = vld [vmem:[%s0 + $0xb00] sm:$0xff]
  %v367 = vld [vmem:[%s0 + $0xb08] sm:$0xff]
  %v368 = vld [vmem:[%s0 + $0xb10] sm:$0xff]
  %v369 = vld [vmem:[%s0 + $0xb18] sm:$0xff]
  %v370 = vld [vmem:[%s0 + $0xb20] sm:$0xff]
  %v371 = vld [vmem:[%s0 + $0xb28] sm:$0xff]
  %v372 = vld [vmem:[%s0 + $0xb30] sm:$0xff]
  %v373 = vld [vmem:[%s0 + $0xb38] sm:$0xff]
  %v374 = vld [vmem:[%s0 + $0xb40] sm:$0xff]
  %v375 = vld [vmem:[%s1] sm:$0xff]
  %v376 = vld [vmem:[%s1 + $0x8] sm:$0xff]
  %v377 = vld [vmem:[%s1 + $0x10] sm:$0xff]
  %v378 = vld [vmem:[%s1 + $0x18] sm:$0xff]
  %v379 = vld [vmem:[%s1 + $0x20] sm:$0xf]
  %v380 = vld [vmem:[%s2] sm:$0x1]
  %v382 = vlaneseq
  %v383 = vshrl.u32 %v382, 7
  %v384 = vsub.s32 0, %v383
  %v385 = vrot.slane %v380, %v384
  %vm387 = vcmask 293888
  %v389 = vsel %vm387, %v14, 0
  %v392 = vsel %vm387, %v15, 0
  %v395 = vsel %vm387, %v16, 0
  %v398 = vsel %vm387, %v17, 0
  %v401 = vsel %vm387, %v18, 0
  %v404 = vsel %vm387, %v19, 0
  %v407 = vsel %vm387, %v20, 0
  %v410 = vsel %vm387, %v21, 0
  %v413 = vsel %vm387, %v22, 0
  %v416 = vsel %vm387, %v23, 0
  %v419 = vsel %vm387, %v24, 0
  %v422 = vsel %vm387, %v25, 0
  %v425 = vsel %vm387, %v26, 0
  %v428 = vsel %vm387, %v27, 0
  %v431 = vsel %vm387, %v28, 0
  %v434 = vsel %vm387, %v29, 0
  %v437 = vsel %vm387, %v30, 0
  %v440 = vsel %vm387, %v31, 0
  %v443 = vsel %vm387, %v32, 0
  %v446 = vsel %vm387, %v33, 0
  %v449 = vsel %vm387, %v34, 0
  %v452 = vsel %vm387, %v35, 0
  %v455 = vsel %vm387, %v36, 0
  %v458 = vsel %vm387, %v37, 0
  %v461 = vsel %vm387, %v38, 0
  %v464 = vsel %vm387, %v39, 0
  %v467 = vsel %vm387, %v40, 0
  %v470 = vsel %vm387, %v41, 0
  %v473 = vsel %vm387, %v42, 0
  %v476 = vsel %vm387, %v43, 0
  %v479 = vsel %vm387, %v44, 0
  %v482 = vsel %vm387, %v45, 0
  %v485 = vsel %vm387, %v46, 0
  %v488 = vsel %vm387, %v47, 0
  %v491 = vsel %vm387, %v48, 0
  %v494 = vsel %vm387, %v49, 0
  %v497 = vsel %vm387, %v50, 0
  %v500 = vsel %vm387, %v51, 0
  %v503 = vsel %vm387, %v52, 0
  %v506 = vsel %vm387, %v53, 0
  %v509 = vsel %vm387, %v54, 0
  %v512 = vsel %vm387, %v55, 0
  %v515 = vsel %vm387, %v56, 0
  %v518 = vsel %vm387, %v57, 0
  %v521 = vsel %vm387, %v58, 0
  %v524 = vsel %vm387, %v59, 0
  %v527 = vsel %vm387, %v60, 0
  %v530 = vsel %vm387, %v61, 0
  %v533 = vsel %vm387, %v62, 0
  %v536 = vsel %vm387, %v63, 0
  %v539 = vsel %vm387, %v64, 0
  %v542 = vsel %vm387, %v65, 0
  %v545 = vsel %vm387, %v66, 0
  %v548 = vsel %vm387, %v67, 0
  %v551 = vsel %vm387, %v68, 0
  %v554 = vsel %vm387, %v69, 0
  %v557 = vsel %vm387, %v70, 0
  %v560 = vsel %vm387, %v71, 0
  %v563 = vsel %vm387, %v72, 0
  %v566 = vsel %vm387, %v73, 0
  %v569 = vsel %vm387, %v74, 0
  %v572 = vsel %vm387, %v75, 0
  %v575 = vsel %vm387, %v76, 0
  %v578 = vsel %vm387, %v77, 0
  %v581 = vsel %vm387, %v78, 0
  %v584 = vsel %vm387, %v79, 0
  %v587 = vsel %vm387, %v80, 0
  %v590 = vsel %vm387, %v81, 0
  %v593 = vsel %vm387, %v82, 0
  %v596 = vsel %vm387, %v83, 0
  %v599 = vsel %vm387, %v84, 0
  %v602 = vsel %vm387, %v85, 0
  %v605 = vsel %vm387, %v86, 0
  %v608 = vsel %vm387, %v87, 0
  %v611 = vsel %vm387, %v88, 0
  %v614 = vsel %vm387, %v89, 0
  %v617 = vsel %vm387, %v90, 0
  %v620 = vsel %vm387, %v91, 0
  %v623 = vsel %vm387, %v92, 0
  %v626 = vsel %vm387, %v93, 0
  %v629 = vsel %vm387, %v94, 0
  %v632 = vsel %vm387, %v95, 0
  %v635 = vsel %vm387, %v96, 0
  %v638 = vsel %vm387, %v97, 0
  %v641 = vsel %vm387, %v98, 0
  %v644 = vsel %vm387, %v99, 0
  %v647 = vsel %vm387, %v100, 0
  %v650 = vsel %vm387, %v101, 0
  %v653 = vsel %vm387, %v102, 0
  %v656 = vsel %vm387, %v103, 0
  %v659 = vsel %vm387, %v104, 0
  %v662 = vsel %vm387, %v105, 0
  %v665 = vsel %vm387, %v106, 0
  %v668 = vsel %vm387, %v107, 0
  %v671 = vsel %vm387, %v108, 0
  %v674 = vsel %vm387, %v109, 0
  %v677 = vsel %vm387, %v110, 0
  %v680 = vsel %vm387, %v111, 0
  %v683 = vsel %vm387, %v112, 0
  %v686 = vsel %vm387, %v113, 0
  %v689 = vsel %vm387, %v114, 0
  %v692 = vsel %vm387, %v115, 0
  %v695 = vsel %vm387, %v116, 0
  %v698 = vsel %vm387, %v117, 0
  %v701 = vsel %vm387, %v118, 0
  %v704 = vsel %vm387, %v119, 0
  %v707 = vsel %vm387, %v120, 0
  %v710 = vsel %vm387, %v121, 0
  %v713 = vsel %vm387, %v122, 0
  %v716 = vsel %vm387, %v123, 0
  %v719 = vsel %vm387, %v124, 0
  %v722 = vsel %vm387, %v125, 0
  %v725 = vsel %vm387, %v126, 0
  %v728 = vsel %vm387, %v127, 0
  %v731 = vsel %vm387, %v128, 0
  %v734 = vsel %vm387, %v129, 0
  %v737 = vsel %vm387, %v130, 0
  %v740 = vsel %vm387, %v131, 0
  %v743 = vsel %vm387, %v132, 0
  %v746 = vsel %vm387, %v133, 0
  %v749 = vsel %vm387, %v134, 0
  %v752 = vsel %vm387, %v135, 0
  %v755 = vsel %vm387, %v136, 0
  %v758 = vsel %vm387, %v137, 0
  %v761 = vsel %vm387, %v138, 0
  %v764 = vsel %vm387, %v139, 0
  %v767 = vsel %vm387, %v140, 0
  %v770 = vsel %vm387, %v141, 0
  %v773 = vsel %vm387, %v142, 0
  %v776 = vsel %vm387, %v143, 0
  %v779 = vsel %vm387, %v144, 0
  %v782 = vsel %vm387, %v145, 0
  %v785 = vsel %vm387, %v146, 0
  %v788 = vsel %vm387, %v147, 0
  %v791 = vsel %vm387, %v148, 0
  %v794 = vsel %vm387, %v149, 0
  %v797 = vsel %vm387, %v150, 0
  %v800 = vsel %vm387, %v151, 0
  %v803 = vsel %vm387, %v152, 0
  %v806 = vsel %vm387, %v153, 0
  %v809 = vsel %vm387, %v154, 0
  %v812 = vsel %vm387, %v155, 0
  %v815 = vsel %vm387, %v156, 0
  %v818 = vsel %vm387, %v157, 0
  %v821 = vsel %vm387, %v158, 0
  %v824 = vsel %vm387, %v159, 0
  %v827 = vsel %vm387, %v160, 0
  %v830 = vsel %vm387, %v161, 0
  %v833 = vsel %vm387, %v162, 0
  %v836 = vsel %vm387, %v163, 0
  %v839 = vsel %vm387, %v164, 0
  %v842 = vsel %vm387, %v165, 0
  %v845 = vsel %vm387, %v166, 0
  %v848 = vsel %vm387, %v167, 0
  %v851 = vsel %vm387, %v168, 0
  %v854 = vsel %vm387, %v169, 0
  %v857 = vsel %vm387, %v170, 0
  %v860 = vsel %vm387, %v171, 0
  %v863 = vsel %vm387, %v172, 0
  %v866 = vsel %vm387, %v173, 0
  %v869 = vsel %vm387, %v174, 0
  %v872 = vsel %vm387, %v175, 0
  %v875 = vsel %vm387, %v176, 0
  %v878 = vsel %vm387, %v177, 0
  %v881 = vsel %vm387, %v178, 0
  %v884 = vsel %vm387, %v179, 0
  %v887 = vsel %vm387, %v180, 0
  %v890 = vsel %vm387, %v181, 0
  %v893 = vsel %vm387, %v182, 0
  %v896 = vsel %vm387, %v183, 0
  %v899 = vsel %vm387, %v184, 0
  %v902 = vsel %vm387, %v185, 0
  %v905 = vsel %vm387, %v186, 0
  %v908 = vsel %vm387, %v187, 0
  %v911 = vsel %vm387, %v188, 0
  %v914 = vsel %vm387, %v189, 0
  %v917 = vsel %vm387, %v190, 0
  %v920 = vsel %vm387, %v191, 0
  %v923 = vsel %vm387, %v192, 0
  %v926 = vsel %vm387, %v193, 0
  %v929 = vsel %vm387, %v194, 0
  %v932 = vsel %vm387, %v195, 0
  %v935 = vsel %vm387, %v196, 0
  %v938 = vsel %vm387, %v197, 0
  %v941 = vsel %vm387, %v198, 0
  %v944 = vsel %vm387, %v199, 0
  %v947 = vsel %vm387, %v200, 0
  %v950 = vsel %vm387, %v201, 0
  %v953 = vsel %vm387, %v202, 0
  %v956 = vsel %vm387, %v203, 0
  %v959 = vsel %vm387, %v204, 0
  %v962 = vsel %vm387, %v205, 0
  %v965 = vsel %vm387, %v206, 0
  %v968 = vsel %vm387, %v207, 0
  %v971 = vsel %vm387, %v208, 0
  %v974 = vsel %vm387, %v209, 0
  %v977 = vsel %vm387, %v210, 0
  %v980 = vsel %vm387, %v211, 0
  %v983 = vsel %vm387, %v212, 0
  %v986 = vsel %vm387, %v213, 0
  %v989 = vsel %vm387, %v214, 0
  %v992 = vsel %vm387, %v215, 0
  %v995 = vsel %vm387, %v216, 0
  %v998 = vsel %vm387, %v217, 0
  %v1001 = vsel %vm387, %v218, 0
  %v1004 = vsel %vm387, %v219, 0
  %v1007 = vsel %vm387, %v220, 0
  %v1010 = vsel %vm387, %v221, 0
  %v1013 = vsel %vm387, %v222, 0
  %v1016 = vsel %vm387, %v223, 0
  %v1019 = vsel %vm387, %v224, 0
  %v1022 = vsel %vm387, %v225, 0
  %v1025 = vsel %vm387, %v226, 0
  %v1028 = vsel %vm387, %v227, 0
  %v1031 = vsel %vm387, %v228, 0
  %v1034 = vsel %vm387, %v229, 0
  %v1037 = vsel %vm387, %v230, 0
  %v1040 = vsel %vm387, %v231, 0
  %v1043 = vsel %vm387, %v232, 0
  %v1046 = vsel %vm387, %v233, 0
  %v1049 = vsel %vm387, %v234, 0
  %v1052 = vsel %vm387, %v235, 0
  %v1055 = vsel %vm387, %v236, 0
  %v1058 = vsel %vm387, %v237, 0
  %v1061 = vsel %vm387, %v238, 0
  %v1064 = vsel %vm387, %v239, 0
  %v1067 = vsel %vm387, %v240, 0
  %v1070 = vsel %vm387, %v241, 0
  %v1073 = vsel %vm387, %v242, 0
  %v1076 = vsel %vm387, %v243, 0
  %v1079 = vsel %vm387, %v244, 0
  %v1082 = vsel %vm387, %v245, 0
  %v1085 = vsel %vm387, %v246, 0
  %v1088 = vsel %vm387, %v247, 0
  %v1091 = vsel %vm387, %v248, 0
  %v1094 = vsel %vm387, %v249, 0
  %v1097 = vsel %vm387, %v250, 0
  %v1100 = vsel %vm387, %v251, 0
  %v1103 = vsel %vm387, %v252, 0
  %v1106 = vsel %vm387, %v253, 0
  %v1109 = vsel %vm387, %v254, 0
  %v1112 = vsel %vm387, %v255, 0
  %v1115 = vsel %vm387, %v256, 0
  %v1118 = vsel %vm387, %v257, 0
  %v1121 = vsel %vm387, %v258, 0
  %v1124 = vsel %vm387, %v259, 0
  %v1127 = vsel %vm387, %v260, 0
  %v1130 = vsel %vm387, %v261, 0
  %v1133 = vsel %vm387, %v262, 0
  %v1136 = vsel %vm387, %v263, 0
  %v1139 = vsel %vm387, %v264, 0
  %v1142 = vsel %vm387, %v265, 0
  %v1145 = vsel %vm387, %v266, 0
  %v1148 = vsel %vm387, %v267, 0
  %v1151 = vsel %vm387, %v268, 0
  %v1154 = vsel %vm387, %v269, 0
  %v1157 = vsel %vm387, %v270, 0
  %v1160 = vsel %vm387, %v271, 0
  %v1163 = vsel %vm387, %v272, 0
  %v1166 = vsel %vm387, %v273, 0
  %v1169 = vsel %vm387, %v274, 0
  %v1172 = vsel %vm387, %v275, 0
  %v1175 = vsel %vm387, %v276, 0
  %v1178 = vsel %vm387, %v277, 0
  %v1181 = vsel %vm387, %v278, 0
  %v1184 = vsel %vm387, %v279, 0
  %v1187 = vsel %vm387, %v280, 0
  %v1190 = vsel %vm387, %v281, 0
  %v1193 = vsel %vm387, %v282, 0
  %v1196 = vsel %vm387, %v283, 0
  %v1199 = vsel %vm387, %v284, 0
  %v1202 = vsel %vm387, %v285, 0
  %v1205 = vsel %vm387, %v286, 0
  %v1208 = vsel %vm387, %v287, 0
  %v1211 = vsel %vm387, %v288, 0
  %v1214 = vsel %vm387, %v289, 0
  %v1217 = vsel %vm387, %v290, 0
  %v1220 = vsel %vm387, %v291, 0
  %v1223 = vsel %vm387, %v292, 0
  %v1226 = vsel %vm387, %v293, 0
  %v1229 = vsel %vm387, %v294, 0
  %v1232 = vsel %vm387, %v295, 0
  %v1235 = vsel %vm387, %v296, 0
  %v1238 = vsel %vm387, %v297, 0
  %v1241 = vsel %vm387, %v298, 0
  %v1244 = vsel %vm387, %v299, 0
  %v1247 = vsel %vm387, %v300, 0
  %v1250 = vsel %vm387, %v301, 0
  %v1253 = vsel %vm387, %v302, 0
  %v1256 = vsel %vm387, %v303, 0
  %v1259 = vsel %vm387, %v304, 0
  %v1262 = vsel %vm387, %v305, 0
  %v1265 = vsel %vm387, %v306, 0
  %v1268 = vsel %vm387, %v307, 0
  %v1271 = vsel %vm387, %v308, 0
  %v1274 = vsel %vm387, %v309, 0
  %v1277 = vsel %vm387, %v310, 0
  %v1280 = vsel %vm387, %v311, 0
  %v1283 = vsel %vm387, %v312, 0
  %v1286 = vsel %vm387, %v313, 0
  %v1289 = vsel %vm387, %v314, 0
  %v1292 = vsel %vm387, %v315, 0
  %v1295 = vsel %vm387, %v316, 0
  %v1298 = vsel %vm387, %v317, 0
  %v1301 = vsel %vm387, %v318, 0
  %v1304 = vsel %vm387, %v319, 0
  %v1307 = vsel %vm387, %v320, 0
  %v1310 = vsel %vm387, %v321, 0
  %v1313 = vsel %vm387, %v322, 0
  %v1316 = vsel %vm387, %v323, 0
  %v1319 = vsel %vm387, %v324, 0
  %v1322 = vsel %vm387, %v325, 0
  %v1325 = vsel %vm387, %v326, 0
  %v1328 = vsel %vm387, %v327, 0
  %v1331 = vsel %vm387, %v328, 0
  %v1334 = vsel %vm387, %v329, 0
  %v1337 = vsel %vm387, %v330, 0
  %v1340 = vsel %vm387, %v331, 0
  %v1343 = vsel %vm387, %v332, 0
  %v1346 = vsel %vm387, %v333, 0
  %v1349 = vsel %vm387, %v334, 0
  %v1352 = vsel %vm387, %v335, 0
  %v1355 = vsel %vm387, %v336, 0
  %v1358 = vsel %vm387, %v337, 0
  %v1361 = vsel %vm387, %v338, 0
  %v1364 = vsel %vm387, %v339, 0
  %v1367 = vsel %vm387, %v340, 0
  %v1370 = vsel %vm387, %v341, 0
  %v1373 = vsel %vm387, %v342, 0
  %v1376 = vsel %vm387, %v343, 0
  %v1379 = vsel %vm387, %v344, 0
  %v1382 = vsel %vm387, %v345, 0
  %v1385 = vsel %vm387, %v346, 0
  %v1388 = vsel %vm387, %v347, 0
  %v1391 = vsel %vm387, %v348, 0
  %v1394 = vsel %vm387, %v349, 0
  %v1397 = vsel %vm387, %v350, 0
  %v1400 = vsel %vm387, %v351, 0
  %v1403 = vsel %vm387, %v352, 0
  %v1406 = vsel %vm387, %v353, 0
  %v1409 = vsel %vm387, %v354, 0
  %v1412 = vsel %vm387, %v355, 0
  %v1415 = vsel %vm387, %v356, 0
  %v1418 = vsel %vm387, %v357, 0
  %v1421 = vsel %vm387, %v358, 0
  %v1424 = vsel %vm387, %v359, 0
  %v1427 = vsel %vm387, %v360, 0
  %v1430 = vsel %vm387, %v361, 0
  %v1433 = vsel %vm387, %v362, 0
  %v1436 = vsel %vm387, %v363, 0
  %v1439 = vsel %vm387, %v364, 0
  %v1442 = vsel %vm387, %v365, 0
  %v1445 = vsel %vm387, %v366, 0
  %v1448 = vsel %vm387, %v367, 0
  %v1451 = vsel %vm387, %v368, 0
  %v1454 = vsel %vm387, %v369, 0
  %v1457 = vsel %vm387, %v370, 0
  %v1460 = vsel %vm387, %v371, 0
  %v1463 = vsel %vm387, %v372, 0
  %v1466 = vsel %vm387, %v373, 0
  %v1469 = vsel %vm387, %v374, 0
  %vm1471 = vcmask 1043456
  %v1473 = vsel %vm1471, %v379, 0
  %1475 = vmatprep.subr.mxu0 0.0
  %1476 = vmatpush1.msra.mxu0 %v375
  %1477 = vmatprep.subr.mxu0 0.0
  %1478 = vmatpush1.msra.mxu0 %v376
  %1479 = vmatprep.subr.mxu0 0.0
  %1480 = vmatpush1.msra.mxu0 %v377
  %1481 = vmatprep.subr.mxu0 0.0
  %1482 = vmatpush1.msra.mxu0 %v378
  %1483 = vmatprep.subr.mxu0 0.0
  %1484 = vmatpush1.msra.mxu0 %v1473
  %1485 = vmatprep.subr.mxu0 0.0
  %1486 = vmatpush1.msra.mxu0 0.0
  %1487 = vmatprep.subr.mxu0 0.0
  %1488 = vmatpush1.msra.mxu0 0.0
  %1489 = vmatprep.subr.mxu0 0.0
  %1490 = vmatpush1.msra.mxu0 0.0
  %1491 = vmatprep.subr.mxu0 0.0
  %1492 = vmatpush1.msra.mxu0 0.0
  %1493 = vmatprep.subr.mxu0 0.0
  %1494 = vmatpush1.msra.mxu0 0.0
  %1495 = vmatprep.subr.mxu0 0.0
  %1496 = vmatpush1.msra.mxu0 0.0
  %1497 = vmatprep.subr.mxu0 0.0
  %1498 = vmatpush1.msra.mxu0 0.0
  %1499 = vmatprep.subr.mxu0 0.0
  %1500 = vmatpush1.msra.mxu0 0.0
  %1501 = vmatprep.subr.mxu0 0.0
  %1502 = vmatpush1.msra.mxu0 0.0
  %1503 = vmatprep.subr.mxu0 0.0
  %1504 = vmatpush1.msra.mxu0 0.0
  %1505 = vmatprep.subr.mxu0 0.0
  %1506 = vmatpush1.msra.mxu0 0.0
  %1507 = vmatprep.subr.mxu0 0.0
  %1508 = vmatpush1.msra.mxu0 0.0
  %1509 = vmatprep.subr.mxu0 0.0
  %1510 = vmatpush1.msra.mxu0 0.0
  %1511 = vmatprep.subr.mxu0 0.0
  %1512 = vmatpush1.msra.mxu0 0.0
  %1513 = vmatprep.subr.mxu0 0.0
  %1514 = vmatpush1.msra.mxu0 0.0
  %1515 = vmatprep.subr.mxu0 0.0
  %1516 = vmatpush1.msra.mxu0 0.0
  %1517 = vmatprep.subr.mxu0 0.0
  %1518 = vmatpush1.msra.mxu0 0.0
  %1519 = vmatprep.subr.mxu0 0.0
  %1520 = vmatpush1.msra.mxu0 0.0
  %1521 = vmatprep.subr.mxu0 0.0
  %1522 = vmatpush1.msra.mxu0 0.0
  %1523 = vmatprep.subr.mxu0 0.0
  %1524 = vmatpush1.msra.mxu0 0.0
  %1525 = vmatprep.subr.mxu0 0.0
  %1526 = vmatpush1.msra.mxu0 0.0
  %1527 = vmatprep.subr.mxu0 0.0
  %1528 = vmatpush1.msra.mxu0 0.0
  %1529 = vmatprep.subr.mxu0 0.0
  %1530 = vmatpush1.msra.mxu0 0.0
  %1531 = vmatprep.subr.mxu0 0.0
  %1532 = vmatpush1.msra.mxu0 0.0
  %1533 = vmatprep.subr.mxu0 0.0
  %1534 = vmatpush1.msra.mxu0 0.0
  %1535 = vmatprep.subr.mxu0 0.0
  %1536 = vmatpush1.msra.mxu0 0.0
  %1537 = vmatprep.subr.mxu0 0.0
  %1538 = vmatpush1.msra.mxu0 0.0
  %1539 = vmatprep.mubr.f32.mxu0 0.0
  %1540 = vmatmul.mubr.f32.gmra.mrb[0].mxu0 %v389
  %v1541 = vpop.f32.mrb[0].mxu0
  %v1542 = vadd.f32 %v385, %v1541
  %v1543 = vpop.f32.mrb[0].mxu0
  %1544 = vmatprep.mubr.f32.mxu0 0.0
  %1545 = vmatmul.mubr.f32.gmra.mrb[0].mxu0 %v392
  %v1546 = vpop.f32.mrb[0].mxu0
  %v1547 = vadd.f32 %v385, %v1546
  %v1548 = vpop.f32.mrb[0].mxu0
  %1549 = vmatprep.mubr.f32.mxu0 0.0
  %1550 = vmatmul.mubr.f32.gmra.mrb[0].mxu0 %v395
  %v1551 = vpop.f32.mrb[0].mxu0
  %v1552 = vadd.f32 %v385, %v1551
  %v1553 = vpop.f32.mrb[0].mxu0
  %1554 = vmatprep.mubr.f32.mxu0 0.0
  %1555 = vmatmul.mubr.f32.gmra.mrb[0].mxu0 %v398
  %v1556 = vpop.f32.mrb[0].mxu0
  %v1557 = vadd.f32 %v385, %v1556
  %v1558 = vpop.f32.mrb[0].mxu0
  %1559 = vmatprep.mubr.f32.mxu0 0.0
  %1560 = vmatmul.mubr.f32.gmra.mrb[0].mxu0 %v401
  %v1561 = vpop.f32.mrb[0].mxu0
  %v1562 = vadd.f32 %v385, %v1561
  %v1563 = vpop.f32.mrb[0].mxu0
  %1564 = vmatprep.mubr.f32.mxu0 0.0
  %1565 = vmatmul.mubr.f32.gmra.mrb[0].mxu0 %v404
  %v1566 = vpop.f32.mrb[0].mxu0
  %v1567 = vadd.f32 %v385, %v1566
  %v1568 = vpop.f32.mrb[0].mxu0
  %1569 = vmatprep.mubr.f32.mxu0 0.0
  %1570 = vmatmul.mubr.f32.gmra.mrb[0].mxu0 %v407
  %v1571 = vpop.f32.mrb[0].mxu0
  %v1572 = vadd.f32 %v385, %v1571
  %v1573 = vpop.f32.mrb[0].mxu0
  %1574 = vmatprep.mubr.f32.mxu0 0.0
  %1575 = vmatmul.mubr.f32.gmra.mrb[0].mxu0 %v410
  %v1576 = vpop.f32.mrb[0].mxu0
  %v1577 = vadd.f32 %v385, %v1576
  %v1578 = vpop.f32.mrb[0].mxu0
  %1579 = vmatprep.mubr.f32.mxu0 0.0
  %1580 = vmatmul.mubr.f32.gmra.mrb[0].mxu0 %v413
  %v1581 = vpop.f32.mrb[0].mxu0
  %v1582 = vadd.f32 %v385, %v1581
  %v1583 = vpop.f32.mrb[0].mxu0
  %1584 = vmatprep.mubr.f32.mxu0 0.0
  %1585 = vmatmul.mubr.f32.gmra.mrb[0].mxu0 %v416
  %v1586 = vpop.f32.mrb[0].mxu0
  %v1587 = vadd.f32 %v385, %v1586
  %v1588 = vpop.f32.mrb[0].mxu0
  %1589 = vmatprep.mubr.f32.mxu0 0.0
  %1590 = vmatmul.mubr.f32.gmra.mrb[0].mxu0 %v419
  %v1591 = vpop.f32.mrb[0].mxu0
  %v1592 = vadd.f32 %v385, %v1591
  %v1593 = vpop.f32.mrb[0].mxu0
  %1594 = vmatprep.mubr.f32.mxu0 0.0
  %1595 = vmatmul.mubr.f32.gmra.mrb[0].mxu0 %v422
  %v1596 = vpop.f32.mrb[0].mxu0
  %v1597 = vadd.f32 %v385, %v1596
  %v1598 = vpop.f32.mrb[0].mxu0
  %1599 = vmatprep.mubr.f32.mxu0 0.0
  %1600 = vmatmul.mubr.f32.gmra.mrb[0].mxu0 %v425
  %v1601 = vpop.f32.mrb[0].mxu0
  %v1602 = vadd.f32 %v385, %v1601
  %v1603 = vpop.f32.mrb[0].mxu0
  %1604 = vmatprep.mubr.f32.mxu0 0.0
  %1605 = vmatmul.mubr.f32.gmra.mrb[0].mxu0 %v428
  %v1606 = vpop.f32.mrb[0].mxu0
  %v1607 = vadd.f32 %v385, %v1606
  %v1608 = vpop.f32.mrb[0].mxu0
  %1609 = vmatprep.mubr.f32.mxu0 0.0
  %1610 = vmatmul.mubr.f32.gmra.mrb[0].mxu0 %v431
  %v1611 = vpop.f32.mrb[0].mxu0
  %v1612 = vadd.f32 %v385, %v1611
  %v1613 = vpop.f32.mrb[0].mxu0
  %1614 = vmatprep.mubr.f32.mxu0 0.0
  %1615 = vmatmul.mubr.f32.gmra.mrb[0].mxu0 %v434
  %v1616 = vpop.f32.mrb[0].mxu0
  %v1617 = vadd.f32 %v385, %v1616
  %v1618 = vpop.f32.mrb[0].mxu0
  %1619 = vmatprep.mubr.f32.mxu0 0.0
  %1620 = vmatmul.mubr.f32.gmra.mrb[0].mxu0 %v437
  %v1621 = vpop.f32.mrb[0].mxu0
  %v1622 = vadd.f32 %v385, %v1621
  %v1623 = vpop.f32.mrb[0].mxu0
  %1624 = vmatprep.mubr.f32.mxu0 0.0
  %1625 = vmatmul.mubr.f32.gmra.mrb[0].mxu0 %v440
  %v1626 = vpop.f32.mrb[0].mxu0
  %v1627 = vadd.f32 %v385, %v1626
  %v1628 = vpop.f32.mrb[0].mxu0
  %1629 = vmatprep.mubr.f32.mxu0 0.0
  %1630 = vmatmul.mubr.f32.gmra.mrb[0].mxu0 %v443
  %v1631 = vpop.f32.mrb[0].mxu0
  %v1632 = vadd.f32 %v385, %v1631
  %v1633 = vpop.f32.mrb[0].mxu0
  %1634 = vmatprep.mubr.f32.mxu0 0.0
  %1635 = vmatmul.mubr.f32.gmra.mrb[0].mxu0 %v446
  %v1636 = vpop.f32.mrb[0].mxu0
  %v1637 = vadd.f32 %v385, %v1636
  %v1638 = vpop.f32.mrb[0].mxu0
  %1639 = vmatprep.mubr.f32.mxu0 0.0
  %1640 = vmatmul.mubr.f32.gmra.mrb[0].mxu0 %v449
  %v1641 = vpop.f32.mrb[0].mxu0
  %v1642 = vadd.f32 %v385, %v1641
  %v1643 = vpop.f32.mrb[0].mxu0
  %1644 = vmatprep.mubr.f32.mxu0 0.0
  %1645 = vmatmul.mubr.f32.gmra.mrb[0].mxu0 %v452
  %v1646 = vpop.f32.mrb[0].mxu0
  %v1647 = vadd.f32 %v385, %v1646
  %v1648 = vpop.f32.mrb[0].mxu0
  %1649 = vmatprep.mubr.f32.mxu0 0.0
  %1650 = vmatmul.mubr.f32.gmra.mrb[0].mxu0 %v455
  %v1651 = vpop.f32.mrb[0].mxu0
  %v1652 = vadd.f32 %v385, %v1651
  %v1653 = vpop.f32.mrb[0].mxu0
  %1654 = vmatprep.mubr.f32.mxu0 0.0
  %1655 = vmatmul.mubr.f32.gmra.mrb[0].mxu0 %v458
  %v1656 = vpop.f32.mrb[0].mxu0
  %v1657 = vadd.f32 %v385, %v1656
  %v1658 = vpop.f32.mrb[0].mxu0
  %1659 = vmatprep.mubr.f32.mxu0 0.0
  %1660 = vmatmul.mubr.f32.gmra.mrb[0].mxu0 %v461
  %v1661 = vpop.f32.mrb[0].mxu0
  %v1662 = vadd.f32 %v385, %v1661
  %v1663 = vpop.f32.mrb[0].mxu0
  %1664 = vmatprep.mubr.f32.mxu0 0.0
  %1665 = vmatmul.mubr.f32.gmra.mrb[0].mxu0 %v464
  %v1666 = vpop.f32.mrb[0].mxu0
  %v1667 = vadd.f32 %v385, %v1666
  %v1668 = vpop.f32.mrb[0].mxu0
  %1669 = vmatprep.mubr.f32.mxu0 0.0
  %1670 = vmatmul.mubr.f32.gmra.mrb[0].mxu0 %v467
  %v1671 = vpop.f32.mrb[0].mxu0
  %v1672 = vadd.f32 %v385, %v1671
  %v1673 = vpop.f32.mrb[0].mxu0
  %1674 = vmatprep.mubr.f32.mxu0 0.0
  %1675 = vmatmul.mubr.f32.gmra.mrb[0].mxu0 %v470
  %v1676 = vpop.f32.mrb[0].mxu0
  %v1677 = vadd.f32 %v385, %v1676
  %v1678 = vpop.f32.mrb[0].mxu0
  %1679 = vmatprep.mubr.f32.mxu0 0.0
  %1680 = vmatmul.mubr.f32.gmra.mrb[0].mxu0 %v473
  %v1681 = vpop.f32.mrb[0].mxu0
  %v1682 = vadd.f32 %v385, %v1681
  %v1683 = vpop.f32.mrb[0].mxu0
  %1684 = vmatprep.mubr.f32.mxu0 0.0
  %1685 = vmatmul.mubr.f32.gmra.mrb[0].mxu0 %v476
  %v1686 = vpop.f32.mrb[0].mxu0
  %v1687 = vadd.f32 %v385, %v1686
  %v1688 = vpop.f32.mrb[0].mxu0
  %1689 = vmatprep.mubr.f32.mxu0 0.0
  %1690 = vmatmul.mubr.f32.gmra.mrb[0].mxu0 %v479
  %v1691 = vpop.f32.mrb[0].mxu0
  %v1692 = vadd.f32 %v385, %v1691
  %v1693 = vpop.f32.mrb[0].mxu0
  %1694 = vmatprep.mubr.f32.mxu0 0.0
  %1695 = vmatmul.mubr.f32.gmra.mrb[0].mxu0 %v482
  %v1696 = vpop.f32.mrb[0].mxu0
  %v1697 = vadd.f32 %v385, %v1696
  %v1698 = vpop.f32.mrb[0].mxu0
  %1699 = vmatprep.mubr.f32.mxu0 0.0
  %1700 = vmatmul.mubr.f32.gmra.mrb[0].mxu0 %v485
  %v1701 = vpop.f32.mrb[0].mxu0
  %v1702 = vadd.f32 %v385, %v1701
  %v1703 = vpop.f32.mrb[0].mxu0
  %1704 = vmatprep.mubr.f32.mxu0 0.0
  %1705 = vmatmul.mubr.f32.gmra.mrb[0].mxu0 %v488
  %v1706 = vpop.f32.mrb[0].mxu0
  %v1707 = vadd.f32 %v385, %v1706
  %v1708 = vpop.f32.mrb[0].mxu0
  %1709 = vmatprep.mubr.f32.mxu0 0.0
  %1710 = vmatmul.mubr.f32.gmra.mrb[0].mxu0 %v491
  %v1711 = vpop.f32.mrb[0].mxu0
  %v1712 = vadd.f32 %v385, %v1711
  %v1713 = vpop.f32.mrb[0].mxu0
  %1714 = vmatprep.mubr.f32.mxu0 0.0
  %1715 = vmatmul.mubr.f32.gmra.mrb[0].mxu0 %v494
  %v1716 = vpop.f32.mrb[0].mxu0
  %v1717 = vadd.f32 %v385, %v1716
  %v1718 = vpop.f32.mrb[0].mxu0
  %1719 = vmatprep.mubr.f32.mxu0 0.0
  %1720 = vmatmul.mubr.f32.gmra.mrb[0].mxu0 %v497
  %v1721 = vpop.f32.mrb[0].mxu0
  %v1722 = vadd.f32 %v385, %v1721
  %v1723 = vpop.f32.mrb[0].mxu0
  %1724 = vmatprep.mubr.f32.mxu0 0.0
  %1725 = vmatmul.mubr.f32.gmra.mrb[0].mxu0 %v500
  %v1726 = vpop.f32.mrb[0].mxu0
  %v1727 = vadd.f32 %v385, %v1726
  %v1728 = vpop.f32.mrb[0].mxu0
  %1729 = vmatprep.mubr.f32.mxu0 0.0
  %1730 = vmatmul.mubr.f32.gmra.mrb[0].mxu0 %v503
  %v1731 = vpop.f32.mrb[0].mxu0
  %v1732 = vadd.f32 %v385, %v1731
  %v1733 = vpop.f32.mrb[0].mxu0
  %1734 = vmatprep.mubr.f32.mxu0 0.0
  %1735 = vmatmul.mubr.f32.gmra.mrb[0].mxu0 %v506
  %v1736 = vpop.f32.mrb[0].mxu0
  %v1737 = vadd.f32 %v385, %v1736
  %v1738 = vpop.f32.mrb[0].mxu0
  %1739 = vmatprep.mubr.f32.mxu0 0.0
  %1740 = vmatmul.mubr.f32.gmra.mrb[0].mxu0 %v509
  %v1741 = vpop.f32.mrb[0].mxu0
  %v1742 = vadd.f32 %v385, %v1741
  %v1743 = vpop.f32.mrb[0].mxu0
  %1744 = vmatprep.mubr.f32.mxu0 0.0
  %1745 = vmatmul.mubr.f32.gmra.mrb[0].mxu0 %v512
  %v1746 = vpop.f32.mrb[0].mxu0
  %v1747 = vadd.f32 %v385, %v1746
  %v1748 = vpop.f32.mrb[0].mxu0
  %1749 = vmatprep.mubr.f32.mxu0 0.0
  %1750 = vmatmul.mubr.f32.gmra.mrb[0].mxu0 %v515
  %v1751 = vpop.f32.mrb[0].mxu0
  %v1752 = vadd.f32 %v385, %v1751
  %v1753 = vpop.f32.mrb[0].mxu0
  %1754 = vmatprep.mubr.f32.mxu0 0.0
  %1755 = vmatmul.mubr.f32.gmra.mrb[0].mxu0 %v518
  %v1756 = vpop.f32.mrb[0].mxu0
  %v1757 = vadd.f32 %v385, %v1756
  %v1758 = vpop.f32.mrb[0].mxu0
  %1759 = vmatprep.mubr.f32.mxu0 0.0
  %1760 = vmatmul.mubr.f32.gmra.mrb[0].mxu0 %v521
  %v1761 = vpop.f32.mrb[0].mxu0
  %v1762 = vadd.f32 %v385, %v1761
  %v1763 = vpop.f32.mrb[0].mxu0
  %1764 = vmatprep.mubr.f32.mxu0 0.0
  %1765 = vmatmul.mubr.f32.gmra.mrb[0].mxu0 %v524
  %v1766 = vpop.f32.mrb[0].mxu0
  %v1767 = vadd.f32 %v385, %v1766
  %v1768 = vpop.f32.mrb[0].mxu0
  %1769 = vmatprep.mubr.f32.mxu0 0.0
  %1770 = vmatmul.mubr.f32.gmra.mrb[0].mxu0 %v527
  %v1771 = vpop.f32.mrb[0].mxu0
  %v1772 = vadd.f32 %v385, %v1771
  %v1773 = vpop.f32.mrb[0].mxu0
  %1774 = vmatprep.mubr.f32.mxu0 0.0
  %1775 = vmatmul.mubr.f32.gmra.mrb[0].mxu0 %v530
  %v1776 = vpop.f32.mrb[0].mxu0
  %v1777 = vadd.f32 %v385, %v1776
  %v1778 = vpop.f32.mrb[0].mxu0
  %1779 = vmatprep.mubr.f32.mxu0 0.0
  %1780 = vmatmul.mubr.f32.gmra.mrb[0].mxu0 %v533
  %v1781 = vpop.f32.mrb[0].mxu0
  %v1782 = vadd.f32 %v385, %v1781
  %v1783 = vpop.f32.mrb[0].mxu0
  %1784 = vmatprep.mubr.f32.mxu0 0.0
  %1785 = vmatmul.mubr.f32.gmra.mrb[0].mxu0 %v536
  %v1786 = vpop.f32.mrb[0].mxu0
  %v1787 = vadd.f32 %v385, %v1786
  %v1788 = vpop.f32.mrb[0].mxu0
  %1789 = vmatprep.mubr.f32.mxu0 0.0
  %1790 = vmatmul.mubr.f32.gmra.mrb[0].mxu0 %v539
  %v1791 = vpop.f32.mrb[0].mxu0
  %v1792 = vadd.f32 %v385, %v1791
  %v1793 = vpop.f32.mrb[0].mxu0
  %1794 = vmatprep.mubr.f32.mxu0 0.0
  %1795 = vmatmul.mubr.f32.gmra.mrb[0].mxu0 %v542
  %v1796 = vpop.f32.mrb[0].mxu0
  %v1797 = vadd.f32 %v385, %v1796
  %v1798 = vpop.f32.mrb[0].mxu0
  %1799 = vmatprep.mubr.f32.mxu0 0.0
  %1800 = vmatmul.mubr.f32.gmra.mrb[0].mxu0 %v545
  %v1801 = vpop.f32.mrb[0].mxu0
  %v1802 = vadd.f32 %v385, %v1801
  %v1803 = vpop.f32.mrb[0].mxu0
  %1804 = vmatprep.mubr.f32.mxu0 0.0
  %1805 = vmatmul.mubr.f32.gmra.mrb[0].mxu0 %v548
  %v1806 = vpop.f32.mrb[0].mxu0
  %v1807 = vadd.f32 %v385, %v1806
  %v1808 = vpop.f32.mrb[0].mxu0
  %1809 = vmatprep.mubr.f32.mxu0 0.0
  %1810 = vmatmul.mubr.f32.gmra.mrb[0].mxu0 %v551
  %v1811 = vpop.f32.mrb[0].mxu0
  %v1812 = vadd.f32 %v385, %v1811
  %v1813 = vpop.f32.mrb[0].mxu0
  %1814 = vmatprep.mubr.f32.mxu0 0.0
  %1815 = vmatmul.mubr.f32.gmra.mrb[0].mxu0 %v554
  %v1816 = vpop.f32.mrb[0].mxu0
  %v1817 = vadd.f32 %v385, %v1816
  %v1818 = vpop.f32.mrb[0].mxu0
  %1819 = vmatprep.mubr.f32.mxu0 0.0
  %1820 = vmatmul.mubr.f32.gmra.mrb[0].mxu0 %v557
  %v1821 = vpop.f32.mrb[0].mxu0
  %v1822 = vadd.f32 %v385, %v1821
  %v1823 = vpop.f32.mrb[0].mxu0
  %1824 = vmatprep.mubr.f32.mxu0 0.0
  %1825 = vmatmul.mubr.f32.gmra.mrb[0].mxu0 %v560
  %v1826 = vpop.f32.mrb[0].mxu0
  %v1827 = vadd.f32 %v385, %v1826
  %v1828 = vpop.f32.mrb[0].mxu0
  %1829 = vmatprep.mubr.f32.mxu0 0.0
  %1830 = vmatmul.mubr.f32.gmra.mrb[0].mxu0 %v563
  %v1831 = vpop.f32.mrb[0].mxu0
  %v1832 = vadd.f32 %v385, %v1831
  %v1833 = vpop.f32.mrb[0].mxu0
  %1834 = vmatprep.mubr.f32.mxu0 0.0
  %1835 = vmatmul.mubr.f32.gmra.mrb[0].mxu0 %v566
  %v1836 = vpop.f32.mrb[0].mxu0
  %v1837 = vadd.f32 %v385, %v1836
  %v1838 = vpop.f32.mrb[0].mxu0
  %1839 = vmatprep.mubr.f32.mxu0 0.0
  %1840 = vmatmul.mubr.f32.gmra.mrb[0].mxu0 %v569
  %v1841 = vpop.f32.mrb[0].mxu0
  %v1842 = vadd.f32 %v385, %v1841
  %v1843 = vpop.f32.mrb[0].mxu0
  %1844 = vmatprep.mubr.f32.mxu0 0.0
  %1845 = vmatmul.mubr.f32.gmra.mrb[0].mxu0 %v572
  %v1846 = vpop.f32.mrb[0].mxu0
  %v1847 = vadd.f32 %v385, %v1846
  %v1848 = vpop.f32.mrb[0].mxu0
  %1849 = vmatprep.mubr.f32.mxu0 0.0
  %1850 = vmatmul.mubr.f32.gmra.mrb[0].mxu0 %v575
  %v1851 = vpop.f32.mrb[0].mxu0
  %v1852 = vadd.f32 %v385, %v1851
  %v1853 = vpop.f32.mrb[0].mxu0
  %1854 = vmatprep.mubr.f32.mxu0 0.0
  %1855 = vmatmul.mubr.f32.gmra.mrb[0].mxu0 %v578
  %v1856 = vpop.f32.mrb[0].mxu0
  %v1857 = vadd.f32 %v385, %v1856
  %v1858 = vpop.f32.mrb[0].mxu0
  %1859 = vmatprep.mubr.f32.mxu0 0.0
  %1860 = vmatmul.mubr.f32.gmra.mrb[0].mxu0 %v581
  %v1861 = vpop.f32.mrb[0].mxu0
  %v1862 = vadd.f32 %v385, %v1861
  %v1863 = vpop.f32.mrb[0].mxu0
  %1864 = vmatprep.mubr.f32.mxu0 0.0
  %1865 = vmatmul.mubr.f32.gmra.mrb[0].mxu0 %v584
  %v1866 = vpop.f32.mrb[0].mxu0
  %v1867 = vadd.f32 %v385, %v1866
  %v1868 = vpop.f32.mrb[0].mxu0
  %1869 = vmatprep.mubr.f32.mxu0 0.0
  %1870 = vmatmul.mubr.f32.gmra.mrb[0].mxu0 %v587
  %v1871 = vpop.f32.mrb[0].mxu0
  %v1872 = vadd.f32 %v385, %v1871
  %v1873 = vpop.f32.mrb[0].mxu0
  %1874 = vmatprep.mubr.f32.mxu0 0.0
  %1875 = vmatmul.mubr.f32.gmra.mrb[0].mxu0 %v590
  %v1876 = vpop.f32.mrb[0].mxu0
  %v1877 = vadd.f32 %v385, %v1876
  %v1878 = vpop.f32.mrb[0].mxu0
  %1879 = vmatprep.mubr.f32.mxu0 0.0
  %1880 = vmatmul.mubr.f32.gmra.mrb[0].mxu0 %v593
  %v1881 = vpop.f32.mrb[0].mxu0
  %v1882 = vadd.f32 %v385, %v1881
  %v1883 = vpop.f32.mrb[0].mxu0
  %1884 = vmatprep.mubr.f32.mxu0 0.0
  %1885 = vmatmul.mubr.f32.gmra.mrb[0].mxu0 %v596
  %v1886 = vpop.f32.mrb[0].mxu0
  %v1887 = vadd.f32 %v385, %v1886
  %v1888 = vpop.f32.mrb[0].mxu0
  %1889 = vmatprep.mubr.f32.mxu0 0.0
  %1890 = vmatmul.mubr.f32.gmra.mrb[0].mxu0 %v599
  %v1891 = vpop.f32.mrb[0].mxu0
  %v1892 = vadd.f32 %v385, %v1891
  %v1893 = vpop.f32.mrb[0].mxu0
  %1894 = vmatprep.mubr.f32.mxu0 0.0
  %1895 = vmatmul.mubr.f32.gmra.mrb[0].mxu0 %v602
  %v1896 = vpop.f32.mrb[0].mxu0
  %v1897 = vadd.f32 %v385, %v1896
  %v1898 = vpop.f32.mrb[0].mxu0
  %1899 = vmatprep.mubr.f32.mxu0 0.0
  %1900 = vmatmul.mubr.f32.gmra.mrb[0].mxu0 %v605
  %v1901 = vpop.f32.mrb[0].mxu0
  %v1902 = vadd.f32 %v385, %v1901
  %v1903 = vpop.f32.mrb[0].mxu0
  %1904 = vmatprep.mubr.f32.mxu0 0.0
  %1905 = vmatmul.mubr.f32.gmra.mrb[0].mxu0 %v608
  %v1906 = vpop.f32.mrb[0].mxu0
  %v1907 = vadd.f32 %v385, %v1906
  %v1908 = vpop.f32.mrb[0].mxu0
  %1909 = vmatprep.mubr.f32.mxu0 0.0
  %1910 = vmatmul.mubr.f32.gmra.mrb[0].mxu0 %v611
  %v1911 = vpop.f32.mrb[0].mxu0
  %v1912 = vadd.f32 %v385, %v1911
  %v1913 = vpop.f32.mrb[0].mxu0
  %1914 = vmatprep.mubr.f32.mxu0 0.0
  %1915 = vmatmul.mubr.f32.gmra.mrb[0].mxu0 %v614
  %v1916 = vpop.f32.mrb[0].mxu0
  %v1917 = vadd.f32 %v385, %v1916
  %v1918 = vpop.f32.mrb[0].mxu0
  %1919 = vmatprep.mubr.f32.mxu0 0.0
  %1920 = vmatmul.mubr.f32.gmra.mrb[0].mxu0 %v617
  %v1921 = vpop.f32.mrb[0].mxu0
  %v1922 = vadd.f32 %v385, %v1921
  %v1923 = vpop.f32.mrb[0].mxu0
  %1924 = vmatprep.mubr.f32.mxu0 0.0
  %1925 = vmatmul.mubr.f32.gmra.mrb[0].mxu0 %v620
  %v1926 = vpop.f32.mrb[0].mxu0
  %v1927 = vadd.f32 %v385, %v1926
  %v1928 = vpop.f32.mrb[0].mxu0
  %1929 = vmatprep.mubr.f32.mxu0 0.0
  %1930 = vmatmul.mubr.f32.gmra.mrb[0].mxu0 %v623
  %v1931 = vpop.f32.mrb[0].mxu0
  %v1932 = vadd.f32 %v385, %v1931
  %v1933 = vpop.f32.mrb[0].mxu0
  %1934 = vmatprep.mubr.f32.mxu0 0.0
  %1935 = vmatmul.mubr.f32.gmra.mrb[0].mxu0 %v626
  %v1936 = vpop.f32.mrb[0].mxu0
  %v1937 = vadd.f32 %v385, %v1936
  %v1938 = vpop.f32.mrb[0].mxu0
  %1939 = vmatprep.mubr.f32.mxu0 0.0
  %1940 = vmatmul.mubr.f32.gmra.mrb[0].mxu0 %v629
  %v1941 = vpop.f32.mrb[0].mxu0
  %v1942 = vadd.f32 %v385, %v1941
  %v1943 = vpop.f32.mrb[0].mxu0
  %1944 = vmatprep.mubr.f32.mxu0 0.0
  %1945 = vmatmul.mubr.f32.gmra.mrb[0].mxu0 %v632
  %v1946 = vpop.f32.mrb[0].mxu0
  %v1947 = vadd.f32 %v385, %v1946
  %v1948 = vpop.f32.mrb[0].mxu0
  %1949 = vmatprep.mubr.f32.mxu0 0.0
  %1950 = vmatmul.mubr.f32.gmra.mrb[0].mxu0 %v635
  %v1951 = vpop.f32.mrb[0].mxu0
  %v1952 = vadd.f32 %v385, %v1951
  %v1953 = vpop.f32.mrb[0].mxu0
  %1954 = vmatprep.mubr.f32.mxu0 0.0
  %1955 = vmatmul.mubr.f32.gmra.mrb[0].mxu0 %v638
  %v1956 = vpop.f32.mrb[0].mxu0
  %v1957 = vadd.f32 %v385, %v1956
  %v1958 = vpop.f32.mrb[0].mxu0
  %1959 = vmatprep.mubr.f32.mxu0 0.0
  %1960 = vmatmul.mubr.f32.gmra.mrb[0].mxu0 %v641
  %v1961 = vpop.f32.mrb[0].mxu0
  %v1962 = vadd.f32 %v385, %v1961
  %v1963 = vpop.f32.mrb[0].mxu0
  %1964 = vmatprep.mubr.f32.mxu0 0.0
  %1965 = vmatmul.mubr.f32.gmra.mrb[0].mxu0 %v644
  %v1966 = vpop.f32.mrb[0].mxu0
  %v1967 = vadd.f32 %v385, %v1966
  %v1968 = vpop.f32.mrb[0].mxu0
  %1969 = vmatprep.mubr.f32.mxu0 0.0
  %1970 = vmatmul.mubr.f32.gmra.mrb[0].mxu0 %v647
  %v1971 = vpop.f32.mrb[0].mxu0
  %v1972 = vadd.f32 %v385, %v1971
  %v1973 = vpop.f32.mrb[0].mxu0
  %1974 = vmatprep.mubr.f32.mxu0 0.0
  %1975 = vmatmul.mubr.f32.gmra.mrb[0].mxu0 %v650
  %v1976 = vpop.f32.mrb[0].mxu0
  %v1977 = vadd.f32 %v385, %v1976
  %v1978 = vpop.f32.mrb[0].mxu0
  %1979 = vmatprep.mubr.f32.mxu0 0.0
  %1980 = vmatmul.mubr.f32.gmra.mrb[0].mxu0 %v653
  %v1981 = vpop.f32.mrb[0].mxu0
  %v1982 = vadd.f32 %v385, %v1981
  %v1983 = vpop.f32.mrb[0].mxu0
  %1984 = vmatprep.mubr.f32.mxu0 0.0
  %1985 = vmatmul.mubr.f32.gmra.mrb[0].mxu0 %v656
  %v1986 = vpop.f32.mrb[0].mxu0
  %v1987 = vadd.f32 %v385, %v1986
  %v1988 = vpop.f32.mrb[0].mxu0
  %1989 = vmatprep.mubr.f32.mxu0 0.0
  %1990 = vmatmul.mubr.f32.gmra.mrb[0].mxu0 %v659
  %v1991 = vpop.f32.mrb[0].mxu0
  %v1992 = vadd.f32 %v385, %v1991
  %v1993 = vpop.f32.mrb[0].mxu0
  %1994 = vmatprep.mubr.f32.mxu0 0.0
  %1995 = vmatmul.mubr.f32.gmra.mrb[0].mxu0 %v662
  %v1996 = vpop.f32.mrb[0].mxu0
  %v1997 = vadd.f32 %v385, %v1996
  %v1998 = vpop.f32.mrb[0].mxu0
  %1999 = vmatprep.mubr.f32.mxu0 0.0
  %2000 = vmatmul.mubr.f32.gmra.mrb[0].mxu0 %v665
  %v2001 = vpop.f32.mrb[0].mxu0
  %v2002 = vadd.f32 %v385, %v2001
  %v2003 = vpop.f32.mrb[0].mxu0
  %2004 = vmatprep.mubr.f32.mxu0 0.0
  %2005 = vmatmul.mubr.f32.gmra.mrb[0].mxu0 %v668
  %v2006 = vpop.f32.mrb[0].mxu0
  %v2007 = vadd.f32 %v385, %v2006
  %v2008 = vpop.f32.mrb[0].mxu0
  %2009 = vmatprep.mubr.f32.mxu0 0.0
  %2010 = vmatmul.mubr.f32.gmra.mrb[0].mxu0 %v671
  %v2011 = vpop.f32.mrb[0].mxu0
  %v2012 = vadd.f32 %v385, %v2011
  %v2013 = vpop.f32.mrb[0].mxu0
  %2014 = vmatprep.mubr.f32.mxu0 0.0
  %2015 = vmatmul.mubr.f32.gmra.mrb[0].mxu0 %v674
  %v2016 = vpop.f32.mrb[0].mxu0
  %v2017 = vadd.f32 %v385, %v2016
  %v2018 = vpop.f32.mrb[0].mxu0
  %2019 = vmatprep.mubr.f32.mxu0 0.0
  %2020 = vmatmul.mubr.f32.gmra.mrb[0].mxu0 %v677
  %v2021 = vpop.f32.mrb[0].mxu0
  %v2022 = vadd.f32 %v385, %v2021
  %v2023 = vpop.f32.mrb[0].mxu0
  %2024 = vmatprep.mubr.f32.mxu0 0.0
  %2025 = vmatmul.mubr.f32.gmra.mrb[0].mxu0 %v680
  %v2026 = vpop.f32.mrb[0].mxu0
  %v2027 = vadd.f32 %v385, %v2026
  %v2028 = vpop.f32.mrb[0].mxu0
  %2029 = vmatprep.mubr.f32.mxu0 0.0
  %2030 = vmatmul.mubr.f32.gmra.mrb[0].mxu0 %v683
  %v2031 = vpop.f32.mrb[0].mxu0
  %v2032 = vadd.f32 %v385, %v2031
  %v2033 = vpop.f32.mrb[0].mxu0
  %2034 = vmatprep.mubr.f32.mxu0 0.0
  %2035 = vmatmul.mubr.f32.gmra.mrb[0].mxu0 %v686
  %v2036 = vpop.f32.mrb[0].mxu0
  %v2037 = vadd.f32 %v385, %v2036
  %v2038 = vpop.f32.mrb[0].mxu0
  %2039 = vmatprep.mubr.f32.mxu0 0.0
  %2040 = vmatmul.mubr.f32.gmra.mrb[0].mxu0 %v689
  %v2041 = vpop.f32.mrb[0].mxu0
  %v2042 = vadd.f32 %v385, %v2041
  %v2043 = vpop.f32.mrb[0].mxu0
  %2044 = vmatprep.mubr.f32.mxu0 0.0
  %2045 = vmatmul.mubr.f32.gmra.mrb[0].mxu0 %v692
  %v2046 = vpop.f32.mrb[0].mxu0
  %v2047 = vadd.f32 %v385, %v2046
  %v2048 = vpop.f32.mrb[0].mxu0
  %2049 = vmatprep.mubr.f32.mxu0 0.0
  %2050 = vmatmul.mubr.f32.gmra.mrb[0].mxu0 %v695
  %v2051 = vpop.f32.mrb[0].mxu0
  %v2052 = vadd.f32 %v385, %v2051
  %v2053 = vpop.f32.mrb[0].mxu0
  %2054 = vmatprep.mubr.f32.mxu0 0.0
  %2055 = vmatmul.mubr.f32.gmra.mrb[0].mxu0 %v698
  %v2056 = vpop.f32.mrb[0].mxu0
  %v2057 = vadd.f32 %v385, %v2056
  %v2058 = vpop.f32.mrb[0].mxu0
  %2059 = vmatprep.mubr.f32.mxu0 0.0
  %2060 = vmatmul.mubr.f32.gmra.mrb[0].mxu0 %v701
  %v2061 = vpop.f32.mrb[0].mxu0
  %v2062 = vadd.f32 %v385, %v2061
  %v2063 = vpop.f32.mrb[0].mxu0
  %2064 = vmatprep.mubr.f32.mxu0 0.0
  %2065 = vmatmul.mubr.f32.gmra.mrb[0].mxu0 %v704
  %v2066 = vpop.f32.mrb[0].mxu0
  %v2067 = vadd.f32 %v385, %v2066
  %v2068 = vpop.f32.mrb[0].mxu0
  %2069 = vmatprep.mubr.f32.mxu0 0.0
  %2070 = vmatmul.mubr.f32.gmra.mrb[0].mxu0 %v707
  %v2071 = vpop.f32.mrb[0].mxu0
  %v2072 = vadd.f32 %v385, %v2071
  %v2073 = vpop.f32.mrb[0].mxu0
  %2074 = vmatprep.mubr.f32.mxu0 0.0
  %2075 = vmatmul.mubr.f32.gmra.mrb[0].mxu0 %v710
  %v2076 = vpop.f32.mrb[0].mxu0
  %v2077 = vadd.f32 %v385, %v2076
  %v2078 = vpop.f32.mrb[0].mxu0
  %2079 = vmatprep.mubr.f32.mxu0 0.0
  %2080 = vmatmul.mubr.f32.gmra.mrb[0].mxu0 %v713
  %v2081 = vpop.f32.mrb[0].mxu0
  %v2082 = vadd.f32 %v385, %v2081
  %v2083 = vpop.f32.mrb[0].mxu0
  %2084 = vmatprep.mubr.f32.mxu0 0.0
  %2085 = vmatmul.mubr.f32.gmra.mrb[0].mxu0 %v716
  %v2086 = vpop.f32.mrb[0].mxu0
  %v2087 = vadd.f32 %v385, %v2086
  %v2088 = vpop.f32.mrb[0].mxu0
  %2089 = vmatprep.mubr.f32.mxu0 0.0
  %2090 = vmatmul.mubr.f32.gmra.mrb[0].mxu0 %v719
  %v2091 = vpop.f32.mrb[0].mxu0
  %v2092 = vadd.f32 %v385, %v2091
  %v2093 = vpop.f32.mrb[0].mxu0
  %2094 = vmatprep.mubr.f32.mxu0 0.0
  %2095 = vmatmul.mubr.f32.gmra.mrb[0].mxu0 %v722
  %v2096 = vpop.f32.mrb[0].mxu0
  %v2097 = vadd.f32 %v385, %v2096
  %v2098 = vpop.f32.mrb[0].mxu0
  %2099 = vmatprep.mubr.f32.mxu0 0.0
  %2100 = vmatmul.mubr.f32.gmra.mrb[0].mxu0 %v725
  %v2101 = vpop.f32.mrb[0].mxu0
  %v2102 = vadd.f32 %v385, %v2101
  %v2103 = vpop.f32.mrb[0].mxu0
  %2104 = vmatprep.mubr.f32.mxu0 0.0
  %2105 = vmatmul.mubr.f32.gmra.mrb[0].mxu0 %v728
  %v2106 = vpop.f32.mrb[0].mxu0
  %v2107 = vadd.f32 %v385, %v2106
  %v2108 = vpop.f32.mrb[0].mxu0
  %2109 = vmatprep.mubr.f32.mxu0 0.0
  %2110 = vmatmul.mubr.f32.gmra.mrb[0].mxu0 %v731
  %v2111 = vpop.f32.mrb[0].mxu0
  %v2112 = vadd.f32 %v385, %v2111
  %v2113 = vpop.f32.mrb[0].mxu0
  %2114 = vmatprep.mubr.f32.mxu0 0.0
  %2115 = vmatmul.mubr.f32.gmra.mrb[0].mxu0 %v734
  %v2116 = vpop.f32.mrb[0].mxu0
  %v2117 = vadd.f32 %v385, %v2116
  %v2118 = vpop.f32.mrb[0].mxu0
  %2119 = vmatprep.mubr.f32.mxu0 0.0
  %2120 = vmatmul.mubr.f32.gmra.mrb[0].mxu0 %v737
  %v2121 = vpop.f32.mrb[0].mxu0
  %v2122 = vadd.f32 %v385, %v2121
  %v2123 = vpop.f32.mrb[0].mxu0
  %2124 = vmatprep.mubr.f32.mxu0 0.0
  %2125 = vmatmul.mubr.f32.gmra.mrb[0].mxu0 %v740
  %v2126 = vpop.f32.mrb[0].mxu0
  %v2127 = vadd.f32 %v385, %v2126
  %v2128 = vpop.f32.mrb[0].mxu0
  %2129 = vmatprep.mubr.f32.mxu0 0.0
  %2130 = vmatmul.mubr.f32.gmra.mrb[0].mxu0 %v743
  %v2131 = vpop.f32.mrb[0].mxu0
  %v2132 = vadd.f32 %v385, %v2131
  %v2133 = vpop.f32.mrb[0].mxu0
  %2134 = vmatprep.mubr.f32.mxu0 0.0
  %2135 = vmatmul.mubr.f32.gmra.mrb[0].mxu0 %v746
  %v2136 = vpop.f32.mrb[0].mxu0
  %v2137 = vadd.f32 %v385, %v2136
  %v2138 = vpop.f32.mrb[0].mxu0
  %2139 = vmatprep.mubr.f32.mxu0 0.0
  %2140 = vmatmul.mubr.f32.gmra.mrb[0].mxu0 %v749
  %v2141 = vpop.f32.mrb[0].mxu0
  %v2142 = vadd.f32 %v385, %v2141
  %v2143 = vpop.f32.mrb[0].mxu0
  %2144 = vmatprep.mubr.f32.mxu0 0.0
  %2145 = vmatmul.mubr.f32.gmra.mrb[0].mxu0 %v752
  %v2146 = vpop.f32.mrb[0].mxu0
  %v2147 = vadd.f32 %v385, %v2146
  %v2148 = vpop.f32.mrb[0].mxu0
  %2149 = vmatprep.mubr.f32.mxu0 0.0
  %2150 = vmatmul.mubr.f32.gmra.mrb[0].mxu0 %v755
  %v2151 = vpop.f32.mrb[0].mxu0
  %v2152 = vadd.f32 %v385, %v2151
  %v2153 = vpop.f32.mrb[0].mxu0
  %2154 = vmatprep.mubr.f32.mxu0 0.0
  %2155 = vmatmul.mubr.f32.gmra.mrb[0].mxu0 %v758
  %v2156 = vpop.f32.mrb[0].mxu0
  %v2157 = vadd.f32 %v385, %v2156
  %v2158 = vpop.f32.mrb[0].mxu0
  %2159 = vmatprep.mubr.f32.mxu0 0.0
  %2160 = vmatmul.mubr.f32.gmra.mrb[0].mxu0 %v761
  %v2161 = vpop.f32.mrb[0].mxu0
  %v2162 = vadd.f32 %v385, %v2161
  %v2163 = vpop.f32.mrb[0].mxu0
  %2164 = vmatprep.mubr.f32.mxu0 0.0
  %2165 = vmatmul.mubr.f32.gmra.mrb[0].mxu0 %v764
  %v2166 = vpop.f32.mrb[0].mxu0
  %v2167 = vadd.f32 %v385, %v2166
  %v2168 = vpop.f32.mrb[0].mxu0
  %2169 = vmatprep.mubr.f32.mxu0 0.0
  %2170 = vmatmul.mubr.f32.gmra.mrb[0].mxu0 %v767
  %v2171 = vpop.f32.mrb[0].mxu0
  %v2172 = vadd.f32 %v385, %v2171
  %v2173 = vpop.f32.mrb[0].mxu0
  %2174 = vmatprep.mubr.f32.mxu0 0.0
  %2175 = vmatmul.mubr.f32.gmra.mrb[0].mxu0 %v770
  %v2176 = vpop.f32.mrb[0].mxu0
  %v2177 = vadd.f32 %v385, %v2176
  %v2178 = vpop.f32.mrb[0].mxu0
  %2179 = vmatprep.mubr.f32.mxu0 0.0
  %2180 = vmatmul.mubr.f32.gmra.mrb[0].mxu0 %v773
  %v2181 = vpop.f32.mrb[0].mxu0
  %v2182 = vadd.f32 %v385, %v2181
  %v2183 = vpop.f32.mrb[0].mxu0
  %2184 = vmatprep.mubr.f32.mxu0 0.0
  %2185 = vmatmul.mubr.f32.gmra.mrb[0].mxu0 %v776
  %v2186 = vpop.f32.mrb[0].mxu0
  %v2187 = vadd.f32 %v385, %v2186
  %v2188 = vpop.f32.mrb[0].mxu0
  %2189 = vmatprep.mubr.f32.mxu0 0.0
  %2190 = vmatmul.mubr.f32.gmra.mrb[0].mxu0 %v779
  %v2191 = vpop.f32.mrb[0].mxu0
  %v2192 = vadd.f32 %v385, %v2191
  %v2193 = vpop.f32.mrb[0].mxu0
  %2194 = vmatprep.mubr.f32.mxu0 0.0
  %2195 = vmatmul.mubr.f32.gmra.mrb[0].mxu0 %v782
  %v2196 = vpop.f32.mrb[0].mxu0
  %v2197 = vadd.f32 %v385, %v2196
  %v2198 = vpop.f32.mrb[0].mxu0
  %2199 = vmatprep.mubr.f32.mxu0 0.0
  %2200 = vmatmul.mubr.f32.gmra.mrb[0].mxu0 %v785
  %v2201 = vpop.f32.mrb[0].mxu0
  %v2202 = vadd.f32 %v385, %v2201
  %v2203 = vpop.f32.mrb[0].mxu0
  %2204 = vmatprep.mubr.f32.mxu0 0.0
  %2205 = vmatmul.mubr.f32.gmra.mrb[0].mxu0 %v788
  %v2206 = vpop.f32.mrb[0].mxu0
  %v2207 = vadd.f32 %v385, %v2206
  %v2208 = vpop.f32.mrb[0].mxu0
  %2209 = vmatprep.mubr.f32.mxu0 0.0
  %2210 = vmatmul.mubr.f32.gmra.mrb[0].mxu0 %v791
  %v2211 = vpop.f32.mrb[0].mxu0
  %v2212 = vadd.f32 %v385, %v2211
  %v2213 = vpop.f32.mrb[0].mxu0
  %2214 = vmatprep.mubr.f32.mxu0 0.0
  %2215 = vmatmul.mubr.f32.gmra.mrb[0].mxu0 %v794
  %v2216 = vpop.f32.mrb[0].mxu0
  %v2217 = vadd.f32 %v385, %v2216
  %v2218 = vpop.f32.mrb[0].mxu0
  %2219 = vmatprep.mubr.f32.mxu0 0.0
  %2220 = vmatmul.mubr.f32.gmra.mrb[0].mxu0 %v797
  %v2221 = vpop.f32.mrb[0].mxu0
  %v2222 = vadd.f32 %v385, %v2221
  %v2223 = vpop.f32.mrb[0].mxu0
  %2224 = vmatprep.mubr.f32.mxu0 0.0
  %2225 = vmatmul.mubr.f32.gmra.mrb[0].mxu0 %v800
  %v2226 = vpop.f32.mrb[0].mxu0
  %v2227 = vadd.f32 %v385, %v2226
  %v2228 = vpop.f32.mrb[0].mxu0
  %2229 = vmatprep.mubr.f32.mxu0 0.0
  %2230 = vmatmul.mubr.f32.gmra.mrb[0].mxu0 %v803
  %v2231 = vpop.f32.mrb[0].mxu0
  %v2232 = vadd.f32 %v385, %v2231
  %v2233 = vpop.f32.mrb[0].mxu0
  %2234 = vmatprep.mubr.f32.mxu0 0.0
  %2235 = vmatmul.mubr.f32.gmra.mrb[0].mxu0 %v806
  %v2236 = vpop.f32.mrb[0].mxu0
  %v2237 = vadd.f32 %v385, %v2236
  %v2238 = vpop.f32.mrb[0].mxu0
  %2239 = vmatprep.mubr.f32.mxu0 0.0
  %2240 = vmatmul.mubr.f32.gmra.mrb[0].mxu0 %v809
  %v2241 = vpop.f32.mrb[0].mxu0
  %v2242 = vadd.f32 %v385, %v2241
  %v2243 = vpop.f32.mrb[0].mxu0
  %2244 = vmatprep.mubr.f32.mxu0 0.0
  %2245 = vmatmul.mubr.f32.gmra.mrb[0].mxu0 %v812
  %v2246 = vpop.f32.mrb[0].mxu0
  %v2247 = vadd.f32 %v385, %v2246
  %v2248 = vpop.f32.mrb[0].mxu0
  %2249 = vmatprep.mubr.f32.mxu0 0.0
  %2250 = vmatmul.mubr.f32.gmra.mrb[0].mxu0 %v815
  %v2251 = vpop.f32.mrb[0].mxu0
  %v2252 = vadd.f32 %v385, %v2251
  %v2253 = vpop.f32.mrb[0].mxu0
  %2254 = vmatprep.mubr.f32.mxu0 0.0
  %2255 = vmatmul.mubr.f32.gmra.mrb[0].mxu0 %v818
  %v2256 = vpop.f32.mrb[0].mxu0
  %v2257 = vadd.f32 %v385, %v2256
  %v2258 = vpop.f32.mrb[0].mxu0
  %2259 = vmatprep.mubr.f32.mxu0 0.0
  %2260 = vmatmul.mubr.f32.gmra.mrb[0].mxu0 %v821
  %v2261 = vpop.f32.mrb[0].mxu0
  %v2262 = vadd.f32 %v385, %v2261
  %v2263 = vpop.f32.mrb[0].mxu0
  %2264 = vmatprep.mubr.f32.mxu0 0.0
  %2265 = vmatmul.mubr.f32.gmra.mrb[0].mxu0 %v824
  %v2266 = vpop.f32.mrb[0].mxu0
  %v2267 = vadd.f32 %v385, %v2266
  %v2268 = vpop.f32.mrb[0].mxu0
  %2269 = vmatprep.mubr.f32.mxu0 0.0
  %2270 = vmatmul.mubr.f32.gmra.mrb[0].mxu0 %v827
  %v2271 = vpop.f32.mrb[0].mxu0
  %v2272 = vadd.f32 %v385, %v2271
  %v2273 = vpop.f32.mrb[0].mxu0
  %2274 = vmatprep.mubr.f32.mxu0 0.0
  %2275 = vmatmul.mubr.f32.gmra.mrb[0].mxu0 %v830
  %v2276 = vpop.f32.mrb[0].mxu0
  %v2277 = vadd.f32 %v385, %v2276
  %v2278 = vpop.f32.mrb[0].mxu0
  %2279 = vmatprep.mubr.f32.mxu0 0.0
  %2280 = vmatmul.mubr.f32.gmra.mrb[0].mxu0 %v833
  %v2281 = vpop.f32.mrb[0].mxu0
  %v2282 = vadd.f32 %v385, %v2281
  %v2283 = vpop.f32.mrb[0].mxu0
  %2284 = vmatprep.mubr.f32.mxu0 0.0
  %2285 = vmatmul.mubr.f32.gmra.mrb[0].mxu0 %v836
  %v2286 = vpop.f32.mrb[0].mxu0
  %v2287 = vadd.f32 %v385, %v2286
  %v2288 = vpop.f32.mrb[0].mxu0
  %2289 = vmatprep.mubr.f32.mxu0 0.0
  %2290 = vmatmul.mubr.f32.gmra.mrb[0].mxu0 %v839
  %v2291 = vpop.f32.mrb[0].mxu0
  %v2292 = vadd.f32 %v385, %v2291
  %v2293 = vpop.f32.mrb[0].mxu0
  %2294 = vmatprep.mubr.f32.mxu0 0.0
  %2295 = vmatmul.mubr.f32.gmra.mrb[0].mxu0 %v842
  %v2296 = vpop.f32.mrb[0].mxu0
  %v2297 = vadd.f32 %v385, %v2296
  %v2298 = vpop.f32.mrb[0].mxu0
  %2299 = vmatprep.mubr.f32.mxu0 0.0
  %2300 = vmatmul.mubr.f32.gmra.mrb[0].mxu0 %v845
  %v2301 = vpop.f32.mrb[0].mxu0
  %v2302 = vadd.f32 %v385, %v2301
  %v2303 = vpop.f32.mrb[0].mxu0
  %2304 = vmatprep.mubr.f32.mxu0 0.0
  %2305 = vmatmul.mubr.f32.gmra.mrb[0].mxu0 %v848
  %v2306 = vpop.f32.mrb[0].mxu0
  %v2307 = vadd.f32 %v385, %v2306
  %v2308 = vpop.f32.mrb[0].mxu0
  %2309 = vmatprep.mubr.f32.mxu0 0.0
  %2310 = vmatmul.mubr.f32.gmra.mrb[0].mxu0 %v851
  %v2311 = vpop.f32.mrb[0].mxu0
  %v2312 = vadd.f32 %v385, %v2311
  %v2313 = vpop.f32.mrb[0].mxu0
  %2314 = vmatprep.mubr.f32.mxu0 0.0
  %2315 = vmatmul.mubr.f32.gmra.mrb[0].mxu0 %v854
  %v2316 = vpop.f32.mrb[0].mxu0
  %v2317 = vadd.f32 %v385, %v2316
  %v2318 = vpop.f32.mrb[0].mxu0
  %2319 = vmatprep.mubr.f32.mxu0 0.0
  %2320 = vmatmul.mubr.f32.gmra.mrb[0].mxu0 %v857
  %v2321 = vpop.f32.mrb[0].mxu0
  %v2322 = vadd.f32 %v385, %v2321
  %v2323 = vpop.f32.mrb[0].mxu0
  %2324 = vmatprep.mubr.f32.mxu0 0.0
  %2325 = vmatmul.mubr.f32.gmra.mrb[0].mxu0 %v860
  %v2326 = vpop.f32.mrb[0].mxu0
  %v2327 = vadd.f32 %v385, %v2326
  %v2328 = vpop.f32.mrb[0].mxu0
  %2329 = vmatprep.mubr.f32.mxu0 0.0
  %2330 = vmatmul.mubr.f32.gmra.mrb[0].mxu0 %v863
  %v2331 = vpop.f32.mrb[0].mxu0
  %v2332 = vadd.f32 %v385, %v2331
  %v2333 = vpop.f32.mrb[0].mxu0
  %2334 = vmatprep.mubr.f32.mxu0 0.0
  %2335 = vmatmul.mubr.f32.gmra.mrb[0].mxu0 %v866
  %v2336 = vpop.f32.mrb[0].mxu0
  %v2337 = vadd.f32 %v385, %v2336
  %v2338 = vpop.f32.mrb[0].mxu0
  %2339 = vmatprep.mubr.f32.mxu0 0.0
  %2340 = vmatmul.mubr.f32.gmra.mrb[0].mxu0 %v869
  %v2341 = vpop.f32.mrb[0].mxu0
  %v2342 = vadd.f32 %v385, %v2341
  %v2343 = vpop.f32.mrb[0].mxu0
  %2344 = vmatprep.mubr.f32.mxu0 0.0
  %2345 = vmatmul.mubr.f32.gmra.mrb[0].mxu0 %v872
  %v2346 = vpop.f32.mrb[0].mxu0
  %v2347 = vadd.f32 %v385, %v2346
  %v2348 = vpop.f32.mrb[0].mxu0
  %2349 = vmatprep.mubr.f32.mxu0 0.0
  %2350 = vmatmul.mubr.f32.gmra.mrb[0].mxu0 %v875
  %v2351 = vpop.f32.mrb[0].mxu0
  %v2352 = vadd.f32 %v385, %v2351
  %v2353 = vpop.f32.mrb[0].mxu0
  %2354 = vmatprep.mubr.f32.mxu0 0.0
  %2355 = vmatmul.mubr.f32.gmra.mrb[0].mxu0 %v878
  %v2356 = vpop.f32.mrb[0].mxu0
  %v2357 = vadd.f32 %v385, %v2356
  %v2358 = vpop.f32.mrb[0].mxu0
  %2359 = vmatprep.mubr.f32.mxu0 0.0
  %2360 = vmatmul.mubr.f32.gmra.mrb[0].mxu0 %v881
  %v2361 = vpop.f32.mrb[0].mxu0
  %v2362 = vadd.f32 %v385, %v2361
  %v2363 = vpop.f32.mrb[0].mxu0
  %2364 = vmatprep.mubr.f32.mxu0 0.0
  %2365 = vmatmul.mubr.f32.gmra.mrb[0].mxu0 %v884
  %v2366 = vpop.f32.mrb[0].mxu0
  %v2367 = vadd.f32 %v385, %v2366
  %v2368 = vpop.f32.mrb[0].mxu0
  %2369 = vmatprep.mubr.f32.mxu0 0.0
  %2370 = vmatmul.mubr.f32.gmra.mrb[0].mxu0 %v887
  %v2371 = vpop.f32.mrb[0].mxu0
  %v2372 = vadd.f32 %v385, %v2371
  %v2373 = vpop.f32.mrb[0].mxu0
  %2374 = vmatprep.mubr.f32.mxu0 0.0
  %2375 = vmatmul.mubr.f32.gmra.mrb[0].mxu0 %v890
  %v2376 = vpop.f32.mrb[0].mxu0
  %v2377 = vadd.f32 %v385, %v2376
  %v2378 = vpop.f32.mrb[0].mxu0
  %2379 = vmatprep.mubr.f32.mxu0 0.0
  %2380 = vmatmul.mubr.f32.gmra.mrb[0].mxu0 %v893
  %v2381 = vpop.f32.mrb[0].mxu0
  %v2382 = vadd.f32 %v385, %v2381
  %v2383 = vpop.f32.mrb[0].mxu0
  %2384 = vmatprep.mubr.f32.mxu0 0.0
  %2385 = vmatmul.mubr.f32.gmra.mrb[0].mxu0 %v896
  %v2386 = vpop.f32.mrb[0].mxu0
  %v2387 = vadd.f32 %v385, %v2386
  %v2388 = vpop.f32.mrb[0].mxu0
  %2389 = vmatprep.mubr.f32.mxu0 0.0
  %2390 = vmatmul.mubr.f32.gmra.mrb[0].mxu0 %v899
  %v2391 = vpop.f32.mrb[0].mxu0
  %v2392 = vadd.f32 %v385, %v2391
  %v2393 = vpop.f32.mrb[0].mxu0
  %2394 = vmatprep.mubr.f32.mxu0 0.0
  %2395 = vmatmul.mubr.f32.gmra.mrb[0].mxu0 %v902
  %v2396 = vpop.f32.mrb[0].mxu0
  %v2397 = vadd.f32 %v385, %v2396
  %v2398 = vpop.f32.mrb[0].mxu0
  %2399 = vmatprep.mubr.f32.mxu0 0.0
  %2400 = vmatmul.mubr.f32.gmra.mrb[0].mxu0 %v905
  %v2401 = vpop.f32.mrb[0].mxu0
  %v2402 = vadd.f32 %v385, %v2401
  %v2403 = vpop.f32.mrb[0].mxu0
  %2404 = vmatprep.mubr.f32.mxu0 0.0
  %2405 = vmatmul.mubr.f32.gmra.mrb[0].mxu0 %v908
  %v2406 = vpop.f32.mrb[0].mxu0
  %v2407 = vadd.f32 %v385, %v2406
  %v2408 = vpop.f32.mrb[0].mxu0
  %2409 = vmatprep.mubr.f32.mxu0 0.0
  %2410 = vmatmul.mubr.f32.gmra.mrb[0].mxu0 %v911
  %v2411 = vpop.f32.mrb[0].mxu0
  %v2412 = vadd.f32 %v385, %v2411
  %v2413 = vpop.f32.mrb[0].mxu0
  %2414 = vmatprep.mubr.f32.mxu0 0.0
  %2415 = vmatmul.mubr.f32.gmra.mrb[0].mxu0 %v914
  %v2416 = vpop.f32.mrb[0].mxu0
  %v2417 = vadd.f32 %v385, %v2416
  %v2418 = vpop.f32.mrb[0].mxu0
  %2419 = vmatprep.mubr.f32.mxu0 0.0
  %2420 = vmatmul.mubr.f32.gmra.mrb[0].mxu0 %v917
  %v2421 = vpop.f32.mrb[0].mxu0
  %v2422 = vadd.f32 %v385, %v2421
  %v2423 = vpop.f32.mrb[0].mxu0
  %2424 = vmatprep.mubr.f32.mxu0 0.0
  %2425 = vmatmul.mubr.f32.gmra.mrb[0].mxu0 %v920
  %v2426 = vpop.f32.mrb[0].mxu0
  %v2427 = vadd.f32 %v385, %v2426
  %v2428 = vpop.f32.mrb[0].mxu0
  %2429 = vmatprep.mubr.f32.mxu0 0.0
  %2430 = vmatmul.mubr.f32.gmra.mrb[0].mxu0 %v923
  %v2431 = vpop.f32.mrb[0].mxu0
  %v2432 = vadd.f32 %v385, %v2431
  %v2433 = vpop.f32.mrb[0].mxu0
  %2434 = vmatprep.mubr.f32.mxu0 0.0
  %2435 = vmatmul.mubr.f32.gmra.mrb[0].mxu0 %v926
  %v2436 = vpop.f32.mrb[0].mxu0
  %v2437 = vadd.f32 %v385, %v2436
  %v2438 = vpop.f32.mrb[0].mxu0
  %2439 = vmatprep.mubr.f32.mxu0 0.0
  %2440 = vmatmul.mubr.f32.gmra.mrb[0].mxu0 %v929
  %v2441 = vpop.f32.mrb[0].mxu0
  %v2442 = vadd.f32 %v385, %v2441
  %v2443 = vpop.f32.mrb[0].mxu0
  %2444 = vmatprep.mubr.f32.mxu0 0.0
  %2445 = vmatmul.mubr.f32.gmra.mrb[0].mxu0 %v932
  %v2446 = vpop.f32.mrb[0].mxu0
  %v2447 = vadd.f32 %v385, %v2446
  %v2448 = vpop.f32.mrb[0].mxu0
  %2449 = vmatprep.mubr.f32.mxu0 0.0
  %2450 = vmatmul.mubr.f32.gmra.mrb[0].mxu0 %v935
  %v2451 = vpop.f32.mrb[0].mxu0
  %v2452 = vadd.f32 %v385, %v2451
  %v2453 = vpop.f32.mrb[0].mxu0
  %2454 = vmatprep.mubr.f32.mxu0 0.0
  %2455 = vmatmul.mubr.f32.gmra.mrb[0].mxu0 %v938
  %v2456 = vpop.f32.mrb[0].mxu0
  %v2457 = vadd.f32 %v385, %v2456
  %v2458 = vpop.f32.mrb[0].mxu0
  %2459 = vmatprep.mubr.f32.mxu0 0.0
  %2460 = vmatmul.mubr.f32.gmra.mrb[0].mxu0 %v941
  %v2461 = vpop.f32.mrb[0].mxu0
  %v2462 = vadd.f32 %v385, %v2461
  %v2463 = vpop.f32.mrb[0].mxu0
  %2464 = vmatprep.mubr.f32.mxu0 0.0
  %2465 = vmatmul.mubr.f32.gmra.mrb[0].mxu0 %v944
  %v2466 = vpop.f32.mrb[0].mxu0
  %v2467 = vadd.f32 %v385, %v2466
  %v2468 = vpop.f32.mrb[0].mxu0
  %2469 = vmatprep.mubr.f32.mxu0 0.0
  %2470 = vmatmul.mubr.f32.gmra.mrb[0].mxu0 %v947
  %v2471 = vpop.f32.mrb[0].mxu0
  %v2472 = vadd.f32 %v385, %v2471
  %v2473 = vpop.f32.mrb[0].mxu0
  %2474 = vmatprep.mubr.f32.mxu0 0.0
  %2475 = vmatmul.mubr.f32.gmra.mrb[0].mxu0 %v950
  %v2476 = vpop.f32.mrb[0].mxu0
  %v2477 = vadd.f32 %v385, %v2476
  %v2478 = vpop.f32.mrb[0].mxu0
  %2479 = vmatprep.mubr.f32.mxu0 0.0
  %2480 = vmatmul.mubr.f32.gmra.mrb[0].mxu0 %v953
  %v2481 = vpop.f32.mrb[0].mxu0
  %v2482 = vadd.f32 %v385, %v2481
  %v2483 = vpop.f32.mrb[0].mxu0
  %2484 = vmatprep.mubr.f32.mxu0 0.0
  %2485 = vmatmul.mubr.f32.gmra.mrb[0].mxu0 %v956
  %v2486 = vpop.f32.mrb[0].mxu0
  %v2487 = vadd.f32 %v385, %v2486
  %v2488 = vpop.f32.mrb[0].mxu0
  %2489 = vmatprep.mubr.f32.mxu0 0.0
  %2490 = vmatmul.mubr.f32.gmra.mrb[0].mxu0 %v959
  %v2491 = vpop.f32.mrb[0].mxu0
  %v2492 = vadd.f32 %v385, %v2491
  %v2493 = vpop.f32.mrb[0].mxu0
  %2494 = vmatprep.mubr.f32.mxu0 0.0
  %2495 = vmatmul.mubr.f32.gmra.mrb[0].mxu0 %v962
  %v2496 = vpop.f32.mrb[0].mxu0
  %v2497 = vadd.f32 %v385, %v2496
  %v2498 = vpop.f32.mrb[0].mxu0
  %2499 = vmatprep.mubr.f32.mxu0 0.0
  %2500 = vmatmul.mubr.f32.gmra.mrb[0].mxu0 %v965
  %v2501 = vpop.f32.mrb[0].mxu0
  %v2502 = vadd.f32 %v385, %v2501
  %v2503 = vpop.f32.mrb[0].mxu0
  %2504 = vmatprep.mubr.f32.mxu0 0.0
  %2505 = vmatmul.mubr.f32.gmra.mrb[0].mxu0 %v968
  %v2506 = vpop.f32.mrb[0].mxu0
  %v2507 = vadd.f32 %v385, %v2506
  %v2508 = vpop.f32.mrb[0].mxu0
  %2509 = vmatprep.mubr.f32.mxu0 0.0
  %2510 = vmatmul.mubr.f32.gmra.mrb[0].mxu0 %v971
  %v2511 = vpop.f32.mrb[0].mxu0
  %v2512 = vadd.f32 %v385, %v2511
  %v2513 = vpop.f32.mrb[0].mxu0
  %2514 = vmatprep.mubr.f32.mxu0 0.0
  %2515 = vmatmul.mubr.f32.gmra.mrb[0].mxu0 %v974
  %v2516 = vpop.f32.mrb[0].mxu0
  %v2517 = vadd.f32 %v385, %v2516
  %v2518 = vpop.f32.mrb[0].mxu0
  %2519 = vmatprep.mubr.f32.mxu0 0.0
  %2520 = vmatmul.mubr.f32.gmra.mrb[0].mxu0 %v977
  %v2521 = vpop.f32.mrb[0].mxu0
  %v2522 = vadd.f32 %v385, %v2521
  %v2523 = vpop.f32.mrb[0].mxu0
  %2524 = vmatprep.mubr.f32.mxu0 0.0
  %2525 = vmatmul.mubr.f32.gmra.mrb[0].mxu0 %v980
  %v2526 = vpop.f32.mrb[0].mxu0
  %v2527 = vadd.f32 %v385, %v2526
  %v2528 = vpop.f32.mrb[0].mxu0
  %2529 = vmatprep.mubr.f32.mxu0 0.0
  %2530 = vmatmul.mubr.f32.gmra.mrb[0].mxu0 %v983
  %v2531 = vpop.f32.mrb[0].mxu0
  %v2532 = vadd.f32 %v385, %v2531
  %v2533 = vpop.f32.mrb[0].mxu0
  %2534 = vmatprep.mubr.f32.mxu0 0.0
  %2535 = vmatmul.mubr.f32.gmra.mrb[0].mxu0 %v986
  %v2536 = vpop.f32.mrb[0].mxu0
  %v2537 = vadd.f32 %v385, %v2536
  %v2538 = vpop.f32.mrb[0].mxu0
  %2539 = vmatprep.mubr.f32.mxu0 0.0
  %2540 = vmatmul.mubr.f32.gmra.mrb[0].mxu0 %v989
  %v2541 = vpop.f32.mrb[0].mxu0
  %v2542 = vadd.f32 %v385, %v2541
  %v2543 = vpop.f32.mrb[0].mxu0
  %2544 = vmatprep.mubr.f32.mxu0 0.0
  %2545 = vmatmul.mubr.f32.gmra.mrb[0].mxu0 %v992
  %v2546 = vpop.f32.mrb[0].mxu0
  %v2547 = vadd.f32 %v385, %v2546
  %v2548 = vpop.f32.mrb[0].mxu0
  %2549 = vmatprep.mubr.f32.mxu0 0.0
  %2550 = vmatmul.mubr.f32.gmra.mrb[0].mxu0 %v995
  %v2551 = vpop.f32.mrb[0].mxu0
  %v2552 = vadd.f32 %v385, %v2551
  %v2553 = vpop.f32.mrb[0].mxu0
  %2554 = vmatprep.mubr.f32.mxu0 0.0
  %2555 = vmatmul.mubr.f32.gmra.mrb[0].mxu0 %v998
  %v2556 = vpop.f32.mrb[0].mxu0
  %v2557 = vadd.f32 %v385, %v2556
  %v2558 = vpop.f32.mrb[0].mxu0
  %2559 = vmatprep.mubr.f32.mxu0 0.0
  %2560 = vmatmul.mubr.f32.gmra.mrb[0].mxu0 %v1001
  %v2561 = vpop.f32.mrb[0].mxu0
  %v2562 = vadd.f32 %v385, %v2561
  %v2563 = vpop.f32.mrb[0].mxu0
  %2564 = vmatprep.mubr.f32.mxu0 0.0
  %2565 = vmatmul.mubr.f32.gmra.mrb[0].mxu0 %v1004
  %v2566 = vpop.f32.mrb[0].mxu0
  %v2567 = vadd.f32 %v385, %v2566
  %v2568 = vpop.f32.mrb[0].mxu0
  %2569 = vmatprep.mubr.f32.mxu0 0.0
  %2570 = vmatmul.mubr.f32.gmra.mrb[0].mxu0 %v1007
  %v2571 = vpop.f32.mrb[0].mxu0
  %v2572 = vadd.f32 %v385, %v2571
  %v2573 = vpop.f32.mrb[0].mxu0
  %2574 = vmatprep.mubr.f32.mxu0 0.0
  %2575 = vmatmul.mubr.f32.gmra.mrb[0].mxu0 %v1010
  %v2576 = vpop.f32.mrb[0].mxu0
  %v2577 = vadd.f32 %v385, %v2576
  %v2578 = vpop.f32.mrb[0].mxu0
  %2579 = vmatprep.mubr.f32.mxu0 0.0
  %2580 = vmatmul.mubr.f32.gmra.mrb[0].mxu0 %v1013
  %v2581 = vpop.f32.mrb[0].mxu0
  %v2582 = vadd.f32 %v385, %v2581
  %v2583 = vpop.f32.mrb[0].mxu0
  %2584 = vmatprep.mubr.f32.mxu0 0.0
  %2585 = vmatmul.mubr.f32.gmra.mrb[0].mxu0 %v1016
  %v2586 = vpop.f32.mrb[0].mxu0
  %v2587 = vadd.f32 %v385, %v2586
  %v2588 = vpop.f32.mrb[0].mxu0
  %2589 = vmatprep.mubr.f32.mxu0 0.0
  %2590 = vmatmul.mubr.f32.gmra.mrb[0].mxu0 %v1019
  %v2591 = vpop.f32.mrb[0].mxu0
  %v2592 = vadd.f32 %v385, %v2591
  %v2593 = vpop.f32.mrb[0].mxu0
  %2594 = vmatprep.mubr.f32.mxu0 0.0
  %2595 = vmatmul.mubr.f32.gmra.mrb[0].mxu0 %v1022
  %v2596 = vpop.f32.mrb[0].mxu0
  %v2597 = vadd.f32 %v385, %v2596
  %v2598 = vpop.f32.mrb[0].mxu0
  %2599 = vmatprep.mubr.f32.mxu0 0.0
  %2600 = vmatmul.mubr.f32.gmra.mrb[0].mxu0 %v1025
  %v2601 = vpop.f32.mrb[0].mxu0
  %v2602 = vadd.f32 %v385, %v2601
  %v2603 = vpop.f32.mrb[0].mxu0
  %2604 = vmatprep.mubr.f32.mxu0 0.0
  %2605 = vmatmul.mubr.f32.gmra.mrb[0].mxu0 %v1028
  %v2606 = vpop.f32.mrb[0].mxu0
  %v2607 = vadd.f32 %v385, %v2606
  %v2608 = vpop.f32.mrb[0].mxu0
  %2609 = vmatprep.mubr.f32.mxu0 0.0
  %2610 = vmatmul.mubr.f32.gmra.mrb[0].mxu0 %v1031
  %v2611 = vpop.f32.mrb[0].mxu0
  %v2612 = vadd.f32 %v385, %v2611
  %v2613 = vpop.f32.mrb[0].mxu0
  %2614 = vmatprep.mubr.f32.mxu0 0.0
  %2615 = vmatmul.mubr.f32.gmra.mrb[0].mxu0 %v1034
  %v2616 = vpop.f32.mrb[0].mxu0
  %v2617 = vadd.f32 %v385, %v2616
  %v2618 = vpop.f32.mrb[0].mxu0
  %2619 = vmatprep.mubr.f32.mxu0 0.0
  %2620 = vmatmul.mubr.f32.gmra.mrb[0].mxu0 %v1037
  %v2621 = vpop.f32.mrb[0].mxu0
  %v2622 = vadd.f32 %v385, %v2621
  %v2623 = vpop.f32.mrb[0].mxu0
  %2624 = vmatprep.mubr.f32.mxu0 0.0
  %2625 = vmatmul.mubr.f32.gmra.mrb[0].mxu0 %v1040
  %v2626 = vpop.f32.mrb[0].mxu0
  %v2627 = vadd.f32 %v385, %v2626
  %v2628 = vpop.f32.mrb[0].mxu0
  %2629 = vmatprep.mubr.f32.mxu0 0.0
  %2630 = vmatmul.mubr.f32.gmra.mrb[0].mxu0 %v1043
  %v2631 = vpop.f32.mrb[0].mxu0
  %v2632 = vadd.f32 %v385, %v2631
  %v2633 = vpop.f32.mrb[0].mxu0
  %2634 = vmatprep.mubr.f32.mxu0 0.0
  %2635 = vmatmul.mubr.f32.gmra.mrb[0].mxu0 %v1046
  %v2636 = vpop.f32.mrb[0].mxu0
  %v2637 = vadd.f32 %v385, %v2636
  %v2638 = vpop.f32.mrb[0].mxu0
  %2639 = vmatprep.mubr.f32.mxu0 0.0
  %2640 = vmatmul.mubr.f32.gmra.mrb[0].mxu0 %v1049
  %v2641 = vpop.f32.mrb[0].mxu0
  %v2642 = vadd.f32 %v385, %v2641
  %v2643 = vpop.f32.mrb[0].mxu0
  %2644 = vmatprep.mubr.f32.mxu0 0.0
  %2645 = vmatmul.mubr.f32.gmra.mrb[0].mxu0 %v1052
  %v2646 = vpop.f32.mrb[0].mxu0
  %v2647 = vadd.f32 %v385, %v2646
  %v2648 = vpop.f32.mrb[0].mxu0
  %2649 = vmatprep.mubr.f32.mxu0 0.0
  %2650 = vmatmul.mubr.f32.gmra.mrb[0].mxu0 %v1055
  %v2651 = vpop.f32.mrb[0].mxu0
  %v2652 = vadd.f32 %v385, %v2651
  %v2653 = vpop.f32.mrb[0].mxu0
  %2654 = vmatprep.mubr.f32.mxu0 0.0
  %2655 = vmatmul.mubr.f32.gmra.mrb[0].mxu0 %v1058
  %v2656 = vpop.f32.mrb[0].mxu0
  %v2657 = vadd.f32 %v385, %v2656
  %v2658 = vpop.f32.mrb[0].mxu0
  %2659 = vmatprep.mubr.f32.mxu0 0.0
  %2660 = vmatmul.mubr.f32.gmra.mrb[0].mxu0 %v1061
  %v2661 = vpop.f32.mrb[0].mxu0
  %v2662 = vadd.f32 %v385, %v2661
  %v2663 = vpop.f32.mrb[0].mxu0
  %2664 = vmatprep.mubr.f32.mxu0 0.0
  %2665 = vmatmul.mubr.f32.gmra.mrb[0].mxu0 %v1064
  %v2666 = vpop.f32.mrb[0].mxu0
  %v2667 = vadd.f32 %v385, %v2666
  %v2668 = vpop.f32.mrb[0].mxu0
  %2669 = vmatprep.mubr.f32.mxu0 0.0
  %2670 = vmatmul.mubr.f32.gmra.mrb[0].mxu0 %v1067
  %v2671 = vpop.f32.mrb[0].mxu0
  %v2672 = vadd.f32 %v385, %v2671
  %v2673 = vpop.f32.mrb[0].mxu0
  %2674 = vmatprep.mubr.f32.mxu0 0.0
  %2675 = vmatmul.mubr.f32.gmra.mrb[0].mxu0 %v1070
  %v2676 = vpop.f32.mrb[0].mxu0
  %v2677 = vadd.f32 %v385, %v2676
  %v2678 = vpop.f32.mrb[0].mxu0
  %2679 = vmatprep.mubr.f32.mxu0 0.0
  %2680 = vmatmul.mubr.f32.gmra.mrb[0].mxu0 %v1073
  %v2681 = vpop.f32.mrb[0].mxu0
  %v2682 = vadd.f32 %v385, %v2681
  %v2683 = vpop.f32.mrb[0].mxu0
  %2684 = vmatprep.mubr.f32.mxu0 0.0
  %2685 = vmatmul.mubr.f32.gmra.mrb[0].mxu0 %v1076
  %v2686 = vpop.f32.mrb[0].mxu0
  %v2687 = vadd.f32 %v385, %v2686
  %v2688 = vpop.f32.mrb[0].mxu0
  %2689 = vmatprep.mubr.f32.mxu0 0.0
  %2690 = vmatmul.mubr.f32.gmra.mrb[0].mxu0 %v1079
  %v2691 = vpop.f32.mrb[0].mxu0
  %v2692 = vadd.f32 %v385, %v2691
  %v2693 = vpop.f32.mrb[0].mxu0
  %2694 = vmatprep.mubr.f32.mxu0 0.0
  %2695 = vmatmul.mubr.f32.gmra.mrb[0].mxu0 %v1082
  %v2696 = vpop.f32.mrb[0].mxu0
  %v2697 = vadd.f32 %v385, %v2696
  %v2698 = vpop.f32.mrb[0].mxu0
  %2699 = vmatprep.mubr.f32.mxu0 0.0
  %2700 = vmatmul.mubr.f32.gmra.mrb[0].mxu0 %v1085
  %v2701 = vpop.f32.mrb[0].mxu0
  %v2702 = vadd.f32 %v385, %v2701
  %v2703 = vpop.f32.mrb[0].mxu0
  %2704 = vmatprep.mubr.f32.mxu0 0.0
  %2705 = vmatmul.mubr.f32.gmra.mrb[0].mxu0 %v1088
  %v2706 = vpop.f32.mrb[0].mxu0
  %v2707 = vadd.f32 %v385, %v2706
  %v2708 = vpop.f32.mrb[0].mxu0
  %2709 = vmatprep.mubr.f32.mxu0 0.0
  %2710 = vmatmul.mubr.f32.gmra.mrb[0].mxu0 %v1091
  %v2711 = vpop.f32.mrb[0].mxu0
  %v2712 = vadd.f32 %v385, %v2711
  %v2713 = vpop.f32.mrb[0].mxu0
  %2714 = vmatprep.mubr.f32.mxu0 0.0
  %2715 = vmatmul.mubr.f32.gmra.mrb[0].mxu0 %v1094
  %v2716 = vpop.f32.mrb[0].mxu0
  %v2717 = vadd.f32 %v385, %v2716
  %v2718 = vpop.f32.mrb[0].mxu0
  %2719 = vmatprep.mubr.f32.mxu0 0.0
  %2720 = vmatmul.mubr.f32.gmra.mrb[0].mxu0 %v1097
  %v2721 = vpop.f32.mrb[0].mxu0
  %v2722 = vadd.f32 %v385, %v2721
  %v2723 = vpop.f32.mrb[0].mxu0
  %2724 = vmatprep.mubr.f32.mxu0 0.0
  %2725 = vmatmul.mubr.f32.gmra.mrb[0].mxu0 %v1100
  %v2726 = vpop.f32.mrb[0].mxu0
  %v2727 = vadd.f32 %v385, %v2726
  %v2728 = vpop.f32.mrb[0].mxu0
  %2729 = vmatprep.mubr.f32.mxu0 0.0
  %2730 = vmatmul.mubr.f32.gmra.mrb[0].mxu0 %v1103
  %v2731 = vpop.f32.mrb[0].mxu0
  %v2732 = vadd.f32 %v385, %v2731
  %v2733 = vpop.f32.mrb[0].mxu0
  %2734 = vmatprep.mubr.f32.mxu0 0.0
  %2735 = vmatmul.mubr.f32.gmra.mrb[0].mxu0 %v1106
  %v2736 = vpop.f32.mrb[0].mxu0
  %v2737 = vadd.f32 %v385, %v2736
  %v2738 = vpop.f32.mrb[0].mxu0
  %2739 = vmatprep.mubr.f32.mxu0 0.0
  %2740 = vmatmul.mubr.f32.gmra.mrb[0].mxu0 %v1109
  %v2741 = vpop.f32.mrb[0].mxu0
  %v2742 = vadd.f32 %v385, %v2741
  %v2743 = vpop.f32.mrb[0].mxu0
  %2744 = vmatprep.mubr.f32.mxu0 0.0
  %2745 = vmatmul.mubr.f32.gmra.mrb[0].mxu0 %v1112
  %v2746 = vpop.f32.mrb[0].mxu0
  %v2747 = vadd.f32 %v385, %v2746
  %v2748 = vpop.f32.mrb[0].mxu0
  %2749 = vmatprep.mubr.f32.mxu0 0.0
  %2750 = vmatmul.mubr.f32.gmra.mrb[0].mxu0 %v1115
  %v2751 = vpop.f32.mrb[0].mxu0
  %v2752 = vadd.f32 %v385, %v2751
  %v2753 = vpop.f32.mrb[0].mxu0
  %2754 = vmatprep.mubr.f32.mxu0 0.0
  %2755 = vmatmul.mubr.f32.gmra.mrb[0].mxu0 %v1118
  %v2756 = vpop.f32.mrb[0].mxu0
  %v2757 = vadd.f32 %v385, %v2756
  %v2758 = vpop.f32.mrb[0].mxu0
  %2759 = vmatprep.mubr.f32.mxu0 0.0
  %2760 = vmatmul.mubr.f32.gmra.mrb[0].mxu0 %v1121
  %v2761 = vpop.f32.mrb[0].mxu0
  %v2762 = vadd.f32 %v385, %v2761
  %v2763 = vpop.f32.mrb[0].mxu0
  %2764 = vmatprep.mubr.f32.mxu0 0.0
  %2765 = vmatmul.mubr.f32.gmra.mrb[0].mxu0 %v1124
  %v2766 = vpop.f32.mrb[0].mxu0
  %v2767 = vadd.f32 %v385, %v2766
  %v2768 = vpop.f32.mrb[0].mxu0
  %2769 = vmatprep.mubr.f32.mxu0 0.0
  %2770 = vmatmul.mubr.f32.gmra.mrb[0].mxu0 %v1127
  %v2771 = vpop.f32.mrb[0].mxu0
  %v2772 = vadd.f32 %v385, %v2771
  %v2773 = vpop.f32.mrb[0].mxu0
  %2774 = vmatprep.mubr.f32.mxu0 0.0
  %2775 = vmatmul.mubr.f32.gmra.mrb[0].mxu0 %v1130
  %v2776 = vpop.f32.mrb[0].mxu0
  %v2777 = vadd.f32 %v385, %v2776
  %v2778 = vpop.f32.mrb[0].mxu0
  %2779 = vmatprep.mubr.f32.mxu0 0.0
  %2780 = vmatmul.mubr.f32.gmra.mrb[0].mxu0 %v1133
  %v2781 = vpop.f32.mrb[0].mxu0
  %v2782 = vadd.f32 %v385, %v2781
  %v2783 = vpop.f32.mrb[0].mxu0
  %2784 = vmatprep.mubr.f32.mxu0 0.0
  %2785 = vmatmul.mubr.f32.gmra.mrb[0].mxu0 %v1136
  %v2786 = vpop.f32.mrb[0].mxu0
  %v2787 = vadd.f32 %v385, %v2786
  %v2788 = vpop.f32.mrb[0].mxu0
  %2789 = vmatprep.mubr.f32.mxu0 0.0
  %2790 = vmatmul.mubr.f32.gmra.mrb[0].mxu0 %v1139
  %v2791 = vpop.f32.mrb[0].mxu0
  %v2792 = vadd.f32 %v385, %v2791
  %v2793 = vpop.f32.mrb[0].mxu0
  %2794 = vmatprep.mubr.f32.mxu0 0.0
  %2795 = vmatmul.mubr.f32.gmra.mrb[0].mxu0 %v1142
  %v2796 = vpop.f32.mrb[0].mxu0
  %v2797 = vadd.f32 %v385, %v2796
  %v2798 = vpop.f32.mrb[0].mxu0
  %2799 = vmatprep.mubr.f32.mxu0 0.0
  %2800 = vmatmul.mubr.f32.gmra.mrb[0].mxu0 %v1145
  %v2801 = vpop.f32.mrb[0].mxu0
  %v2802 = vadd.f32 %v385, %v2801
  %v2803 = vpop.f32.mrb[0].mxu0
  %2804 = vmatprep.mubr.f32.mxu0 0.0
  %2805 = vmatmul.mubr.f32.gmra.mrb[0].mxu0 %v1148
  %v2806 = vpop.f32.mrb[0].mxu0
  %v2807 = vadd.f32 %v385, %v2806
  %v2808 = vpop.f32.mrb[0].mxu0
  %2809 = vmatprep.mubr.f32.mxu0 0.0
  %2810 = vmatmul.mubr.f32.gmra.mrb[0].mxu0 %v1151
  %v2811 = vpop.f32.mrb[0].mxu0
  %v2812 = vadd.f32 %v385, %v2811
  %v2813 = vpop.f32.mrb[0].mxu0
  %2814 = vmatprep.mubr.f32.mxu0 0.0
  %2815 = vmatmul.mubr.f32.gmra.mrb[0].mxu0 %v1154
  %v2816 = vpop.f32.mrb[0].mxu0
  %v2817 = vadd.f32 %v385, %v2816
  %v2818 = vpop.f32.mrb[0].mxu0
  %2819 = vmatprep.mubr.f32.mxu0 0.0
  %2820 = vmatmul.mubr.f32.gmra.mrb[0].mxu0 %v1157
  %v2821 = vpop.f32.mrb[0].mxu0
  %v2822 = vadd.f32 %v385, %v2821
  %v2823 = vpop.f32.mrb[0].mxu0
  %2824 = vmatprep.mubr.f32.mxu0 0.0
  %2825 = vmatmul.mubr.f32.gmra.mrb[0].mxu0 %v1160
  %v2826 = vpop.f32.mrb[0].mxu0
  %v2827 = vadd.f32 %v385, %v2826
  %v2828 = vpop.f32.mrb[0].mxu0
  %2829 = vmatprep.mubr.f32.mxu0 0.0
  %2830 = vmatmul.mubr.f32.gmra.mrb[0].mxu0 %v1163
  %v2831 = vpop.f32.mrb[0].mxu0
  %v2832 = vadd.f32 %v385, %v2831
  %v2833 = vpop.f32.mrb[0].mxu0
  %2834 = vmatprep.mubr.f32.mxu0 0.0
  %2835 = vmatmul.mubr.f32.gmra.mrb[0].mxu0 %v1166
  %v2836 = vpop.f32.mrb[0].mxu0
  %v2837 = vadd.f32 %v385, %v2836
  %v2838 = vpop.f32.mrb[0].mxu0
  %2839 = vmatprep.mubr.f32.mxu0 0.0
  %2840 = vmatmul.mubr.f32.gmra.mrb[0].mxu0 %v1169
  %v2841 = vpop.f32.mrb[0].mxu0
  %v2842 = vadd.f32 %v385, %v2841
  %v2843 = vpop.f32.mrb[0].mxu0
  %2844 = vmatprep.mubr.f32.mxu0 0.0
  %2845 = vmatmul.mubr.f32.gmra.mrb[0].mxu0 %v1172
  %v2846 = vpop.f32.mrb[0].mxu0
  %v2847 = vadd.f32 %v385, %v2846
  %v2848 = vpop.f32.mrb[0].mxu0
  %2849 = vmatprep.mubr.f32.mxu0 0.0
  %2850 = vmatmul.mubr.f32.gmra.mrb[0].mxu0 %v1175
  %v2851 = vpop.f32.mrb[0].mxu0
  %v2852 = vadd.f32 %v385, %v2851
  %v2853 = vpop.f32.mrb[0].mxu0
  %2854 = vmatprep.mubr.f32.mxu0 0.0
  %2855 = vmatmul.mubr.f32.gmra.mrb[0].mxu0 %v1178
  %v2856 = vpop.f32.mrb[0].mxu0
  %v2857 = vadd.f32 %v385, %v2856
  %v2858 = vpop.f32.mrb[0].mxu0
  %2859 = vmatprep.mubr.f32.mxu0 0.0
  %2860 = vmatmul.mubr.f32.gmra.mrb[0].mxu0 %v1181
  %v2861 = vpop.f32.mrb[0].mxu0
  %v2862 = vadd.f32 %v385, %v2861
  %v2863 = vpop.f32.mrb[0].mxu0
  %2864 = vmatprep.mubr.f32.mxu0 0.0
  %2865 = vmatmul.mubr.f32.gmra.mrb[0].mxu0 %v1184
  %v2866 = vpop.f32.mrb[0].mxu0
  %v2867 = vadd.f32 %v385, %v2866
  %v2868 = vpop.f32.mrb[0].mxu0
  %2869 = vmatprep.mubr.f32.mxu0 0.0
  %2870 = vmatmul.mubr.f32.gmra.mrb[0].mxu0 %v1187
  %v2871 = vpop.f32.mrb[0].mxu0
  %v2872 = vadd.f32 %v385, %v2871
  %v2873 = vpop.f32.mrb[0].mxu0
  %2874 = vmatprep.mubr.f32.mxu0 0.0
  %2875 = vmatmul.mubr.f32.gmra.mrb[0].mxu0 %v1190
  %v2876 = vpop.f32.mrb[0].mxu0
  %v2877 = vadd.f32 %v385, %v2876
  %v2878 = vpop.f32.mrb[0].mxu0
  %2879 = vmatprep.mubr.f32.mxu0 0.0
  %2880 = vmatmul.mubr.f32.gmra.mrb[0].mxu0 %v1193
  %v2881 = vpop.f32.mrb[0].mxu0
  %v2882 = vadd.f32 %v385, %v2881
  %v2883 = vpop.f32.mrb[0].mxu0
  %2884 = vmatprep.mubr.f32.mxu0 0.0
  %2885 = vmatmul.mubr.f32.gmra.mrb[0].mxu0 %v1196
  %v2886 = vpop.f32.mrb[0].mxu0
  %v2887 = vadd.f32 %v385, %v2886
  %v2888 = vpop.f32.mrb[0].mxu0
  %2889 = vmatprep.mubr.f32.mxu0 0.0
  %2890 = vmatmul.mubr.f32.gmra.mrb[0].mxu0 %v1199
  %v2891 = vpop.f32.mrb[0].mxu0
  %v2892 = vadd.f32 %v385, %v2891
  %v2893 = vpop.f32.mrb[0].mxu0
  %2894 = vmatprep.mubr.f32.mxu0 0.0
  %2895 = vmatmul.mubr.f32.gmra.mrb[0].mxu0 %v1202
  %v2896 = vpop.f32.mrb[0].mxu0
  %v2897 = vadd.f32 %v385, %v2896
  %v2898 = vpop.f32.mrb[0].mxu0
  %2899 = vmatprep.mubr.f32.mxu0 0.0
  %2900 = vmatmul.mubr.f32.gmra.mrb[0].mxu0 %v1205
  %v2901 = vpop.f32.mrb[0].mxu0
  %v2902 = vadd.f32 %v385, %v2901
  %v2903 = vpop.f32.mrb[0].mxu0
  %2904 = vmatprep.mubr.f32.mxu0 0.0
  %2905 = vmatmul.mubr.f32.gmra.mrb[0].mxu0 %v1208
  %v2906 = vpop.f32.mrb[0].mxu0
  %v2907 = vadd.f32 %v385, %v2906
  %v2908 = vpop.f32.mrb[0].mxu0
  %2909 = vmatprep.mubr.f32.mxu0 0.0
  %2910 = vmatmul.mubr.f32.gmra.mrb[0].mxu0 %v1211
  %v2911 = vpop.f32.mrb[0].mxu0
  %v2912 = vadd.f32 %v385, %v2911
  %v2913 = vpop.f32.mrb[0].mxu0
  %2914 = vmatprep.mubr.f32.mxu0 0.0
  %2915 = vmatmul.mubr.f32.gmra.mrb[0].mxu0 %v1214
  %v2916 = vpop.f32.mrb[0].mxu0
  %v2917 = vadd.f32 %v385, %v2916
  %v2918 = vpop.f32.mrb[0].mxu0
  %2919 = vmatprep.mubr.f32.mxu0 0.0
  %2920 = vmatmul.mubr.f32.gmra.mrb[0].mxu0 %v1217
  %v2921 = vpop.f32.mrb[0].mxu0
  %v2922 = vadd.f32 %v385, %v2921
  %v2923 = vpop.f32.mrb[0].mxu0
  %2924 = vmatprep.mubr.f32.mxu0 0.0
  %2925 = vmatmul.mubr.f32.gmra.mrb[0].mxu0 %v1220
  %v2926 = vpop.f32.mrb[0].mxu0
  %v2927 = vadd.f32 %v385, %v2926
  %v2928 = vpop.f32.mrb[0].mxu0
  %2929 = vmatprep.mubr.f32.mxu0 0.0
  %2930 = vmatmul.mubr.f32.gmra.mrb[0].mxu0 %v1223
  %v2931 = vpop.f32.mrb[0].mxu0
  %v2932 = vadd.f32 %v385, %v2931
  %v2933 = vpop.f32.mrb[0].mxu0
  %2934 = vmatprep.mubr.f32.mxu0 0.0
  %2935 = vmatmul.mubr.f32.gmra.mrb[0].mxu0 %v1226
  %v2936 = vpop.f32.mrb[0].mxu0
  %v2937 = vadd.f32 %v385, %v2936
  %v2938 = vpop.f32.mrb[0].mxu0
  %2939 = vmatprep.mubr.f32.mxu0 0.0
  %2940 = vmatmul.mubr.f32.gmra.mrb[0].mxu0 %v1229
  %v2941 = vpop.f32.mrb[0].mxu0
  %v2942 = vadd.f32 %v385, %v2941
  %v2943 = vpop.f32.mrb[0].mxu0
  %2944 = vmatprep.mubr.f32.mxu0 0.0
  %2945 = vmatmul.mubr.f32.gmra.mrb[0].mxu0 %v1232
  %v2946 = vpop.f32.mrb[0].mxu0
  %v2947 = vadd.f32 %v385, %v2946
  %v2948 = vpop.f32.mrb[0].mxu0
  %2949 = vmatprep.mubr.f32.mxu0 0.0
  %2950 = vmatmul.mubr.f32.gmra.mrb[0].mxu0 %v1235
  %v2951 = vpop.f32.mrb[0].mxu0
  %v2952 = vadd.f32 %v385, %v2951
  %v2953 = vpop.f32.mrb[0].mxu0
  %2954 = vmatprep.mubr.f32.mxu0 0.0
  %2955 = vmatmul.mubr.f32.gmra.mrb[0].mxu0 %v1238
  %v2956 = vpop.f32.mrb[0].mxu0
  %v2957 = vadd.f32 %v385, %v2956
  %v2958 = vpop.f32.mrb[0].mxu0
  %2959 = vmatprep.mubr.f32.mxu0 0.0
  %2960 = vmatmul.mubr.f32.gmra.mrb[0].mxu0 %v1241
  %v2961 = vpop.f32.mrb[0].mxu0
  %v2962 = vadd.f32 %v385, %v2961
  %v2963 = vpop.f32.mrb[0].mxu0
  %2964 = vmatprep.mubr.f32.mxu0 0.0
  %2965 = vmatmul.mubr.f32.gmra.mrb[0].mxu0 %v1244
  %v2966 = vpop.f32.mrb[0].mxu0
  %v2967 = vadd.f32 %v385, %v2966
  %v2968 = vpop.f32.mrb[0].mxu0
  %2969 = vmatprep.mubr.f32.mxu0 0.0
  %2970 = vmatmul.mubr.f32.gmra.mrb[0].mxu0 %v1247
  %v2971 = vpop.f32.mrb[0].mxu0
  %v2972 = vadd.f32 %v385, %v2971
  %v2973 = vpop.f32.mrb[0].mxu0
  %2974 = vmatprep.mubr.f32.mxu0 0.0
  %2975 = vmatmul.mubr.f32.gmra.mrb[0].mxu0 %v1250
  %v2976 = vpop.f32.mrb[0].mxu0
  %v2977 = vadd.f32 %v385, %v2976
  %v2978 = vpop.f32.mrb[0].mxu0
  %2979 = vmatprep.mubr.f32.mxu0 0.0
  %2980 = vmatmul.mubr.f32.gmra.mrb[0].mxu0 %v1253
  %v2981 = vpop.f32.mrb[0].mxu0
  %v2982 = vadd.f32 %v385, %v2981
  %v2983 = vpop.f32.mrb[0].mxu0
  %2984 = vmatprep.mubr.f32.mxu0 0.0
  %2985 = vmatmul.mubr.f32.gmra.mrb[0].mxu0 %v1256
  %v2986 = vpop.f32.mrb[0].mxu0
  %v2987 = vadd.f32 %v385, %v2986
  %v2988 = vpop.f32.mrb[0].mxu0
  %2989 = vmatprep.mubr.f32.mxu0 0.0
  %2990 = vmatmul.mubr.f32.gmra.mrb[0].mxu0 %v1259
  %v2991 = vpop.f32.mrb[0].mxu0
  %v2992 = vadd.f32 %v385, %v2991
  %v2993 = vpop.f32.mrb[0].mxu0
  %2994 = vmatprep.mubr.f32.mxu0 0.0
  %2995 = vmatmul.mubr.f32.gmra.mrb[0].mxu0 %v1262
  %v2996 = vpop.f32.mrb[0].mxu0
  %v2997 = vadd.f32 %v385, %v2996
  %v2998 = vpop.f32.mrb[0].mxu0
  %2999 = vmatprep.mubr.f32.mxu0 0.0
  %3000 = vmatmul.mubr.f32.gmra.mrb[0].mxu0 %v1265
  %v3001 = vpop.f32.mrb[0].mxu0
  %v3002 = vadd.f32 %v385, %v3001
  %v3003 = vpop.f32.mrb[0].mxu0
  %3004 = vmatprep.mubr.f32.mxu0 0.0
  %3005 = vmatmul.mubr.f32.gmra.mrb[0].mxu0 %v1268
  %v3006 = vpop.f32.mrb[0].mxu0
  %v3007 = vadd.f32 %v385, %v3006
  %v3008 = vpop.f32.mrb[0].mxu0
  %3009 = vmatprep.mubr.f32.mxu0 0.0
  %3010 = vmatmul.mubr.f32.gmra.mrb[0].mxu0 %v1271
  %v3011 = vpop.f32.mrb[0].mxu0
  %v3012 = vadd.f32 %v385, %v3011
  %v3013 = vpop.f32.mrb[0].mxu0
  %3014 = vmatprep.mubr.f32.mxu0 0.0
  %3015 = vmatmul.mubr.f32.gmra.mrb[0].mxu0 %v1274
  %v3016 = vpop.f32.mrb[0].mxu0
  %v3017 = vadd.f32 %v385, %v3016
  %v3018 = vpop.f32.mrb[0].mxu0
  %3019 = vmatprep.mubr.f32.mxu0 0.0
  %3020 = vmatmul.mubr.f32.gmra.mrb[0].mxu0 %v1277
  %v3021 = vpop.f32.mrb[0].mxu0
  %v3022 = vadd.f32 %v385, %v3021
  %v3023 = vpop.f32.mrb[0].mxu0
  %3024 = vmatprep.mubr.f32.mxu0 0.0
  %3025 = vmatmul.mubr.f32.gmra.mrb[0].mxu0 %v1280
  %v3026 = vpop.f32.mrb[0].mxu0
  %v3027 = vadd.f32 %v385, %v3026
  %v3028 = vpop.f32.mrb[0].mxu0
  %3029 = vmatprep.mubr.f32.mxu0 0.0
  %3030 = vmatmul.mubr.f32.gmra.mrb[0].mxu0 %v1283
  %v3031 = vpop.f32.mrb[0].mxu0
  %v3032 = vadd.f32 %v385, %v3031
  %v3033 = vpop.f32.mrb[0].mxu0
  %3034 = vmatprep.mubr.f32.mxu0 0.0
  %3035 = vmatmul.mubr.f32.gmra.mrb[0].mxu0 %v1286
  %v3036 = vpop.f32.mrb[0].mxu0
  %v3037 = vadd.f32 %v385, %v3036
  %v3038 = vpop.f32.mrb[0].mxu0
  %3039 = vmatprep.mubr.f32.mxu0 0.0
  %3040 = vmatmul.mubr.f32.gmra.mrb[0].mxu0 %v1289
  %v3041 = vpop.f32.mrb[0].mxu0
  %v3042 = vadd.f32 %v385, %v3041
  %v3043 = vpop.f32.mrb[0].mxu0
  %3044 = vmatprep.mubr.f32.mxu0 0.0
  %3045 = vmatmul.mubr.f32.gmra.mrb[0].mxu0 %v1292
  %v3046 = vpop.f32.mrb[0].mxu0
  %v3047 = vadd.f32 %v385, %v3046
  %v3048 = vpop.f32.mrb[0].mxu0
  %3049 = vmatprep.mubr.f32.mxu0 0.0
  %3050 = vmatmul.mubr.f32.gmra.mrb[0].mxu0 %v1295
  %v3051 = vpop.f32.mrb[0].mxu0
  %v3052 = vadd.f32 %v385, %v3051
  %v3053 = vpop.f32.mrb[0].mxu0
  %3054 = vmatprep.mubr.f32.mxu0 0.0
  %3055 = vmatmul.mubr.f32.gmra.mrb[0].mxu0 %v1298
  %v3056 = vpop.f32.mrb[0].mxu0
  %v3057 = vadd.f32 %v385, %v3056
  %v3058 = vpop.f32.mrb[0].mxu0
  %3059 = vmatprep.mubr.f32.mxu0 0.0
  %3060 = vmatmul.mubr.f32.gmra.mrb[0].mxu0 %v1301
  %v3061 = vpop.f32.mrb[0].mxu0
  %v3062 = vadd.f32 %v385, %v3061
  %v3063 = vpop.f32.mrb[0].mxu0
  %3064 = vmatprep.mubr.f32.mxu0 0.0
  %3065 = vmatmul.mubr.f32.gmra.mrb[0].mxu0 %v1304
  %v3066 = vpop.f32.mrb[0].mxu0
  %v3067 = vadd.f32 %v385, %v3066
  %v3068 = vpop.f32.mrb[0].mxu0
  %3069 = vmatprep.mubr.f32.mxu0 0.0
  %3070 = vmatmul.mubr.f32.gmra.mrb[0].mxu0 %v1307
  %v3071 = vpop.f32.mrb[0].mxu0
  %v3072 = vadd.f32 %v385, %v3071
  %v3073 = vpop.f32.mrb[0].mxu0
  %3074 = vmatprep.mubr.f32.mxu0 0.0
  %3075 = vmatmul.mubr.f32.gmra.mrb[0].mxu0 %v1310
  %v3076 = vpop.f32.mrb[0].mxu0
  %v3077 = vadd.f32 %v385, %v3076
  %v3078 = vpop.f32.mrb[0].mxu0
  %3079 = vmatprep.mubr.f32.mxu0 0.0
  %3080 = vmatmul.mubr.f32.gmra.mrb[0].mxu0 %v1313
  %v3081 = vpop.f32.mrb[0].mxu0
  %v3082 = vadd.f32 %v385, %v3081
  %v3083 = vpop.f32.mrb[0].mxu0
  %3084 = vmatprep.mubr.f32.mxu0 0.0
  %3085 = vmatmul.mubr.f32.gmra.mrb[0].mxu0 %v1316
  %v3086 = vpop.f32.mrb[0].mxu0
  %v3087 = vadd.f32 %v385, %v3086
  %v3088 = vpop.f32.mrb[0].mxu0
  %3089 = vmatprep.mubr.f32.mxu0 0.0
  %3090 = vmatmul.mubr.f32.gmra.mrb[0].mxu0 %v1319
  %v3091 = vpop.f32.mrb[0].mxu0
  %v3092 = vadd.f32 %v385, %v3091
  %v3093 = vpop.f32.mrb[0].mxu0
  %3094 = vmatprep.mubr.f32.mxu0 0.0
  %3095 = vmatmul.mubr.f32.gmra.mrb[0].mxu0 %v1322
  %v3096 = vpop.f32.mrb[0].mxu0
  %v3097 = vadd.f32 %v385, %v3096
  %v3098 = vpop.f32.mrb[0].mxu0
  %3099 = vmatprep.mubr.f32.mxu0 0.0
  %3100 = vmatmul.mubr.f32.gmra.mrb[0].mxu0 %v1325
  %v3101 = vpop.f32.mrb[0].mxu0
  %v3102 = vadd.f32 %v385, %v3101
  %v3103 = vpop.f32.mrb[0].mxu0
  %3104 = vmatprep.mubr.f32.mxu0 0.0
  %3105 = vmatmul.mubr.f32.gmra.mrb[0].mxu0 %v1328
  %v3106 = vpop.f32.mrb[0].mxu0
  %v3107 = vadd.f32 %v385, %v3106
  %v3108 = vpop.f32.mrb[0].mxu0
  %3109 = vmatprep.mubr.f32.mxu0 0.0
  %3110 = vmatmul.mubr.f32.gmra.mrb[0].mxu0 %v1331
  %v3111 = vpop.f32.mrb[0].mxu0
  %v3112 = vadd.f32 %v385, %v3111
  %v3113 = vpop.f32.mrb[0].mxu0
  %3114 = vmatprep.mubr.f32.mxu0 0.0
  %3115 = vmatmul.mubr.f32.gmra.mrb[0].mxu0 %v1334
  %v3116 = vpop.f32.mrb[0].mxu0
  %v3117 = vadd.f32 %v385, %v3116
  %v3118 = vpop.f32.mrb[0].mxu0
  %3119 = vmatprep.mubr.f32.mxu0 0.0
  %3120 = vmatmul.mubr.f32.gmra.mrb[0].mxu0 %v1337
  %v3121 = vpop.f32.mrb[0].mxu0
  %v3122 = vadd.f32 %v385, %v3121
  %v3123 = vpop.f32.mrb[0].mxu0
  %3124 = vmatprep.mubr.f32.mxu0 0.0
  %3125 = vmatmul.mubr.f32.gmra.mrb[0].mxu0 %v1340
  %v3126 = vpop.f32.mrb[0].mxu0
  %v3127 = vadd.f32 %v385, %v3126
  %v3128 = vpop.f32.mrb[0].mxu0
  %3129 = vmatprep.mubr.f32.mxu0 0.0
  %3130 = vmatmul.mubr.f32.gmra.mrb[0].mxu0 %v1343
  %v3131 = vpop.f32.mrb[0].mxu0
  %v3132 = vadd.f32 %v385, %v3131
  %v3133 = vpop.f32.mrb[0].mxu0
  %3134 = vmatprep.mubr.f32.mxu0 0.0
  %3135 = vmatmul.mubr.f32.gmra.mrb[0].mxu0 %v1346
  %v3136 = vpop.f32.mrb[0].mxu0
  %v3137 = vadd.f32 %v385, %v3136
  %v3138 = vpop.f32.mrb[0].mxu0
  %3139 = vmatprep.mubr.f32.mxu0 0.0
  %3140 = vmatmul.mubr.f32.gmra.mrb[0].mxu0 %v1349
  %v3141 = vpop.f32.mrb[0].mxu0
  %v3142 = vadd.f32 %v385, %v3141
  %v3143 = vpop.f32.mrb[0].mxu0
  %3144 = vmatprep.mubr.f32.mxu0 0.0
  %3145 = vmatmul.mubr.f32.gmra.mrb[0].mxu0 %v1352
  %v3146 = vpop.f32.mrb[0].mxu0
  %v3147 = vadd.f32 %v385, %v3146
  %v3148 = vpop.f32.mrb[0].mxu0
  %3149 = vmatprep.mubr.f32.mxu0 0.0
  %3150 = vmatmul.mubr.f32.gmra.mrb[0].mxu0 %v1355
  %v3151 = vpop.f32.mrb[0].mxu0
  %v3152 = vadd.f32 %v385, %v3151
  %v3153 = vpop.f32.mrb[0].mxu0
  %3154 = vmatprep.mubr.f32.mxu0 0.0
  %3155 = vmatmul.mubr.f32.gmra.mrb[0].mxu0 %v1358
  %v3156 = vpop.f32.mrb[0].mxu0
  %v3157 = vadd.f32 %v385, %v3156
  %v3158 = vpop.f32.mrb[0].mxu0
  %3159 = vmatprep.mubr.f32.mxu0 0.0
  %3160 = vmatmul.mubr.f32.gmra.mrb[0].mxu0 %v1361
  %v3161 = vpop.f32.mrb[0].mxu0
  %v3162 = vadd.f32 %v385, %v3161
  %v3163 = vpop.f32.mrb[0].mxu0
  %3164 = vmatprep.mubr.f32.mxu0 0.0
  %3165 = vmatmul.mubr.f32.gmra.mrb[0].mxu0 %v1364
  %v3166 = vpop.f32.mrb[0].mxu0
  %v3167 = vadd.f32 %v385, %v3166
  %v3168 = vpop.f32.mrb[0].mxu0
  %3169 = vmatprep.mubr.f32.mxu0 0.0
  %3170 = vmatmul.mubr.f32.gmra.mrb[0].mxu0 %v1367
  %v3171 = vpop.f32.mrb[0].mxu0
  %v3172 = vadd.f32 %v385, %v3171
  %v3173 = vpop.f32.mrb[0].mxu0
  %3174 = vmatprep.mubr.f32.mxu0 0.0
  %3175 = vmatmul.mubr.f32.gmra.mrb[0].mxu0 %v1370
  %v3176 = vpop.f32.mrb[0].mxu0
  %v3177 = vadd.f32 %v385, %v3176
  %v3178 = vpop.f32.mrb[0].mxu0
  %3179 = vmatprep.mubr.f32.mxu0 0.0
  %3180 = vmatmul.mubr.f32.gmra.mrb[0].mxu0 %v1373
  %v3181 = vpop.f32.mrb[0].mxu0
  %v3182 = vadd.f32 %v385, %v3181
  %v3183 = vpop.f32.mrb[0].mxu0
  %3184 = vmatprep.mubr.f32.mxu0 0.0
  %3185 = vmatmul.mubr.f32.gmra.mrb[0].mxu0 %v1376
  %v3186 = vpop.f32.mrb[0].mxu0
  %v3187 = vadd.f32 %v385, %v3186
  %v3188 = vpop.f32.mrb[0].mxu0
  %3189 = vmatprep.mubr.f32.mxu0 0.0
  %3190 = vmatmul.mubr.f32.gmra.mrb[0].mxu0 %v1379
  %v3191 = vpop.f32.mrb[0].mxu0
  %v3192 = vadd.f32 %v385, %v3191
  %v3193 = vpop.f32.mrb[0].mxu0
  %3194 = vmatprep.mubr.f32.mxu0 0.0
  %3195 = vmatmul.mubr.f32.gmra.mrb[0].mxu0 %v1382
  %v3196 = vpop.f32.mrb[0].mxu0
  %v3197 = vadd.f32 %v385, %v3196
  %v3198 = vpop.f32.mrb[0].mxu0
  %3199 = vmatprep.mubr.f32.mxu0 0.0
  %3200 = vmatmul.mubr.f32.gmra.mrb[0].mxu0 %v1385
  %v3201 = vpop.f32.mrb[0].mxu0
  %v3202 = vadd.f32 %v385, %v3201
  %v3203 = vpop.f32.mrb[0].mxu0
  %3204 = vmatprep.mubr.f32.mxu0 0.0
  %3205 = vmatmul.mubr.f32.gmra.mrb[0].mxu0 %v1388
  %v3206 = vpop.f32.mrb[0].mxu0
  %v3207 = vadd.f32 %v385, %v3206
  %v3208 = vpop.f32.mrb[0].mxu0
  %3209 = vmatprep.mubr.f32.mxu0 0.0
  %3210 = vmatmul.mubr.f32.gmra.mrb[0].mxu0 %v1391
  %v3211 = vpop.f32.mrb[0].mxu0
  %v3212 = vadd.f32 %v385, %v3211
  %v3213 = vpop.f32.mrb[0].mxu0
  %3214 = vmatprep.mubr.f32.mxu0 0.0
  %3215 = vmatmul.mubr.f32.gmra.mrb[0].mxu0 %v1394
  %v3216 = vpop.f32.mrb[0].mxu0
  %v3217 = vadd.f32 %v385, %v3216
  %v3218 = vpop.f32.mrb[0].mxu0
  %3219 = vmatprep.mubr.f32.mxu0 0.0
  %3220 = vmatmul.mubr.f32.gmra.mrb[0].mxu0 %v1397
  %v3221 = vpop.f32.mrb[0].mxu0
  %v3222 = vadd.f32 %v385, %v3221
  %v3223 = vpop.f32.mrb[0].mxu0
  %3224 = vmatprep.mubr.f32.mxu0 0.0
  %3225 = vmatmul.mubr.f32.gmra.mrb[0].mxu0 %v1400
  %v3226 = vpop.f32.mrb[0].mxu0
  %v3227 = vadd.f32 %v385, %v3226
  %v3228 = vpop.f32.mrb[0].mxu0
  %3229 = vmatprep.mubr.f32.mxu0 0.0
  %3230 = vmatmul.mubr.f32.gmra.mrb[0].mxu0 %v1403
  %v3231 = vpop.f32.mrb[0].mxu0
  %v3232 = vadd.f32 %v385, %v3231
  %v3233 = vpop.f32.mrb[0].mxu0
  %3234 = vmatprep.mubr.f32.mxu0 0.0
  %3235 = vmatmul.mubr.f32.gmra.mrb[0].mxu0 %v1406
  %v3236 = vpop.f32.mrb[0].mxu0
  %v3237 = vadd.f32 %v385, %v3236
  %v3238 = vpop.f32.mrb[0].mxu0
  %3239 = vmatprep.mubr.f32.mxu0 0.0
  %3240 = vmatmul.mubr.f32.gmra.mrb[0].mxu0 %v1409
  %v3241 = vpop.f32.mrb[0].mxu0
  %v3242 = vadd.f32 %v385, %v3241
  %v3243 = vpop.f32.mrb[0].mxu0
  %3244 = vmatprep.mubr.f32.mxu0 0.0
  %3245 = vmatmul.mubr.f32.gmra.mrb[0].mxu0 %v1412
  %v3246 = vpop.f32.mrb[0].mxu0
  %v3247 = vadd.f32 %v385, %v3246
  %v3248 = vpop.f32.mrb[0].mxu0
  %3249 = vmatprep.mubr.f32.mxu0 0.0
  %3250 = vmatmul.mubr.f32.gmra.mrb[0].mxu0 %v1415
  %v3251 = vpop.f32.mrb[0].mxu0
  %v3252 = vadd.f32 %v385, %v3251
  %v3253 = vpop.f32.mrb[0].mxu0
  %3254 = vmatprep.mubr.f32.mxu0 0.0
  %3255 = vmatmul.mubr.f32.gmra.mrb[0].mxu0 %v1418
  %v3256 = vpop.f32.mrb[0].mxu0
  %v3257 = vadd.f32 %v385, %v3256
  %v3258 = vpop.f32.mrb[0].mxu0
  %3259 = vmatprep.mubr.f32.mxu0 0.0
  %3260 = vmatmul.mubr.f32.gmra.mrb[0].mxu0 %v1421
  %v3261 = vpop.f32.mrb[0].mxu0
  %v3262 = vadd.f32 %v385, %v3261
  %v3263 = vpop.f32.mrb[0].mxu0
  %3264 = vmatprep.mubr.f32.mxu0 0.0
  %3265 = vmatmul.mubr.f32.gmra.mrb[0].mxu0 %v1424
  %v3266 = vpop.f32.mrb[0].mxu0
  %v3267 = vadd.f32 %v385, %v3266
  %v3268 = vpop.f32.mrb[0].mxu0
  %3269 = vmatprep.mubr.f32.mxu0 0.0
  %3270 = vmatmul.mubr.f32.gmra.mrb[0].mxu0 %v1427
  %v3271 = vpop.f32.mrb[0].mxu0
  %v3272 = vadd.f32 %v385, %v3271
  %v3273 = vpop.f32.mrb[0].mxu0
  %3274 = vmatprep.mubr.f32.mxu0 0.0
  %3275 = vmatmul.mubr.f32.gmra.mrb[0].mxu0 %v1430
  %v3276 = vpop.f32.mrb[0].mxu0
  %v3277 = vadd.f32 %v385, %v3276
  %v3278 = vpop.f32.mrb[0].mxu0
  %3279 = vmatprep.mubr.f32.mxu0 0.0
  %3280 = vmatmul.mubr.f32.gmra.mrb[0].mxu0 %v1433
  %v3281 = vpop.f32.mrb[0].mxu0
  %v3282 = vadd.f32 %v385, %v3281
  %v3283 = vpop.f32.mrb[0].mxu0
  %3284 = vmatprep.mubr.f32.mxu0 0.0
  %3285 = vmatmul.mubr.f32.gmra.mrb[0].mxu0 %v1436
  %v3286 = vpop.f32.mrb[0].mxu0
  %v3287 = vadd.f32 %v385, %v3286
  %v3288 = vpop.f32.mrb[0].mxu0
  %3289 = vmatprep.mubr.f32.mxu0 0.0
  %3290 = vmatmul.mubr.f32.gmra.mrb[0].mxu0 %v1439
  %v3291 = vpop.f32.mrb[0].mxu0
  %v3292 = vadd.f32 %v385, %v3291
  %v3293 = vpop.f32.mrb[0].mxu0
  %3294 = vmatprep.mubr.f32.mxu0 0.0
  %3295 = vmatmul.mubr.f32.gmra.mrb[0].mxu0 %v1442
  %v3296 = vpop.f32.mrb[0].mxu0
  %v3297 = vadd.f32 %v385, %v3296
  %v3298 = vpop.f32.mrb[0].mxu0
  %3299 = vmatprep.mubr.f32.mxu0 0.0
  %3300 = vmatmul.mubr.f32.gmra.mrb[0].mxu0 %v1445
  %v3301 = vpop.f32.mrb[0].mxu0
  %v3302 = vadd.f32 %v385, %v3301
  %v3303 = vpop.f32.mrb[0].mxu0
  %3304 = vmatprep.mubr.f32.mxu0 0.0
  %3305 = vmatmul.mubr.f32.gmra.mrb[0].mxu0 %v1448
  %v3306 = vpop.f32.mrb[0].mxu0
  %v3307 = vadd.f32 %v385, %v3306
  %v3308 = vpop.f32.mrb[0].mxu0
  %3309 = vmatprep.mubr.f32.mxu0 0.0
  %3310 = vmatmul.mubr.f32.gmra.mrb[0].mxu0 %v1451
  %v3311 = vpop.f32.mrb[0].mxu0
  %v3312 = vadd.f32 %v385, %v3311
  %v3313 = vpop.f32.mrb[0].mxu0
  %3314 = vmatprep.mubr.f32.mxu0 0.0
  %3315 = vmatmul.mubr.f32.gmra.mrb[0].mxu0 %v1454
  %v3316 = vpop.f32.mrb[0].mxu0
  %v3317 = vadd.f32 %v385, %v3316
  %v3318 = vpop.f32.mrb[0].mxu0
  %3319 = vmatprep.mubr.f32.mxu0 0.0
  %3320 = vmatmul.mubr.f32.gmra.mrb[0].mxu0 %v1457
  %v3321 = vpop.f32.mrb[0].mxu0
  %v3322 = vadd.f32 %v385, %v3321
  %v3323 = vpop.f32.mrb[0].mxu0
  %3324 = vmatprep.mubr.f32.mxu0 0.0
  %3325 = vmatmul.mubr.f32.gmra.mrb[0].mxu0 %v1460
  %v3326 = vpop.f32.mrb[0].mxu0
  %v3327 = vadd.f32 %v385, %v3326
  %v3328 = vpop.f32.mrb[0].mxu0
  %3329 = vmatprep.mubr.f32.mxu0 0.0
  %3330 = vmatmul.mubr.f32.gmra.mrb[0].mxu0 %v1463
  %v3331 = vpop.f32.mrb[0].mxu0
  %v3332 = vadd.f32 %v385, %v3331
  %v3333 = vpop.f32.mrb[0].mxu0
  %3334 = vmatprep.mubr.f32.mxu0 0.0
  %3335 = vmatmul.mubr.f32.gmra.mrb[0].mxu0 %v1466
  %v3336 = vpop.f32.mrb[0].mxu0
  %v3337 = vadd.f32 %v385, %v3336
  %v3338 = vpop.f32.mrb[0].mxu0
  %3339 = vmatprep.mubr.f32.mxu0 0.0
  %3340 = vmatmul.mubr.f32.gmra.mrb[0].mxu0 %v1469
  %v3341 = vpop.f32.mrb[0].mxu0
  %v3342 = vadd.f32 %v385, %v3341
  %v3343 = vpop.f32.mrb[0].mxu0
  %3344 = vdwg.mxu0
  %vm3345 = vcmp.ge.f32.partialorder %v1542, 0.0
  %vm3346 = vcmp.ge.f32.partialorder %v1547, 0.0
  %vm3347 = vcmp.ge.f32.partialorder %v1552, 0.0
  %vm3348 = vcmp.ge.f32.partialorder %v1557, 0.0
  %vm3349 = vcmp.ge.f32.partialorder %v1562, 0.0
  %vm3350 = vcmp.ge.f32.partialorder %v1567, 0.0
  %vm3351 = vcmp.ge.f32.partialorder %v1572, 0.0
  %vm3352 = vcmp.ge.f32.partialorder %v1577, 0.0
  %vm3353 = vcmp.ge.f32.partialorder %v1582, 0.0
  %vm3354 = vcmp.ge.f32.partialorder %v1587, 0.0
  %vm3355 = vcmp.ge.f32.partialorder %v1592, 0.0
  %vm3356 = vcmp.ge.f32.partialorder %v1597, 0.0
  %vm3357 = vcmp.ge.f32.partialorder %v1602, 0.0
  %vm3358 = vcmp.ge.f32.partialorder %v1607, 0.0
  %vm3359 = vcmp.ge.f32.partialorder %v1612, 0.0
  %vm3360 = vcmp.ge.f32.partialorder %v1617, 0.0
  %vm3361 = vcmp.ge.f32.partialorder %v1622, 0.0
  %vm3362 = vcmp.ge.f32.partialorder %v1627, 0.0
  %vm3363 = vcmp.ge.f32.partialorder %v1632, 0.0
  %vm3364 = vcmp.ge.f32.partialorder %v1637, 0.0
  %vm3365 = vcmp.ge.f32.partialorder %v1642, 0.0
  %vm3366 = vcmp.ge.f32.partialorder %v1647, 0.0
  %vm3367 = vcmp.ge.f32.partialorder %v1652, 0.0
  %vm3368 = vcmp.ge.f32.partialorder %v1657, 0.0
  %vm3369 = vcmp.ge.f32.partialorder %v1662, 0.0
  %vm3370 = vcmp.ge.f32.partialorder %v1667, 0.0
  %vm3371 = vcmp.ge.f32.partialorder %v1672, 0.0
  %vm3372 = vcmp.ge.f32.partialorder %v1677, 0.0
  %vm3373 = vcmp.ge.f32.partialorder %v1682, 0.0
  %vm3374 = vcmp.ge.f32.partialorder %v1687, 0.0
  %vm3375 = vcmp.ge.f32.partialorder %v1692, 0.0
  %vm3376 = vcmp.ge.f32.partialorder %v1697, 0.0
  %vm3377 = vcmp.ge.f32.partialorder %v1702, 0.0
  %vm3378 = vcmp.ge.f32.partialorder %v1707, 0.0
  %vm3379 = vcmp.ge.f32.partialorder %v1712, 0.0
  %vm3380 = vcmp.ge.f32.partialorder %v1717, 0.0
  %vm3381 = vcmp.ge.f32.partialorder %v1722, 0.0
  %vm3382 = vcmp.ge.f32.partialorder %v1727, 0.0
  %vm3383 = vcmp.ge.f32.partialorder %v1732, 0.0
  %vm3384 = vcmp.ge.f32.partialorder %v1737, 0.0
  %vm3385 = vcmp.ge.f32.partialorder %v1742, 0.0
  %vm3386 = vcmp.ge.f32.partialorder %v1747, 0.0
  %vm3387 = vcmp.ge.f32.partialorder %v1752, 0.0
  %vm3388 = vcmp.ge.f32.partialorder %v1757, 0.0
  %vm3389 = vcmp.ge.f32.partialorder %v1762, 0.0
  %vm3390 = vcmp.ge.f32.partialorder %v1767, 0.0
  %vm3391 = vcmp.ge.f32.partialorder %v1772, 0.0
  %vm3392 = vcmp.ge.f32.partialorder %v1777, 0.0
  %vm3393 = vcmp.ge.f32.partialorder %v1782, 0.0
  %vm3394 = vcmp.ge.f32.partialorder %v1787, 0.0
  %vm3395 = vcmp.ge.f32.partialorder %v1792, 0.0
  %vm3396 = vcmp.ge.f32.partialorder %v1797, 0.0
  %vm3397 = vcmp.ge.f32.partialorder %v1802, 0.0
  %vm3398 = vcmp.ge.f32.partialorder %v1807, 0.0
  %vm3399 = vcmp.ge.f32.partialorder %v1812, 0.0
  %vm3400 = vcmp.ge.f32.partialorder %v1817, 0.0
  %vm3401 = vcmp.ge.f32.partialorder %v1822, 0.0
  %vm3402 = vcmp.ge.f32.partialorder %v1827, 0.0
  %vm3403 = vcmp.ge.f32.partialorder %v1832, 0.0
  %vm3404 = vcmp.ge.f32.partialorder %v1837, 0.0
  %vm3405 = vcmp.ge.f32.partialorder %v1842, 0.0
  %vm3406 = vcmp.ge.f32.partialorder %v1847, 0.0
  %vm3407 = vcmp.ge.f32.partialorder %v1852, 0.0
  %vm3408 = vcmp.ge.f32.partialorder %v1857, 0.0
  %vm3409 = vcmp.ge.f32.partialorder %v1862, 0.0
  %vm3410 = vcmp.ge.f32.partialorder %v1867, 0.0
  %vm3411 = vcmp.ge.f32.partialorder %v1872, 0.0
  %vm3412 = vcmp.ge.f32.partialorder %v1877, 0.0
  %vm3413 = vcmp.ge.f32.partialorder %v1882, 0.0
  %vm3414 = vcmp.ge.f32.partialorder %v1887, 0.0
  %vm3415 = vcmp.ge.f32.partialorder %v1892, 0.0
  %vm3416 = vcmp.ge.f32.partialorder %v1897, 0.0
  %vm3417 = vcmp.ge.f32.partialorder %v1902, 0.0
  %vm3418 = vcmp.ge.f32.partialorder %v1907, 0.0
  %vm3419 = vcmp.ge.f32.partialorder %v1912, 0.0
  %vm3420 = vcmp.ge.f32.partialorder %v1917, 0.0
  %vm3421 = vcmp.ge.f32.partialorder %v1922, 0.0
  %vm3422 = vcmp.ge.f32.partialorder %v1927, 0.0
  %vm3423 = vcmp.ge.f32.partialorder %v1932, 0.0
  %vm3424 = vcmp.ge.f32.partialorder %v1937, 0.0
  %vm3425 = vcmp.ge.f32.partialorder %v1942, 0.0
  %vm3426 = vcmp.ge.f32.partialorder %v1947, 0.0
  %vm3427 = vcmp.ge.f32.partialorder %v1952, 0.0
  %vm3428 = vcmp.ge.f32.partialorder %v1957, 0.0
  %vm3429 = vcmp.ge.f32.partialorder %v1962, 0.0
  %vm3430 = vcmp.ge.f32.partialorder %v1967, 0.0
  %vm3431 = vcmp.ge.f32.partialorder %v1972, 0.0
  %vm3432 = vcmp.ge.f32.partialorder %v1977, 0.0
  %vm3433 = vcmp.ge.f32.partialorder %v1982, 0.0
  %vm3434 = vcmp.ge.f32.partialorder %v1987, 0.0
  %vm3435 = vcmp.ge.f32.partialorder %v1992, 0.0
  %vm3436 = vcmp.ge.f32.partialorder %v1997, 0.0
  %vm3437 = vcmp.ge.f32.partialorder %v2002, 0.0
  %vm3438 = vcmp.ge.f32.partialorder %v2007, 0.0
  %vm3439 = vcmp.ge.f32.partialorder %v2012, 0.0
  %vm3440 = vcmp.ge.f32.partialorder %v2017, 0.0
  %vm3441 = vcmp.ge.f32.partialorder %v2022, 0.0
  %vm3442 = vcmp.ge.f32.partialorder %v2027, 0.0
  %vm3443 = vcmp.ge.f32.partialorder %v2032, 0.0
  %vm3444 = vcmp.ge.f32.partialorder %v2037, 0.0
  %vm3445 = vcmp.ge.f32.partialorder %v2042, 0.0
  %vm3446 = vcmp.ge.f32.partialorder %v2047, 0.0
  %vm3447 = vcmp.ge.f32.partialorder %v2052, 0.0
  %vm3448 = vcmp.ge.f32.partialorder %v2057, 0.0
  %vm3449 = vcmp.ge.f32.partialorder %v2062, 0.0
  %vm3450 = vcmp.ge.f32.partialorder %v2067, 0.0
  %vm3451 = vcmp.ge.f32.partialorder %v2072, 0.0
  %vm3452 = vcmp.ge.f32.partialorder %v2077, 0.0
  %vm3453 = vcmp.ge.f32.partialorder %v2082, 0.0
  %vm3454 = vcmp.ge.f32.partialorder %v2087, 0.0
  %vm3455 = vcmp.ge.f32.partialorder %v2092, 0.0
  %vm3456 = vcmp.ge.f32.partialorder %v2097, 0.0
  %vm3457 = vcmp.ge.f32.partialorder %v2102, 0.0
  %vm3458 = vcmp.ge.f32.partialorder %v2107, 0.0
  %vm3459 = vcmp.ge.f32.partialorder %v2112, 0.0
  %vm3460 = vcmp.ge.f32.partialorder %v2117, 0.0
  %vm3461 = vcmp.ge.f32.partialorder %v2122, 0.0
  %vm3462 = vcmp.ge.f32.partialorder %v2127, 0.0
  %vm3463 = vcmp.ge.f32.partialorder %v2132, 0.0
  %vm3464 = vcmp.ge.f32.partialorder %v2137, 0.0
  %vm3465 = vcmp.ge.f32.partialorder %v2142, 0.0
  %vm3466 = vcmp.ge.f32.partialorder %v2147, 0.0
  %vm3467 = vcmp.ge.f32.partialorder %v2152, 0.0
  %vm3468 = vcmp.ge.f32.partialorder %v2157, 0.0
  %vm3469 = vcmp.ge.f32.partialorder %v2162, 0.0
  %vm3470 = vcmp.ge.f32.partialorder %v2167, 0.0
  %vm3471 = vcmp.ge.f32.partialorder %v2172, 0.0
  %vm3472 = vcmp.ge.f32.partialorder %v2177, 0.0
  %vm3473 = vcmp.ge.f32.partialorder %v2182, 0.0
  %vm3474 = vcmp.ge.f32.partialorder %v2187, 0.0
  %vm3475 = vcmp.ge.f32.partialorder %v2192, 0.0
  %vm3476 = vcmp.ge.f32.partialorder %v2197, 0.0
  %vm3477 = vcmp.ge.f32.partialorder %v2202, 0.0
  %vm3478 = vcmp.ge.f32.partialorder %v2207, 0.0
  %vm3479 = vcmp.ge.f32.partialorder %v2212, 0.0
  %vm3480 = vcmp.ge.f32.partialorder %v2217, 0.0
  %vm3481 = vcmp.ge.f32.partialorder %v2222, 0.0
  %vm3482 = vcmp.ge.f32.partialorder %v2227, 0.0
  %vm3483 = vcmp.ge.f32.partialorder %v2232, 0.0
  %vm3484 = vcmp.ge.f32.partialorder %v2237, 0.0
  %vm3485 = vcmp.ge.f32.partialorder %v2242, 0.0
  %vm3486 = vcmp.ge.f32.partialorder %v2247, 0.0
  %vm3487 = vcmp.ge.f32.partialorder %v2252, 0.0
  %vm3488 = vcmp.ge.f32.partialorder %v2257, 0.0
  %vm3489 = vcmp.ge.f32.partialorder %v2262, 0.0
  %vm3490 = vcmp.ge.f32.partialorder %v2267, 0.0
  %vm3491 = vcmp.ge.f32.partialorder %v2272, 0.0
  %vm3492 = vcmp.ge.f32.partialorder %v2277, 0.0
  %vm3493 = vcmp.ge.f32.partialorder %v2282, 0.0
  %vm3494 = vcmp.ge.f32.partialorder %v2287, 0.0
  %vm3495 = vcmp.ge.f32.partialorder %v2292, 0.0
  %vm3496 = vcmp.ge.f32.partialorder %v2297, 0.0
  %vm3497 = vcmp.ge.f32.partialorder %v2302, 0.0
  %vm3498 = vcmp.ge.f32.partialorder %v2307, 0.0
  %vm3499 = vcmp.ge.f32.partialorder %v2312, 0.0
  %vm3500 = vcmp.ge.f32.partialorder %v2317, 0.0
  %vm3501 = vcmp.ge.f32.partialorder %v2322, 0.0
  %vm3502 = vcmp.ge.f32.partialorder %v2327, 0.0
  %vm3503 = vcmp.ge.f32.partialorder %v2332, 0.0
  %vm3504 = vcmp.ge.f32.partialorder %v2337, 0.0
  %vm3505 = vcmp.ge.f32.partialorder %v2342, 0.0
  %vm3506 = vcmp.ge.f32.partialorder %v2347, 0.0
  %vm3507 = vcmp.ge.f32.partialorder %v2352, 0.0
  %vm3508 = vcmp.ge.f32.partialorder %v2357, 0.0
  %vm3509 = vcmp.ge.f32.partialorder %v2362, 0.0
  %vm3510 = vcmp.ge.f32.partialorder %v2367, 0.0
  %vm3511 = vcmp.ge.f32.partialorder %v2372, 0.0
  %vm3512 = vcmp.ge.f32.partialorder %v2377, 0.0
  %vm3513 = vcmp.ge.f32.partialorder %v2382, 0.0
  %vm3514 = vcmp.ge.f32.partialorder %v2387, 0.0
  %vm3515 = vcmp.ge.f32.partialorder %v2392, 0.0
  %vm3516 = vcmp.ge.f32.partialorder %v2397, 0.0
  %vm3517 = vcmp.ge.f32.partialorder %v2402, 0.0
  %vm3518 = vcmp.ge.f32.partialorder %v2407, 0.0
  %vm3519 = vcmp.ge.f32.partialorder %v2412, 0.0
  %vm3520 = vcmp.ge.f32.partialorder %v2417, 0.0
  %vm3521 = vcmp.ge.f32.partialorder %v2422, 0.0
  %vm3522 = vcmp.ge.f32.partialorder %v2427, 0.0
  %vm3523 = vcmp.ge.f32.partialorder %v2432, 0.0
  %vm3524 = vcmp.ge.f32.partialorder %v2437, 0.0
  %vm3525 = vcmp.ge.f32.partialorder %v2442, 0.0
  %vm3526 = vcmp.ge.f32.partialorder %v2447, 0.0
  %vm3527 = vcmp.ge.f32.partialorder %v2452, 0.0
  %vm3528 = vcmp.ge.f32.partialorder %v2457, 0.0
  %vm3529 = vcmp.ge.f32.partialorder %v2462, 0.0
  %vm3530 = vcmp.ge.f32.partialorder %v2467, 0.0
  %vm3531 = vcmp.ge.f32.partialorder %v2472, 0.0
  %vm3532 = vcmp.ge.f32.partialorder %v2477, 0.0
  %vm3533 = vcmp.ge.f32.partialorder %v2482, 0.0
  %vm3534 = vcmp.ge.f32.partialorder %v2487, 0.0
  %vm3535 = vcmp.ge.f32.partialorder %v2492, 0.0
  %vm3536 = vcmp.ge.f32.partialorder %v2497, 0.0
  %vm3537 = vcmp.ge.f32.partialorder %v2502, 0.0
  %vm3538 = vcmp.ge.f32.partialorder %v2507, 0.0
  %vm3539 = vcmp.ge.f32.partialorder %v2512, 0.0
  %vm3540 = vcmp.ge.f32.partialorder %v2517, 0.0
  %vm3541 = vcmp.ge.f32.partialorder %v2522, 0.0
  %vm3542 = vcmp.ge.f32.partialorder %v2527, 0.0
  %vm3543 = vcmp.ge.f32.partialorder %v2532, 0.0
  %vm3544 = vcmp.ge.f32.partialorder %v2537, 0.0
  %vm3545 = vcmp.ge.f32.partialorder %v2542, 0.0
  %vm3546 = vcmp.ge.f32.partialorder %v2547, 0.0
  %vm3547 = vcmp.ge.f32.partialorder %v2552, 0.0
  %vm3548 = vcmp.ge.f32.partialorder %v2557, 0.0
  %vm3549 = vcmp.ge.f32.partialorder %v2562, 0.0
  %vm3550 = vcmp.ge.f32.partialorder %v2567, 0.0
  %vm3551 = vcmp.ge.f32.partialorder %v2572, 0.0
  %vm3552 = vcmp.ge.f32.partialorder %v2577, 0.0
  %vm3553 = vcmp.ge.f32.partialorder %v2582, 0.0
  %vm3554 = vcmp.ge.f32.partialorder %v2587, 0.0
  %vm3555 = vcmp.ge.f32.partialorder %v2592, 0.0
  %vm3556 = vcmp.ge.f32.partialorder %v2597, 0.0
  %vm3557 = vcmp.ge.f32.partialorder %v2602, 0.0
  %vm3558 = vcmp.ge.f32.partialorder %v2607, 0.0
  %vm3559 = vcmp.ge.f32.partialorder %v2612, 0.0
  %vm3560 = vcmp.ge.f32.partialorder %v2617, 0.0
  %vm3561 = vcmp.ge.f32.partialorder %v2622, 0.0
  %vm3562 = vcmp.ge.f32.partialorder %v2627, 0.0
  %vm3563 = vcmp.ge.f32.partialorder %v2632, 0.0
  %vm3564 = vcmp.ge.f32.partialorder %v2637, 0.0
  %vm3565 = vcmp.ge.f32.partialorder %v2642, 0.0
  %vm3566 = vcmp.ge.f32.partialorder %v2647, 0.0
  %vm3567 = vcmp.ge.f32.partialorder %v2652, 0.0
  %vm3568 = vcmp.ge.f32.partialorder %v2657, 0.0
  %vm3569 = vcmp.ge.f32.partialorder %v2662, 0.0
  %vm3570 = vcmp.ge.f32.partialorder %v2667, 0.0
  %vm3571 = vcmp.ge.f32.partialorder %v2672, 0.0
  %vm3572 = vcmp.ge.f32.partialorder %v2677, 0.0
  %vm3573 = vcmp.ge.f32.partialorder %v2682, 0.0
  %vm3574 = vcmp.ge.f32.partialorder %v2687, 0.0
  %vm3575 = vcmp.ge.f32.partialorder %v2692, 0.0
  %vm3576 = vcmp.ge.f32.partialorder %v2697, 0.0
  %vm3577 = vcmp.ge.f32.partialorder %v2702, 0.0
  %vm3578 = vcmp.ge.f32.partialorder %v2707, 0.0
  %vm3579 = vcmp.ge.f32.partialorder %v2712, 0.0
  %vm3580 = vcmp.ge.f32.partialorder %v2717, 0.0
  %vm3581 = vcmp.ge.f32.partialorder %v2722, 0.0
  %vm3582 = vcmp.ge.f32.partialorder %v2727, 0.0
  %vm3583 = vcmp.ge.f32.partialorder %v2732, 0.0
  %vm3584 = vcmp.ge.f32.partialorder %v2737, 0.0
  %vm3585 = vcmp.ge.f32.partialorder %v2742, 0.0
  %vm3586 = vcmp.ge.f32.partialorder %v2747, 0.0
  %vm3587 = vcmp.ge.f32.partialorder %v2752, 0.0
  %vm3588 = vcmp.ge.f32.partialorder %v2757, 0.0
  %vm3589 = vcmp.ge.f32.partialorder %v2762, 0.0
  %vm3590 = vcmp.ge.f32.partialorder %v2767, 0.0
  %vm3591 = vcmp.ge.f32.partialorder %v2772, 0.0
  %vm3592 = vcmp.ge.f32.partialorder %v2777, 0.0
  %vm3593 = vcmp.ge.f32.partialorder %v2782, 0.0
  %vm3594 = vcmp.ge.f32.partialorder %v2787, 0.0
  %vm3595 = vcmp.ge.f32.partialorder %v2792, 0.0
  %vm3596 = vcmp.ge.f32.partialorder %v2797, 0.0
  %vm3597 = vcmp.ge.f32.partialorder %v2802, 0.0
  %vm3598 = vcmp.ge.f32.partialorder %v2807, 0.0
  %vm3599 = vcmp.ge.f32.partialorder %v2812, 0.0
  %vm3600 = vcmp.ge.f32.partialorder %v2817, 0.0
  %vm3601 = vcmp.ge.f32.partialorder %v2822, 0.0
  %vm3602 = vcmp.ge.f32.partialorder %v2827, 0.0
  %vm3603 = vcmp.ge.f32.partialorder %v2832, 0.0
  %vm3604 = vcmp.ge.f32.partialorder %v2837, 0.0
  %vm3605 = vcmp.ge.f32.partialorder %v2842, 0.0
  %vm3606 = vcmp.ge.f32.partialorder %v2847, 0.0
  %vm3607 = vcmp.ge.f32.partialorder %v2852, 0.0
  %vm3608 = vcmp.ge.f32.partialorder %v2857, 0.0
  %vm3609 = vcmp.ge.f32.partialorder %v2862, 0.0
  %vm3610 = vcmp.ge.f32.partialorder %v2867, 0.0
  %vm3611 = vcmp.ge.f32.partialorder %v2872, 0.0
  %vm3612 = vcmp.ge.f32.partialorder %v2877, 0.0
  %vm3613 = vcmp.ge.f32.partialorder %v2882, 0.0
  %vm3614 = vcmp.ge.f32.partialorder %v2887, 0.0
  %vm3615 = vcmp.ge.f32.partialorder %v2892, 0.0
  %vm3616 = vcmp.ge.f32.partialorder %v2897, 0.0
  %vm3617 = vcmp.ge.f32.partialorder %v2902, 0.0
  %vm3618 = vcmp.ge.f32.partialorder %v2907, 0.0
  %vm3619 = vcmp.ge.f32.partialorder %v2912, 0.0
  %vm3620 = vcmp.ge.f32.partialorder %v2917, 0.0
  %vm3621 = vcmp.ge.f32.partialorder %v2922, 0.0
  %vm3622 = vcmp.ge.f32.partialorder %v2927, 0.0
  %vm3623 = vcmp.ge.f32.partialorder %v2932, 0.0
  %vm3624 = vcmp.ge.f32.partialorder %v2937, 0.0
  %vm3625 = vcmp.ge.f32.partialorder %v2942, 0.0
  %vm3626 = vcmp.ge.f32.partialorder %v2947, 0.0
  %vm3627 = vcmp.ge.f32.partialorder %v2952, 0.0
  %vm3628 = vcmp.ge.f32.partialorder %v2957, 0.0
  %vm3629 = vcmp.ge.f32.partialorder %v2962, 0.0
  %vm3630 = vcmp.ge.f32.partialorder %v2967, 0.0
  %vm3631 = vcmp.ge.f32.partialorder %v2972, 0.0
  %vm3632 = vcmp.ge.f32.partialorder %v2977, 0.0
  %vm3633 = vcmp.ge.f32.partialorder %v2982, 0.0
  %vm3634 = vcmp.ge.f32.partialorder %v2987, 0.0
  %vm3635 = vcmp.ge.f32.partialorder %v2992, 0.0
  %vm3636 = vcmp.ge.f32.partialorder %v2997, 0.0
  %vm3637 = vcmp.ge.f32.partialorder %v3002, 0.0
  %vm3638 = vcmp.ge.f32.partialorder %v3007, 0.0
  %vm3639 = vcmp.ge.f32.partialorder %v3012, 0.0
  %vm3640 = vcmp.ge.f32.partialorder %v3017, 0.0
  %vm3641 = vcmp.ge.f32.partialorder %v3022, 0.0
  %vm3642 = vcmp.ge.f32.partialorder %v3027, 0.0
  %vm3643 = vcmp.ge.f32.partialorder %v3032, 0.0
  %vm3644 = vcmp.ge.f32.partialorder %v3037, 0.0
  %vm3645 = vcmp.ge.f32.partialorder %v3042, 0.0
  %vm3646 = vcmp.ge.f32.partialorder %v3047, 0.0
  %vm3647 = vcmp.ge.f32.partialorder %v3052, 0.0
  %vm3648 = vcmp.ge.f32.partialorder %v3057, 0.0
  %vm3649 = vcmp.ge.f32.partialorder %v3062, 0.0
  %vm3650 = vcmp.ge.f32.partialorder %v3067, 0.0
  %vm3651 = vcmp.ge.f32.partialorder %v3072, 0.0
  %vm3652 = vcmp.ge.f32.partialorder %v3077, 0.0
  %vm3653 = vcmp.ge.f32.partialorder %v3082, 0.0
  %vm3654 = vcmp.ge.f32.partialorder %v3087, 0.0
  %vm3655 = vcmp.ge.f32.partialorder %v3092, 0.0
  %vm3656 = vcmp.ge.f32.partialorder %v3097, 0.0
  %vm3657 = vcmp.ge.f32.partialorder %v3102, 0.0
  %vm3658 = vcmp.ge.f32.partialorder %v3107, 0.0
  %vm3659 = vcmp.ge.f32.partialorder %v3112, 0.0
  %vm3660 = vcmp.ge.f32.partialorder %v3117, 0.0
  %vm3661 = vcmp.ge.f32.partialorder %v3122, 0.0
  %vm3662 = vcmp.ge.f32.partialorder %v3127, 0.0
  %vm3663 = vcmp.ge.f32.partialorder %v3132, 0.0
  %vm3664 = vcmp.ge.f32.partialorder %v3137, 0.0
  %vm3665 = vcmp.ge.f32.partialorder %v3142, 0.0
  %vm3666 = vcmp.ge.f32.partialorder %v3147, 0.0
  %vm3667 = vcmp.ge.f32.partialorder %v3152, 0.0
  %vm3668 = vcmp.ge.f32.partialorder %v3157, 0.0
  %vm3669 = vcmp.ge.f32.partialorder %v3162, 0.0
  %vm3670 = vcmp.ge.f32.partialorder %v3167, 0.0
  %vm3671 = vcmp.ge.f32.partialorder %v3172, 0.0
  %vm3672 = vcmp.ge.f32.partialorder %v3177, 0.0
  %vm3673 = vcmp.ge.f32.partialorder %v3182, 0.0
  %vm3674 = vcmp.ge.f32.partialorder %v3187, 0.0
  %vm3675 = vcmp.ge.f32.partialorder %v3192, 0.0
  %vm3676 = vcmp.ge.f32.partialorder %v3197, 0.0
  %vm3677 = vcmp.ge.f32.partialorder %v3202, 0.0
  %vm3678 = vcmp.ge.f32.partialorder %v3207, 0.0
  %vm3679 = vcmp.ge.f32.partialorder %v3212, 0.0
  %vm3680 = vcmp.ge.f32.partialorder %v3217, 0.0
  %vm3681 = vcmp.ge.f32.partialorder %v3222, 0.0
  %vm3682 = vcmp.ge.f32.partialorder %v3227, 0.0
  %vm3683 = vcmp.ge.f32.partialorder %v3232, 0.0
  %vm3684 = vcmp.ge.f32.partialorder %v3237, 0.0
  %vm3685 = vcmp.ge.f32.partialorder %v3242, 0.0
  %vm3686 = vcmp.ge.f32.partialorder %v3247, 0.0
  %vm3687 = vcmp.ge.f32.partialorder %v3252, 0.0
  %vm3688 = vcmp.ge.f32.partialorder %v3257, 0.0
  %vm3689 = vcmp.ge.f32.partialorder %v3262, 0.0
  %vm3690 = vcmp.ge.f32.partialorder %v3267, 0.0
  %vm3691 = vcmp.ge.f32.partialorder %v3272, 0.0
  %vm3692 = vcmp.ge.f32.partialorder %v3277, 0.0
  %vm3693 = vcmp.ge.f32.partialorder %v3282, 0.0
  %vm3694 = vcmp.ge.f32.partialorder %v3287, 0.0
  %vm3695 = vcmp.ge.f32.partialorder %v3292, 0.0
  %vm3696 = vcmp.ge.f32.partialorder %v3297, 0.0
  %vm3697 = vcmp.ge.f32.partialorder %v3302, 0.0
  %vm3698 = vcmp.ge.f32.partialorder %v3307, 0.0
  %vm3699 = vcmp.ge.f32.partialorder %v3312, 0.0
  %vm3700 = vcmp.ge.f32.partialorder %v3317, 0.0
  %vm3701 = vcmp.ge.f32.partialorder %v3322, 0.0
  %vm3702 = vcmp.ge.f32.partialorder %v3327, 0.0
  %vm3703 = vcmp.ge.f32.partialorder %v3332, 0.0
  %vm3704 = vcmp.ge.f32.partialorder %v3337, 0.0
  %vm3705 = vcmp.ge.f32.partialorder %v3342, 0.0
  %v3706 = vmul.f32 %v1542, 0.2
  %v3707 = vmul.f32 %v1547, 0.2
  %v3708 = vmul.f32 %v1552, 0.2
  %v3709 = vmul.f32 %v1557, 0.2
  %v3710 = vmul.f32 %v1562, 0.2
  %v3711 = vmul.f32 %v1567, 0.2
  %v3712 = vmul.f32 %v1572, 0.2
  %v3713 = vmul.f32 %v1577, 0.2
  %v3714 = vmul.f32 %v1582, 0.2
  %v3715 = vmul.f32 %v1587, 0.2
  %v3716 = vmul.f32 %v1592, 0.2
  %v3717 = vmul.f32 %v1597, 0.2
  %v3718 = vmul.f32 %v1602, 0.2
  %v3719 = vmul.f32 %v1607, 0.2
  %v3720 = vmul.f32 %v1612, 0.2
  %v3721 = vmul.f32 %v1617, 0.2
  %v3722 = vmul.f32 %v1622, 0.2
  %v3723 = vmul.f32 %v1627, 0.2
  %v3724 = vmul.f32 %v1632, 0.2
  %v3725 = vmul.f32 %v1637, 0.2
  %v3726 = vmul.f32 %v1642, 0.2
  %v3727 = vmul.f32 %v1647, 0.2
  %v3728 = vmul.f32 %v1652, 0.2
  %v3729 = vmul.f32 %v1657, 0.2
  %v3730 = vmul.f32 %v1662, 0.2
  %v3731 = vmul.f32 %v1667, 0.2
  %v3732 = vmul.f32 %v1672, 0.2
  %v3733 = vmul.f32 %v1677, 0.2
  %v3734 = vmul.f32 %v1682, 0.2
  %v3735 = vmul.f32 %v1687, 0.2
  %v3736 = vmul.f32 %v1692, 0.2
  %v3737 = vmul.f32 %v1697, 0.2
  %v3738 = vmul.f32 %v1702, 0.2
  %v3739 = vmul.f32 %v1707, 0.2
  %v3740 = vmul.f32 %v1712, 0.2
  %v3741 = vmul.f32 %v1717, 0.2
  %v3742 = vmul.f32 %v1722, 0.2
  %v3743 = vmul.f32 %v1727, 0.2
  %v3744 = vmul.f32 %v1732, 0.2
  %v3745 = vmul.f32 %v1737, 0.2
  %v3746 = vmul.f32 %v1742, 0.2
  %v3747 = vmul.f32 %v1747, 0.2
  %v3748 = vmul.f32 %v1752, 0.2
  %v3749 = vmul.f32 %v1757, 0.2
  %v3750 = vmul.f32 %v1762, 0.2
  %v3751 = vmul.f32 %v1767, 0.2
  %v3752 = vmul.f32 %v1772, 0.2
  %v3753 = vmul.f32 %v1777, 0.2
  %v3754 = vmul.f32 %v1782, 0.2
  %v3755 = vmul.f32 %v1787, 0.2
  %v3756 = vmul.f32 %v1792, 0.2
  %v3757 = vmul.f32 %v1797, 0.2
  %v3758 = vmul.f32 %v1802, 0.2
  %v3759 = vmul.f32 %v1807, 0.2
  %v3760 = vmul.f32 %v1812, 0.2
  %v3761 = vmul.f32 %v1817, 0.2
  %v3762 = vmul.f32 %v1822, 0.2
  %v3763 = vmul.f32 %v1827, 0.2
  %v3764 = vmul.f32 %v1832, 0.2
  %v3765 = vmul.f32 %v1837, 0.2
  %v3766 = vmul.f32 %v1842, 0.2
  %v3767 = vmul.f32 %v1847, 0.2
  %v3768 = vmul.f32 %v1852, 0.2
  %v3769 = vmul.f32 %v1857, 0.2
  %v3770 = vmul.f32 %v1862, 0.2
  %v3771 = vmul.f32 %v1867, 0.2
  %v3772 = vmul.f32 %v1872, 0.2
  %v3773 = vmul.f32 %v1877, 0.2
  %v3774 = vmul.f32 %v1882, 0.2
  %v3775 = vmul.f32 %v1887, 0.2
  %v3776 = vmul.f32 %v1892, 0.2
  %v3777 = vmul.f32 %v1897, 0.2
  %v3778 = vmul.f32 %v1902, 0.2
  %v3779 = vmul.f32 %v1907, 0.2
  %v3780 = vmul.f32 %v1912, 0.2
  %v3781 = vmul.f32 %v1917, 0.2
  %v3782 = vmul.f32 %v1922, 0.2
  %v3783 = vmul.f32 %v1927, 0.2
  %v3784 = vmul.f32 %v1932, 0.2
  %v3785 = vmul.f32 %v1937, 0.2
  %v3786 = vmul.f32 %v1942, 0.2
  %v3787 = vmul.f32 %v1947, 0.2
  %v3788 = vmul.f32 %v1952, 0.2
  %v3789 = vmul.f32 %v1957, 0.2
  %v3790 = vmul.f32 %v1962, 0.2
  %v3791 = vmul.f32 %v1967, 0.2
  %v3792 = vmul.f32 %v1972, 0.2
  %v3793 = vmul.f32 %v1977, 0.2
  %v3794 = vmul.f32 %v1982, 0.2
  %v3795 = vmul.f32 %v1987, 0.2
  %v3796 = vmul.f32 %v1992, 0.2
  %v3797 = vmul.f32 %v1997, 0.2
  %v3798 = vmul.f32 %v2002, 0.2
  %v3799 = vmul.f32 %v2007, 0.2
  %v3800 = vmul.f32 %v2012, 0.2
  %v3801 = vmul.f32 %v2017, 0.2
  %v3802 = vmul.f32 %v2022, 0.2
  %v3803 = vmul.f32 %v2027, 0.2
  %v3804 = vmul.f32 %v2032, 0.2
  %v3805 = vmul.f32 %v2037, 0.2
  %v3806 = vmul.f32 %v2042, 0.2
  %v3807 = vmul.f32 %v2047, 0.2
  %v3808 = vmul.f32 %v2052, 0.2
  %v3809 = vmul.f32 %v2057, 0.2
  %v3810 = vmul.f32 %v2062, 0.2
  %v3811 = vmul.f32 %v2067, 0.2
  %v3812 = vmul.f32 %v2072, 0.2
  %v3813 = vmul.f32 %v2077, 0.2
  %v3814 = vmul.f32 %v2082, 0.2
  %v3815 = vmul.f32 %v2087, 0.2
  %v3816 = vmul.f32 %v2092, 0.2
  %v3817 = vmul.f32 %v2097, 0.2
  %v3818 = vmul.f32 %v2102, 0.2
  %v3819 = vmul.f32 %v2107, 0.2
  %v3820 = vmul.f32 %v2112, 0.2
  %v3821 = vmul.f32 %v2117, 0.2
  %v3822 = vmul.f32 %v2122, 0.2
  %v3823 = vmul.f32 %v2127, 0.2
  %v3824 = vmul.f32 %v2132, 0.2
  %v3825 = vmul.f32 %v2137, 0.2
  %v3826 = vmul.f32 %v2142, 0.2
  %v3827 = vmul.f32 %v2147, 0.2
  %v3828 = vmul.f32 %v2152, 0.2
  %v3829 = vmul.f32 %v2157, 0.2
  %v3830 = vmul.f32 %v2162, 0.2
  %v3831 = vmul.f32 %v2167, 0.2
  %v3832 = vmul.f32 %v2172, 0.2
  %v3833 = vmul.f32 %v2177, 0.2
  %v3834 = vmul.f32 %v2182, 0.2
  %v3835 = vmul.f32 %v2187, 0.2
  %v3836 = vmul.f32 %v2192, 0.2
  %v3837 = vmul.f32 %v2197, 0.2
  %v3838 = vmul.f32 %v2202, 0.2
  %v3839 = vmul.f32 %v2207, 0.2
  %v3840 = vmul.f32 %v2212, 0.2
  %v3841 = vmul.f32 %v2217, 0.2
  %v3842 = vmul.f32 %v2222, 0.2
  %v3843 = vmul.f32 %v2227, 0.2
  %v3844 = vmul.f32 %v2232, 0.2
  %v3845 = vmul.f32 %v2237, 0.2
  %v3846 = vmul.f32 %v2242, 0.2
  %v3847 = vmul.f32 %v2247, 0.2
  %v3848 = vmul.f32 %v2252, 0.2
  %v3849 = vmul.f32 %v2257, 0.2
  %v3850 = vmul.f32 %v2262, 0.2
  %v3851 = vmul.f32 %v2267, 0.2
  %v3852 = vmul.f32 %v2272, 0.2
  %v3853 = vmul.f32 %v2277, 0.2
  %v3854 = vmul.f32 %v2282, 0.2
  %v3855 = vmul.f32 %v2287, 0.2
  %v3856 = vmul.f32 %v2292, 0.2
  %v3857 = vmul.f32 %v2297, 0.2
  %v3858 = vmul.f32 %v2302, 0.2
  %v3859 = vmul.f32 %v2307, 0.2
  %v3860 = vmul.f32 %v2312, 0.2
  %v3861 = vmul.f32 %v2317, 0.2
  %v3862 = vmul.f32 %v2322, 0.2
  %v3863 = vmul.f32 %v2327, 0.2
  %v3864 = vmul.f32 %v2332, 0.2
  %v3865 = vmul.f32 %v2337, 0.2
  %v3866 = vmul.f32 %v2342, 0.2
  %v3867 = vmul.f32 %v2347, 0.2
  %v3868 = vmul.f32 %v2352, 0.2
  %v3869 = vmul.f32 %v2357, 0.2
  %v3870 = vmul.f32 %v2362, 0.2
  %v3871 = vmul.f32 %v2367, 0.2
  %v3872 = vmul.f32 %v2372, 0.2
  %v3873 = vmul.f32 %v2377, 0.2
  %v3874 = vmul.f32 %v2382, 0.2
  %v3875 = vmul.f32 %v2387, 0.2
  %v3876 = vmul.f32 %v2392, 0.2
  %v3877 = vmul.f32 %v2397, 0.2
  %v3878 = vmul.f32 %v2402, 0.2
  %v3879 = vmul.f32 %v2407, 0.2
  %v3880 = vmul.f32 %v2412, 0.2
  %v3881 = vmul.f32 %v2417, 0.2
  %v3882 = vmul.f32 %v2422, 0.2
  %v3883 = vmul.f32 %v2427, 0.2
  %v3884 = vmul.f32 %v2432, 0.2
  %v3885 = vmul.f32 %v2437, 0.2
  %v3886 = vmul.f32 %v2442, 0.2
  %v3887 = vmul.f32 %v2447, 0.2
  %v3888 = vmul.f32 %v2452, 0.2
  %v3889 = vmul.f32 %v2457, 0.2
  %v3890 = vmul.f32 %v2462, 0.2
  %v3891 = vmul.f32 %v2467, 0.2
  %v3892 = vmul.f32 %v2472, 0.2
  %v3893 = vmul.f32 %v2477, 0.2
  %v3894 = vmul.f32 %v2482, 0.2
  %v3895 = vmul.f32 %v2487, 0.2
  %v3896 = vmul.f32 %v2492, 0.2
  %v3897 = vmul.f32 %v2497, 0.2
  %v3898 = vmul.f32 %v2502, 0.2
  %v3899 = vmul.f32 %v2507, 0.2
  %v3900 = vmul.f32 %v2512, 0.2
  %v3901 = vmul.f32 %v2517, 0.2
  %v3902 = vmul.f32 %v2522, 0.2
  %v3903 = vmul.f32 %v2527, 0.2
  %v3904 = vmul.f32 %v2532, 0.2
  %v3905 = vmul.f32 %v2537, 0.2
  %v3906 = vmul.f32 %v2542, 0.2
  %v3907 = vmul.f32 %v2547, 0.2
  %v3908 = vmul.f32 %v2552, 0.2
  %v3909 = vmul.f32 %v2557, 0.2
  %v3910 = vmul.f32 %v2562, 0.2
  %v3911 = vmul.f32 %v2567, 0.2
  %v3912 = vmul.f32 %v2572, 0.2
  %v3913 = vmul.f32 %v2577, 0.2
  %v3914 = vmul.f32 %v2582, 0.2
  %v3915 = vmul.f32 %v2587, 0.2
  %v3916 = vmul.f32 %v2592, 0.2
  %v3917 = vmul.f32 %v2597, 0.2
  %v3918 = vmul.f32 %v2602, 0.2
  %v3919 = vmul.f32 %v2607, 0.2
  %v3920 = vmul.f32 %v2612, 0.2
  %v3921 = vmul.f32 %v2617, 0.2
  %v3922 = vmul.f32 %v2622, 0.2
  %v3923 = vmul.f32 %v2627, 0.2
  %v3924 = vmul.f32 %v2632, 0.2
  %v3925 = vmul.f32 %v2637, 0.2
  %v3926 = vmul.f32 %v2642, 0.2
  %v3927 = vmul.f32 %v2647, 0.2
  %v3928 = vmul.f32 %v2652, 0.2
  %v3929 = vmul.f32 %v2657, 0.2
  %v3930 = vmul.f32 %v2662, 0.2
  %v3931 = vmul.f32 %v2667, 0.2
  %v3932 = vmul.f32 %v2672, 0.2
  %v3933 = vmul.f32 %v2677, 0.2
  %v3934 = vmul.f32 %v2682, 0.2
  %v3935 = vmul.f32 %v2687, 0.2
  %v3936 = vmul.f32 %v2692, 0.2
  %v3937 = vmul.f32 %v2697, 0.2
  %v3938 = vmul.f32 %v2702, 0.2
  %v3939 = vmul.f32 %v2707, 0.2
  %v3940 = vmul.f32 %v2712, 0.2
  %v3941 = vmul.f32 %v2717, 0.2
  %v3942 = vmul.f32 %v2722, 0.2
  %v3943 = vmul.f32 %v2727, 0.2
  %v3944 = vmul.f32 %v2732, 0.2
  %v3945 = vmul.f32 %v2737, 0.2
  %v3946 = vmul.f32 %v2742, 0.2
  %v3947 = vmul.f32 %v2747, 0.2
  %v3948 = vmul.f32 %v2752, 0.2
  %v3949 = vmul.f32 %v2757, 0.2
  %v3950 = vmul.f32 %v2762, 0.2
  %v3951 = vmul.f32 %v2767, 0.2
  %v3952 = vmul.f32 %v2772, 0.2
  %v3953 = vmul.f32 %v2777, 0.2
  %v3954 = vmul.f32 %v2782, 0.2
  %v3955 = vmul.f32 %v2787, 0.2
  %v3956 = vmul.f32 %v2792, 0.2
  %v3957 = vmul.f32 %v2797, 0.2
  %v3958 = vmul.f32 %v2802, 0.2
  %v3959 = vmul.f32 %v2807, 0.2
  %v3960 = vmul.f32 %v2812, 0.2
  %v3961 = vmul.f32 %v2817, 0.2
  %v3962 = vmul.f32 %v2822, 0.2
  %v3963 = vmul.f32 %v2827, 0.2
  %v3964 = vmul.f32 %v2832, 0.2
  %v3965 = vmul.f32 %v2837, 0.2
  %v3966 = vmul.f32 %v2842, 0.2
  %v3967 = vmul.f32 %v2847, 0.2
  %v3968 = vmul.f32 %v2852, 0.2
  %v3969 = vmul.f32 %v2857, 0.2
  %v3970 = vmul.f32 %v2862, 0.2
  %v3971 = vmul.f32 %v2867, 0.2
  %v3972 = vmul.f32 %v2872, 0.2
  %v3973 = vmul.f32 %v2877, 0.2
  %v3974 = vmul.f32 %v2882, 0.2
  %v3975 = vmul.f32 %v2887, 0.2
  %v3976 = vmul.f32 %v2892, 0.2
  %v3977 = vmul.f32 %v2897, 0.2
  %v3978 = vmul.f32 %v2902, 0.2
  %v3979 = vmul.f32 %v2907, 0.2
  %v3980 = vmul.f32 %v2912, 0.2
  %v3981 = vmul.f32 %v2917, 0.2
  %v3982 = vmul.f32 %v2922, 0.2
  %v3983 = vmul.f32 %v2927, 0.2
  %v3984 = vmul.f32 %v2932, 0.2
  %v3985 = vmul.f32 %v2937, 0.2
  %v3986 = vmul.f32 %v2942, 0.2
  %v3987 = vmul.f32 %v2947, 0.2
  %v3988 = vmul.f32 %v2952, 0.2
  %v3989 = vmul.f32 %v2957, 0.2
  %v3990 = vmul.f32 %v2962, 0.2
  %v3991 = vmul.f32 %v2967, 0.2
  %v3992 = vmul.f32 %v2972, 0.2
  %v3993 = vmul.f32 %v2977, 0.2
  %v3994 = vmul.f32 %v2982, 0.2
  %v3995 = vmul.f32 %v2987, 0.2
  %v3996 = vmul.f32 %v2992, 0.2
  %v3997 = vmul.f32 %v2997, 0.2
  %v3998 = vmul.f32 %v3002, 0.2
  %v3999 = vmul.f32 %v3007, 0.2
  %v4000 = vmul.f32 %v3012, 0.2
  %v4001 = vmul.f32 %v3017, 0.2
  %v4002 = vmul.f32 %v3022, 0.2
  %v4003 = vmul.f32 %v3027, 0.2
  %v4004 = vmul.f32 %v3032, 0.2
  %v4005 = vmul.f32 %v3037, 0.2
  %v4006 = vmul.f32 %v3042, 0.2
  %v4007 = vmul.f32 %v3047, 0.2
  %v4008 = vmul.f32 %v3052, 0.2
  %v4009 = vmul.f32 %v3057, 0.2
  %v4010 = vmul.f32 %v3062, 0.2
  %v4011 = vmul.f32 %v3067, 0.2
  %v4012 = vmul.f32 %v3072, 0.2
  %v4013 = vmul.f32 %v3077, 0.2
  %v4014 = vmul.f32 %v3082, 0.2
  %v4015 = vmul.f32 %v3087, 0.2
  %v4016 = vmul.f32 %v3092, 0.2
  %v4017 = vmul.f32 %v3097, 0.2
  %v4018 = vmul.f32 %v3102, 0.2
  %v4019 = vmul.f32 %v3107, 0.2
  %v4020 = vmul.f32 %v3112, 0.2
  %v4021 = vmul.f32 %v3117, 0.2
  %v4022 = vmul.f32 %v3122, 0.2
  %v4023 = vmul.f32 %v3127, 0.2
  %v4024 = vmul.f32 %v3132, 0.2
  %v4025 = vmul.f32 %v3137, 0.2
  %v4026 = vmul.f32 %v3142, 0.2
  %v4027 = vmul.f32 %v3147, 0.2
  %v4028 = vmul.f32 %v3152, 0.2
  %v4029 = vmul.f32 %v3157, 0.2
  %v4030 = vmul.f32 %v3162, 0.2
  %v4031 = vmul.f32 %v3167, 0.2
  %v4032 = vmul.f32 %v3172, 0.2
  %v4033 = vmul.f32 %v3177, 0.2
  %v4034 = vmul.f32 %v3182, 0.2
  %v4035 = vmul.f32 %v3187, 0.2
  %v4036 = vmul.f32 %v3192, 0.2
  %v4037 = vmul.f32 %v3197, 0.2
  %v4038 = vmul.f32 %v3202, 0.2
  %v4039 = vmul.f32 %v3207, 0.2
  %v4040 = vmul.f32 %v3212, 0.2
  %v4041 = vmul.f32 %v3217, 0.2
  %v4042 = vmul.f32 %v3222, 0.2
  %v4043 = vmul.f32 %v3227, 0.2
  %v4044 = vmul.f32 %v3232, 0.2
  %v4045 = vmul.f32 %v3237, 0.2
  %v4046 = vmul.f32 %v3242, 0.2
  %v4047 = vmul.f32 %v3247, 0.2
  %v4048 = vmul.f32 %v3252, 0.2
  %v4049 = vmul.f32 %v3257, 0.2
  %v4050 = vmul.f32 %v3262, 0.2
  %v4051 = vmul.f32 %v3267, 0.2
  %v4052 = vmul.f32 %v3272, 0.2
  %v4053 = vmul.f32 %v3277, 0.2
  %v4054 = vmul.f32 %v3282, 0.2
  %v4055 = vmul.f32 %v3287, 0.2
  %v4056 = vmul.f32 %v3292, 0.2
  %v4057 = vmul.f32 %v3297, 0.2
  %v4058 = vmul.f32 %v3302, 0.2
  %v4059 = vmul.f32 %v3307, 0.2
  %v4060 = vmul.f32 %v3312, 0.2
  %v4061 = vmul.f32 %v3317, 0.2
  %v4062 = vmul.f32 %v3322, 0.2
  %v4063 = vmul.f32 %v3327, 0.2
  %v4064 = vmul.f32 %v3332, 0.2
  %v4065 = vmul.f32 %v3337, 0.2
  %v4066 = vmul.f32 %v3342, 0.2
  %v4067 = vsel %vm3345, %v1542, %v3706
  %v4068 = vsel %vm3346, %v1547, %v3707
  %v4069 = vsel %vm3347, %v1552, %v3708
  %v4070 = vsel %vm3348, %v1557, %v3709
  %v4071 = vsel %vm3349, %v1562, %v3710
  %v4072 = vsel %vm3350, %v1567, %v3711
  %v4073 = vsel %vm3351, %v1572, %v3712
  %v4074 = vsel %vm3352, %v1577, %v3713
  %v4075 = vsel %vm3353, %v1582, %v3714
  %v4076 = vsel %vm3354, %v1587, %v3715
  %v4077 = vsel %vm3355, %v1592, %v3716
  %v4078 = vsel %vm3356, %v1597, %v3717
  %v4079 = vsel %vm3357, %v1602, %v3718
  %v4080 = vsel %vm3358, %v1607, %v3719
  %v4081 = vsel %vm3359, %v1612, %v3720
  %v4082 = vsel %vm3360, %v1617, %v3721
  %v4083 = vsel %vm3361, %v1622, %v3722
  %v4084 = vsel %vm3362, %v1627, %v3723
  %v4085 = vsel %vm3363, %v1632, %v3724
  %v4086 = vsel %vm3364, %v1637, %v3725
  %v4087 = vsel %vm3365, %v1642, %v3726
  %v4088 = vsel %vm3366, %v1647, %v3727
  %v4089 = vsel %vm3367, %v1652, %v3728
  %v4090 = vsel %vm3368, %v1657, %v3729
  %v4091 = vsel %vm3369, %v1662, %v3730
  %v4092 = vsel %vm3370, %v1667, %v3731
  %v4093 = vsel %vm3371, %v1672, %v3732
  %v4094 = vsel %vm3372, %v1677, %v3733
  %v4095 = vsel %vm3373, %v1682, %v3734
  %v4096 = vsel %vm3374, %v1687, %v3735
  %v4097 = vsel %vm3375, %v1692, %v3736
  %v4098 = vsel %vm3376, %v1697, %v3737
  %v4099 = vsel %vm3377, %v1702, %v3738
  %v4100 = vsel %vm3378, %v1707, %v3739
  %v4101 = vsel %vm3379, %v1712, %v3740
  %v4102 = vsel %vm3380, %v1717, %v3741
  %v4103 = vsel %vm3381, %v1722, %v3742
  %v4104 = vsel %vm3382, %v1727, %v3743
  %v4105 = vsel %vm3383, %v1732, %v3744
  %v4106 = vsel %vm3384, %v1737, %v3745
  %v4107 = vsel %vm3385, %v1742, %v3746
  %v4108 = vsel %vm3386, %v1747, %v3747
  %v4109 = vsel %vm3387, %v1752, %v3748
  %v4110 = vsel %vm3388, %v1757, %v3749
  %v4111 = vsel %vm3389, %v1762, %v3750
  %v4112 = vsel %vm3390, %v1767, %v3751
  %v4113 = vsel %vm3391, %v1772, %v3752
  %v4114 = vsel %vm3392, %v1777, %v3753
  %v4115 = vsel %vm3393, %v1782, %v3754
  %v4116 = vsel %vm3394, %v1787, %v3755
  %v4117 = vsel %vm3395, %v1792, %v3756
  %v4118 = vsel %vm3396, %v1797, %v3757
  %v4119 = vsel %vm3397, %v1802, %v3758
  %v4120 = vsel %vm3398, %v1807, %v3759
  %v4121 = vsel %vm3399, %v1812, %v3760
  %v4122 = vsel %vm3400, %v1817, %v3761
  %v4123 = vsel %vm3401, %v1822, %v3762
  %v4124 = vsel %vm3402, %v1827, %v3763
  %v4125 = vsel %vm3403, %v1832, %v3764
  %v4126 = vsel %vm3404, %v1837, %v3765
  %v4127 = vsel %vm3405, %v1842, %v3766
  %v4128 = vsel %vm3406, %v1847, %v3767
  %v4129 = vsel %vm3407, %v1852, %v3768
  %v4130 = vsel %vm3408, %v1857, %v3769
  %v4131 = vsel %vm3409, %v1862, %v3770
  %v4132 = vsel %vm3410, %v1867, %v3771
  %v4133 = vsel %vm3411, %v1872, %v3772
  %v4134 = vsel %vm3412, %v1877, %v3773
  %v4135 = vsel %vm3413, %v1882, %v3774
  %v4136 = vsel %vm3414, %v1887, %v3775
  %v4137 = vsel %vm3415, %v1892, %v3776
  %v4138 = vsel %vm3416, %v1897, %v3777
  %v4139 = vsel %vm3417, %v1902, %v3778
  %v4140 = vsel %vm3418, %v1907, %v3779
  %v4141 = vsel %vm3419, %v1912, %v3780
  %v4142 = vsel %vm3420, %v1917, %v3781
  %v4143 = vsel %vm3421, %v1922, %v3782
  %v4144 = vsel %vm3422, %v1927, %v3783
  %v4145 = vsel %vm3423, %v1932, %v3784
  %v4146 = vsel %vm3424, %v1937, %v3785
  %v4147 = vsel %vm3425, %v1942, %v3786
  %v4148 = vsel %vm3426, %v1947, %v3787
  %v4149 = vsel %vm3427, %v1952, %v3788
  %v4150 = vsel %vm3428, %v1957, %v3789
  %v4151 = vsel %vm3429, %v1962, %v3790
  %v4152 = vsel %vm3430, %v1967, %v3791
  %v4153 = vsel %vm3431, %v1972, %v3792
  %v4154 = vsel %vm3432, %v1977, %v3793
  %v4155 = vsel %vm3433, %v1982, %v3794
  %v4156 = vsel %vm3434, %v1987, %v3795
  %v4157 = vsel %vm3435, %v1992, %v3796
  %v4158 = vsel %vm3436, %v1997, %v3797
  %v4159 = vsel %vm3437, %v2002, %v3798
  %v4160 = vsel %vm3438, %v2007, %v3799
  %v4161 = vsel %vm3439, %v2012, %v3800
  %v4162 = vsel %vm3440, %v2017, %v3801
  %v4163 = vsel %vm3441, %v2022, %v3802
  %v4164 = vsel %vm3442, %v2027, %v3803
  %v4165 = vsel %vm3443, %v2032, %v3804
  %v4166 = vsel %vm3444, %v2037, %v3805
  %v4167 = vsel %vm3445, %v2042, %v3806
  %v4168 = vsel %vm3446, %v2047, %v3807
  %v4169 = vsel %vm3447, %v2052, %v3808
  %v4170 = vsel %vm3448, %v2057, %v3809
  %v4171 = vsel %vm3449, %v2062, %v3810
  %v4172 = vsel %vm3450, %v2067, %v3811
  %v4173 = vsel %vm3451, %v2072, %v3812
  %v4174 = vsel %vm3452, %v2077, %v3813
  %v4175 = vsel %vm3453, %v2082, %v3814
  %v4176 = vsel %vm3454, %v2087, %v3815
  %v4177 = vsel %vm3455, %v2092, %v3816
  %v4178 = vsel %vm3456, %v2097, %v3817
  %v4179 = vsel %vm3457, %v2102, %v3818
  %v4180 = vsel %vm3458, %v2107, %v3819
  %v4181 = vsel %vm3459, %v2112, %v3820
  %v4182 = vsel %vm3460, %v2117, %v3821
  %v4183 = vsel %vm3461, %v2122, %v3822
  %v4184 = vsel %vm3462, %v2127, %v3823
  %v4185 = vsel %vm3463, %v2132, %v3824
  %v4186 = vsel %vm3464, %v2137, %v3825
  %v4187 = vsel %vm3465, %v2142, %v3826
  %v4188 = vsel %vm3466, %v2147, %v3827
  %v4189 = vsel %vm3467, %v2152, %v3828
  %v4190 = vsel %vm3468, %v2157, %v3829
  %v4191 = vsel %vm3469, %v2162, %v3830
  %v4192 = vsel %vm3470, %v2167, %v3831
  %v4193 = vsel %vm3471, %v2172, %v3832
  %v4194 = vsel %vm3472, %v2177, %v3833
  %v4195 = vsel %vm3473, %v2182, %v3834
  %v4196 = vsel %vm3474, %v2187, %v3835
  %v4197 = vsel %vm3475, %v2192, %v3836
  %v4198 = vsel %vm3476, %v2197, %v3837
  %v4199 = vsel %vm3477, %v2202, %v3838
  %v4200 = vsel %vm3478, %v2207, %v3839
  %v4201 = vsel %vm3479, %v2212, %v3840
  %v4202 = vsel %vm3480, %v2217, %v3841
  %v4203 = vsel %vm3481, %v2222, %v3842
  %v4204 = vsel %vm3482, %v2227, %v3843
  %v4205 = vsel %vm3483, %v2232, %v3844
  %v4206 = vsel %vm3484, %v2237, %v3845
  %v4207 = vsel %vm3485, %v2242, %v3846
  %v4208 = vsel %vm3486, %v2247, %v3847
  %v4209 = vsel %vm3487, %v2252, %v3848
  %v4210 = vsel %vm3488, %v2257, %v3849
  %v4211 = vsel %vm3489, %v2262, %v3850
  %v4212 = vsel %vm3490, %v2267, %v3851
  %v4213 = vsel %vm3491, %v2272, %v3852
  %v4214 = vsel %vm3492, %v2277, %v3853
  %v4215 = vsel %vm3493, %v2282, %v3854
  %v4216 = vsel %vm3494, %v2287, %v3855
  %v4217 = vsel %vm3495, %v2292, %v3856
  %v4218 = vsel %vm3496, %v2297, %v3857
  %v4219 = vsel %vm3497, %v2302, %v3858
  %v4220 = vsel %vm3498, %v2307, %v3859
  %v4221 = vsel %vm3499, %v2312, %v3860
  %v4222 = vsel %vm3500, %v2317, %v3861
  %v4223 = vsel %vm3501, %v2322, %v3862
  %v4224 = vsel %vm3502, %v2327, %v3863
  %v4225 = vsel %vm3503, %v2332, %v3864
  %v4226 = vsel %vm3504, %v2337, %v3865
  %v4227 = vsel %vm3505, %v2342, %v3866
  %v4228 = vsel %vm3506, %v2347, %v3867
  %v4229 = vsel %vm3507, %v2352, %v3868
  %v4230 = vsel %vm3508, %v2357, %v3869
  %v4231 = vsel %vm3509, %v2362, %v3870
  %v4232 = vsel %vm3510, %v2367, %v3871
  %v4233 = vsel %vm3511, %v2372, %v3872
  %v4234 = vsel %vm3512, %v2377, %v3873
  %v4235 = vsel %vm3513, %v2382, %v3874
  %v4236 = vsel %vm3514, %v2387, %v3875
  %v4237 = vsel %vm3515, %v2392, %v3876
  %v4238 = vsel %vm3516, %v2397, %v3877
  %v4239 = vsel %vm3517, %v2402, %v3878
  %v4240 = vsel %vm3518, %v2407, %v3879
  %v4241 = vsel %vm3519, %v2412, %v3880
  %v4242 = vsel %vm3520, %v2417, %v3881
  %v4243 = vsel %vm3521, %v2422, %v3882
  %v4244 = vsel %vm3522, %v2427, %v3883
  %v4245 = vsel %vm3523, %v2432, %v3884
  %v4246 = vsel %vm3524, %v2437, %v3885
  %v4247 = vsel %vm3525, %v2442, %v3886
  %v4248 = vsel %vm3526, %v2447, %v3887
  %v4249 = vsel %vm3527, %v2452, %v3888
  %v4250 = vsel %vm3528, %v2457, %v3889
  %v4251 = vsel %vm3529, %v2462, %v3890
  %v4252 = vsel %vm3530, %v2467, %v3891
  %v4253 = vsel %vm3531, %v2472, %v3892
  %v4254 = vsel %vm3532, %v2477, %v3893
  %v4255 = vsel %vm3533, %v2482, %v3894
  %v4256 = vsel %vm3534, %v2487, %v3895
  %v4257 = vsel %vm3535, %v2492, %v3896
  %v4258 = vsel %vm3536, %v2497, %v3897
  %v4259 = vsel %vm3537, %v2502, %v3898
  %v4260 = vsel %vm3538, %v2507, %v3899
  %v4261 = vsel %vm3539, %v2512, %v3900
  %v4262 = vsel %vm3540, %v2517, %v3901
  %v4263 = vsel %vm3541, %v2522, %v3902
  %v4264 = vsel %vm3542, %v2527, %v3903
  %v4265 = vsel %vm3543, %v2532, %v3904
  %v4266 = vsel %vm3544, %v2537, %v3905
  %v4267 = vsel %vm3545, %v2542, %v3906
  %v4268 = vsel %vm3546, %v2547, %v3907
  %v4269 = vsel %vm3547, %v2552, %v3908
  %v4270 = vsel %vm3548, %v2557, %v3909
  %v4271 = vsel %vm3549, %v2562, %v3910
  %v4272 = vsel %vm3550, %v2567, %v3911
  %v4273 = vsel %vm3551, %v2572, %v3912
  %v4274 = vsel %vm3552, %v2577, %v3913
  %v4275 = vsel %vm3553, %v2582, %v3914
  %v4276 = vsel %vm3554, %v2587, %v3915
  %v4277 = vsel %vm3555, %v2592, %v3916
  %v4278 = vsel %vm3556, %v2597, %v3917
  %v4279 = vsel %vm3557, %v2602, %v3918
  %v4280 = vsel %vm3558, %v2607, %v3919
  %v4281 = vsel %vm3559, %v2612, %v3920
  %v4282 = vsel %vm3560, %v2617, %v3921
  %v4283 = vsel %vm3561, %v2622, %v3922
  %v4284 = vsel %vm3562, %v2627, %v3923
  %v4285 = vsel %vm3563, %v2632, %v3924
  %v4286 = vsel %vm3564, %v2637, %v3925
  %v4287 = vsel %vm3565, %v2642, %v3926
  %v4288 = vsel %vm3566, %v2647, %v3927
  %v4289 = vsel %vm3567, %v2652, %v3928
  %v4290 = vsel %vm3568, %v2657, %v3929
  %v4291 = vsel %vm3569, %v2662, %v3930
  %v4292 = vsel %vm3570, %v2667, %v3931
  %v4293 = vsel %vm3571, %v2672, %v3932
  %v4294 = vsel %vm3572, %v2677, %v3933
  %v4295 = vsel %vm3573, %v2682, %v3934
  %v4296 = vsel %vm3574, %v2687, %v3935
  %v4297 = vsel %vm3575, %v2692, %v3936
  %v4298 = vsel %vm3576, %v2697, %v3937
  %v4299 = vsel %vm3577, %v2702, %v3938
  %v4300 = vsel %vm3578, %v2707, %v3939
  %v4301 = vsel %vm3579, %v2712, %v3940
  %v4302 = vsel %vm3580, %v2717, %v3941
  %v4303 = vsel %vm3581, %v2722, %v3942
  %v4304 = vsel %vm3582, %v2727, %v3943
  %v4305 = vsel %vm3583, %v2732, %v3944
  %v4306 = vsel %vm3584, %v2737, %v3945
  %v4307 = vsel %vm3585, %v2742, %v3946
  %v4308 = vsel %vm3586, %v2747, %v3947
  %v4309 = vsel %vm3587, %v2752, %v3948
  %v4310 = vsel %vm3588, %v2757, %v3949
  %v4311 = vsel %vm3589, %v2762, %v3950
  %v4312 = vsel %vm3590, %v2767, %v3951
  %v4313 = vsel %vm3591, %v2772, %v3952
  %v4314 = vsel %vm3592, %v2777, %v3953
  %v4315 = vsel %vm3593, %v2782, %v3954
  %v4316 = vsel %vm3594, %v2787, %v3955
  %v4317 = vsel %vm3595, %v2792, %v3956
  %v4318 = vsel %vm3596, %v2797, %v3957
  %v4319 = vsel %vm3597, %v2802, %v3958
  %v4320 = vsel %vm3598, %v2807, %v3959
  %v4321 = vsel %vm3599, %v2812, %v3960
  %v4322 = vsel %vm3600, %v2817, %v3961
  %v4323 = vsel %vm3601, %v2822, %v3962
  %v4324 = vsel %vm3602, %v2827, %v3963
  %v4325 = vsel %vm3603, %v2832, %v3964
  %v4326 = vsel %vm3604, %v2837, %v3965
  %v4327 = vsel %vm3605, %v2842, %v3966
  %v4328 = vsel %vm3606, %v2847, %v3967
  %v4329 = vsel %vm3607, %v2852, %v3968
  %v4330 = vsel %vm3608, %v2857, %v3969
  %v4331 = vsel %vm3609, %v2862, %v3970
  %v4332 = vsel %vm3610, %v2867, %v3971
  %v4333 = vsel %vm3611, %v2872, %v3972
  %v4334 = vsel %vm3612, %v2877, %v3973
  %v4335 = vsel %vm3613, %v2882, %v3974
  %v4336 = vsel %vm3614, %v2887, %v3975
  %v4337 = vsel %vm3615, %v2892, %v3976
  %v4338 = vsel %vm3616, %v2897, %v3977
  %v4339 = vsel %vm3617, %v2902, %v3978
  %v4340 = vsel %vm3618, %v2907, %v3979
  %v4341 = vsel %vm3619, %v2912, %v3980
  %v4342 = vsel %vm3620, %v2917, %v3981
  %v4343 = vsel %vm3621, %v2922, %v3982
  %v4344 = vsel %vm3622, %v2927, %v3983
  %v4345 = vsel %vm3623, %v2932, %v3984
  %v4346 = vsel %vm3624, %v2937, %v3985
  %v4347 = vsel %vm3625, %v2942, %v3986
  %v4348 = vsel %vm3626, %v2947, %v3987
  %v4349 = vsel %vm3627, %v2952, %v3988
  %v4350 = vsel %vm3628, %v2957, %v3989
  %v4351 = vsel %vm3629, %v2962, %v3990
  %v4352 = vsel %vm3630, %v2967, %v3991
  %v4353 = vsel %vm3631, %v2972, %v3992
  %v4354 = vsel %vm3632, %v2977, %v3993
  %v4355 = vsel %vm3633, %v2982, %v3994
  %v4356 = vsel %vm3634, %v2987, %v3995
  %v4357 = vsel %vm3635, %v2992, %v3996
  %v4358 = vsel %vm3636, %v2997, %v3997
  %v4359 = vsel %vm3637, %v3002, %v3998
  %v4360 = vsel %vm3638, %v3007, %v3999
  %v4361 = vsel %vm3639, %v3012, %v4000
  %v4362 = vsel %vm3640, %v3017, %v4001
  %v4363 = vsel %vm3641, %v3022, %v4002
  %v4364 = vsel %vm3642, %v3027, %v4003
  %v4365 = vsel %vm3643, %v3032, %v4004
  %v4366 = vsel %vm3644, %v3037, %v4005
  %v4367 = vsel %vm3645, %v3042, %v4006
  %v4368 = vsel %vm3646, %v3047, %v4007
  %v4369 = vsel %vm3647, %v3052, %v4008
  %v4370 = vsel %vm3648, %v3057, %v4009
  %v4371 = vsel %vm3649, %v3062, %v4010
  %v4372 = vsel %vm3650, %v3067, %v4011
  %v4373 = vsel %vm3651, %v3072, %v4012
  %v4374 = vsel %vm3652, %v3077, %v4013
  %v4375 = vsel %vm3653, %v3082, %v4014
  %v4376 = vsel %vm3654, %v3087, %v4015
  %v4377 = vsel %vm3655, %v3092, %v4016
  %v4378 = vsel %vm3656, %v3097, %v4017
  %v4379 = vsel %vm3657, %v3102, %v4018
  %v4380 = vsel %vm3658, %v3107, %v4019
  %v4381 = vsel %vm3659, %v3112, %v4020
  %v4382 = vsel %vm3660, %v3117, %v4021
  %v4383 = vsel %vm3661, %v3122, %v4022
  %v4384 = vsel %vm3662, %v3127, %v4023
  %v4385 = vsel %vm3663, %v3132, %v4024
  %v4386 = vsel %vm3664, %v3137, %v4025
  %v4387 = vsel %vm3665, %v3142, %v4026
  %v4388 = vsel %vm3666, %v3147, %v4027
  %v4389 = vsel %vm3667, %v3152, %v4028
  %v4390 = vsel %vm3668, %v3157, %v4029
  %v4391 = vsel %vm3669, %v3162, %v4030
  %v4392 = vsel %vm3670, %v3167, %v4031
  %v4393 = vsel %vm3671, %v3172, %v4032
  %v4394 = vsel %vm3672, %v3177, %v4033
  %v4395 = vsel %vm3673, %v3182, %v4034
  %v4396 = vsel %vm3674, %v3187, %v4035
  %v4397 = vsel %vm3675, %v3192, %v4036
  %v4398 = vsel %vm3676, %v3197, %v4037
  %v4399 = vsel %vm3677, %v3202, %v4038
  %v4400 = vsel %vm3678, %v3207, %v4039
  %v4401 = vsel %vm3679, %v3212, %v4040
  %v4402 = vsel %vm3680, %v3217, %v4041
  %v4403 = vsel %vm3681, %v3222, %v4042
  %v4404 = vsel %vm3682, %v3227, %v4043
  %v4405 = vsel %vm3683, %v3232, %v4044
  %v4406 = vsel %vm3684, %v3237, %v4045
  %v4407 = vsel %vm3685, %v3242, %v4046
  %v4408 = vsel %vm3686, %v3247, %v4047
  %v4409 = vsel %vm3687, %v3252, %v4048
  %v4410 = vsel %vm3688, %v3257, %v4049
  %v4411 = vsel %vm3689, %v3262, %v4050
  %v4412 = vsel %vm3690, %v3267, %v4051
  %v4413 = vsel %vm3691, %v3272, %v4052
  %v4414 = vsel %vm3692, %v3277, %v4053
  %v4415 = vsel %vm3693, %v3282, %v4054
  %v4416 = vsel %vm3694, %v3287, %v4055
  %v4417 = vsel %vm3695, %v3292, %v4056
  %v4418 = vsel %vm3696, %v3297, %v4057
  %v4419 = vsel %vm3697, %v3302, %v4058
  %v4420 = vsel %vm3698, %v3307, %v4059
  %v4421 = vsel %vm3699, %v3312, %v4060
  %v4422 = vsel %vm3700, %v3317, %v4061
  %v4423 = vsel %vm3701, %v3322, %v4062
  %v4424 = vsel %vm3702, %v3327, %v4063
  %v4425 = vsel %vm3703, %v3332, %v4064
  %v4426 = vsel %vm3704, %v3337, %v4065
  %v4427 = vsel %vm3705, %v3342, %v4066
  %vm4428 = vcmask 261120
  %4429 = vst.msk [vmem:[%s3] sm:$0xff] %vm4428, %v4067
  %4430 = vst.msk [vmem:[%s3 + $0x8] sm:$0xff] %vm4428, %v4068
  %4431 = vst.msk [vmem:[%s3 + $0x10] sm:$0xff] %vm4428, %v4069
  %4432 = vst.msk [vmem:[%s3 + $0x18] sm:$0xff] %vm4428, %v4070
  %4433 = vst.msk [vmem:[%s3 + $0x20] sm:$0xff] %vm4428, %v4071
  %4434 = vst.msk [vmem:[%s3 + $0x28] sm:$0xff] %vm4428, %v4072
  %4435 = vst.msk [vmem:[%s3 + $0x30] sm:$0xff] %vm4428, %v4073
  %4436 = vst.msk [vmem:[%s3 + $0x38] sm:$0xff] %vm4428, %v4074
  %4437 = vst.msk [vmem:[%s3 + $0x40] sm:$0xff] %vm4428, %v4075
  %4438 = vst.msk [vmem:[%s3 + $0x48] sm:$0xff] %vm4428, %v4076
  %4439 = vst.msk [vmem:[%s3 + $0x50] sm:$0xff] %vm4428, %v4077
  %4440 = vst.msk [vmem:[%s3 + $0x58] sm:$0xff] %vm4428, %v4078
  %4441 = vst.msk [vmem:[%s3 + $0x60] sm:$0xff] %vm4428, %v4079
  %4442 = vst.msk [vmem:[%s3 + $0x68] sm:$0xff] %vm4428, %v4080
  %4443 = vst.msk [vmem:[%s3 + $0x70] sm:$0xff] %vm4428, %v4081
  %4444 = vst.msk [vmem:[%s3 + $0x78] sm:$0xff] %vm4428, %v4082
  %4445 = vst.msk [vmem:[%s3 + $0x80] sm:$0xff] %vm4428, %v4083
  %4446 = vst.msk [vmem:[%s3 + $0x88] sm:$0xff] %vm4428, %v4084
  %4447 = vst.msk [vmem:[%s3 + $0x90] sm:$0xff] %vm4428, %v4085
  %4448 = vst.msk [vmem:[%s3 + $0x98] sm:$0xff] %vm4428, %v4086
  %4449 = vst.msk [vmem:[%s3 + $0xa0] sm:$0xff] %vm4428, %v4087
  %4450 = vst.msk [vmem:[%s3 + $0xa8] sm:$0xff] %vm4428, %v4088
  %4451 = vst.msk [vmem:[%s3 + $0xb0] sm:$0xff] %vm4428, %v4089
  %4452 = vst.msk [vmem:[%s3 + $0xb8] sm:$0xff] %vm4428, %v4090
  %4453 = vst.msk [vmem:[%s3 + $0xc0] sm:$0xff] %vm4428, %v4091
  %4454 = vst.msk [vmem:[%s3 + $0xc8] sm:$0xff] %vm4428, %v4092
  %4455 = vst.msk [vmem:[%s3 + $0xd0] sm:$0xff] %vm4428, %v4093
  %4456 = vst.msk [vmem:[%s3 + $0xd8] sm:$0xff] %vm4428, %v4094
  %4457 = vst.msk [vmem:[%s3 + $0xe0] sm:$0xff] %vm4428, %v4095
  %4458 = vst.msk [vmem:[%s3 + $0xe8] sm:$0xff] %vm4428, %v4096
  %4459 = vst.msk [vmem:[%s3 + $0xf0] sm:$0xff] %vm4428, %v4097
  %4460 = vst.msk [vmem:[%s3 + $0xf8] sm:$0xff] %vm4428, %v4098
  %4461 = vst.msk [vmem:[%s3 + $0x100] sm:$0xff] %vm4428, %v4099
  %4462 = vst.msk [vmem:[%s3 + $0x108] sm:$0xff] %vm4428, %v4100
  %4463 = vst.msk [vmem:[%s3 + $0x110] sm:$0xff] %vm4428, %v4101
  %4464 = vst.msk [vmem:[%s3 + $0x118] sm:$0xff] %vm4428, %v4102
  %4465 = vst.msk [vmem:[%s3 + $0x120] sm:$0xff] %vm4428, %v4103
  %4466 = vst.msk [vmem:[%s3 + $0x128] sm:$0xff] %vm4428, %v4104
  %4467 = vst.msk [vmem:[%s3 + $0x130] sm:$0xff] %vm4428, %v4105
  %4468 = vst.msk [vmem:[%s3 + $0x138] sm:$0xff] %vm4428, %v4106
  %4469 = vst.msk [vmem:[%s3 + $0x140] sm:$0xff] %vm4428, %v4107
  %4470 = vst.msk [vmem:[%s3 + $0x148] sm:$0xff] %vm4428, %v4108
  %4471 = vst.msk [vmem:[%s3 + $0x150] sm:$0xff] %vm4428, %v4109
  %4472 = vst.msk [vmem:[%s3 + $0x158] sm:$0xff] %vm4428, %v4110
  %4473 = vst.msk [vmem:[%s3 + $0x160] sm:$0xff] %vm4428, %v4111
  %4474 = vst.msk [vmem:[%s3 + $0x168] sm:$0xff] %vm4428, %v4112
  %4475 = vst.msk [vmem:[%s3 + $0x170] sm:$0xff] %vm4428, %v4113
  %4476 = vst.msk [vmem:[%s3 + $0x178] sm:$0xff] %vm4428, %v4114
  %4477 = vst.msk [vmem:[%s3 + $0x180] sm:$0xff] %vm4428, %v4115
  %4478 = vst.msk [vmem:[%s3 + $0x188] sm:$0xff] %vm4428, %v4116
  %4479 = vst.msk [vmem:[%s3 + $0x190] sm:$0xff] %vm4428, %v4117
  %4480 = vst.msk [vmem:[%s3 + $0x198] sm:$0xff] %vm4428, %v4118
  %4481 = vst.msk [vmem:[%s3 + $0x1a0] sm:$0xff] %vm4428, %v4119
  %4482 = vst.msk [vmem:[%s3 + $0x1a8] sm:$0xff] %vm4428, %v4120
  %4483 = vst.msk [vmem:[%s3 + $0x1b0] sm:$0xff] %vm4428, %v4121
  %4484 = vst.msk [vmem:[%s3 + $0x1b8] sm:$0xff] %vm4428, %v4122
  %4485 = vst.msk [vmem:[%s3 + $0x1c0] sm:$0xff] %vm4428, %v4123
  %4486 = vst.msk [vmem:[%s3 + $0x1c8] sm:$0xff] %vm4428, %v4124
  %4487 = vst.msk [vmem:[%s3 + $0x1d0] sm:$0xff] %vm4428, %v4125
  %4488 = vst.msk [vmem:[%s3 + $0x1d8] sm:$0xff] %vm4428, %v4126
  %4489 = vst.msk [vmem:[%s3 + $0x1e0] sm:$0xff] %vm4428, %v4127
  %4490 = vst.msk [vmem:[%s3 + $0x1e8] sm:$0xff] %vm4428, %v4128
  %4491 = vst.msk [vmem:[%s3 + $0x1f0] sm:$0xff] %vm4428, %v4129
  %4492 = vst.msk [vmem:[%s3 + $0x1f8] sm:$0xff] %vm4428, %v4130
  %4493 = vst.msk [vmem:[%s3 + $0x200] sm:$0xff] %vm4428, %v4131
  %4494 = vst.msk [vmem:[%s3 + $0x208] sm:$0xff] %vm4428, %v4132
  %4495 = vst.msk [vmem:[%s3 + $0x210] sm:$0xff] %vm4428, %v4133
  %4496 = vst.msk [vmem:[%s3 + $0x218] sm:$0xff] %vm4428, %v4134
  %4497 = vst.msk [vmem:[%s3 + $0x220] sm:$0xff] %vm4428, %v4135
  %4498 = vst.msk [vmem:[%s3 + $0x228] sm:$0xff] %vm4428, %v4136
  %4499 = vst.msk [vmem:[%s3 + $0x230] sm:$0xff] %vm4428, %v4137
  %4500 = vst.msk [vmem:[%s3 + $0x238] sm:$0xff] %vm4428, %v4138
  %4501 = vst.msk [vmem:[%s3 + $0x240] sm:$0xff] %vm4428, %v4139
  %4502 = vst.msk [vmem:[%s3 + $0x248] sm:$0xff] %vm4428, %v4140
  %4503 = vst.msk [vmem:[%s3 + $0x250] sm:$0xff] %vm4428, %v4141
  %4504 = vst.msk [vmem:[%s3 + $0x258] sm:$0xff] %vm4428, %v4142
  %4505 = vst.msk [vmem:[%s3 + $0x260] sm:$0xff] %vm4428, %v4143
  %4506 = vst.msk [vmem:[%s3 + $0x268] sm:$0xff] %vm4428, %v4144
  %4507 = vst.msk [vmem:[%s3 + $0x270] sm:$0xff] %vm4428, %v4145
  %4508 = vst.msk [vmem:[%s3 + $0x278] sm:$0xff] %vm4428, %v4146
  %4509 = vst.msk [vmem:[%s3 + $0x280] sm:$0xff] %vm4428, %v4147
  %4510 = vst.msk [vmem:[%s3 + $0x288] sm:$0xff] %vm4428, %v4148
  %4511 = vst.msk [vmem:[%s3 + $0x290] sm:$0xff] %vm4428, %v4149
  %4512 = vst.msk [vmem:[%s3 + $0x298] sm:$0xff] %vm4428, %v4150
  %4513 = vst.msk [vmem:[%s3 + $0x2a0] sm:$0xff] %vm4428, %v4151
  %4514 = vst.msk [vmem:[%s3 + $0x2a8] sm:$0xff] %vm4428, %v4152
  %4515 = vst.msk [vmem:[%s3 + $0x2b0] sm:$0xff] %vm4428, %v4153
  %4516 = vst.msk [vmem:[%s3 + $0x2b8] sm:$0xff] %vm4428, %v4154
  %4517 = vst.msk [vmem:[%s3 + $0x2c0] sm:$0xff] %vm4428, %v4155
  %4518 = vst.msk [vmem:[%s3 + $0x2c8] sm:$0xff] %vm4428, %v4156
  %4519 = vst.msk [vmem:[%s3 + $0x2d0] sm:$0xff] %vm4428, %v4157
  %4520 = vst.msk [vmem:[%s3 + $0x2d8] sm:$0xff] %vm4428, %v4158
  %4521 = vst.msk [vmem:[%s3 + $0x2e0] sm:$0xff] %vm4428, %v4159
  %4522 = vst.msk [vmem:[%s3 + $0x2e8] sm:$0xff] %vm4428, %v4160
  %4523 = vst.msk [vmem:[%s3 + $0x2f0] sm:$0xff] %vm4428, %v4161
  %4524 = vst.msk [vmem:[%s3 + $0x2f8] sm:$0xff] %vm4428, %v4162
  %4525 = vst.msk [vmem:[%s3 + $0x300] sm:$0xff] %vm4428, %v4163
  %4526 = vst.msk [vmem:[%s3 + $0x308] sm:$0xff] %vm4428, %v4164
  %4527 = vst.msk [vmem:[%s3 + $0x310] sm:$0xff] %vm4428, %v4165
  %4528 = vst.msk [vmem:[%s3 + $0x318] sm:$0xff] %vm4428, %v4166
  %4529 = vst.msk [vmem:[%s3 + $0x320] sm:$0xff] %vm4428, %v4167
  %4530 = vst.msk [vmem:[%s3 + $0x328] sm:$0xff] %vm4428, %v4168
  %4531 = vst.msk [vmem:[%s3 + $0x330] sm:$0xff] %vm4428, %v4169
  %4532 = vst.msk [vmem:[%s3 + $0x338] sm:$0xff] %vm4428, %v4170
  %4533 = vst.msk [vmem:[%s3 + $0x340] sm:$0xff] %vm4428, %v4171
  %4534 = vst.msk [vmem:[%s3 + $0x348] sm:$0xff] %vm4428, %v4172
  %4535 = vst.msk [vmem:[%s3 + $0x350] sm:$0xff] %vm4428, %v4173
  %4536 = vst.msk [vmem:[%s3 + $0x358] sm:$0xff] %vm4428, %v4174
  %4537 = vst.msk [vmem:[%s3 + $0x360] sm:$0xff] %vm4428, %v4175
  %4538 = vst.msk [vmem:[%s3 + $0x368] sm:$0xff] %vm4428, %v4176
  %4539 = vst.msk [vmem:[%s3 + $0x370] sm:$0xff] %vm4428, %v4177
  %4540 = vst.msk [vmem:[%s3 + $0x378] sm:$0xff] %vm4428, %v4178
  %4541 = vst.msk [vmem:[%s3 + $0x380] sm:$0xff] %vm4428, %v4179
  %4542 = vst.msk [vmem:[%s3 + $0x388] sm:$0xff] %vm4428, %v4180
  %4543 = vst.msk [vmem:[%s3 + $0x390] sm:$0xff] %vm4428, %v4181
  %4544 = vst.msk [vmem:[%s3 + $0x398] sm:$0xff] %vm4428, %v4182
  %4545 = vst.msk [vmem:[%s3 + $0x3a0] sm:$0xff] %vm4428, %v4183
  %4546 = vst.msk [vmem:[%s3 + $0x3a8] sm:$0xff] %vm4428, %v4184
  %4547 = vst.msk [vmem:[%s3 + $0x3b0] sm:$0xff] %vm4428, %v4185
  %4548 = vst.msk [vmem:[%s3 + $0x3b8] sm:$0xff] %vm4428, %v4186
  %4549 = vst.msk [vmem:[%s3 + $0x3c0] sm:$0xff] %vm4428, %v4187
  %4550 = vst.msk [vmem:[%s3 + $0x3c8] sm:$0xff] %vm4428, %v4188
  %4551 = vst.msk [vmem:[%s3 + $0x3d0] sm:$0xff] %vm4428, %v4189
  %4552 = vst.msk [vmem:[%s3 + $0x3d8] sm:$0xff] %vm4428, %v4190
  %4553 = vst.msk [vmem:[%s3 + $0x3e0] sm:$0xff] %vm4428, %v4191
  %4554 = vst.msk [vmem:[%s3 + $0x3e8] sm:$0xff] %vm4428, %v4192
  %4555 = vst.msk [vmem:[%s3 + $0x3f0] sm:$0xff] %vm4428, %v4193
  %4556 = vst.msk [vmem:[%s3 + $0x3f8] sm:$0xff] %vm4428, %v4194
  %4557 = vst.msk [vmem:[%s3 + $0x400] sm:$0xff] %vm4428, %v4195
  %4558 = vst.msk [vmem:[%s3 + $0x408] sm:$0xff] %vm4428, %v4196
  %4559 = vst.msk [vmem:[%s3 + $0x410] sm:$0xff] %vm4428, %v4197
  %4560 = vst.msk [vmem:[%s3 + $0x418] sm:$0xff] %vm4428, %v4198
  %4561 = vst.msk [vmem:[%s3 + $0x420] sm:$0xff] %vm4428, %v4199
  %4562 = vst.msk [vmem:[%s3 + $0x428] sm:$0xff] %vm4428, %v4200
  %4563 = vst.msk [vmem:[%s3 + $0x430] sm:$0xff] %vm4428, %v4201
  %4564 = vst.msk [vmem:[%s3 + $0x438] sm:$0xff] %vm4428, %v4202
  %4565 = vst.msk [vmem:[%s3 + $0x440] sm:$0xff] %vm4428, %v4203
  %4566 = vst.msk [vmem:[%s3 + $0x448] sm:$0xff] %vm4428, %v4204
  %4567 = vst.msk [vmem:[%s3 + $0x450] sm:$0xff] %vm4428, %v4205
  %4568 = vst.msk [vmem:[%s3 + $0x458] sm:$0xff] %vm4428, %v4206
  %4569 = vst.msk [vmem:[%s3 + $0x460] sm:$0xff] %vm4428, %v4207
  %4570 = vst.msk [vmem:[%s3 + $0x468] sm:$0xff] %vm4428, %v4208
  %4571 = vst.msk [vmem:[%s3 + $0x470] sm:$0xff] %vm4428, %v4209
  %4572 = vst.msk [vmem:[%s3 + $0x478] sm:$0xff] %vm4428, %v4210
  %4573 = vst.msk [vmem:[%s3 + $0x480] sm:$0xff] %vm4428, %v4211
  %4574 = vst.msk [vmem:[%s3 + $0x488] sm:$0xff] %vm4428, %v4212
  %4575 = vst.msk [vmem:[%s3 + $0x490] sm:$0xff] %vm4428, %v4213
  %4576 = vst.msk [vmem:[%s3 + $0x498] sm:$0xff] %vm4428, %v4214
  %4577 = vst.msk [vmem:[%s3 + $0x4a0] sm:$0xff] %vm4428, %v4215
  %4578 = vst.msk [vmem:[%s3 + $0x4a8] sm:$0xff] %vm4428, %v4216
  %4579 = vst.msk [vmem:[%s3 + $0x4b0] sm:$0xff] %vm4428, %v4217
  %4580 = vst.msk [vmem:[%s3 + $0x4b8] sm:$0xff] %vm4428, %v4218
  %4581 = vst.msk [vmem:[%s3 + $0x4c0] sm:$0xff] %vm4428, %v4219
  %4582 = vst.msk [vmem:[%s3 + $0x4c8] sm:$0xff] %vm4428, %v4220
  %4583 = vst.msk [vmem:[%s3 + $0x4d0] sm:$0xff] %vm4428, %v4221
  %4584 = vst.msk [vmem:[%s3 + $0x4d8] sm:$0xff] %vm4428, %v4222
  %4585 = vst.msk [vmem:[%s3 + $0x4e0] sm:$0xff] %vm4428, %v4223
  %4586 = vst.msk [vmem:[%s3 + $0x4e8] sm:$0xff] %vm4428, %v4224
  %4587 = vst.msk [vmem:[%s3 + $0x4f0] sm:$0xff] %vm4428, %v4225
  %4588 = vst.msk [vmem:[%s3 + $0x4f8] sm:$0xff] %vm4428, %v4226
  %4589 = vst.msk [vmem:[%s3 + $0x500] sm:$0xff] %vm4428, %v4227
  %4590 = vst.msk [vmem:[%s3 + $0x508] sm:$0xff] %vm4428, %v4228
  %4591 = vst.msk [vmem:[%s3 + $0x510] sm:$0xff] %vm4428, %v4229
  %4592 = vst.msk [vmem:[%s3 + $0x518] sm:$0xff] %vm4428, %v4230
  %4593 = vst.msk [vmem:[%s3 + $0x520] sm:$0xff] %vm4428, %v4231
  %4594 = vst.msk [vmem:[%s3 + $0x528] sm:$0xff] %vm4428, %v4232
  %4595 = vst.msk [vmem:[%s3 + $0x530] sm:$0xff] %vm4428, %v4233
  %4596 = vst.msk [vmem:[%s3 + $0x538] sm:$0xff] %vm4428, %v4234
  %4597 = vst.msk [vmem:[%s3 + $0x540] sm:$0xff] %vm4428, %v4235
  %4598 = vst.msk [vmem:[%s3 + $0x548] sm:$0xff] %vm4428, %v4236
  %4599 = vst.msk [vmem:[%s3 + $0x550] sm:$0xff] %vm4428, %v4237
  %4600 = vst.msk [vmem:[%s3 + $0x558] sm:$0xff] %vm4428, %v4238
  %4601 = vst.msk [vmem:[%s3 + $0x560] sm:$0xff] %vm4428, %v4239
  %4602 = vst.msk [vmem:[%s3 + $0x568] sm:$0xff] %vm4428, %v4240
  %4603 = vst.msk [vmem:[%s3 + $0x570] sm:$0xff] %vm4428, %v4241
  %4604 = vst.msk [vmem:[%s3 + $0x578] sm:$0xff] %vm4428, %v4242
  %4605 = vst.msk [vmem:[%s3 + $0x580] sm:$0xff] %vm4428, %v4243
  %4606 = vst.msk [vmem:[%s3 + $0x588] sm:$0xff] %vm4428, %v4244
  %4607 = vst.msk [vmem:[%s3 + $0x590] sm:$0xff] %vm4428, %v4245
  %4608 = vst.msk [vmem:[%s3 + $0x598] sm:$0xff] %vm4428, %v4246
  %4609 = vst.msk [vmem:[%s3 + $0x5a0] sm:$0xff] %vm4428, %v4247
  %4610 = vst.msk [vmem:[%s3 + $0x5a8] sm:$0xff] %vm4428, %v4248
  %4611 = vst.msk [vmem:[%s3 + $0x5b0] sm:$0xff] %vm4428, %v4249
  %4612 = vst.msk [vmem:[%s3 + $0x5b8] sm:$0xff] %vm4428, %v4250
  %4613 = vst.msk [vmem:[%s3 + $0x5c0] sm:$0xff] %vm4428, %v4251
  %4614 = vst.msk [vmem:[%s3 + $0x5c8] sm:$0xff] %vm4428, %v4252
  %4615 = vst.msk [vmem:[%s3 + $0x5d0] sm:$0xff] %vm4428, %v4253
  %4616 = vst.msk [vmem:[%s3 + $0x5d8] sm:$0xff] %vm4428, %v4254
  %4617 = vst.msk [vmem:[%s3 + $0x5e0] sm:$0xff] %vm4428, %v4255
  %4618 = vst.msk [vmem:[%s3 + $0x5e8] sm:$0xff] %vm4428, %v4256
  %4619 = vst.msk [vmem:[%s3 + $0x5f0] sm:$0xff] %vm4428, %v4257
  %4620 = vst.msk [vmem:[%s3 + $0x5f8] sm:$0xff] %vm4428, %v4258
  %4621 = vst.msk [vmem:[%s3 + $0x600] sm:$0xff] %vm4428, %v4259
  %4622 = vst.msk [vmem:[%s3 + $0x608] sm:$0xff] %vm4428, %v4260
  %4623 = vst.msk [vmem:[%s3 + $0x610] sm:$0xff] %vm4428, %v4261
  %4624 = vst.msk [vmem:[%s3 + $0x618] sm:$0xff] %vm4428, %v4262
  %4625 = vst.msk [vmem:[%s3 + $0x620] sm:$0xff] %vm4428, %v4263
  %4626 = vst.msk [vmem:[%s3 + $0x628] sm:$0xff] %vm4428, %v4264
  %4627 = vst.msk [vmem:[%s3 + $0x630] sm:$0xff] %vm4428, %v4265
  %4628 = vst.msk [vmem:[%s3 + $0x638] sm:$0xff] %vm4428, %v4266
  %4629 = vst.msk [vmem:[%s3 + $0x640] sm:$0xff] %vm4428, %v4267
  %4630 = vst.msk [vmem:[%s3 + $0x648] sm:$0xff] %vm4428, %v4268
  %4631 = vst.msk [vmem:[%s3 + $0x650] sm:$0xff] %vm4428, %v4269
  %4632 = vst.msk [vmem:[%s3 + $0x658] sm:$0xff] %vm4428, %v4270
  %4633 = vst.msk [vmem:[%s3 + $0x660] sm:$0xff] %vm4428, %v4271
  %4634 = vst.msk [vmem:[%s3 + $0x668] sm:$0xff] %vm4428, %v4272
  %4635 = vst.msk [vmem:[%s3 + $0x670] sm:$0xff] %vm4428, %v4273
  %4636 = vst.msk [vmem:[%s3 + $0x678] sm:$0xff] %vm4428, %v4274
  %4637 = vst.msk [vmem:[%s3 + $0x680] sm:$0xff] %vm4428, %v4275
  %4638 = vst.msk [vmem:[%s3 + $0x688] sm:$0xff] %vm4428, %v4276
  %4639 = vst.msk [vmem:[%s3 + $0x690] sm:$0xff] %vm4428, %v4277
  %4640 = vst.msk [vmem:[%s3 + $0x698] sm:$0xff] %vm4428, %v4278
  %4641 = vst.msk [vmem:[%s3 + $0x6a0] sm:$0xff] %vm4428, %v4279
  %4642 = vst.msk [vmem:[%s3 + $0x6a8] sm:$0xff] %vm4428, %v4280
  %4643 = vst.msk [vmem:[%s3 + $0x6b0] sm:$0xff] %vm4428, %v4281
  %4644 = vst.msk [vmem:[%s3 + $0x6b8] sm:$0xff] %vm4428, %v4282
  %4645 = vst.msk [vmem:[%s3 + $0x6c0] sm:$0xff] %vm4428, %v4283
  %4646 = vst.msk [vmem:[%s3 + $0x6c8] sm:$0xff] %vm4428, %v4284
  %4647 = vst.msk [vmem:[%s3 + $0x6d0] sm:$0xff] %vm4428, %v4285
  %4648 = vst.msk [vmem:[%s3 + $0x6d8] sm:$0xff] %vm4428, %v4286
  %4649 = vst.msk [vmem:[%s3 + $0x6e0] sm:$0xff] %vm4428, %v4287
  %4650 = vst.msk [vmem:[%s3 + $0x6e8] sm:$0xff] %vm4428, %v4288
  %4651 = vst.msk [vmem:[%s3 + $0x6f0] sm:$0xff] %vm4428, %v4289
  %4652 = vst.msk [vmem:[%s3 + $0x6f8] sm:$0xff] %vm4428, %v4290
  %4653 = vst.msk [vmem:[%s3 + $0x700] sm:$0xff] %vm4428, %v4291
  %4654 = vst.msk [vmem:[%s3 + $0x708] sm:$0xff] %vm4428, %v4292
  %4655 = vst.msk [vmem:[%s3 + $0x710] sm:$0xff] %vm4428, %v4293
  %4656 = vst.msk [vmem:[%s3 + $0x718] sm:$0xff] %vm4428, %v4294
  %4657 = vst.msk [vmem:[%s3 + $0x720] sm:$0xff] %vm4428, %v4295
  %4658 = vst.msk [vmem:[%s3 + $0x728] sm:$0xff] %vm4428, %v4296
  %4659 = vst.msk [vmem:[%s3 + $0x730] sm:$0xff] %vm4428, %v4297
  %4660 = vst.msk [vmem:[%s3 + $0x738] sm:$0xff] %vm4428, %v4298
  %4661 = vst.msk [vmem:[%s3 + $0x740] sm:$0xff] %vm4428, %v4299
  %4662 = vst.msk [vmem:[%s3 + $0x748] sm:$0xff] %vm4428, %v4300
  %4663 = vst.msk [vmem:[%s3 + $0x750] sm:$0xff] %vm4428, %v4301
  %4664 = vst.msk [vmem:[%s3 + $0x758] sm:$0xff] %vm4428, %v4302
  %4665 = vst.msk [vmem:[%s3 + $0x760] sm:$0xff] %vm4428, %v4303
  %4666 = vst.msk [vmem:[%s3 + $0x768] sm:$0xff] %vm4428, %v4304
  %4667 = vst.msk [vmem:[%s3 + $0x770] sm:$0xff] %vm4428, %v4305
  %4668 = vst.msk [vmem:[%s3 + $0x778] sm:$0xff] %vm4428, %v4306
  %4669 = vst.msk [vmem:[%s3 + $0x780] sm:$0xff] %vm4428, %v4307
  %4670 = vst.msk [vmem:[%s3 + $0x788] sm:$0xff] %vm4428, %v4308
  %4671 = vst.msk [vmem:[%s3 + $0x790] sm:$0xff] %vm4428, %v4309
  %4672 = vst.msk [vmem:[%s3 + $0x798] sm:$0xff] %vm4428, %v4310
  %4673 = vst.msk [vmem:[%s3 + $0x7a0] sm:$0xff] %vm4428, %v4311
  %4674 = vst.msk [vmem:[%s3 + $0x7a8] sm:$0xff] %vm4428, %v4312
  %4675 = vst.msk [vmem:[%s3 + $0x7b0] sm:$0xff] %vm4428, %v4313
  %4676 = vst.msk [vmem:[%s3 + $0x7b8] sm:$0xff] %vm4428, %v4314
  %4677 = vst.msk [vmem:[%s3 + $0x7c0] sm:$0xff] %vm4428, %v4315
  %4678 = vst.msk [vmem:[%s3 + $0x7c8] sm:$0xff] %vm4428, %v4316
  %4679 = vst.msk [vmem:[%s3 + $0x7d0] sm:$0xff] %vm4428, %v4317
  %4680 = vst.msk [vmem:[%s3 + $0x7d8] sm:$0xff] %vm4428, %v4318
  %4681 = vst.msk [vmem:[%s3 + $0x7e0] sm:$0xff] %vm4428, %v4319
  %4682 = vst.msk [vmem:[%s3 + $0x7e8] sm:$0xff] %vm4428, %v4320
  %4683 = vst.msk [vmem:[%s3 + $0x7f0] sm:$0xff] %vm4428, %v4321
  %4684 = vst.msk [vmem:[%s3 + $0x7f8] sm:$0xff] %vm4428, %v4322
  %4685 = vst.msk [vmem:[%s3 + $0x800] sm:$0xff] %vm4428, %v4323
  %4686 = vst.msk [vmem:[%s3 + $0x808] sm:$0xff] %vm4428, %v4324
  %4687 = vst.msk [vmem:[%s3 + $0x810] sm:$0xff] %vm4428, %v4325
  %4688 = vst.msk [vmem:[%s3 + $0x818] sm:$0xff] %vm4428, %v4326
  %4689 = vst.msk [vmem:[%s3 + $0x820] sm:$0xff] %vm4428, %v4327
  %4690 = vst.msk [vmem:[%s3 + $0x828] sm:$0xff] %vm4428, %v4328
  %4691 = vst.msk [vmem:[%s3 + $0x830] sm:$0xff] %vm4428, %v4329
  %4692 = vst.msk [vmem:[%s3 + $0x838] sm:$0xff] %vm4428, %v4330
  %4693 = vst.msk [vmem:[%s3 + $0x840] sm:$0xff] %vm4428, %v4331
  %4694 = vst.msk [vmem:[%s3 + $0x848] sm:$0xff] %vm4428, %v4332
  %4695 = vst.msk [vmem:[%s3 + $0x850] sm:$0xff] %vm4428, %v4333
  %4696 = vst.msk [vmem:[%s3 + $0x858] sm:$0xff] %vm4428, %v4334
  %4697 = vst.msk [vmem:[%s3 + $0x860] sm:$0xff] %vm4428, %v4335
  %4698 = vst.msk [vmem:[%s3 + $0x868] sm:$0xff] %vm4428, %v4336
  %4699 = vst.msk [vmem:[%s3 + $0x870] sm:$0xff] %vm4428, %v4337
  %4700 = vst.msk [vmem:[%s3 + $0x878] sm:$0xff] %vm4428, %v4338
  %4701 = vst.msk [vmem:[%s3 + $0x880] sm:$0xff] %vm4428, %v4339
  %4702 = vst.msk [vmem:[%s3 + $0x888] sm:$0xff] %vm4428, %v4340
  %4703 = vst.msk [vmem:[%s3 + $0x890] sm:$0xff] %vm4428, %v4341
  %4704 = vst.msk [vmem:[%s3 + $0x898] sm:$0xff] %vm4428, %v4342
  %4705 = vst.msk [vmem:[%s3 + $0x8a0] sm:$0xff] %vm4428, %v4343
  %4706 = vst.msk [vmem:[%s3 + $0x8a8] sm:$0xff] %vm4428, %v4344
  %4707 = vst.msk [vmem:[%s3 + $0x8b0] sm:$0xff] %vm4428, %v4345
  %4708 = vst.msk [vmem:[%s3 + $0x8b8] sm:$0xff] %vm4428, %v4346
  %4709 = vst.msk [vmem:[%s3 + $0x8c0] sm:$0xff] %vm4428, %v4347
  %4710 = vst.msk [vmem:[%s3 + $0x8c8] sm:$0xff] %vm4428, %v4348
  %4711 = vst.msk [vmem:[%s3 + $0x8d0] sm:$0xff] %vm4428, %v4349
  %4712 = vst.msk [vmem:[%s3 + $0x8d8] sm:$0xff] %vm4428, %v4350
  %4713 = vst.msk [vmem:[%s3 + $0x8e0] sm:$0xff] %vm4428, %v4351
  %4714 = vst.msk [vmem:[%s3 + $0x8e8] sm:$0xff] %vm4428, %v4352
  %4715 = vst.msk [vmem:[%s3 + $0x8f0] sm:$0xff] %vm4428, %v4353
  %4716 = vst.msk [vmem:[%s3 + $0x8f8] sm:$0xff] %vm4428, %v4354
  %4717 = vst.msk [vmem:[%s3 + $0x900] sm:$0xff] %vm4428, %v4355
  %4718 = vst.msk [vmem:[%s3 + $0x908] sm:$0xff] %vm4428, %v4356
  %4719 = vst.msk [vmem:[%s3 + $0x910] sm:$0xff] %vm4428, %v4357
  %4720 = vst.msk [vmem:[%s3 + $0x918] sm:$0xff] %vm4428, %v4358
  %4721 = vst.msk [vmem:[%s3 + $0x920] sm:$0xff] %vm4428, %v4359
  %4722 = vst.msk [vmem:[%s3 + $0x928] sm:$0xff] %vm4428, %v4360
  %4723 = vst.msk [vmem:[%s3 + $0x930] sm:$0xff] %vm4428, %v4361
  %4724 = vst.msk [vmem:[%s3 + $0x938] sm:$0xff] %vm4428, %v4362
  %4725 = vst.msk [vmem:[%s3 + $0x940] sm:$0xff] %vm4428, %v4363
  %4726 = vst.msk [vmem:[%s3 + $0x948] sm:$0xff] %vm4428, %v4364
  %4727 = vst.msk [vmem:[%s3 + $0x950] sm:$0xff] %vm4428, %v4365
  %4728 = vst.msk [vmem:[%s3 + $0x958] sm:$0xff] %vm4428, %v4366
  %4729 = vst.msk [vmem:[%s3 + $0x960] sm:$0xff] %vm4428, %v4367
  %4730 = vst.msk [vmem:[%s3 + $0x968] sm:$0xff] %vm4428, %v4368
  %4731 = vst.msk [vmem:[%s3 + $0x970] sm:$0xff] %vm4428, %v4369
  %4732 = vst.msk [vmem:[%s3 + $0x978] sm:$0xff] %vm4428, %v4370
  %4733 = vst.msk [vmem:[%s3 + $0x980] sm:$0xff] %vm4428, %v4371
  %4734 = vst.msk [vmem:[%s3 + $0x988] sm:$0xff] %vm4428, %v4372
  %4735 = vst.msk [vmem:[%s3 + $0x990] sm:$0xff] %vm4428, %v4373
  %4736 = vst.msk [vmem:[%s3 + $0x998] sm:$0xff] %vm4428, %v4374
  %4737 = vst.msk [vmem:[%s3 + $0x9a0] sm:$0xff] %vm4428, %v4375
  %4738 = vst.msk [vmem:[%s3 + $0x9a8] sm:$0xff] %vm4428, %v4376
  %4739 = vst.msk [vmem:[%s3 + $0x9b0] sm:$0xff] %vm4428, %v4377
  %4740 = vst.msk [vmem:[%s3 + $0x9b8] sm:$0xff] %vm4428, %v4378
  %4741 = vst.msk [vmem:[%s3 + $0x9c0] sm:$0xff] %vm4428, %v4379
  %4742 = vst.msk [vmem:[%s3 + $0x9c8] sm:$0xff] %vm4428, %v4380
  %4743 = vst.msk [vmem:[%s3 + $0x9d0] sm:$0xff] %vm4428, %v4381
  %4744 = vst.msk [vmem:[%s3 + $0x9d8] sm:$0xff] %vm4428, %v4382
  %4745 = vst.msk [vmem:[%s3 + $0x9e0] sm:$0xff] %vm4428, %v4383
  %4746 = vst.msk [vmem:[%s3 + $0x9e8] sm:$0xff] %vm4428, %v4384
  %4747 = vst.msk [vmem:[%s3 + $0x9f0] sm:$0xff] %vm4428, %v4385
  %4748 = vst.msk [vmem:[%s3 + $0x9f8] sm:$0xff] %vm4428, %v4386
  %4749 = vst.msk [vmem:[%s3 + $0xa00] sm:$0xff] %vm4428, %v4387
  %4750 = vst.msk [vmem:[%s3 + $0xa08] sm:$0xff] %vm4428, %v4388
  %4751 = vst.msk [vmem:[%s3 + $0xa10] sm:$0xff] %vm4428, %v4389
  %4752 = vst.msk [vmem:[%s3 + $0xa18] sm:$0xff] %vm4428, %v4390
  %4753 = vst.msk [vmem:[%s3 + $0xa20] sm:$0xff] %vm4428, %v4391
  %4754 = vst.msk [vmem:[%s3 + $0xa28] sm:$0xff] %vm4428, %v4392
  %4755 = vst.msk [vmem:[%s3 + $0xa30] sm:$0xff] %vm4428, %v4393
  %4756 = vst.msk [vmem:[%s3 + $0xa38] sm:$0xff] %vm4428, %v4394
  %4757 = vst.msk [vmem:[%s3 + $0xa40] sm:$0xff] %vm4428, %v4395
  %4758 = vst.msk [vmem:[%s3 + $0xa48] sm:$0xff] %vm4428, %v4396
  %4759 = vst.msk [vmem:[%s3 + $0xa50] sm:$0xff] %vm4428, %v4397
  %4760 = vst.msk [vmem:[%s3 + $0xa58] sm:$0xff] %vm4428, %v4398
  %4761 = vst.msk [vmem:[%s3 + $0xa60] sm:$0xff] %vm4428, %v4399
  %4762 = vst.msk [vmem:[%s3 + $0xa68] sm:$0xff] %vm4428, %v4400
  %4763 = vst.msk [vmem:[%s3 + $0xa70] sm:$0xff] %vm4428, %v4401
  %4764 = vst.msk [vmem:[%s3 + $0xa78] sm:$0xff] %vm4428, %v4402
  %4765 = vst.msk [vmem:[%s3 + $0xa80] sm:$0xff] %vm4428, %v4403
  %4766 = vst.msk [vmem:[%s3 + $0xa88] sm:$0xff] %vm4428, %v4404
  %4767 = vst.msk [vmem:[%s3 + $0xa90] sm:$0xff] %vm4428, %v4405
  %4768 = vst.msk [vmem:[%s3 + $0xa98] sm:$0xff] %vm4428, %v4406
  %4769 = vst.msk [vmem:[%s3 + $0xaa0] sm:$0xff] %vm4428, %v4407
  %4770 = vst.msk [vmem:[%s3 + $0xaa8] sm:$0xff] %vm4428, %v4408
  %4771 = vst.msk [vmem:[%s3 + $0xab0] sm:$0xff] %vm4428, %v4409
  %4772 = vst.msk [vmem:[%s3 + $0xab8] sm:$0xff] %vm4428, %v4410
  %4773 = vst.msk [vmem:[%s3 + $0xac0] sm:$0xff] %vm4428, %v4411
  %4774 = vst.msk [vmem:[%s3 + $0xac8] sm:$0xff] %vm4428, %v4412
  %4775 = vst.msk [vmem:[%s3 + $0xad0] sm:$0xff] %vm4428, %v4413
  %4776 = vst.msk [vmem:[%s3 + $0xad8] sm:$0xff] %vm4428, %v4414
  %4777 = vst.msk [vmem:[%s3 + $0xae0] sm:$0xff] %vm4428, %v4415
  %4778 = vst.msk [vmem:[%s3 + $0xae8] sm:$0xff] %vm4428, %v4416
  %4779 = vst.msk [vmem:[%s3 + $0xaf0] sm:$0xff] %vm4428, %v4417
  %4780 = vst.msk [vmem:[%s3 + $0xaf8] sm:$0xff] %vm4428, %v4418
  %4781 = vst.msk [vmem:[%s3 + $0xb00] sm:$0xff] %vm4428, %v4419
  %4782 = vst.msk [vmem:[%s3 + $0xb08] sm:$0xff] %vm4428, %v4420
  %4783 = vst.msk [vmem:[%s3 + $0xb10] sm:$0xff] %vm4428, %v4421
  %4784 = vst.msk [vmem:[%s3 + $0xb18] sm:$0xff] %vm4428, %v4422
  %4785 = vst.msk [vmem:[%s3 + $0xb20] sm:$0xff] %vm4428, %v4423
  %4786 = vst.msk [vmem:[%s3 + $0xb28] sm:$0xff] %vm4428, %v4424
  %4787 = vst.msk [vmem:[%s3 + $0xb30] sm:$0xff] %vm4428, %v4425
  %4788 = vst.msk [vmem:[%s3 + $0xb38] sm:$0xff] %vm4428, %v4426
  %4789 = vst.msk [vmem:[%s3 + $0xb40] sm:$0xff] %vm4428, %v4427
  // Predicated region
  $region14: #{_lambda_.4} parent=0 // pred_check
    _
  $region15: #{_lambda_.4} parent=0 // pred_check_branch
    %4791 = sbr.rel (0) target = $region17
  $region16: #{_lambda_.4} parent=0 // pred_region
    _
  $region17: #{_lambda_.4} parent=0 // pred_fallthru
    _
  // Predicated region
  $region18: #{_lambda_.4} parent=0 // pred_check
    _
  $region19: #{_lambda_.4} parent=0 // pred_check_branch
    %4793 = sbr.rel (0) target = $region21
  $region20: #{_lambda_.4} parent=0 // pred_region
    _
  $region21: #{_lambda_.4} parent=0 // pred_fallthru
    _

// kernel: _lambda_.5
$region0: #{_lambda_.5}
  #allocation0 [shape = 'u32[]', space=smem, size = 0x4, offset = 0x4, fixed_abs, tag = 'smem constant byte address 0x4 - core index']
  #allocation1 [shape = 'u32[144,128]{1,0:T(1,128)}', space=vmem, size = 0x12000, scoped, tag = 'internal scratch']
  %s0 = inlined_call_operand.vmem [shape: f32[648,288], index: 0, kind: input, shape index: {}]
  %s1 = inlined_call_operand.vmem [shape: f32[288,128], index: 1, kind: input, shape index: {}]
  %s2 = inlined_call_operand.vmem [shape: f32[1,128], index: 2, kind: input, shape index: {}]
  %s3 = inlined_call_operand.vmem [shape: f32[1,128], index: 3, kind: input, shape index: {}]
  %s4 = inlined_call_operand.vmem [shape: f32[1,128], index: 4, kind: input, shape index: {}]
  %s5 = inlined_call_operand.vmem [shape: f32[648,128], index: 5, kind: output, shape index: {}]
  %s6 = sld [smem:[#allocation0]]
  $region30: #{_lambda_.5} parent=0
    _
  %s8 = ssub.s32 1, %s6
  %s9 = scalar_select 0, %s8, %s6
  // Predicated region
  $region2: #{_lambda_.5} parent=0 // pred_check
    _
  $region3: #{_lambda_.5} parent=0 // pred_check_branch
    %11 = sbr.rel (0) target = $region5
  $region4: #{_lambda_.5} parent=0 // pred_region
    _
  $region5: #{_lambda_.5} parent=0 // pred_fallthru
    _
  // Predicated region
  $region6: #{_lambda_.5} parent=0 // pred_check
    _
  $region7: #{_lambda_.5} parent=0 // pred_check_branch
    %13 = sbr.rel (0) target = $region9
  $region8: #{_lambda_.5} parent=0 // pred_region
    _
  $region9: #{_lambda_.5} parent=0 // pred_fallthru
    _
  // Predicated region
  $region10: #{_lambda_.5} parent=0 // pred_check
    _
  $region11: #{_lambda_.5} parent=0 // pred_check_branch
    %15 = sbr.rel (0) target = $region13
  $region12: #{_lambda_.5} parent=0 // pred_region
    _
  $region13: #{_lambda_.5} parent=0 // pred_fallthru
    _
  // Predicated region
  $region14: #{_lambda_.5} parent=0 // pred_check
    _
  $region15: #{_lambda_.5} parent=0 // pred_check_branch
    %17 = sbr.rel (0) target = $region17
  $region16: #{_lambda_.5} parent=0 // pred_region
    _
  $region17: #{_lambda_.5} parent=0 // pred_fallthru
    _
  // Predicated region
  $region18: #{_lambda_.5} parent=0 // pred_check
    _
  $region19: #{_lambda_.5} parent=0 // pred_check_branch
    %19 = sbr.rel (0) target = $region21
  $region20: #{_lambda_.5} parent=0 // pred_region
    _
  $region21: #{_lambda_.5} parent=0 // pred_fallthru
    _
  %v20 = vld [vmem:[%s0] sm:$0xff]
  %v21 = vld [vmem:[%s0 + $0x8] sm:$0xff]
  %v22 = vld [vmem:[%s0 + $0x10] sm:$0xff]
  %v23 = vld [vmem:[%s0 + $0x18] sm:$0xff]
  %v24 = vld [vmem:[%s0 + $0x20] sm:$0xff]
  %v25 = vld [vmem:[%s0 + $0x28] sm:$0xff]
  %v26 = vld [vmem:[%s0 + $0x30] sm:$0xff]
  %v27 = vld [vmem:[%s0 + $0x38] sm:$0xff]
  %v28 = vld [vmem:[%s0 + $0x40] sm:$0xff]
  %v29 = vld [vmem:[%s0 + $0x48] sm:$0xff]
  %v30 = vld [vmem:[%s0 + $0x50] sm:$0xff]
  %v31 = vld [vmem:[%s0 + $0x58] sm:$0xff]
  %v32 = vld [vmem:[%s0 + $0x60] sm:$0xff]
  %v33 = vld [vmem:[%s0 + $0x68] sm:$0xff]
  %v34 = vld [vmem:[%s0 + $0x70] sm:$0xff]
  %v35 = vld [vmem:[%s0 + $0x78] sm:$0xff]
  %v36 = vld [vmem:[%s0 + $0x80] sm:$0xff]
  %v37 = vld [vmem:[%s0 + $0x88] sm:$0xff]
  %v38 = vld [vmem:[%s0 + $0x90] sm:$0xff]
  %v39 = vld [vmem:[%s0 + $0x98] sm:$0xff]
  %v40 = vld [vmem:[%s0 + $0xa0] sm:$0xff]
  %v41 = vld [vmem:[%s0 + $0xa8] sm:$0xff]
  %v42 = vld [vmem:[%s0 + $0xb0] sm:$0xff]
  %v43 = vld [vmem:[%s0 + $0xb8] sm:$0xff]
  %v44 = vld [vmem:[%s0 + $0xc0] sm:$0xff]
  %v45 = vld [vmem:[%s0 + $0xc8] sm:$0xff]
  %v46 = vld [vmem:[%s0 + $0xd0] sm:$0xff]
  %v47 = vld [vmem:[%s0 + $0xd8] sm:$0xff]
  %v48 = vld [vmem:[%s0 + $0xe0] sm:$0xff]
  %v49 = vld [vmem:[%s0 + $0xe8] sm:$0xff]
  %v50 = vld [vmem:[%s0 + $0xf0] sm:$0xff]
  %v51 = vld [vmem:[%s0 + $0xf8] sm:$0xff]
  %v52 = vld [vmem:[%s0 + $0x100] sm:$0xff]
  %v53 = vld [vmem:[%s0 + $0x108] sm:$0xff]
  %v54 = vld [vmem:[%s0 + $0x110] sm:$0xff]
  %v55 = vld [vmem:[%s0 + $0x118] sm:$0xff]
  %v56 = vld [vmem:[%s0 + $0x120] sm:$0xff]
  %v57 = vld [vmem:[%s0 + $0x128] sm:$0xff]
  %v58 = vld [vmem:[%s0 + $0x130] sm:$0xff]
  %v59 = vld [vmem:[%s0 + $0x138] sm:$0xff]
  %v60 = vld [vmem:[%s0 + $0x140] sm:$0xff]
  %v61 = vld [vmem:[%s0 + $0x148] sm:$0xff]
  %v62 = vld [vmem:[%s0 + $0x150] sm:$0xff]
  %v63 = vld [vmem:[%s0 + $0x158] sm:$0xff]
  %v64 = vld [vmem:[%s0 + $0x160] sm:$0xff]
  %v65 = vld [vmem:[%s0 + $0x168] sm:$0xff]
  %v66 = vld [vmem:[%s0 + $0x170] sm:$0xff]
  %v67 = vld [vmem:[%s0 + $0x178] sm:$0xff]
  %v68 = vld [vmem:[%s0 + $0x180] sm:$0xff]
  %v69 = vld [vmem:[%s0 + $0x188] sm:$0xff]
  %v70 = vld [vmem:[%s0 + $0x190] sm:$0xff]
  %v71 = vld [vmem:[%s0 + $0x198] sm:$0xff]
  %v72 = vld [vmem:[%s0 + $0x1a0] sm:$0xff]
  %v73 = vld [vmem:[%s0 + $0x1a8] sm:$0xff]
  %v74 = vld [vmem:[%s0 + $0x1b0] sm:$0xff]
  %v75 = vld [vmem:[%s0 + $0x1b8] sm:$0xff]
  %v76 = vld [vmem:[%s0 + $0x1c0] sm:$0xff]
  %v77 = vld [vmem:[%s0 + $0x1c8] sm:$0xff]
  %v78 = vld [vmem:[%s0 + $0x1d0] sm:$0xff]
  %v79 = vld [vmem:[%s0 + $0x1d8] sm:$0xff]
  %v80 = vld [vmem:[%s0 + $0x1e0] sm:$0xff]
  %v81 = vld [vmem:[%s0 + $0x1e8] sm:$0xff]
  %v82 = vld [vmem:[%s0 + $0x1f0] sm:$0xff]
  %v83 = vld [vmem:[%s0 + $0x1f8] sm:$0xff]
  %v84 = vld [vmem:[%s0 + $0x200] sm:$0xff]
  %v85 = vld [vmem:[%s0 + $0x208] sm:$0xff]
  %v86 = vld [vmem:[%s0 + $0x210] sm:$0xff]
  %v87 = vld [vmem:[%s0 + $0x218] sm:$0xff]
  %v88 = vld [vmem:[%s0 + $0x220] sm:$0xff]
  %v89 = vld [vmem:[%s0 + $0x228] sm:$0xff]
  %v90 = vld [vmem:[%s0 + $0x230] sm:$0xff]
  %v91 = vld [vmem:[%s0 + $0x238] sm:$0xff]
  %v92 = vld [vmem:[%s0 + $0x240] sm:$0xff]
  %v93 = vld [vmem:[%s0 + $0x248] sm:$0xff]
  %v94 = vld [vmem:[%s0 + $0x250] sm:$0xff]
  %v95 = vld [vmem:[%s0 + $0x258] sm:$0xff]
  %v96 = vld [vmem:[%s0 + $0x260] sm:$0xff]
  %v97 = vld [vmem:[%s0 + $0x268] sm:$0xff]
  %v98 = vld [vmem:[%s0 + $0x270] sm:$0xff]
  %v99 = vld [vmem:[%s0 + $0x278] sm:$0xff]
  %v100 = vld [vmem:[%s0 + $0x280] sm:$0xff]
  %v101 = vld [vmem:[%s0 + $0x288] sm:$0xff]
  %v102 = vld [vmem:[%s0 + $0x290] sm:$0xff]
  %v103 = vld [vmem:[%s0 + $0x298] sm:$0xff]
  %v104 = vld [vmem:[%s0 + $0x2a0] sm:$0xff]
  %v105 = vld [vmem:[%s0 + $0x2a8] sm:$0xff]
  %v106 = vld [vmem:[%s0 + $0x2b0] sm:$0xff]
  %v107 = vld [vmem:[%s0 + $0x2b8] sm:$0xff]
  %v108 = vld [vmem:[%s0 + $0x2c0] sm:$0xff]
  %v109 = vld [vmem:[%s0 + $0x2c8] sm:$0xff]
  %v110 = vld [vmem:[%s0 + $0x2d0] sm:$0xff]
  %v111 = vld [vmem:[%s0 + $0x2d8] sm:$0xff]
  %v112 = vld [vmem:[%s0 + $0x2e0] sm:$0xff]
  %v113 = vld [vmem:[%s0 + $0x2e8] sm:$0xff]
  %v114 = vld [vmem:[%s0 + $0x2f0] sm:$0xff]
  %v115 = vld [vmem:[%s0 + $0x2f8] sm:$0xff]
  %v116 = vld [vmem:[%s0 + $0x300] sm:$0xff]
  %v117 = vld [vmem:[%s0 + $0x308] sm:$0xff]
  %v118 = vld [vmem:[%s0 + $0x310] sm:$0xff]
  %v119 = vld [vmem:[%s0 + $0x318] sm:$0xff]
  %v120 = vld [vmem:[%s0 + $0x320] sm:$0xff]
  %v121 = vld [vmem:[%s0 + $0x328] sm:$0xff]
  %v122 = vld [vmem:[%s0 + $0x330] sm:$0xff]
  %v123 = vld [vmem:[%s0 + $0x338] sm:$0xff]
  %v124 = vld [vmem:[%s0 + $0x340] sm:$0xff]
  %v125 = vld [vmem:[%s0 + $0x348] sm:$0xff]
  %v126 = vld [vmem:[%s0 + $0x350] sm:$0xff]
  %v127 = vld [vmem:[%s0 + $0x358] sm:$0xff]
  %v128 = vld [vmem:[%s0 + $0x360] sm:$0xff]
  %v129 = vld [vmem:[%s0 + $0x368] sm:$0xff]
  %v130 = vld [vmem:[%s0 + $0x370] sm:$0xff]
  %v131 = vld [vmem:[%s0 + $0x378] sm:$0xff]
  %v132 = vld [vmem:[%s0 + $0x380] sm:$0xff]
  %v133 = vld [vmem:[%s0 + $0x388] sm:$0xff]
  %v134 = vld [vmem:[%s0 + $0x390] sm:$0xff]
  %v135 = vld [vmem:[%s0 + $0x398] sm:$0xff]
  %v136 = vld [vmem:[%s0 + $0x3a0] sm:$0xff]
  %v137 = vld [vmem:[%s0 + $0x3a8] sm:$0xff]
  %v138 = vld [vmem:[%s0 + $0x3b0] sm:$0xff]
  %v139 = vld [vmem:[%s0 + $0x3b8] sm:$0xff]
  %v140 = vld [vmem:[%s0 + $0x3c0] sm:$0xff]
  %v141 = vld [vmem:[%s0 + $0x3c8] sm:$0xff]
  %v142 = vld [vmem:[%s0 + $0x3d0] sm:$0xff]
  %v143 = vld [vmem:[%s0 + $0x3d8] sm:$0xff]
  %v144 = vld [vmem:[%s0 + $0x3e0] sm:$0xff]
  %v145 = vld [vmem:[%s0 + $0x3e8] sm:$0xff]
  %v146 = vld [vmem:[%s0 + $0x3f0] sm:$0xff]
  %v147 = vld [vmem:[%s0 + $0x3f8] sm:$0xff]
  %v148 = vld [vmem:[%s0 + $0x400] sm:$0xff]
  %v149 = vld [vmem:[%s0 + $0x408] sm:$0xff]
  %v150 = vld [vmem:[%s0 + $0x410] sm:$0xff]
  %v151 = vld [vmem:[%s0 + $0x418] sm:$0xff]
  %v152 = vld [vmem:[%s0 + $0x420] sm:$0xff]
  %v153 = vld [vmem:[%s0 + $0x428] sm:$0xff]
  %v154 = vld [vmem:[%s0 + $0x430] sm:$0xff]
  %v155 = vld [vmem:[%s0 + $0x438] sm:$0xff]
  %v156 = vld [vmem:[%s0 + $0x440] sm:$0xff]
  %v157 = vld [vmem:[%s0 + $0x448] sm:$0xff]
  %v158 = vld [vmem:[%s0 + $0x450] sm:$0xff]
  %v159 = vld [vmem:[%s0 + $0x458] sm:$0xff]
  %v160 = vld [vmem:[%s0 + $0x460] sm:$0xff]
  %v161 = vld [vmem:[%s0 + $0x468] sm:$0xff]
  %v162 = vld [vmem:[%s0 + $0x470] sm:$0xff]
  %v163 = vld [vmem:[%s0 + $0x478] sm:$0xff]
  %v164 = vld [vmem:[%s0 + $0x480] sm:$0xff]
  %v165 = vld [vmem:[%s0 + $0x488] sm:$0xff]
  %v166 = vld [vmem:[%s0 + $0x490] sm:$0xff]
  %v167 = vld [vmem:[%s0 + $0x498] sm:$0xff]
  %v168 = vld [vmem:[%s0 + $0x4a0] sm:$0xff]
  %v169 = vld [vmem:[%s0 + $0x4a8] sm:$0xff]
  %v170 = vld [vmem:[%s0 + $0x4b0] sm:$0xff]
  %v171 = vld [vmem:[%s0 + $0x4b8] sm:$0xff]
  %v172 = vld [vmem:[%s0 + $0x4c0] sm:$0xff]
  %v173 = vld [vmem:[%s0 + $0x4c8] sm:$0xff]
  %v174 = vld [vmem:[%s0 + $0x4d0] sm:$0xff]
  %v175 = vld [vmem:[%s0 + $0x4d8] sm:$0xff]
  %v176 = vld [vmem:[%s0 + $0x4e0] sm:$0xff]
  %v177 = vld [vmem:[%s0 + $0x4e8] sm:$0xff]
  %v178 = vld [vmem:[%s0 + $0x4f0] sm:$0xff]
  %v179 = vld [vmem:[%s0 + $0x4f8] sm:$0xff]
  %v180 = vld [vmem:[%s0 + $0x500] sm:$0xff]
  %v181 = vld [vmem:[%s0 + $0x508] sm:$0xff]
  %v182 = vld [vmem:[%s0 + $0x510] sm:$0xff]
  %v183 = vld [vmem:[%s0 + $0x518] sm:$0xff]
  %v184 = vld [vmem:[%s0 + $0x520] sm:$0xff]
  %v185 = vld [vmem:[%s0 + $0x528] sm:$0xff]
  %v186 = vld [vmem:[%s0 + $0x530] sm:$0xff]
  %v187 = vld [vmem:[%s0 + $0x538] sm:$0xff]
  %v188 = vld [vmem:[%s0 + $0x540] sm:$0xff]
  %v189 = vld [vmem:[%s0 + $0x548] sm:$0xff]
  %v190 = vld [vmem:[%s0 + $0x550] sm:$0xff]
  %v191 = vld [vmem:[%s0 + $0x558] sm:$0xff]
  %v192 = vld [vmem:[%s0 + $0x560] sm:$0xff]
  %v193 = vld [vmem:[%s0 + $0x568] sm:$0xff]
  %v194 = vld [vmem:[%s0 + $0x570] sm:$0xff]
  %v195 = vld [vmem:[%s0 + $0x578] sm:$0xff]
  %v196 = vld [vmem:[%s0 + $0x580] sm:$0xff]
  %v197 = vld [vmem:[%s0 + $0x588] sm:$0xff]
  %v198 = vld [vmem:[%s0 + $0x590] sm:$0xff]
  %v199 = vld [vmem:[%s0 + $0x598] sm:$0xff]
  %v200 = vld [vmem:[%s0 + $0x5a0] sm:$0xff]
  %v201 = vld [vmem:[%s0 + $0x5a8] sm:$0xff]
  %v202 = vld [vmem:[%s0 + $0x5b0] sm:$0xff]
  %v203 = vld [vmem:[%s0 + $0x5b8] sm:$0xff]
  %v204 = vld [vmem:[%s0 + $0x5c0] sm:$0xff]
  %v205 = vld [vmem:[%s0 + $0x5c8] sm:$0xff]
  %v206 = vld [vmem:[%s0 + $0x5d0] sm:$0xff]
  %v207 = vld [vmem:[%s0 + $0x5d8] sm:$0xff]
  %v208 = vld [vmem:[%s0 + $0x5e0] sm:$0xff]
  %v209 = vld [vmem:[%s0 + $0x5e8] sm:$0xff]
  %v210 = vld [vmem:[%s0 + $0x5f0] sm:$0xff]
  %v211 = vld [vmem:[%s0 + $0x5f8] sm:$0xff]
  %v212 = vld [vmem:[%s0 + $0x600] sm:$0xff]
  %v213 = vld [vmem:[%s0 + $0x608] sm:$0xff]
  %v214 = vld [vmem:[%s0 + $0x610] sm:$0xff]
  %v215 = vld [vmem:[%s0 + $0x618] sm:$0xff]
  %v216 = vld [vmem:[%s0 + $0x620] sm:$0xff]
  %v217 = vld [vmem:[%s0 + $0x628] sm:$0xff]
  %v218 = vld [vmem:[%s0 + $0x630] sm:$0xff]
  %v219 = vld [vmem:[%s0 + $0x638] sm:$0xff]
  %v220 = vld [vmem:[%s0 + $0x640] sm:$0xff]
  %v221 = vld [vmem:[%s0 + $0x648] sm:$0xff]
  %v222 = vld [vmem:[%s0 + $0x650] sm:$0xff]
  %v223 = vld [vmem:[%s0 + $0x658] sm:$0xff]
  %v224 = vld [vmem:[%s0 + $0x660] sm:$0xff]
  %v225 = vld [vmem:[%s0 + $0x668] sm:$0xff]
  %v226 = vld [vmem:[%s0 + $0x670] sm:$0xff]
  %v227 = vld [vmem:[%s0 + $0x678] sm:$0xff]
  %v228 = vld [vmem:[%s0 + $0x680] sm:$0xff]
  %v229 = vld [vmem:[%s0 + $0x688] sm:$0xff]
  %v230 = vld [vmem:[%s0 + $0x690] sm:$0xff]
  %v231 = vld [vmem:[%s0 + $0x698] sm:$0xff]
  %v232 = vld [vmem:[%s0 + $0x6a0] sm:$0xff]
  %v233 = vld [vmem:[%s0 + $0x6a8] sm:$0xff]
  %v234 = vld [vmem:[%s0 + $0x6b0] sm:$0xff]
  %v235 = vld [vmem:[%s0 + $0x6b8] sm:$0xff]
  %v236 = vld [vmem:[%s0 + $0x6c0] sm:$0xff]
  %v237 = vld [vmem:[%s0 + $0x6c8] sm:$0xff]
  %v238 = vld [vmem:[%s0 + $0x6d0] sm:$0xff]
  %v239 = vld [vmem:[%s0 + $0x6d8] sm:$0xff]
  %v240 = vld [vmem:[%s0 + $0x6e0] sm:$0xff]
  %v241 = vld [vmem:[%s0 + $0x6e8] sm:$0xff]
  %v242 = vld [vmem:[%s0 + $0x6f0] sm:$0xff]
  %v243 = vld [vmem:[%s0 + $0x6f8] sm:$0xff]
  %v244 = vld [vmem:[%s0 + $0x700] sm:$0xff]
  %v245 = vld [vmem:[%s0 + $0x708] sm:$0xff]
  %v246 = vld [vmem:[%s0 + $0x710] sm:$0xff]
  %v247 = vld [vmem:[%s0 + $0x718] sm:$0xff]
  %v248 = vld [vmem:[%s0 + $0x720] sm:$0xff]
  %v249 = vld [vmem:[%s0 + $0x728] sm:$0xff]
  %v250 = vld [vmem:[%s0 + $0x730] sm:$0xff]
  %v251 = vld [vmem:[%s0 + $0x738] sm:$0xff]
  %v252 = vld [vmem:[%s0 + $0x740] sm:$0xff]
  %v253 = vld [vmem:[%s0 + $0x748] sm:$0xff]
  %v254 = vld [vmem:[%s0 + $0x750] sm:$0xff]
  %v255 = vld [vmem:[%s0 + $0x758] sm:$0xff]
  %v256 = vld [vmem:[%s0 + $0x760] sm:$0xff]
  %v257 = vld [vmem:[%s0 + $0x768] sm:$0xff]
  %v258 = vld [vmem:[%s0 + $0x770] sm:$0xff]
  %v259 = vld [vmem:[%s0 + $0x778] sm:$0xff]
  %v260 = vld [vmem:[%s0 + $0x780] sm:$0xff]
  %v261 = vld [vmem:[%s0 + $0x788] sm:$0xff]
  %v262 = vld [vmem:[%s0 + $0x790] sm:$0xff]
  %v263 = vld [vmem:[%s1] sm:$0xff]
  %v264 = vld [vmem:[%s1 + $0x8] sm:$0xff]
  %v265 = vld [vmem:[%s1 + $0x10] sm:$0xff]
  %v266 = vld [vmem:[%s1 + $0x18] sm:$0xff]
  %v267 = vld [vmem:[%s1 + $0x20] sm:$0xff]
  %v268 = vld [vmem:[%s1 + $0x28] sm:$0xff]
  %v269 = vld [vmem:[%s1 + $0x30] sm:$0xff]
  %v270 = vld [vmem:[%s1 + $0x38] sm:$0xff]
  %v271 = vld [vmem:[%s1 + $0x40] sm:$0xff]
  %v272 = vld [vmem:[%s1 + $0x48] sm:$0xff]
  %v273 = vld [vmem:[%s1 + $0x50] sm:$0xff]
  %v274 = vld [vmem:[%s1 + $0x58] sm:$0xff]
  %v275 = vld [vmem:[%s1 + $0x60] sm:$0xff]
  %v276 = vld [vmem:[%s1 + $0x68] sm:$0xff]
  %v277 = vld [vmem:[%s1 + $0x70] sm:$0xff]
  %v278 = vld [vmem:[%s1 + $0x78] sm:$0xff]
  %v279 = vld [vmem:[%s1 + $0x80] sm:$0xff]
  %v280 = vld [vmem:[%s1 + $0x88] sm:$0xff]
  %v281 = vld [vmem:[%s1 + $0x90] sm:$0xff]
  %v282 = vld [vmem:[%s1 + $0x98] sm:$0xff]
  %v283 = vld [vmem:[%s1 + $0xa0] sm:$0xff]
  %v284 = vld [vmem:[%s1 + $0xa8] sm:$0xff]
  %v285 = vld [vmem:[%s1 + $0xb0] sm:$0xff]
  %v286 = vld [vmem:[%s1 + $0xb8] sm:$0xff]
  %v287 = vld [vmem:[%s1 + $0xc0] sm:$0xff]
  %v288 = vld [vmem:[%s1 + $0xc8] sm:$0xff]
  %v289 = vld [vmem:[%s1 + $0xd0] sm:$0xff]
  %v290 = vld [vmem:[%s1 + $0xd8] sm:$0xff]
  %v291 = vld [vmem:[%s1 + $0xe0] sm:$0xff]
  %v292 = vld [vmem:[%s1 + $0xe8] sm:$0xff]
  %v293 = vld [vmem:[%s1 + $0xf0] sm:$0xff]
  %v294 = vld [vmem:[%s1 + $0xf8] sm:$0xff]
  %v295 = vld [vmem:[%s1 + $0x100] sm:$0xff]
  %v296 = vld [vmem:[%s1 + $0x108] sm:$0xff]
  %v297 = vld [vmem:[%s1 + $0x110] sm:$0xff]
  %v298 = vld [vmem:[%s1 + $0x118] sm:$0xff]
  %v299 = vld [vmem:[%s2] sm:$0x1]
  %v301 = vlaneseq
  %v302 = vshrl.u32 %v301, 7
  %v303 = vsub.s32 0, %v302
  %v304 = vrot.slane %v299, %v303
  %vm306 = vcmask 261120
  %v308 = vsel %vm306, %v22, 0
  %v311 = vsel %vm306, %v25, 0
  %v314 = vsel %vm306, %v28, 0
  %v317 = vsel %vm306, %v31, 0
  %v320 = vsel %vm306, %v34, 0
  %v323 = vsel %vm306, %v37, 0
  %v326 = vsel %vm306, %v40, 0
  %v329 = vsel %vm306, %v43, 0
  %v332 = vsel %vm306, %v46, 0
  %v335 = vsel %vm306, %v49, 0
  %v338 = vsel %vm306, %v52, 0
  %v341 = vsel %vm306, %v55, 0
  %v344 = vsel %vm306, %v58, 0
  %v347 = vsel %vm306, %v61, 0
  %v350 = vsel %vm306, %v64, 0
  %v353 = vsel %vm306, %v67, 0
  %v356 = vsel %vm306, %v70, 0
  %v359 = vsel %vm306, %v73, 0
  %v362 = vsel %vm306, %v76, 0
  %v365 = vsel %vm306, %v79, 0
  %v368 = vsel %vm306, %v82, 0
  %v371 = vsel %vm306, %v85, 0
  %v374 = vsel %vm306, %v88, 0
  %v377 = vsel %vm306, %v91, 0
  %v380 = vsel %vm306, %v94, 0
  %v383 = vsel %vm306, %v97, 0
  %v386 = vsel %vm306, %v100, 0
  %v389 = vsel %vm306, %v103, 0
  %v392 = vsel %vm306, %v106, 0
  %v395 = vsel %vm306, %v109, 0
  %v398 = vsel %vm306, %v112, 0
  %v401 = vsel %vm306, %v115, 0
  %v404 = vsel %vm306, %v118, 0
  %v407 = vsel %vm306, %v121, 0
  %v410 = vsel %vm306, %v124, 0
  %v413 = vsel %vm306, %v127, 0
  %v416 = vsel %vm306, %v130, 0
  %v419 = vsel %vm306, %v133, 0
  %v422 = vsel %vm306, %v136, 0
  %v425 = vsel %vm306, %v139, 0
  %v428 = vsel %vm306, %v142, 0
  %v431 = vsel %vm306, %v145, 0
  %v434 = vsel %vm306, %v148, 0
  %v437 = vsel %vm306, %v151, 0
  %v440 = vsel %vm306, %v154, 0
  %v443 = vsel %vm306, %v157, 0
  %v446 = vsel %vm306, %v160, 0
  %v449 = vsel %vm306, %v163, 0
  %v452 = vsel %vm306, %v166, 0
  %v455 = vsel %vm306, %v169, 0
  %v458 = vsel %vm306, %v172, 0
  %v461 = vsel %vm306, %v175, 0
  %v464 = vsel %vm306, %v178, 0
  %v467 = vsel %vm306, %v181, 0
  %v470 = vsel %vm306, %v184, 0
  %v473 = vsel %vm306, %v187, 0
  %v476 = vsel %vm306, %v190, 0
  %v479 = vsel %vm306, %v193, 0
  %v482 = vsel %vm306, %v196, 0
  %v485 = vsel %vm306, %v199, 0
  %v488 = vsel %vm306, %v202, 0
  %v491 = vsel %vm306, %v205, 0
  %v494 = vsel %vm306, %v208, 0
  %v497 = vsel %vm306, %v211, 0
  %v500 = vsel %vm306, %v214, 0
  %v503 = vsel %vm306, %v217, 0
  %v506 = vsel %vm306, %v220, 0
  %v509 = vsel %vm306, %v223, 0
  %v512 = vsel %vm306, %v226, 0
  %v515 = vsel %vm306, %v229, 0
  %v518 = vsel %vm306, %v232, 0
  %v521 = vsel %vm306, %v235, 0
  %v524 = vsel %vm306, %v238, 0
  %v527 = vsel %vm306, %v241, 0
  %v530 = vsel %vm306, %v244, 0
  %v533 = vsel %vm306, %v247, 0
  %v536 = vsel %vm306, %v250, 0
  %v539 = vsel %vm306, %v253, 0
  %v542 = vsel %vm306, %v256, 0
  %v545 = vsel %vm306, %v259, 0
  %v548 = vsel %vm306, %v262, 0
  %550 = vmatprep.subr.mxu0 0.0
  %551 = vmatpush1.msra.mxu0 %v263
  %552 = vmatprep.subr.mxu0 0.0
  %553 = vmatpush1.msra.mxu0 %v264
  %554 = vmatprep.subr.mxu0 0.0
  %555 = vmatpush1.msra.mxu0 %v265
  %556 = vmatprep.subr.mxu0 0.0
  %557 = vmatpush1.msra.mxu0 %v266
  %558 = vmatprep.subr.mxu0 0.0
  %559 = vmatpush1.msra.mxu0 %v267
  %560 = vmatprep.subr.mxu0 0.0
  %561 = vmatpush1.msra.mxu0 %v268
  %562 = vmatprep.subr.mxu0 0.0
  %563 = vmatpush1.msra.mxu0 %v269
  %564 = vmatprep.subr.mxu0 0.0
  %565 = vmatpush1.msra.mxu0 %v270
  %566 = vmatprep.subr.mxu0 0.0
  %567 = vmatpush1.msra.mxu0 %v271
  %568 = vmatprep.subr.mxu0 0.0
  %569 = vmatpush1.msra.mxu0 %v272
  %570 = vmatprep.subr.mxu0 0.0
  %571 = vmatpush1.msra.mxu0 %v273
  %572 = vmatprep.subr.mxu0 0.0
  %573 = vmatpush1.msra.mxu0 %v274
  %574 = vmatprep.subr.mxu0 0.0
  %575 = vmatpush1.msra.mxu0 %v275
  %576 = vmatprep.subr.mxu0 0.0
  %577 = vmatpush1.msra.mxu0 %v276
  %578 = vmatprep.subr.mxu0 0.0
  %579 = vmatpush1.msra.mxu0 %v277
  %580 = vmatprep.subr.mxu0 0.0
  %581 = vmatpush1.msra.mxu0 %v278
  %582 = vmatprep.subr.mxu0 0.0
  %583 = vmatpush1.msra.mxu0 %v279
  %584 = vmatprep.subr.mxu0 0.0
  %585 = vmatpush1.msra.mxu0 %v280
  %586 = vmatprep.subr.mxu0 0.0
  %587 = vmatpush1.msra.mxu0 %v281
  %588 = vmatprep.subr.mxu0 0.0
  %589 = vmatpush1.msra.mxu0 %v282
  %590 = vmatprep.subr.mxu0 0.0
  %591 = vmatpush1.msra.mxu0 %v283
  %592 = vmatprep.subr.mxu0 0.0
  %593 = vmatpush1.msra.mxu0 %v284
  %594 = vmatprep.subr.mxu0 0.0
  %595 = vmatpush1.msra.mxu0 %v285
  %596 = vmatprep.subr.mxu0 0.0
  %597 = vmatpush1.msra.mxu0 %v286
  %598 = vmatprep.subr.mxu0 0.0
  %599 = vmatpush1.msra.mxu0 %v287
  %600 = vmatprep.subr.mxu0 0.0
  %601 = vmatpush1.msra.mxu0 %v288
  %602 = vmatprep.subr.mxu0 0.0
  %603 = vmatpush1.msra.mxu0 %v289
  %604 = vmatprep.subr.mxu0 0.0
  %605 = vmatpush1.msra.mxu0 %v290
  %606 = vmatprep.subr.mxu0 0.0
  %607 = vmatpush1.msra.mxu0 %v291
  %608 = vmatprep.subr.mxu0 0.0
  %609 = vmatpush1.msra.mxu0 %v292
  %610 = vmatprep.subr.mxu0 0.0
  %611 = vmatpush1.msra.mxu0 %v293
  %612 = vmatprep.subr.mxu0 0.0
  %613 = vmatpush1.msra.mxu0 %v294
  %614 = vmatprep.mubr.f32.mxu0 %v21
  %615 = vmatmul.mubr.f32.gmra.mrb[0].mxu0 %v20
  %v616 = vpop.f32.mrb[0].mxu0
  %v617 = vadd.f32 %v304, %v616
  %v618 = vpop.f32.mrb[0].mxu0
  %619 = vmatprep.mubr.f32.mxu0 %v24
  %620 = vmatmul.mubr.f32.gmra.mrb[0].mxu0 %v23
  %v621 = vpop.f32.mrb[0].mxu0
  %v622 = vadd.f32 %v304, %v621
  %v623 = vpop.f32.mrb[0].mxu0
  %624 = vmatprep.mubr.f32.mxu0 %v27
  %625 = vmatmul.mubr.f32.gmra.mrb[0].mxu0 %v26
  %v626 = vpop.f32.mrb[0].mxu0
  %v627 = vadd.f32 %v304, %v626
  %v628 = vpop.f32.mrb[0].mxu0
  %629 = vmatprep.mubr.f32.mxu0 %v30
  %630 = vmatmul.mubr.f32.gmra.mrb[0].mxu0 %v29
  %v631 = vpop.f32.mrb[0].mxu0
  %v632 = vadd.f32 %v304, %v631
  %v633 = vpop.f32.mrb[0].mxu0
  %634 = vmatprep.mubr.f32.mxu0 %v33
  %635 = vmatmul.mubr.f32.gmra.mrb[0].mxu0 %v32
  %v636 = vpop.f32.mrb[0].mxu0
  %v637 = vadd.f32 %v304, %v636
  %v638 = vpop.f32.mrb[0].mxu0
  %639 = vmatprep.mubr.f32.mxu0 %v36
  %640 = vmatmul.mubr.f32.gmra.mrb[0].mxu0 %v35
  %v641 = vpop.f32.mrb[0].mxu0
  %v642 = vadd.f32 %v304, %v641
  %v643 = vpop.f32.mrb[0].mxu0
  %644 = vmatprep.mubr.f32.mxu0 %v39
  %645 = vmatmul.mubr.f32.gmra.mrb[0].mxu0 %v38
  %v646 = vpop.f32.mrb[0].mxu0
  %v647 = vadd.f32 %v304, %v646
  %v648 = vpop.f32.mrb[0].mxu0
  %649 = vmatprep.mubr.f32.mxu0 %v42
  %650 = vmatmul.mubr.f32.gmra.mrb[0].mxu0 %v41
  %v651 = vpop.f32.mrb[0].mxu0
  %v652 = vadd.f32 %v304, %v651
  %v653 = vpop.f32.mrb[0].mxu0
  %654 = vmatprep.mubr.f32.mxu0 %v45
  %655 = vmatmul.mubr.f32.gmra.mrb[0].mxu0 %v44
  %v656 = vpop.f32.mrb[0].mxu0
  %v657 = vadd.f32 %v304, %v656
  %v658 = vpop.f32.mrb[0].mxu0
  %659 = vmatprep.mubr.f32.mxu0 %v48
  %660 = vmatmul.mubr.f32.gmra.mrb[0].mxu0 %v47
  %v661 = vpop.f32.mrb[0].mxu0
  %v662 = vadd.f32 %v304, %v661
  %v663 = vpop.f32.mrb[0].mxu0
  %664 = vmatprep.mubr.f32.mxu0 %v51
  %665 = vmatmul.mubr.f32.gmra.mrb[0].mxu0 %v50
  %v666 = vpop.f32.mrb[0].mxu0
  %v667 = vadd.f32 %v304, %v666
  %v668 = vpop.f32.mrb[0].mxu0
  %669 = vmatprep.mubr.f32.mxu0 %v54
  %670 = vmatmul.mubr.f32.gmra.mrb[0].mxu0 %v53
  %v671 = vpop.f32.mrb[0].mxu0
  %v672 = vadd.f32 %v304, %v671
  %v673 = vpop.f32.mrb[0].mxu0
  %674 = vmatprep.mubr.f32.mxu0 %v57
  %675 = vmatmul.mubr.f32.gmra.mrb[0].mxu0 %v56
  %v676 = vpop.f32.mrb[0].mxu0
  %v677 = vadd.f32 %v304, %v676
  %v678 = vpop.f32.mrb[0].mxu0
  %679 = vmatprep.mubr.f32.mxu0 %v60
  %680 = vmatmul.mubr.f32.gmra.mrb[0].mxu0 %v59
  %v681 = vpop.f32.mrb[0].mxu0
  %v682 = vadd.f32 %v304, %v681
  %v683 = vpop.f32.mrb[0].mxu0
  %684 = vmatprep.mubr.f32.mxu0 %v63
  %685 = vmatmul.mubr.f32.gmra.mrb[0].mxu0 %v62
  %v686 = vpop.f32.mrb[0].mxu0
  %v687 = vadd.f32 %v304, %v686
  %v688 = vpop.f32.mrb[0].mxu0
  %689 = vmatprep.mubr.f32.mxu0 %v66
  %690 = vmatmul.mubr.f32.gmra.mrb[0].mxu0 %v65
  %v691 = vpop.f32.mrb[0].mxu0
  %v692 = vadd.f32 %v304, %v691
  %v693 = vpop.f32.mrb[0].mxu0
  %694 = vmatprep.mubr.f32.mxu0 %v69
  %695 = vmatmul.mubr.f32.gmra.mrb[0].mxu0 %v68
  %v696 = vpop.f32.mrb[0].mxu0
  %v697 = vadd.f32 %v304, %v696
  %v698 = vpop.f32.mrb[0].mxu0
  %699 = vmatprep.mubr.f32.mxu0 %v72
  %700 = vmatmul.mubr.f32.gmra.mrb[0].mxu0 %v71
  %v701 = vpop.f32.mrb[0].mxu0
  %v702 = vadd.f32 %v304, %v701
  %v703 = vpop.f32.mrb[0].mxu0
  %704 = vmatprep.mubr.f32.mxu0 %v75
  %705 = vmatmul.mubr.f32.gmra.mrb[0].mxu0 %v74
  %v706 = vpop.f32.mrb[0].mxu0
  %v707 = vadd.f32 %v304, %v706
  %v708 = vpop.f32.mrb[0].mxu0
  %709 = vmatprep.mubr.f32.mxu0 %v78
  %710 = vmatmul.mubr.f32.gmra.mrb[0].mxu0 %v77
  %v711 = vpop.f32.mrb[0].mxu0
  %v712 = vadd.f32 %v304, %v711
  %v713 = vpop.f32.mrb[0].mxu0
  %714 = vmatprep.mubr.f32.mxu0 %v81
  %715 = vmatmul.mubr.f32.gmra.mrb[0].mxu0 %v80
  %v716 = vpop.f32.mrb[0].mxu0
  %v717 = vadd.f32 %v304, %v716
  %v718 = vpop.f32.mrb[0].mxu0
  %719 = vmatprep.mubr.f32.mxu0 %v84
  %720 = vmatmul.mubr.f32.gmra.mrb[0].mxu0 %v83
  %v721 = vpop.f32.mrb[0].mxu0
  %v722 = vadd.f32 %v304, %v721
  %v723 = vpop.f32.mrb[0].mxu0
  %724 = vmatprep.mubr.f32.mxu0 %v87
  %725 = vmatmul.mubr.f32.gmra.mrb[0].mxu0 %v86
  %v726 = vpop.f32.mrb[0].mxu0
  %v727 = vadd.f32 %v304, %v726
  %v728 = vpop.f32.mrb[0].mxu0
  %729 = vmatprep.mubr.f32.mxu0 %v90
  %730 = vmatmul.mubr.f32.gmra.mrb[0].mxu0 %v89
  %v731 = vpop.f32.mrb[0].mxu0
  %v732 = vadd.f32 %v304, %v731
  %v733 = vpop.f32.mrb[0].mxu0
  %734 = vmatprep.mubr.f32.mxu0 %v93
  %735 = vmatmul.mubr.f32.gmra.mrb[0].mxu0 %v92
  %v736 = vpop.f32.mrb[0].mxu0
  %v737 = vadd.f32 %v304, %v736
  %v738 = vpop.f32.mrb[0].mxu0
  %739 = vmatprep.mubr.f32.mxu0 %v96
  %740 = vmatmul.mubr.f32.gmra.mrb[0].mxu0 %v95
  %v741 = vpop.f32.mrb[0].mxu0
  %v742 = vadd.f32 %v304, %v741
  %v743 = vpop.f32.mrb[0].mxu0
  %744 = vmatprep.mubr.f32.mxu0 %v99
  %745 = vmatmul.mubr.f32.gmra.mrb[0].mxu0 %v98
  %v746 = vpop.f32.mrb[0].mxu0
  %v747 = vadd.f32 %v304, %v746
  %v748 = vpop.f32.mrb[0].mxu0
  %749 = vmatprep.mubr.f32.mxu0 %v102
  %750 = vmatmul.mubr.f32.gmra.mrb[0].mxu0 %v101
  %v751 = vpop.f32.mrb[0].mxu0
  %v752 = vadd.f32 %v304, %v751
  %v753 = vpop.f32.mrb[0].mxu0
  %754 = vmatprep.mubr.f32.mxu0 %v105
  %755 = vmatmul.mubr.f32.gmra.mrb[0].mxu0 %v104
  %v756 = vpop.f32.mrb[0].mxu0
  %v757 = vadd.f32 %v304, %v756
  %v758 = vpop.f32.mrb[0].mxu0
  %759 = vmatprep.mubr.f32.mxu0 %v108
  %760 = vmatmul.mubr.f32.gmra.mrb[0].mxu0 %v107
  %v761 = vpop.f32.mrb[0].mxu0
  %v762 = vadd.f32 %v304, %v761
  %v763 = vpop.f32.mrb[0].mxu0
  %764 = vmatprep.mubr.f32.mxu0 %v111
  %765 = vmatmul.mubr.f32.gmra.mrb[0].mxu0 %v110
  %v766 = vpop.f32.mrb[0].mxu0
  %v767 = vadd.f32 %v304, %v766
  %v768 = vpop.f32.mrb[0].mxu0
  %769 = vmatprep.mubr.f32.mxu0 %v114
  %770 = vmatmul.mubr.f32.gmra.mrb[0].mxu0 %v113
  %v771 = vpop.f32.mrb[0].mxu0
  %v772 = vadd.f32 %v304, %v771
  %v773 = vpop.f32.mrb[0].mxu0
  %774 = vmatprep.mubr.f32.mxu0 %v117
  %775 = vmatmul.mubr.f32.gmra.mrb[0].mxu0 %v116
  %v776 = vpop.f32.mrb[0].mxu0
  %v777 = vadd.f32 %v304, %v776
  %v778 = vpop.f32.mrb[0].mxu0
  %779 = vmatprep.mubr.f32.mxu0 %v120
  %780 = vmatmul.mubr.f32.gmra.mrb[0].mxu0 %v119
  %v781 = vpop.f32.mrb[0].mxu0
  %v782 = vadd.f32 %v304, %v781
  %v783 = vpop.f32.mrb[0].mxu0
  %784 = vmatprep.mubr.f32.mxu0 %v123
  %785 = vmatmul.mubr.f32.gmra.mrb[0].mxu0 %v122
  %v786 = vpop.f32.mrb[0].mxu0
  %v787 = vadd.f32 %v304, %v786
  %v788 = vpop.f32.mrb[0].mxu0
  %789 = vmatprep.mubr.f32.mxu0 %v126
  %790 = vmatmul.mubr.f32.gmra.mrb[0].mxu0 %v125
  %v791 = vpop.f32.mrb[0].mxu0
  %v792 = vadd.f32 %v304, %v791
  %v793 = vpop.f32.mrb[0].mxu0
  %794 = vmatprep.mubr.f32.mxu0 %v129
  %795 = vmatmul.mubr.f32.gmra.mrb[0].mxu0 %v128
  %v796 = vpop.f32.mrb[0].mxu0
  %v797 = vadd.f32 %v304, %v796
  %v798 = vpop.f32.mrb[0].mxu0
  %799 = vmatprep.mubr.f32.mxu0 %v132
  %800 = vmatmul.mubr.f32.gmra.mrb[0].mxu0 %v131
  %v801 = vpop.f32.mrb[0].mxu0
  %v802 = vadd.f32 %v304, %v801
  %v803 = vpop.f32.mrb[0].mxu0
  %804 = vmatprep.mubr.f32.mxu0 %v135
  %805 = vmatmul.mubr.f32.gmra.mrb[0].mxu0 %v134
  %v806 = vpop.f32.mrb[0].mxu0
  %v807 = vadd.f32 %v304, %v806
  %v808 = vpop.f32.mrb[0].mxu0
  %809 = vmatprep.mubr.f32.mxu0 %v138
  %810 = vmatmul.mubr.f32.gmra.mrb[0].mxu0 %v137
  %v811 = vpop.f32.mrb[0].mxu0
  %v812 = vadd.f32 %v304, %v811
  %v813 = vpop.f32.mrb[0].mxu0
  %814 = vmatprep.mubr.f32.mxu0 %v141
  %815 = vmatmul.mubr.f32.gmra.mrb[0].mxu0 %v140
  %v816 = vpop.f32.mrb[0].mxu0
  %v817 = vadd.f32 %v304, %v816
  %v818 = vpop.f32.mrb[0].mxu0
  %819 = vmatprep.mubr.f32.mxu0 %v144
  %820 = vmatmul.mubr.f32.gmra.mrb[0].mxu0 %v143
  %v821 = vpop.f32.mrb[0].mxu0
  %v822 = vadd.f32 %v304, %v821
  %v823 = vpop.f32.mrb[0].mxu0
  %824 = vmatprep.mubr.f32.mxu0 %v147
  %825 = vmatmul.mubr.f32.gmra.mrb[0].mxu0 %v146
  %v826 = vpop.f32.mrb[0].mxu0
  %v827 = vadd.f32 %v304, %v826
  %v828 = vpop.f32.mrb[0].mxu0
  %829 = vmatprep.mubr.f32.mxu0 %v150
  %830 = vmatmul.mubr.f32.gmra.mrb[0].mxu0 %v149
  %v831 = vpop.f32.mrb[0].mxu0
  %v832 = vadd.f32 %v304, %v831
  %v833 = vpop.f32.mrb[0].mxu0
  %834 = vmatprep.mubr.f32.mxu0 %v153
  %835 = vmatmul.mubr.f32.gmra.mrb[0].mxu0 %v152
  %v836 = vpop.f32.mrb[0].mxu0
  %v837 = vadd.f32 %v304, %v836
  %v838 = vpop.f32.mrb[0].mxu0
  %839 = vmatprep.mubr.f32.mxu0 %v156
  %840 = vmatmul.mubr.f32.gmra.mrb[0].mxu0 %v155
  %v841 = vpop.f32.mrb[0].mxu0
  %v842 = vadd.f32 %v304, %v841
  %v843 = vpop.f32.mrb[0].mxu0
  %844 = vmatprep.mubr.f32.mxu0 %v159
  %845 = vmatmul.mubr.f32.gmra.mrb[0].mxu0 %v158
  %v846 = vpop.f32.mrb[0].mxu0
  %v847 = vadd.f32 %v304, %v846
  %v848 = vpop.f32.mrb[0].mxu0
  %849 = vmatprep.mubr.f32.mxu0 %v162
  %850 = vmatmul.mubr.f32.gmra.mrb[0].mxu0 %v161
  %v851 = vpop.f32.mrb[0].mxu0
  %v852 = vadd.f32 %v304, %v851
  %v853 = vpop.f32.mrb[0].mxu0
  %854 = vmatprep.mubr.f32.mxu0 %v165
  %855 = vmatmul.mubr.f32.gmra.mrb[0].mxu0 %v164
  %v856 = vpop.f32.mrb[0].mxu0
  %v857 = vadd.f32 %v304, %v856
  %v858 = vpop.f32.mrb[0].mxu0
  %859 = vmatprep.mubr.f32.mxu0 %v168
  %860 = vmatmul.mubr.f32.gmra.mrb[0].mxu0 %v167
  %v861 = vpop.f32.mrb[0].mxu0
  %v862 = vadd.f32 %v304, %v861
  %v863 = vpop.f32.mrb[0].mxu0
  %864 = vmatprep.mubr.f32.mxu0 %v171
  %865 = vmatmul.mubr.f32.gmra.mrb[0].mxu0 %v170
  %v866 = vpop.f32.mrb[0].mxu0
  %v867 = vadd.f32 %v304, %v866
  %v868 = vpop.f32.mrb[0].mxu0
  %869 = vmatprep.mubr.f32.mxu0 %v174
  %870 = vmatmul.mubr.f32.gmra.mrb[0].mxu0 %v173
  %v871 = vpop.f32.mrb[0].mxu0
  %v872 = vadd.f32 %v304, %v871
  %v873 = vpop.f32.mrb[0].mxu0
  %874 = vmatprep.mubr.f32.mxu0 %v177
  %875 = vmatmul.mubr.f32.gmra.mrb[0].mxu0 %v176
  %v876 = vpop.f32.mrb[0].mxu0
  %v877 = vadd.f32 %v304, %v876
  %v878 = vpop.f32.mrb[0].mxu0
  %879 = vmatprep.mubr.f32.mxu0 %v180
  %880 = vmatmul.mubr.f32.gmra.mrb[0].mxu0 %v179
  %v881 = vpop.f32.mrb[0].mxu0
  %v882 = vadd.f32 %v304, %v881
  %v883 = vpop.f32.mrb[0].mxu0
  %884 = vmatprep.mubr.f32.mxu0 %v183
  %885 = vmatmul.mubr.f32.gmra.mrb[0].mxu0 %v182
  %v886 = vpop.f32.mrb[0].mxu0
  %v887 = vadd.f32 %v304, %v886
  %v888 = vpop.f32.mrb[0].mxu0
  %889 = vmatprep.mubr.f32.mxu0 %v186
  %890 = vmatmul.mubr.f32.gmra.mrb[0].mxu0 %v185
  %v891 = vpop.f32.mrb[0].mxu0
  %v892 = vadd.f32 %v304, %v891
  %v893 = vpop.f32.mrb[0].mxu0
  %894 = vmatprep.mubr.f32.mxu0 %v189
  %895 = vmatmul.mubr.f32.gmra.mrb[0].mxu0 %v188
  %v896 = vpop.f32.mrb[0].mxu0
  %v897 = vadd.f32 %v304, %v896
  %v898 = vpop.f32.mrb[0].mxu0
  %899 = vmatprep.mubr.f32.mxu0 %v192
  %900 = vmatmul.mubr.f32.gmra.mrb[0].mxu0 %v191
  %v901 = vpop.f32.mrb[0].mxu0
  %v902 = vadd.f32 %v304, %v901
  %v903 = vpop.f32.mrb[0].mxu0
  %904 = vmatprep.mubr.f32.mxu0 %v195
  %905 = vmatmul.mubr.f32.gmra.mrb[0].mxu0 %v194
  %v906 = vpop.f32.mrb[0].mxu0
  %v907 = vadd.f32 %v304, %v906
  %v908 = vpop.f32.mrb[0].mxu0
  %909 = vmatprep.mubr.f32.mxu0 %v198
  %910 = vmatmul.mubr.f32.gmra.mrb[0].mxu0 %v197
  %v911 = vpop.f32.mrb[0].mxu0
  %v912 = vadd.f32 %v304, %v911
  %v913 = vpop.f32.mrb[0].mxu0
  %914 = vmatprep.mubr.f32.mxu0 %v201
  %915 = vmatmul.mubr.f32.gmra.mrb[0].mxu0 %v200
  %v916 = vpop.f32.mrb[0].mxu0
  %v917 = vadd.f32 %v304, %v916
  %v918 = vpop.f32.mrb[0].mxu0
  %919 = vmatprep.mubr.f32.mxu0 %v204
  %920 = vmatmul.mubr.f32.gmra.mrb[0].mxu0 %v203
  %v921 = vpop.f32.mrb[0].mxu0
  %v922 = vadd.f32 %v304, %v921
  %v923 = vpop.f32.mrb[0].mxu0
  %924 = vmatprep.mubr.f32.mxu0 %v207
  %925 = vmatmul.mubr.f32.gmra.mrb[0].mxu0 %v206
  %v926 = vpop.f32.mrb[0].mxu0
  %v927 = vadd.f32 %v304, %v926
  %v928 = vpop.f32.mrb[0].mxu0
  %929 = vmatprep.mubr.f32.mxu0 %v210
  %930 = vmatmul.mubr.f32.gmra.mrb[0].mxu0 %v209
  %v931 = vpop.f32.mrb[0].mxu0
  %v932 = vadd.f32 %v304, %v931
  %v933 = vpop.f32.mrb[0].mxu0
  %934 = vmatprep.mubr.f32.mxu0 %v213
  %935 = vmatmul.mubr.f32.gmra.mrb[0].mxu0 %v212
  %v936 = vpop.f32.mrb[0].mxu0
  %v937 = vadd.f32 %v304, %v936
  %v938 = vpop.f32.mrb[0].mxu0
  %939 = vmatprep.mubr.f32.mxu0 %v216
  %940 = vmatmul.mubr.f32.gmra.mrb[0].mxu0 %v215
  %v941 = vpop.f32.mrb[0].mxu0
  %v942 = vadd.f32 %v304, %v941
  %v943 = vpop.f32.mrb[0].mxu0
  %944 = vmatprep.mubr.f32.mxu0 %v219
  %945 = vmatmul.mubr.f32.gmra.mrb[0].mxu0 %v218
  %v946 = vpop.f32.mrb[0].mxu0
  %v947 = vadd.f32 %v304, %v946
  %v948 = vpop.f32.mrb[0].mxu0
  %949 = vmatprep.mubr.f32.mxu0 %v222
  %950 = vmatmul.mubr.f32.gmra.mrb[0].mxu0 %v221
  %v951 = vpop.f32.mrb[0].mxu0
  %v952 = vadd.f32 %v304, %v951
  %v953 = vpop.f32.mrb[0].mxu0
  %954 = vmatprep.mubr.f32.mxu0 %v225
  %955 = vmatmul.mubr.f32.gmra.mrb[0].mxu0 %v224
  %v956 = vpop.f32.mrb[0].mxu0
  %v957 = vadd.f32 %v304, %v956
  %v958 = vpop.f32.mrb[0].mxu0
  %959 = vmatprep.mubr.f32.mxu0 %v228
  %960 = vmatmul.mubr.f32.gmra.mrb[0].mxu0 %v227
  %v961 = vpop.f32.mrb[0].mxu0
  %v962 = vadd.f32 %v304, %v961
  %v963 = vpop.f32.mrb[0].mxu0
  %964 = vmatprep.mubr.f32.mxu0 %v231
  %965 = vmatmul.mubr.f32.gmra.mrb[0].mxu0 %v230
  %v966 = vpop.f32.mrb[0].mxu0
  %v967 = vadd.f32 %v304, %v966
  %v968 = vpop.f32.mrb[0].mxu0
  %969 = vmatprep.mubr.f32.mxu0 %v234
  %970 = vmatmul.mubr.f32.gmra.mrb[0].mxu0 %v233
  %v971 = vpop.f32.mrb[0].mxu0
  %v972 = vadd.f32 %v304, %v971
  %v973 = vpop.f32.mrb[0].mxu0
  %974 = vmatprep.mubr.f32.mxu0 %v237
  %975 = vmatmul.mubr.f32.gmra.mrb[0].mxu0 %v236
  %v976 = vpop.f32.mrb[0].mxu0
  %v977 = vadd.f32 %v304, %v976
  %v978 = vpop.f32.mrb[0].mxu0
  %979 = vmatprep.mubr.f32.mxu0 %v240
  %980 = vmatmul.mubr.f32.gmra.mrb[0].mxu0 %v239
  %v981 = vpop.f32.mrb[0].mxu0
  %v982 = vadd.f32 %v304, %v981
  %v983 = vpop.f32.mrb[0].mxu0
  %984 = vmatprep.mubr.f32.mxu0 %v243
  %985 = vmatmul.mubr.f32.gmra.mrb[0].mxu0 %v242
  %v986 = vpop.f32.mrb[0].mxu0
  %v987 = vadd.f32 %v304, %v986
  %v988 = vpop.f32.mrb[0].mxu0
  %989 = vmatprep.mubr.f32.mxu0 %v246
  %990 = vmatmul.mubr.f32.gmra.mrb[0].mxu0 %v245
  %v991 = vpop.f32.mrb[0].mxu0
  %v992 = vadd.f32 %v304, %v991
  %v993 = vpop.f32.mrb[0].mxu0
  %994 = vmatprep.mubr.f32.mxu0 %v249
  %995 = vmatmul.mubr.f32.gmra.mrb[0].mxu0 %v248
  %v996 = vpop.f32.mrb[0].mxu0
  %v997 = vadd.f32 %v304, %v996
  %v998 = vpop.f32.mrb[0].mxu0
  %999 = vmatprep.mubr.f32.mxu0 %v252
  %1000 = vmatmul.mubr.f32.gmra.mrb[0].mxu0 %v251
  %v1001 = vpop.f32.mrb[0].mxu0
  %v1002 = vadd.f32 %v304, %v1001
  %v1003 = vpop.f32.mrb[0].mxu0
  %1004 = vmatprep.mubr.f32.mxu0 %v255
  %1005 = vmatmul.mubr.f32.gmra.mrb[0].mxu0 %v254
  %v1006 = vpop.f32.mrb[0].mxu0
  %v1007 = vadd.f32 %v304, %v1006
  %v1008 = vpop.f32.mrb[0].mxu0
  %1009 = vmatprep.mubr.f32.mxu0 %v258
  %1010 = vmatmul.mubr.f32.gmra.mrb[0].mxu0 %v257
  %v1011 = vpop.f32.mrb[0].mxu0
  %v1012 = vadd.f32 %v304, %v1011
  %v1013 = vpop.f32.mrb[0].mxu0
  %1014 = vmatprep.mubr.f32.mxu0 %v261
  %1015 = vmatmul.mubr.f32.gmra.mrb[0].mxu0 %v260
  %v1016 = vpop.f32.mrb[0].mxu0
  %v1017 = vadd.f32 %v304, %v1016
  %v1018 = vpop.f32.mrb[0].mxu0
  %1019 = vdwg.mxu0
  %1020 = vmatprep.subr.mxu0 0.0
  %1021 = vmatpush1.msra.mxu0 %v295
  %1022 = vmatprep.subr.mxu0 0.0
  %1023 = vmatpush1.msra.mxu0 %v296
  %1024 = vmatprep.subr.mxu0 0.0
  %1025 = vmatpush1.msra.mxu0 %v297
  %1026 = vmatprep.subr.mxu0 0.0
  %1027 = vmatpush1.msra.mxu0 %v298
  %1028 = vmatprep.subr.mxu0 0.0
  %1029 = vmatpush1.msra.mxu0 0.0
  %1030 = vmatprep.subr.mxu0 0.0
  %1031 = vmatpush1.msra.mxu0 0.0
  %1032 = vmatprep.subr.mxu0 0.0
  %1033 = vmatpush1.msra.mxu0 0.0
  %1034 = vmatprep.subr.mxu0 0.0
  %1035 = vmatpush1.msra.mxu0 0.0
  %1036 = vmatprep.subr.mxu0 0.0
  %1037 = vmatpush1.msra.mxu0 0.0
  %1038 = vmatprep.subr.mxu0 0.0
  %1039 = vmatpush1.msra.mxu0 0.0
  %1040 = vmatprep.subr.mxu0 0.0
  %1041 = vmatpush1.msra.mxu0 0.0
  %1042 = vmatprep.subr.mxu0 0.0
  %1043 = vmatpush1.msra.mxu0 0.0
  %1044 = vmatprep.subr.mxu0 0.0
  %1045 = vmatpush1.msra.mxu0 0.0
  %1046 = vmatprep.subr.mxu0 0.0
  %1047 = vmatpush1.msra.mxu0 0.0
  %1048 = vmatprep.subr.mxu0 0.0
  %1049 = vmatpush1.msra.mxu0 0.0
  %1050 = vmatprep.subr.mxu0 0.0
  %1051 = vmatpush1.msra.mxu0 0.0
  %1052 = vmatprep.subr.mxu0 0.0
  %1053 = vmatpush1.msra.mxu0 0.0
  %1054 = vmatprep.subr.mxu0 0.0
  %1055 = vmatpush1.msra.mxu0 0.0
  %1056 = vmatprep.subr.mxu0 0.0
  %1057 = vmatpush1.msra.mxu0 0.0
  %1058 = vmatprep.subr.mxu0 0.0
  %1059 = vmatpush1.msra.mxu0 0.0
  %1060 = vmatprep.subr.mxu0 0.0
  %1061 = vmatpush1.msra.mxu0 0.0
  %1062 = vmatprep.subr.mxu0 0.0
  %1063 = vmatpush1.msra.mxu0 0.0
  %1064 = vmatprep.subr.mxu0 0.0
  %1065 = vmatpush1.msra.mxu0 0.0
  %1066 = vmatprep.subr.mxu0 0.0
  %1067 = vmatpush1.msra.mxu0 0.0
  %1068 = vmatprep.subr.mxu0 0.0
  %1069 = vmatpush1.msra.mxu0 0.0
  %1070 = vmatprep.subr.mxu0 0.0
  %1071 = vmatpush1.msra.mxu0 0.0
  %1072 = vmatprep.subr.mxu0 0.0
  %1073 = vmatpush1.msra.mxu0 0.0
  %1074 = vmatprep.subr.mxu0 0.0
  %1075 = vmatpush1.msra.mxu0 0.0
  %1076 = vmatprep.subr.mxu0 0.0
  %1077 = vmatpush1.msra.mxu0 0.0
  %1078 = vmatprep.subr.mxu0 0.0
  %1079 = vmatpush1.msra.mxu0 0.0
  %1080 = vmatprep.subr.mxu0 0.0
  %1081 = vmatpush1.msra.mxu0 0.0
  %1082 = vmatprep.subr.mxu0 0.0
  %1083 = vmatpush1.msra.mxu0 0.0
  %1084 = vmatprep.mubr.f32.mxu0 0.0
  %1085 = vmatmul.mubr.f32.gmra.mrb[0].mxu0 %v308
  %v1086 = vpop.f32.mrb[0].mxu0
  %v1087 = vadd.f32 %v617, %v1086
  %v1088 = vpop.f32.mrb[0].mxu0
  %1089 = vmatprep.mubr.f32.mxu0 0.0
  %1090 = vmatmul.mubr.f32.gmra.mrb[0].mxu0 %v311
  %v1091 = vpop.f32.mrb[0].mxu0
  %v1092 = vadd.f32 %v622, %v1091
  %v1093 = vpop.f32.mrb[0].mxu0
  %1094 = vmatprep.mubr.f32.mxu0 0.0
  %1095 = vmatmul.mubr.f32.gmra.mrb[0].mxu0 %v314
  %v1096 = vpop.f32.mrb[0].mxu0
  %v1097 = vadd.f32 %v627, %v1096
  %v1098 = vpop.f32.mrb[0].mxu0
  %1099 = vmatprep.mubr.f32.mxu0 0.0
  %1100 = vmatmul.mubr.f32.gmra.mrb[0].mxu0 %v317
  %v1101 = vpop.f32.mrb[0].mxu0
  %v1102 = vadd.f32 %v632, %v1101
  %v1103 = vpop.f32.mrb[0].mxu0
  %1104 = vmatprep.mubr.f32.mxu0 0.0
  %1105 = vmatmul.mubr.f32.gmra.mrb[0].mxu0 %v320
  %v1106 = vpop.f32.mrb[0].mxu0
  %v1107 = vadd.f32 %v637, %v1106
  %v1108 = vpop.f32.mrb[0].mxu0
  %1109 = vmatprep.mubr.f32.mxu0 0.0
  %1110 = vmatmul.mubr.f32.gmra.mrb[0].mxu0 %v323
  %v1111 = vpop.f32.mrb[0].mxu0
  %v1112 = vadd.f32 %v642, %v1111
  %v1113 = vpop.f32.mrb[0].mxu0
  %1114 = vmatprep.mubr.f32.mxu0 0.0
  %1115 = vmatmul.mubr.f32.gmra.mrb[0].mxu0 %v326
  %v1116 = vpop.f32.mrb[0].mxu0
  %v1117 = vadd.f32 %v647, %v1116
  %v1118 = vpop.f32.mrb[0].mxu0
  %1119 = vmatprep.mubr.f32.mxu0 0.0
  %1120 = vmatmul.mubr.f32.gmra.mrb[0].mxu0 %v329
  %v1121 = vpop.f32.mrb[0].mxu0
  %v1122 = vadd.f32 %v652, %v1121
  %v1123 = vpop.f32.mrb[0].mxu0
  %1124 = vmatprep.mubr.f32.mxu0 0.0
  %1125 = vmatmul.mubr.f32.gmra.mrb[0].mxu0 %v332
  %v1126 = vpop.f32.mrb[0].mxu0
  %v1127 = vadd.f32 %v657, %v1126
  %v1128 = vpop.f32.mrb[0].mxu0
  %1129 = vmatprep.mubr.f32.mxu0 0.0
  %1130 = vmatmul.mubr.f32.gmra.mrb[0].mxu0 %v335
  %v1131 = vpop.f32.mrb[0].mxu0
  %v1132 = vadd.f32 %v662, %v1131
  %v1133 = vpop.f32.mrb[0].mxu0
  %1134 = vmatprep.mubr.f32.mxu0 0.0
  %1135 = vmatmul.mubr.f32.gmra.mrb[0].mxu0 %v338
  %v1136 = vpop.f32.mrb[0].mxu0
  %v1137 = vadd.f32 %v667, %v1136
  %v1138 = vpop.f32.mrb[0].mxu0
  %1139 = vmatprep.mubr.f32.mxu0 0.0
  %1140 = vmatmul.mubr.f32.gmra.mrb[0].mxu0 %v341
  %v1141 = vpop.f32.mrb[0].mxu0
  %v1142 = vadd.f32 %v672, %v1141
  %v1143 = vpop.f32.mrb[0].mxu0
  %1144 = vmatprep.mubr.f32.mxu0 0.0
  %1145 = vmatmul.mubr.f32.gmra.mrb[0].mxu0 %v344
  %v1146 = vpop.f32.mrb[0].mxu0
  %v1147 = vadd.f32 %v677, %v1146
  %v1148 = vpop.f32.mrb[0].mxu0
  %1149 = vmatprep.mubr.f32.mxu0 0.0
  %1150 = vmatmul.mubr.f32.gmra.mrb[0].mxu0 %v347
  %v1151 = vpop.f32.mrb[0].mxu0
  %v1152 = vadd.f32 %v682, %v1151
  %v1153 = vpop.f32.mrb[0].mxu0
  %1154 = vmatprep.mubr.f32.mxu0 0.0
  %1155 = vmatmul.mubr.f32.gmra.mrb[0].mxu0 %v350
  %v1156 = vpop.f32.mrb[0].mxu0
  %v1157 = vadd.f32 %v687, %v1156
  %v1158 = vpop.f32.mrb[0].mxu0
  %1159 = vmatprep.mubr.f32.mxu0 0.0
  %1160 = vmatmul.mubr.f32.gmra.mrb[0].mxu0 %v353
  %v1161 = vpop.f32.mrb[0].mxu0
  %v1162 = vadd.f32 %v692, %v1161
  %v1163 = vpop.f32.mrb[0].mxu0
  %1164 = vmatprep.mubr.f32.mxu0 0.0
  %1165 = vmatmul.mubr.f32.gmra.mrb[0].mxu0 %v356
  %v1166 = vpop.f32.mrb[0].mxu0
  %v1167 = vadd.f32 %v697, %v1166
  %v1168 = vpop.f32.mrb[0].mxu0
  %1169 = vmatprep.mubr.f32.mxu0 0.0
  %1170 = vmatmul.mubr.f32.gmra.mrb[0].mxu0 %v359
  %v1171 = vpop.f32.mrb[0].mxu0
  %v1172 = vadd.f32 %v702, %v1171
  %v1173 = vpop.f32.mrb[0].mxu0
  %1174 = vmatprep.mubr.f32.mxu0 0.0
  %1175 = vmatmul.mubr.f32.gmra.mrb[0].mxu0 %v362
  %v1176 = vpop.f32.mrb[0].mxu0
  %v1177 = vadd.f32 %v707, %v1176
  %v1178 = vpop.f32.mrb[0].mxu0
  %1179 = vmatprep.mubr.f32.mxu0 0.0
  %1180 = vmatmul.mubr.f32.gmra.mrb[0].mxu0 %v365
  %v1181 = vpop.f32.mrb[0].mxu0
  %v1182 = vadd.f32 %v712, %v1181
  %v1183 = vpop.f32.mrb[0].mxu0
  %1184 = vmatprep.mubr.f32.mxu0 0.0
  %1185 = vmatmul.mubr.f32.gmra.mrb[0].mxu0 %v368
  %v1186 = vpop.f32.mrb[0].mxu0
  %v1187 = vadd.f32 %v717, %v1186
  %v1188 = vpop.f32.mrb[0].mxu0
  %1189 = vmatprep.mubr.f32.mxu0 0.0
  %1190 = vmatmul.mubr.f32.gmra.mrb[0].mxu0 %v371
  %v1191 = vpop.f32.mrb[0].mxu0
  %v1192 = vadd.f32 %v722, %v1191
  %v1193 = vpop.f32.mrb[0].mxu0
  %1194 = vmatprep.mubr.f32.mxu0 0.0
  %1195 = vmatmul.mubr.f32.gmra.mrb[0].mxu0 %v374
  %v1196 = vpop.f32.mrb[0].mxu0
  %v1197 = vadd.f32 %v727, %v1196
  %v1198 = vpop.f32.mrb[0].mxu0
  %1199 = vmatprep.mubr.f32.mxu0 0.0
  %1200 = vmatmul.mubr.f32.gmra.mrb[0].mxu0 %v377
  %v1201 = vpop.f32.mrb[0].mxu0
  %v1202 = vadd.f32 %v732, %v1201
  %v1203 = vpop.f32.mrb[0].mxu0
  %1204 = vmatprep.mubr.f32.mxu0 0.0
  %1205 = vmatmul.mubr.f32.gmra.mrb[0].mxu0 %v380
  %v1206 = vpop.f32.mrb[0].mxu0
  %v1207 = vadd.f32 %v737, %v1206
  %v1208 = vpop.f32.mrb[0].mxu0
  %1209 = vmatprep.mubr.f32.mxu0 0.0
  %1210 = vmatmul.mubr.f32.gmra.mrb[0].mxu0 %v383
  %v1211 = vpop.f32.mrb[0].mxu0
  %v1212 = vadd.f32 %v742, %v1211
  %v1213 = vpop.f32.mrb[0].mxu0
  %1214 = vmatprep.mubr.f32.mxu0 0.0
  %1215 = vmatmul.mubr.f32.gmra.mrb[0].mxu0 %v386
  %v1216 = vpop.f32.mrb[0].mxu0
  %v1217 = vadd.f32 %v747, %v1216
  %v1218 = vpop.f32.mrb[0].mxu0
  %1219 = vmatprep.mubr.f32.mxu0 0.0
  %1220 = vmatmul.mubr.f32.gmra.mrb[0].mxu0 %v389
  %v1221 = vpop.f32.mrb[0].mxu0
  %v1222 = vadd.f32 %v752, %v1221
  %v1223 = vpop.f32.mrb[0].mxu0
  %1224 = vmatprep.mubr.f32.mxu0 0.0
  %1225 = vmatmul.mubr.f32.gmra.mrb[0].mxu0 %v392
  %v1226 = vpop.f32.mrb[0].mxu0
  %v1227 = vadd.f32 %v757, %v1226
  %v1228 = vpop.f32.mrb[0].mxu0
  %1229 = vmatprep.mubr.f32.mxu0 0.0
  %1230 = vmatmul.mubr.f32.gmra.mrb[0].mxu0 %v395
  %v1231 = vpop.f32.mrb[0].mxu0
  %v1232 = vadd.f32 %v762, %v1231
  %v1233 = vpop.f32.mrb[0].mxu0
  %1234 = vmatprep.mubr.f32.mxu0 0.0
  %1235 = vmatmul.mubr.f32.gmra.mrb[0].mxu0 %v398
  %v1236 = vpop.f32.mrb[0].mxu0
  %v1237 = vadd.f32 %v767, %v1236
  %v1238 = vpop.f32.mrb[0].mxu0
  %1239 = vmatprep.mubr.f32.mxu0 0.0
  %1240 = vmatmul.mubr.f32.gmra.mrb[0].mxu0 %v401
  %v1241 = vpop.f32.mrb[0].mxu0
  %v1242 = vadd.f32 %v772, %v1241
  %v1243 = vpop.f32.mrb[0].mxu0
  %1244 = vmatprep.mubr.f32.mxu0 0.0
  %1245 = vmatmul.mubr.f32.gmra.mrb[0].mxu0 %v404
  %v1246 = vpop.f32.mrb[0].mxu0
  %v1247 = vadd.f32 %v777, %v1246
  %v1248 = vpop.f32.mrb[0].mxu0
  %1249 = vmatprep.mubr.f32.mxu0 0.0
  %1250 = vmatmul.mubr.f32.gmra.mrb[0].mxu0 %v407
  %v1251 = vpop.f32.mrb[0].mxu0
  %v1252 = vadd.f32 %v782, %v1251
  %v1253 = vpop.f32.mrb[0].mxu0
  %1254 = vmatprep.mubr.f32.mxu0 0.0
  %1255 = vmatmul.mubr.f32.gmra.mrb[0].mxu0 %v410
  %v1256 = vpop.f32.mrb[0].mxu0
  %v1257 = vadd.f32 %v787, %v1256
  %v1258 = vpop.f32.mrb[0].mxu0
  %1259 = vmatprep.mubr.f32.mxu0 0.0
  %1260 = vmatmul.mubr.f32.gmra.mrb[0].mxu0 %v413
  %v1261 = vpop.f32.mrb[0].mxu0
  %v1262 = vadd.f32 %v792, %v1261
  %v1263 = vpop.f32.mrb[0].mxu0
  %1264 = vmatprep.mubr.f32.mxu0 0.0
  %1265 = vmatmul.mubr.f32.gmra.mrb[0].mxu0 %v416
  %v1266 = vpop.f32.mrb[0].mxu0
  %v1267 = vadd.f32 %v797, %v1266
  %v1268 = vpop.f32.mrb[0].mxu0
  %1269 = vmatprep.mubr.f32.mxu0 0.0
  %1270 = vmatmul.mubr.f32.gmra.mrb[0].mxu0 %v419
  %v1271 = vpop.f32.mrb[0].mxu0
  %v1272 = vadd.f32 %v802, %v1271
  %v1273 = vpop.f32.mrb[0].mxu0
  %1274 = vmatprep.mubr.f32.mxu0 0.0
  %1275 = vmatmul.mubr.f32.gmra.mrb[0].mxu0 %v422
  %v1276 = vpop.f32.mrb[0].mxu0
  %v1277 = vadd.f32 %v807, %v1276
  %v1278 = vpop.f32.mrb[0].mxu0
  %1279 = vmatprep.mubr.f32.mxu0 0.0
  %1280 = vmatmul.mubr.f32.gmra.mrb[0].mxu0 %v425
  %v1281 = vpop.f32.mrb[0].mxu0
  %v1282 = vadd.f32 %v812, %v1281
  %v1283 = vpop.f32.mrb[0].mxu0
  %1284 = vmatprep.mubr.f32.mxu0 0.0
  %1285 = vmatmul.mubr.f32.gmra.mrb[0].mxu0 %v428
  %v1286 = vpop.f32.mrb[0].mxu0
  %v1287 = vadd.f32 %v817, %v1286
  %v1288 = vpop.f32.mrb[0].mxu0
  %1289 = vmatprep.mubr.f32.mxu0 0.0
  %1290 = vmatmul.mubr.f32.gmra.mrb[0].mxu0 %v431
  %v1291 = vpop.f32.mrb[0].mxu0
  %v1292 = vadd.f32 %v822, %v1291
  %v1293 = vpop.f32.mrb[0].mxu0
  %1294 = vmatprep.mubr.f32.mxu0 0.0
  %1295 = vmatmul.mubr.f32.gmra.mrb[0].mxu0 %v434
  %v1296 = vpop.f32.mrb[0].mxu0
  %v1297 = vadd.f32 %v827, %v1296
  %v1298 = vpop.f32.mrb[0].mxu0
  %1299 = vmatprep.mubr.f32.mxu0 0.0
  %1300 = vmatmul.mubr.f32.gmra.mrb[0].mxu0 %v437
  %v1301 = vpop.f32.mrb[0].mxu0
  %v1302 = vadd.f32 %v832, %v1301
  %v1303 = vpop.f32.mrb[0].mxu0
  %1304 = vmatprep.mubr.f32.mxu0 0.0
  %1305 = vmatmul.mubr.f32.gmra.mrb[0].mxu0 %v440
  %v1306 = vpop.f32.mrb[0].mxu0
  %v1307 = vadd.f32 %v837, %v1306
  %v1308 = vpop.f32.mrb[0].mxu0
  %1309 = vmatprep.mubr.f32.mxu0 0.0
  %1310 = vmatmul.mubr.f32.gmra.mrb[0].mxu0 %v443
  %v1311 = vpop.f32.mrb[0].mxu0
  %v1312 = vadd.f32 %v842, %v1311
  %v1313 = vpop.f32.mrb[0].mxu0
  %1314 = vmatprep.mubr.f32.mxu0 0.0
  %1315 = vmatmul.mubr.f32.gmra.mrb[0].mxu0 %v446
  %v1316 = vpop.f32.mrb[0].mxu0
  %v1317 = vadd.f32 %v847, %v1316
  %v1318 = vpop.f32.mrb[0].mxu0
  %1319 = vmatprep.mubr.f32.mxu0 0.0
  %1320 = vmatmul.mubr.f32.gmra.mrb[0].mxu0 %v449
  %v1321 = vpop.f32.mrb[0].mxu0
  %v1322 = vadd.f32 %v852, %v1321
  %v1323 = vpop.f32.mrb[0].mxu0
  %1324 = vmatprep.mubr.f32.mxu0 0.0
  %1325 = vmatmul.mubr.f32.gmra.mrb[0].mxu0 %v452
  %v1326 = vpop.f32.mrb[0].mxu0
  %v1327 = vadd.f32 %v857, %v1326
  %v1328 = vpop.f32.mrb[0].mxu0
  %1329 = vmatprep.mubr.f32.mxu0 0.0
  %1330 = vmatmul.mubr.f32.gmra.mrb[0].mxu0 %v455
  %v1331 = vpop.f32.mrb[0].mxu0
  %v1332 = vadd.f32 %v862, %v1331
  %v1333 = vpop.f32.mrb[0].mxu0
  %1334 = vmatprep.mubr.f32.mxu0 0.0
  %1335 = vmatmul.mubr.f32.gmra.mrb[0].mxu0 %v458
  %v1336 = vpop.f32.mrb[0].mxu0
  %v1337 = vadd.f32 %v867, %v1336
  %v1338 = vpop.f32.mrb[0].mxu0
  %1339 = vmatprep.mubr.f32.mxu0 0.0
  %1340 = vmatmul.mubr.f32.gmra.mrb[0].mxu0 %v461
  %v1341 = vpop.f32.mrb[0].mxu0
  %v1342 = vadd.f32 %v872, %v1341
  %v1343 = vpop.f32.mrb[0].mxu0
  %1344 = vmatprep.mubr.f32.mxu0 0.0
  %1345 = vmatmul.mubr.f32.gmra.mrb[0].mxu0 %v464
  %v1346 = vpop.f32.mrb[0].mxu0
  %v1347 = vadd.f32 %v877, %v1346
  %v1348 = vpop.f32.mrb[0].mxu0
  %1349 = vmatprep.mubr.f32.mxu0 0.0
  %1350 = vmatmul.mubr.f32.gmra.mrb[0].mxu0 %v467
  %v1351 = vpop.f32.mrb[0].mxu0
  %v1352 = vadd.f32 %v882, %v1351
  %v1353 = vpop.f32.mrb[0].mxu0
  %1354 = vmatprep.mubr.f32.mxu0 0.0
  %1355 = vmatmul.mubr.f32.gmra.mrb[0].mxu0 %v470
  %v1356 = vpop.f32.mrb[0].mxu0
  %v1357 = vadd.f32 %v887, %v1356
  %v1358 = vpop.f32.mrb[0].mxu0
  %1359 = vmatprep.mubr.f32.mxu0 0.0
  %1360 = vmatmul.mubr.f32.gmra.mrb[0].mxu0 %v473
  %v1361 = vpop.f32.mrb[0].mxu0
  %v1362 = vadd.f32 %v892, %v1361
  %v1363 = vpop.f32.mrb[0].mxu0
  %1364 = vmatprep.mubr.f32.mxu0 0.0
  %1365 = vmatmul.mubr.f32.gmra.mrb[0].mxu0 %v476
  %v1366 = vpop.f32.mrb[0].mxu0
  %v1367 = vadd.f32 %v897, %v1366
  %v1368 = vpop.f32.mrb[0].mxu0
  %1369 = vmatprep.mubr.f32.mxu0 0.0
  %1370 = vmatmul.mubr.f32.gmra.mrb[0].mxu0 %v479
  %v1371 = vpop.f32.mrb[0].mxu0
  %v1372 = vadd.f32 %v902, %v1371
  %v1373 = vpop.f32.mrb[0].mxu0
  %1374 = vmatprep.mubr.f32.mxu0 0.0
  %1375 = vmatmul.mubr.f32.gmra.mrb[0].mxu0 %v482
  %v1376 = vpop.f32.mrb[0].mxu0
  %v1377 = vadd.f32 %v907, %v1376
  %v1378 = vpop.f32.mrb[0].mxu0
  %1379 = vmatprep.mubr.f32.mxu0 0.0
  %1380 = vmatmul.mubr.f32.gmra.mrb[0].mxu0 %v485
  %v1381 = vpop.f32.mrb[0].mxu0
  %v1382 = vadd.f32 %v912, %v1381
  %v1383 = vpop.f32.mrb[0].mxu0
  %1384 = vmatprep.mubr.f32.mxu0 0.0
  %1385 = vmatmul.mubr.f32.gmra.mrb[0].mxu0 %v488
  %v1386 = vpop.f32.mrb[0].mxu0
  %v1387 = vadd.f32 %v917, %v1386
  %v1388 = vpop.f32.mrb[0].mxu0
  %1389 = vmatprep.mubr.f32.mxu0 0.0
  %1390 = vmatmul.mubr.f32.gmra.mrb[0].mxu0 %v491
  %v1391 = vpop.f32.mrb[0].mxu0
  %v1392 = vadd.f32 %v922, %v1391
  %v1393 = vpop.f32.mrb[0].mxu0
  %1394 = vmatprep.mubr.f32.mxu0 0.0
  %1395 = vmatmul.mubr.f32.gmra.mrb[0].mxu0 %v494
  %v1396 = vpop.f32.mrb[0].mxu0
  %v1397 = vadd.f32 %v927, %v1396
  %v1398 = vpop.f32.mrb[0].mxu0
  %1399 = vmatprep.mubr.f32.mxu0 0.0
  %1400 = vmatmul.mubr.f32.gmra.mrb[0].mxu0 %v497
  %v1401 = vpop.f32.mrb[0].mxu0
  %v1402 = vadd.f32 %v932, %v1401
  %v1403 = vpop.f32.mrb[0].mxu0
  %1404 = vmatprep.mubr.f32.mxu0 0.0
  %1405 = vmatmul.mubr.f32.gmra.mrb[0].mxu0 %v500
  %v1406 = vpop.f32.mrb[0].mxu0
  %v1407 = vadd.f32 %v937, %v1406
  %v1408 = vpop.f32.mrb[0].mxu0
  %1409 = vmatprep.mubr.f32.mxu0 0.0
  %1410 = vmatmul.mubr.f32.gmra.mrb[0].mxu0 %v503
  %v1411 = vpop.f32.mrb[0].mxu0
  %v1412 = vadd.f32 %v942, %v1411
  %v1413 = vpop.f32.mrb[0].mxu0
  %1414 = vmatprep.mubr.f32.mxu0 0.0
  %1415 = vmatmul.mubr.f32.gmra.mrb[0].mxu0 %v506
  %v1416 = vpop.f32.mrb[0].mxu0
  %v1417 = vadd.f32 %v947, %v1416
  %v1418 = vpop.f32.mrb[0].mxu0
  %1419 = vmatprep.mubr.f32.mxu0 0.0
  %1420 = vmatmul.mubr.f32.gmra.mrb[0].mxu0 %v509
  %v1421 = vpop.f32.mrb[0].mxu0
  %v1422 = vadd.f32 %v952, %v1421
  %v1423 = vpop.f32.mrb[0].mxu0
  %1424 = vmatprep.mubr.f32.mxu0 0.0
  %1425 = vmatmul.mubr.f32.gmra.mrb[0].mxu0 %v512
  %v1426 = vpop.f32.mrb[0].mxu0
  %v1427 = vadd.f32 %v957, %v1426
  %v1428 = vpop.f32.mrb[0].mxu0
  %1429 = vmatprep.mubr.f32.mxu0 0.0
  %1430 = vmatmul.mubr.f32.gmra.mrb[0].mxu0 %v515
  %v1431 = vpop.f32.mrb[0].mxu0
  %v1432 = vadd.f32 %v962, %v1431
  %v1433 = vpop.f32.mrb[0].mxu0
  %1434 = vmatprep.mubr.f32.mxu0 0.0
  %1435 = vmatmul.mubr.f32.gmra.mrb[0].mxu0 %v518
  %v1436 = vpop.f32.mrb[0].mxu0
  %v1437 = vadd.f32 %v967, %v1436
  %v1438 = vpop.f32.mrb[0].mxu0
  %1439 = vmatprep.mubr.f32.mxu0 0.0
  %1440 = vmatmul.mubr.f32.gmra.mrb[0].mxu0 %v521
  %v1441 = vpop.f32.mrb[0].mxu0
  %v1442 = vadd.f32 %v972, %v1441
  %v1443 = vpop.f32.mrb[0].mxu0
  %1444 = vmatprep.mubr.f32.mxu0 0.0
  %1445 = vmatmul.mubr.f32.gmra.mrb[0].mxu0 %v524
  %v1446 = vpop.f32.mrb[0].mxu0
  %v1447 = vadd.f32 %v977, %v1446
  %v1448 = vpop.f32.mrb[0].mxu0
  %1449 = vmatprep.mubr.f32.mxu0 0.0
  %1450 = vmatmul.mubr.f32.gmra.mrb[0].mxu0 %v527
  %v1451 = vpop.f32.mrb[0].mxu0
  %v1452 = vadd.f32 %v982, %v1451
  %v1453 = vpop.f32.mrb[0].mxu0
  %1454 = vmatprep.mubr.f32.mxu0 0.0
  %1455 = vmatmul.mubr.f32.gmra.mrb[0].mxu0 %v530
  %v1456 = vpop.f32.mrb[0].mxu0
  %v1457 = vadd.f32 %v987, %v1456
  %v1458 = vpop.f32.mrb[0].mxu0
  %1459 = vmatprep.mubr.f32.mxu0 0.0
  %1460 = vmatmul.mubr.f32.gmra.mrb[0].mxu0 %v533
  %v1461 = vpop.f32.mrb[0].mxu0
  %v1462 = vadd.f32 %v992, %v1461
  %v1463 = vpop.f32.mrb[0].mxu0
  %1464 = vmatprep.mubr.f32.mxu0 0.0
  %1465 = vmatmul.mubr.f32.gmra.mrb[0].mxu0 %v536
  %v1466 = vpop.f32.mrb[0].mxu0
  %v1467 = vadd.f32 %v997, %v1466
  %v1468 = vpop.f32.mrb[0].mxu0
  %1469 = vmatprep.mubr.f32.mxu0 0.0
  %1470 = vmatmul.mubr.f32.gmra.mrb[0].mxu0 %v539
  %v1471 = vpop.f32.mrb[0].mxu0
  %v1472 = vadd.f32 %v1002, %v1471
  %v1473 = vpop.f32.mrb[0].mxu0
  %1474 = vmatprep.mubr.f32.mxu0 0.0
  %1475 = vmatmul.mubr.f32.gmra.mrb[0].mxu0 %v542
  %v1476 = vpop.f32.mrb[0].mxu0
  %v1477 = vadd.f32 %v1007, %v1476
  %v1478 = vpop.f32.mrb[0].mxu0
  %1479 = vmatprep.mubr.f32.mxu0 0.0
  %1480 = vmatmul.mubr.f32.gmra.mrb[0].mxu0 %v545
  %v1481 = vpop.f32.mrb[0].mxu0
  %v1482 = vadd.f32 %v1012, %v1481
  %v1483 = vpop.f32.mrb[0].mxu0
  %1484 = vmatprep.mubr.f32.mxu0 0.0
  %1485 = vmatmul.mubr.f32.gmra.mrb[0].mxu0 %v548
  %v1486 = vpop.f32.mrb[0].mxu0
  %v1487 = vadd.f32 %v1017, %v1486
  %v1488 = vpop.f32.mrb[0].mxu0
  %1489 = vdwg.mxu0
  %v1490 = vadd.f32 %v1087, %v1092
  %v1491 = vadd.f32 %v1490, %v1097
  %v1492 = vadd.f32 %v1491, %v1102
  %v1493 = vadd.f32 %v1492, %v1107
  %v1494 = vadd.f32 %v1493, %v1112
  %v1495 = vadd.f32 %v1494, %v1117
  %v1496 = vadd.f32 %v1495, %v1122
  %v1497 = vadd.f32 %v1496, %v1127
  %v1498 = vadd.f32 %v1497, %v1132
  %v1499 = vadd.f32 %v1498, %v1137
  %v1500 = vadd.f32 %v1499, %v1142
  %v1501 = vadd.f32 %v1500, %v1147
  %v1502 = vadd.f32 %v1501, %v1152
  %v1503 = vadd.f32 %v1502, %v1157
  %v1504 = vadd.f32 %v1503, %v1162
  %v1505 = vadd.f32 %v1504, %v1167
  %v1506 = vadd.f32 %v1505, %v1172
  %v1507 = vadd.f32 %v1506, %v1177
  %v1508 = vadd.f32 %v1507, %v1182
  %v1509 = vadd.f32 %v1508, %v1187
  %v1510 = vadd.f32 %v1509, %v1192
  %v1511 = vadd.f32 %v1510, %v1197
  %v1512 = vadd.f32 %v1511, %v1202
  %v1513 = vadd.f32 %v1512, %v1207
  %v1514 = vadd.f32 %v1513, %v1212
  %v1515 = vadd.f32 %v1514, %v1217
  %v1516 = vadd.f32 %v1515, %v1222
  %v1517 = vadd.f32 %v1516, %v1227
  %v1518 = vadd.f32 %v1517, %v1232
  %v1519 = vadd.f32 %v1518, %v1237
  %v1520 = vadd.f32 %v1519, %v1242
  %v1521 = vadd.f32 %v1520, %v1247
  %v1522 = vadd.f32 %v1521, %v1252
  %v1523 = vadd.f32 %v1522, %v1257
  %v1524 = vadd.f32 %v1523, %v1262
  %v1525 = vadd.f32 %v1524, %v1267
  %v1526 = vadd.f32 %v1525, %v1272
  %v1527 = vadd.f32 %v1526, %v1277
  %v1528 = vadd.f32 %v1527, %v1282
  %v1529 = vadd.f32 %v1528, %v1287
  %v1530 = vadd.f32 %v1529, %v1292
  %v1531 = vadd.f32 %v1530, %v1297
  %v1532 = vadd.f32 %v1531, %v1302
  %v1533 = vadd.f32 %v1532, %v1307
  %v1534 = vadd.f32 %v1533, %v1312
  %v1535 = vadd.f32 %v1534, %v1317
  %v1536 = vadd.f32 %v1535, %v1322
  %v1537 = vadd.f32 %v1536, %v1327
  %v1538 = vadd.f32 %v1537, %v1332
  %v1539 = vadd.f32 %v1538, %v1337
  %v1540 = vadd.f32 %v1539, %v1342
  %v1541 = vadd.f32 %v1540, %v1347
  %v1542 = vadd.f32 %v1541, %v1352
  %v1543 = vadd.f32 %v1542, %v1357
  %v1544 = vadd.f32 %v1543, %v1362
  %v1545 = vadd.f32 %v1544, %v1367
  %v1546 = vadd.f32 %v1545, %v1372
  %v1547 = vadd.f32 %v1546, %v1377
  %v1548 = vadd.f32 %v1547, %v1382
  %v1549 = vadd.f32 %v1548, %v1387
  %v1550 = vadd.f32 %v1549, %v1392
  %v1551 = vadd.f32 %v1550, %v1397
  %v1552 = vadd.f32 %v1551, %v1402
  %v1553 = vadd.f32 %v1552, %v1407
  %v1554 = vadd.f32 %v1553, %v1412
  %v1555 = vadd.f32 %v1554, %v1417
  %v1556 = vadd.f32 %v1555, %v1422
  %v1557 = vadd.f32 %v1556, %v1427
  %v1558 = vadd.f32 %v1557, %v1432
  %v1559 = vadd.f32 %v1558, %v1437
  %v1560 = vadd.f32 %v1559, %v1442
  %v1561 = vadd.f32 %v1560, %v1447
  %v1562 = vadd.f32 %v1561, %v1452
  %v1563 = vadd.f32 %v1562, %v1457
  %v1564 = vadd.f32 %v1563, %v1462
  %v1565 = vadd.f32 %v1564, %v1467
  %v1566 = vadd.f32 %v1565, %v1472
  %v1567 = vadd.f32 %v1566, %v1477
  %v1568 = vadd.f32 %v1567, %v1482
  %v1569 = vadd.f32 %v1568, %v1487
  %v1570 = vrot.slane %v1569, 4
  %v1571 = vadd.f32 %v1569, %v1570
  %v1572 = vrot.slane %v1571, 2
  %v1573 = vadd.f32 %v1571, %v1572
  %v1574 = vrot.slane %v1573, 1
  %v1575 = vadd.f32 %v1573, %v1574
  %v1576 = vrcp.pop 648.0
  %v1577 = vmul.f32 %v1575, %v1576
  %v1578 = vsub.f32 %v1087, %v1577
  %v1579 = vsub.f32 %v1092, %v1577
  %v1580 = vsub.f32 %v1097, %v1577
  %v1581 = vsub.f32 %v1102, %v1577
  %v1582 = vsub.f32 %v1107, %v1577
  %v1583 = vsub.f32 %v1112, %v1577
  %v1584 = vsub.f32 %v1117, %v1577
  %v1585 = vsub.f32 %v1122, %v1577
  %v1586 = vsub.f32 %v1127, %v1577
  %v1587 = vsub.f32 %v1132, %v1577
  %v1588 = vsub.f32 %v1137, %v1577
  %v1589 = vsub.f32 %v1142, %v1577
  %v1590 = vsub.f32 %v1147, %v1577
  %v1591 = vsub.f32 %v1152, %v1577
  %v1592 = vsub.f32 %v1157, %v1577
  %v1593 = vsub.f32 %v1162, %v1577
  %v1594 = vsub.f32 %v1167, %v1577
  %v1595 = vsub.f32 %v1172, %v1577
  %v1596 = vsub.f32 %v1177, %v1577
  %v1597 = vsub.f32 %v1182, %v1577
  %v1598 = vsub.f32 %v1187, %v1577
  %v1599 = vsub.f32 %v1192, %v1577
  %v1600 = vsub.f32 %v1197, %v1577
  %v1601 = vsub.f32 %v1202, %v1577
  %v1602 = vsub.f32 %v1207, %v1577
  %v1603 = vsub.f32 %v1212, %v1577
  %v1604 = vsub.f32 %v1217, %v1577
  %v1605 = vsub.f32 %v1222, %v1577
  %v1606 = vsub.f32 %v1227, %v1577
  %v1607 = vsub.f32 %v1232, %v1577
  %v1608 = vsub.f32 %v1237, %v1577
  %v1609 = vsub.f32 %v1242, %v1577
  %v1610 = vsub.f32 %v1247, %v1577
  %v1611 = vsub.f32 %v1252, %v1577
  %v1612 = vsub.f32 %v1257, %v1577
  %v1613 = vsub.f32 %v1262, %v1577
  %v1614 = vsub.f32 %v1267, %v1577
  %v1615 = vsub.f32 %v1272, %v1577
  %v1616 = vsub.f32 %v1277, %v1577
  %v1617 = vsub.f32 %v1282, %v1577
  %v1618 = vsub.f32 %v1287, %v1577
  %v1619 = vsub.f32 %v1292, %v1577
  %v1620 = vsub.f32 %v1297, %v1577
  %v1621 = vsub.f32 %v1302, %v1577
  %v1622 = vsub.f32 %v1307, %v1577
  %v1623 = vsub.f32 %v1312, %v1577
  %v1624 = vsub.f32 %v1317, %v1577
  %v1625 = vsub.f32 %v1322, %v1577
  %v1626 = vsub.f32 %v1327, %v1577
  %v1627 = vsub.f32 %v1332, %v1577
  %v1628 = vsub.f32 %v1337, %v1577
  %v1629 = vsub.f32 %v1342, %v1577
  %v1630 = vsub.f32 %v1347, %v1577
  %v1631 = vsub.f32 %v1352, %v1577
  %v1632 = vsub.f32 %v1357, %v1577
  %v1633 = vsub.f32 %v1362, %v1577
  %v1634 = vsub.f32 %v1367, %v1577
  %v1635 = vsub.f32 %v1372, %v1577
  %v1636 = vsub.f32 %v1377, %v1577
  %v1637 = vsub.f32 %v1382, %v1577
  %v1638 = vsub.f32 %v1387, %v1577
  %v1639 = vsub.f32 %v1392, %v1577
  %v1640 = vsub.f32 %v1397, %v1577
  %v1641 = vsub.f32 %v1402, %v1577
  %v1642 = vsub.f32 %v1407, %v1577
  %v1643 = vsub.f32 %v1412, %v1577
  %v1644 = vsub.f32 %v1417, %v1577
  %v1645 = vsub.f32 %v1422, %v1577
  %v1646 = vsub.f32 %v1427, %v1577
  %v1647 = vsub.f32 %v1432, %v1577
  %v1648 = vsub.f32 %v1437, %v1577
  %v1649 = vsub.f32 %v1442, %v1577
  %v1650 = vsub.f32 %v1447, %v1577
  %v1651 = vsub.f32 %v1452, %v1577
  %v1652 = vsub.f32 %v1457, %v1577
  %v1653 = vsub.f32 %v1462, %v1577
  %v1654 = vsub.f32 %v1467, %v1577
  %v1655 = vsub.f32 %v1472, %v1577
  %v1656 = vsub.f32 %v1477, %v1577
  %v1657 = vsub.f32 %v1482, %v1577
  %v1658 = vsub.f32 %v1487, %v1577
  %v1659 = vmul.f32 %v1578, %v1578
  %v1660 = vmul.f32 %v1579, %v1579
  %v1661 = vmul.f32 %v1580, %v1580
  %v1662 = vmul.f32 %v1581, %v1581
  %v1663 = vmul.f32 %v1582, %v1582
  %v1664 = vmul.f32 %v1583, %v1583
  %v1665 = vmul.f32 %v1584, %v1584
  %v1666 = vmul.f32 %v1585, %v1585
  %v1667 = vmul.f32 %v1586, %v1586
  %v1668 = vmul.f32 %v1587, %v1587
  %v1669 = vmul.f32 %v1588, %v1588
  %v1670 = vmul.f32 %v1589, %v1589
  %v1671 = vmul.f32 %v1590, %v1590
  %v1672 = vmul.f32 %v1591, %v1591
  %v1673 = vmul.f32 %v1592, %v1592
  %v1674 = vmul.f32 %v1593, %v1593
  %v1675 = vmul.f32 %v1594, %v1594
  %v1676 = vmul.f32 %v1595, %v1595
  %v1677 = vmul.f32 %v1596, %v1596
  %v1678 = vmul.f32 %v1597, %v1597
  %v1679 = vmul.f32 %v1598, %v1598
  %v1680 = vmul.f32 %v1599, %v1599
  %v1681 = vmul.f32 %v1600, %v1600
  %v1682 = vmul.f32 %v1601, %v1601
  %v1683 = vmul.f32 %v1602, %v1602
  %v1684 = vmul.f32 %v1603, %v1603
  %v1685 = vmul.f32 %v1604, %v1604
  %v1686 = vmul.f32 %v1605, %v1605
  %v1687 = vmul.f32 %v1606, %v1606
  %v1688 = vmul.f32 %v1607, %v1607
  %v1689 = vmul.f32 %v1608, %v1608
  %v1690 = vmul.f32 %v1609, %v1609
  %v1691 = vmul.f32 %v1610, %v1610
  %v1692 = vmul.f32 %v1611, %v1611
  %v1693 = vmul.f32 %v1612, %v1612
  %v1694 = vmul.f32 %v1613, %v1613
  %v1695 = vmul.f32 %v1614, %v1614
  %v1696 = vmul.f32 %v1615, %v1615
  %v1697 = vmul.f32 %v1616, %v1616
  %v1698 = vmul.f32 %v1617, %v1617
  %v1699 = vmul.f32 %v1618, %v1618
  %v1700 = vmul.f32 %v1619, %v1619
  %v1701 = vmul.f32 %v1620, %v1620
  %v1702 = vmul.f32 %v1621, %v1621
  %v1703 = vmul.f32 %v1622, %v1622
  %v1704 = vmul.f32 %v1623, %v1623
  %v1705 = vmul.f32 %v1624, %v1624
  %v1706 = vmul.f32 %v1625, %v1625
  %v1707 = vmul.f32 %v1626, %v1626
  %v1708 = vmul.f32 %v1627, %v1627
  %v1709 = vmul.f32 %v1628, %v1628
  %v1710 = vmul.f32 %v1629, %v1629
  %v1711 = vmul.f32 %v1630, %v1630
  %v1712 = vmul.f32 %v1631, %v1631
  %v1713 = vmul.f32 %v1632, %v1632
  %v1714 = vmul.f32 %v1633, %v1633
  %v1715 = vmul.f32 %v1634, %v1634
  %v1716 = vmul.f32 %v1635, %v1635
  %v1717 = vmul.f32 %v1636, %v1636
  %v1718 = vmul.f32 %v1637, %v1637
  %v1719 = vmul.f32 %v1638, %v1638
  %v1720 = vmul.f32 %v1639, %v1639
  %v1721 = vmul.f32 %v1640, %v1640
  %v1722 = vmul.f32 %v1641, %v1641
  %v1723 = vmul.f32 %v1642, %v1642
  %v1724 = vmul.f32 %v1643, %v1643
  %v1725 = vmul.f32 %v1644, %v1644
  %v1726 = vmul.f32 %v1645, %v1645
  %v1727 = vmul.f32 %v1646, %v1646
  %v1728 = vmul.f32 %v1647, %v1647
  %v1729 = vmul.f32 %v1648, %v1648
  %v1730 = vmul.f32 %v1649, %v1649
  %v1731 = vmul.f32 %v1650, %v1650
  %v1732 = vmul.f32 %v1651, %v1651
  %v1733 = vmul.f32 %v1652, %v1652
  %v1734 = vmul.f32 %v1653, %v1653
  %v1735 = vmul.f32 %v1654, %v1654
  %v1736 = vmul.f32 %v1655, %v1655
  %v1737 = vmul.f32 %v1656, %v1656
  %v1738 = vmul.f32 %v1657, %v1657
  %v1739 = vmul.f32 %v1658, %v1658
  %v1740 = vadd.f32 %v1659, %v1660
  %v1741 = vadd.f32 %v1740, %v1661
  %v1742 = vadd.f32 %v1741, %v1662
  %v1743 = vadd.f32 %v1742, %v1663
  %v1744 = vadd.f32 %v1743, %v1664
  %v1745 = vadd.f32 %v1744, %v1665
  %v1746 = vadd.f32 %v1745, %v1666
  %v1747 = vadd.f32 %v1746, %v1667
  %v1748 = vadd.f32 %v1747, %v1668
  %v1749 = vadd.f32 %v1748, %v1669
  %v1750 = vadd.f32 %v1749, %v1670
  %v1751 = vadd.f32 %v1750, %v1671
  %v1752 = vadd.f32 %v1751, %v1672
  %v1753 = vadd.f32 %v1752, %v1673
  %v1754 = vadd.f32 %v1753, %v1674
  %v1755 = vadd.f32 %v1754, %v1675
  %v1756 = vadd.f32 %v1755, %v1676
  %v1757 = vadd.f32 %v1756, %v1677
  %v1758 = vadd.f32 %v1757, %v1678
  %v1759 = vadd.f32 %v1758, %v1679
  %v1760 = vadd.f32 %v1759, %v1680
  %v1761 = vadd.f32 %v1760, %v1681
  %v1762 = vadd.f32 %v1761, %v1682
  %v1763 = vadd.f32 %v1762, %v1683
  %v1764 = vadd.f32 %v1763, %v1684
  %v1765 = vadd.f32 %v1764, %v1685
  %v1766 = vadd.f32 %v1765, %v1686
  %v1767 = vadd.f32 %v1766, %v1687
  %v1768 = vadd.f32 %v1767, %v1688
  %v1769 = vadd.f32 %v1768, %v1689
  %v1770 = vadd.f32 %v1769, %v1690
  %v1771 = vadd.f32 %v1770, %v1691
  %v1772 = vadd.f32 %v1771, %v1692
  %v1773 = vadd.f32 %v1772, %v1693
  %v1774 = vadd.f32 %v1773, %v1694
  %v1775 = vadd.f32 %v1774, %v1695
  %v1776 = vadd.f32 %v1775, %v1696
  %v1777 = vadd.f32 %v1776, %v1697
  %v1778 = vadd.f32 %v1777, %v1698
  %v1779 = vadd.f32 %v1778, %v1699
  %v1780 = vadd.f32 %v1779, %v1700
  %v1781 = vadd.f32 %v1780, %v1701
  %v1782 = vadd.f32 %v1781, %v1702
  %v1783 = vadd.f32 %v1782, %v1703
  %v1784 = vadd.f32 %v1783, %v1704
  %v1785 = vadd.f32 %v1784, %v1705
  %v1786 = vadd.f32 %v1785, %v1706
  %v1787 = vadd.f32 %v1786, %v1707
  %v1788 = vadd.f32 %v1787, %v1708
  %v1789 = vadd.f32 %v1788, %v1709
  %v1790 = vadd.f32 %v1789, %v1710
  %v1791 = vadd.f32 %v1790, %v1711
  %v1792 = vadd.f32 %v1791, %v1712
  %v1793 = vadd.f32 %v1792, %v1713
  %v1794 = vadd.f32 %v1793, %v1714
  %v1795 = vadd.f32 %v1794, %v1715
  %v1796 = vadd.f32 %v1795, %v1716
  %v1797 = vadd.f32 %v1796, %v1717
  %v1798 = vadd.f32 %v1797, %v1718
  %v1799 = vadd.f32 %v1798, %v1719
  %v1800 = vadd.f32 %v1799, %v1720
  %v1801 = vadd.f32 %v1800, %v1721
  %v1802 = vadd.f32 %v1801, %v1722
  %v1803 = vadd.f32 %v1802, %v1723
  %v1804 = vadd.f32 %v1803, %v1724
  %v1805 = vadd.f32 %v1804, %v1725
  %v1806 = vadd.f32 %v1805, %v1726
  %v1807 = vadd.f32 %v1806, %v1727
  %v1808 = vadd.f32 %v1807, %v1728
  %v1809 = vadd.f32 %v1808, %v1729
  %v1810 = vadd.f32 %v1809, %v1730
  %v1811 = vadd.f32 %v1810, %v1731
  %v1812 = vadd.f32 %v1811, %v1732
  %v1813 = vadd.f32 %v1812, %v1733
  %v1814 = vadd.f32 %v1813, %v1734
  %v1815 = vadd.f32 %v1814, %v1735
  %v1816 = vadd.f32 %v1815, %v1736
  %v1817 = vadd.f32 %v1816, %v1737
  %v1818 = vadd.f32 %v1817, %v1738
  %v1819 = vadd.f32 %v1818, %v1739
  %v1820 = vrot.slane %v1819, 4
  %v1821 = vadd.f32 %v1819, %v1820
  %v1822 = vrot.slane %v1821, 2
  %v1823 = vadd.f32 %v1821, %v1822
  %v1824 = vrot.slane %v1823, 1
  %v1825 = vadd.f32 %v1823, %v1824
  %v1826 = vmul.f32 %v1825, %v1576
  %v1827 = vld [vmem:[%s3] sm:$0x1]
  %v1828 = vadd.f32 %v1826, 1e-05
  %v1829 = vrsqrt.pop %v1828
  %v1830 = vmul.f32 %v1827, %v1829
  %v1832 = vlaneseq
  %v1833 = vshrl.u32 %v1832, 7
  %v1834 = vsub.s32 0, %v1833
  %v1835 = vrot.slane %v1830, %v1834
  %v1837 = vmul.f32 %v1578, %v1835
  %v1838 = vmul.f32 %v1579, %v1835
  %v1839 = vmul.f32 %v1580, %v1835
  %v1840 = vmul.f32 %v1581, %v1835
  %v1841 = vmul.f32 %v1582, %v1835
  %v1842 = vmul.f32 %v1583, %v1835
  %v1843 = vmul.f32 %v1584, %v1835
  %v1844 = vmul.f32 %v1585, %v1835
  %v1845 = vmul.f32 %v1586, %v1835
  %v1846 = vmul.f32 %v1587, %v1835
  %v1847 = vmul.f32 %v1588, %v1835
  %v1848 = vmul.f32 %v1589, %v1835
  %v1849 = vmul.f32 %v1590, %v1835
  %v1850 = vmul.f32 %v1591, %v1835
  %v1851 = vmul.f32 %v1592, %v1835
  %v1852 = vmul.f32 %v1593, %v1835
  %v1853 = vmul.f32 %v1594, %v1835
  %v1854 = vmul.f32 %v1595, %v1835
  %v1855 = vmul.f32 %v1596, %v1835
  %v1856 = vmul.f32 %v1597, %v1835
  %v1857 = vmul.f32 %v1598, %v1835
  %v1858 = vmul.f32 %v1599, %v1835
  %v1859 = vmul.f32 %v1600, %v1835
  %v1860 = vmul.f32 %v1601, %v1835
  %v1861 = vmul.f32 %v1602, %v1835
  %v1862 = vmul.f32 %v1603, %v1835
  %v1863 = vmul.f32 %v1604, %v1835
  %v1864 = vmul.f32 %v1605, %v1835
  %v1865 = vmul.f32 %v1606, %v1835
  %v1866 = vmul.f32 %v1607, %v1835
  %v1867 = vmul.f32 %v1608, %v1835
  %v1868 = vmul.f32 %v1609, %v1835
  %v1869 = vmul.f32 %v1610, %v1835
  %v1870 = vmul.f32 %v1611, %v1835
  %v1871 = vmul.f32 %v1612, %v1835
  %v1872 = vmul.f32 %v1613, %v1835
  %v1873 = vmul.f32 %v1614, %v1835
  %v1874 = vmul.f32 %v1615, %v1835
  %v1875 = vmul.f32 %v1616, %v1835
  %v1876 = vmul.f32 %v1617, %v1835
  %v1877 = vmul.f32 %v1618, %v1835
  %v1878 = vmul.f32 %v1619, %v1835
  %v1879 = vmul.f32 %v1620, %v1835
  %v1880 = vmul.f32 %v1621, %v1835
  %v1881 = vmul.f32 %v1622, %v1835
  %v1882 = vmul.f32 %v1623, %v1835
  %v1883 = vmul.f32 %v1624, %v1835
  %v1884 = vmul.f32 %v1625, %v1835
  %v1885 = vmul.f32 %v1626, %v1835
  %v1886 = vmul.f32 %v1627, %v1835
  %v1887 = vmul.f32 %v1628, %v1835
  %v1888 = vmul.f32 %v1629, %v1835
  %v1889 = vmul.f32 %v1630, %v1835
  %v1890 = vmul.f32 %v1631, %v1835
  %v1891 = vmul.f32 %v1632, %v1835
  %v1892 = vmul.f32 %v1633, %v1835
  %v1893 = vmul.f32 %v1634, %v1835
  %v1894 = vmul.f32 %v1635, %v1835
  %v1895 = vmul.f32 %v1636, %v1835
  %v1896 = vmul.f32 %v1637, %v1835
  %v1897 = vmul.f32 %v1638, %v1835
  %v1898 = vmul.f32 %v1639, %v1835
  %v1899 = vmul.f32 %v1640, %v1835
  %v1900 = vmul.f32 %v1641, %v1835
  %v1901 = vmul.f32 %v1642, %v1835
  %v1902 = vmul.f32 %v1643, %v1835
  %v1903 = vmul.f32 %v1644, %v1835
  %v1904 = vmul.f32 %v1645, %v1835
  %v1905 = vmul.f32 %v1646, %v1835
  %v1906 = vmul.f32 %v1647, %v1835
  %v1907 = vmul.f32 %v1648, %v1835
  %v1908 = vmul.f32 %v1649, %v1835
  %v1909 = vmul.f32 %v1650, %v1835
  %v1910 = vmul.f32 %v1651, %v1835
  %v1911 = vmul.f32 %v1652, %v1835
  %v1912 = vmul.f32 %v1653, %v1835
  %v1913 = vmul.f32 %v1654, %v1835
  %v1914 = vmul.f32 %v1655, %v1835
  %v1915 = vmul.f32 %v1656, %v1835
  %v1916 = vmul.f32 %v1657, %v1835
  %v1917 = vmul.f32 %v1658, %v1835
  %v1918 = vld [vmem:[%s4] sm:$0x1]
  %v1920 = vlaneseq
  %v1921 = vshrl.u32 %v1920, 7
  %v1922 = vsub.s32 0, %v1921
  %v1923 = vrot.slane %v1918, %v1922
  %v1925 = vadd.f32 %v1837, %v1923
  %v1926 = vadd.f32 %v1838, %v1923
  %v1927 = vadd.f32 %v1839, %v1923
  %v1928 = vadd.f32 %v1840, %v1923
  %v1929 = vadd.f32 %v1841, %v1923
  %v1930 = vadd.f32 %v1842, %v1923
  %v1931 = vadd.f32 %v1843, %v1923
  %v1932 = vadd.f32 %v1844, %v1923
  %v1933 = vadd.f32 %v1845, %v1923
  %v1934 = vadd.f32 %v1846, %v1923
  %v1935 = vadd.f32 %v1847, %v1923
  %v1936 = vadd.f32 %v1848, %v1923
  %v1937 = vadd.f32 %v1849, %v1923
  %v1938 = vadd.f32 %v1850, %v1923
  %v1939 = vadd.f32 %v1851, %v1923
  %v1940 = vadd.f32 %v1852, %v1923
  %v1941 = vadd.f32 %v1853, %v1923
  %v1942 = vadd.f32 %v1854, %v1923
  %v1943 = vadd.f32 %v1855, %v1923
  %v1944 = vadd.f32 %v1856, %v1923
  %v1945 = vadd.f32 %v1857, %v1923
  %v1946 = vadd.f32 %v1858, %v1923
  %v1947 = vadd.f32 %v1859, %v1923
  %v1948 = vadd.f32 %v1860, %v1923
  %v1949 = vadd.f32 %v1861, %v1923
  %v1950 = vadd.f32 %v1862, %v1923
  %v1951 = vadd.f32 %v1863, %v1923
  %v1952 = vadd.f32 %v1864, %v1923
  %v1953 = vadd.f32 %v1865, %v1923
  %v1954 = vadd.f32 %v1866, %v1923
  %v1955 = vadd.f32 %v1867, %v1923
  %v1956 = vadd.f32 %v1868, %v1923
  %v1957 = vadd.f32 %v1869, %v1923
  %v1958 = vadd.f32 %v1870, %v1923
  %v1959 = vadd.f32 %v1871, %v1923
  %v1960 = vadd.f32 %v1872, %v1923
  %v1961 = vadd.f32 %v1873, %v1923
  %v1962 = vadd.f32 %v1874, %v1923
  %v1963 = vadd.f32 %v1875, %v1923
  %v1964 = vadd.f32 %v1876, %v1923
  %v1965 = vadd.f32 %v1877, %v1923
  %v1966 = vadd.f32 %v1878, %v1923
  %v1967 = vadd.f32 %v1879, %v1923
  %v1968 = vadd.f32 %v1880, %v1923
  %v1969 = vadd.f32 %v1881, %v1923
  %v1970 = vadd.f32 %v1882, %v1923
  %v1971 = vadd.f32 %v1883, %v1923
  %v1972 = vadd.f32 %v1884, %v1923
  %v1973 = vadd.f32 %v1885, %v1923
  %v1974 = vadd.f32 %v1886, %v1923
  %v1975 = vadd.f32 %v1887, %v1923
  %v1976 = vadd.f32 %v1888, %v1923
  %v1977 = vadd.f32 %v1889, %v1923
  %v1978 = vadd.f32 %v1890, %v1923
  %v1979 = vadd.f32 %v1891, %v1923
  %v1980 = vadd.f32 %v1892, %v1923
  %v1981 = vadd.f32 %v1893, %v1923
  %v1982 = vadd.f32 %v1894, %v1923
  %v1983 = vadd.f32 %v1895, %v1923
  %v1984 = vadd.f32 %v1896, %v1923
  %v1985 = vadd.f32 %v1897, %v1923
  %v1986 = vadd.f32 %v1898, %v1923
  %v1987 = vadd.f32 %v1899, %v1923
  %v1988 = vadd.f32 %v1900, %v1923
  %v1989 = vadd.f32 %v1901, %v1923
  %v1990 = vadd.f32 %v1902, %v1923
  %v1991 = vadd.f32 %v1903, %v1923
  %v1992 = vadd.f32 %v1904, %v1923
  %v1993 = vadd.f32 %v1905, %v1923
  %v1994 = vadd.f32 %v1906, %v1923
  %v1995 = vadd.f32 %v1907, %v1923
  %v1996 = vadd.f32 %v1908, %v1923
  %v1997 = vadd.f32 %v1909, %v1923
  %v1998 = vadd.f32 %v1910, %v1923
  %v1999 = vadd.f32 %v1911, %v1923
  %v2000 = vadd.f32 %v1912, %v1923
  %v2001 = vadd.f32 %v1913, %v1923
  %v2002 = vadd.f32 %v1914, %v1923
  %v2003 = vadd.f32 %v1915, %v1923
  %v2004 = vadd.f32 %v1916, %v1923
  %v2005 = vadd.f32 %v1917, %v1923
  %vm2006 = vcmp.ge.f32.partialorder %v1925, 0.0
  %vm2007 = vcmp.ge.f32.partialorder %v1926, 0.0
  %vm2008 = vcmp.ge.f32.partialorder %v1927, 0.0
  %vm2009 = vcmp.ge.f32.partialorder %v1928, 0.0
  %vm2010 = vcmp.ge.f32.partialorder %v1929, 0.0
  %vm2011 = vcmp.ge.f32.partialorder %v1930, 0.0
  %vm2012 = vcmp.ge.f32.partialorder %v1931, 0.0
  %vm2013 = vcmp.ge.f32.partialorder %v1932, 0.0
  %vm2014 = vcmp.ge.f32.partialorder %v1933, 0.0
  %vm2015 = vcmp.ge.f32.partialorder %v1934, 0.0
  %vm2016 = vcmp.ge.f32.partialorder %v1935, 0.0
  %vm2017 = vcmp.ge.f32.partialorder %v1936, 0.0
  %vm2018 = vcmp.ge.f32.partialorder %v1937, 0.0
  %vm2019 = vcmp.ge.f32.partialorder %v1938, 0.0
  %vm2020 = vcmp.ge.f32.partialorder %v1939, 0.0
  %vm2021 = vcmp.ge.f32.partialorder %v1940, 0.0
  %vm2022 = vcmp.ge.f32.partialorder %v1941, 0.0
  %vm2023 = vcmp.ge.f32.partialorder %v1942, 0.0
  %vm2024 = vcmp.ge.f32.partialorder %v1943, 0.0
  %vm2025 = vcmp.ge.f32.partialorder %v1944, 0.0
  %vm2026 = vcmp.ge.f32.partialorder %v1945, 0.0
  %vm2027 = vcmp.ge.f32.partialorder %v1946, 0.0
  %vm2028 = vcmp.ge.f32.partialorder %v1947, 0.0
  %vm2029 = vcmp.ge.f32.partialorder %v1948, 0.0
  %vm2030 = vcmp.ge.f32.partialorder %v1949, 0.0
  %vm2031 = vcmp.ge.f32.partialorder %v1950, 0.0
  %vm2032 = vcmp.ge.f32.partialorder %v1951, 0.0
  %vm2033 = vcmp.ge.f32.partialorder %v1952, 0.0
  %vm2034 = vcmp.ge.f32.partialorder %v1953, 0.0
  %vm2035 = vcmp.ge.f32.partialorder %v1954, 0.0
  %vm2036 = vcmp.ge.f32.partialorder %v1955, 0.0
  %vm2037 = vcmp.ge.f32.partialorder %v1956, 0.0
  %vm2038 = vcmp.ge.f32.partialorder %v1957, 0.0
  %vm2039 = vcmp.ge.f32.partialorder %v1958, 0.0
  %vm2040 = vcmp.ge.f32.partialorder %v1959, 0.0
  %vm2041 = vcmp.ge.f32.partialorder %v1960, 0.0
  %vm2042 = vcmp.ge.f32.partialorder %v1961, 0.0
  %vm2043 = vcmp.ge.f32.partialorder %v1962, 0.0
  %vm2044 = vcmp.ge.f32.partialorder %v1963, 0.0
  %vm2045 = vcmp.ge.f32.partialorder %v1964, 0.0
  %vm2046 = vcmp.ge.f32.partialorder %v1965, 0.0
  %vm2047 = vcmp.ge.f32.partialorder %v1966, 0.0
  %vm2048 = vcmp.ge.f32.partialorder %v1967, 0.0
  %vm2049 = vcmp.ge.f32.partialorder %v1968, 0.0
  %vm2050 = vcmp.ge.f32.partialorder %v1969, 0.0
  %vm2051 = vcmp.ge.f32.partialorder %v1970, 0.0
  %vm2052 = vcmp.ge.f32.partialorder %v1971, 0.0
  %vm2053 = vcmp.ge.f32.partialorder %v1972, 0.0
  %vm2054 = vcmp.ge.f32.partialorder %v1973, 0.0
  %vm2055 = vcmp.ge.f32.partialorder %v1974, 0.0
  %vm2056 = vcmp.ge.f32.partialorder %v1975, 0.0
  %vm2057 = vcmp.ge.f32.partialorder %v1976, 0.0
  %vm2058 = vcmp.ge.f32.partialorder %v1977, 0.0
  %vm2059 = vcmp.ge.f32.partialorder %v1978, 0.0
  %vm2060 = vcmp.ge.f32.partialorder %v1979, 0.0
  %vm2061 = vcmp.ge.f32.partialorder %v1980, 0.0
  %vm2062 = vcmp.ge.f32.partialorder %v1981, 0.0
  %vm2063 = vcmp.ge.f32.partialorder %v1982, 0.0
  %vm2064 = vcmp.ge.f32.partialorder %v1983, 0.0
  %vm2065 = vcmp.ge.f32.partialorder %v1984, 0.0
  %vm2066 = vcmp.ge.f32.partialorder %v1985, 0.0
  %vm2067 = vcmp.ge.f32.partialorder %v1986, 0.0
  %vm2068 = vcmp.ge.f32.partialorder %v1987, 0.0
  %vm2069 = vcmp.ge.f32.partialorder %v1988, 0.0
  %vm2070 = vcmp.ge.f32.partialorder %v1989, 0.0
  %vm2071 = vcmp.ge.f32.partialorder %v1990, 0.0
  %vm2072 = vcmp.ge.f32.partialorder %v1991, 0.0
  %vm2073 = vcmp.ge.f32.partialorder %v1992, 0.0
  %vm2074 = vcmp.ge.f32.partialorder %v1993, 0.0
  %vm2075 = vcmp.ge.f32.partialorder %v1994, 0.0
  %vm2076 = vcmp.ge.f32.partialorder %v1995, 0.0
  %vm2077 = vcmp.ge.f32.partialorder %v1996, 0.0
  %vm2078 = vcmp.ge.f32.partialorder %v1997, 0.0
  %vm2079 = vcmp.ge.f32.partialorder %v1998, 0.0
  %vm2080 = vcmp.ge.f32.partialorder %v1999, 0.0
  %vm2081 = vcmp.ge.f32.partialorder %v2000, 0.0
  %vm2082 = vcmp.ge.f32.partialorder %v2001, 0.0
  %vm2083 = vcmp.ge.f32.partialorder %v2002, 0.0
  %vm2084 = vcmp.ge.f32.partialorder %v2003, 0.0
  %vm2085 = vcmp.ge.f32.partialorder %v2004, 0.0
  %vm2086 = vcmp.ge.f32.partialorder %v2005, 0.0
  %v2087 = vmul.f32 %v1925, 0.2
  %v2088 = vmul.f32 %v1926, 0.2
  %v2089 = vmul.f32 %v1927, 0.2
  %v2090 = vmul.f32 %v1928, 0.2
  %v2091 = vmul.f32 %v1929, 0.2
  %v2092 = vmul.f32 %v1930, 0.2
  %v2093 = vmul.f32 %v1931, 0.2
  %v2094 = vmul.f32 %v1932, 0.2
  %v2095 = vmul.f32 %v1933, 0.2
  %v2096 = vmul.f32 %v1934, 0.2
  %v2097 = vmul.f32 %v1935, 0.2
  %v2098 = vmul.f32 %v1936, 0.2
  %v2099 = vmul.f32 %v1937, 0.2
  %v2100 = vmul.f32 %v1938, 0.2
  %v2101 = vmul.f32 %v1939, 0.2
  %v2102 = vmul.f32 %v1940, 0.2
  %v2103 = vmul.f32 %v1941, 0.2
  %v2104 = vmul.f32 %v1942, 0.2
  %v2105 = vmul.f32 %v1943, 0.2
  %v2106 = vmul.f32 %v1944, 0.2
  %v2107 = vmul.f32 %v1945, 0.2
  %v2108 = vmul.f32 %v1946, 0.2
  %v2109 = vmul.f32 %v1947, 0.2
  %v2110 = vmul.f32 %v1948, 0.2
  %v2111 = vmul.f32 %v1949, 0.2
  %v2112 = vmul.f32 %v1950, 0.2
  %v2113 = vmul.f32 %v1951, 0.2
  %v2114 = vmul.f32 %v1952, 0.2
  %v2115 = vmul.f32 %v1953, 0.2
  %v2116 = vmul.f32 %v1954, 0.2
  %v2117 = vmul.f32 %v1955, 0.2
  %v2118 = vmul.f32 %v1956, 0.2
  %v2119 = vmul.f32 %v1957, 0.2
  %v2120 = vmul.f32 %v1958, 0.2
  %v2121 = vmul.f32 %v1959, 0.2
  %v2122 = vmul.f32 %v1960, 0.2
  %v2123 = vmul.f32 %v1961, 0.2
  %v2124 = vmul.f32 %v1962, 0.2
  %v2125 = vmul.f32 %v1963, 0.2
  %v2126 = vmul.f32 %v1964, 0.2
  %v2127 = vmul.f32 %v1965, 0.2
  %v2128 = vmul.f32 %v1966, 0.2
  %v2129 = vmul.f32 %v1967, 0.2
  %v2130 = vmul.f32 %v1968, 0.2
  %v2131 = vmul.f32 %v1969, 0.2
  %v2132 = vmul.f32 %v1970, 0.2
  %v2133 = vmul.f32 %v1971, 0.2
  %v2134 = vmul.f32 %v1972, 0.2
  %v2135 = vmul.f32 %v1973, 0.2
  %v2136 = vmul.f32 %v1974, 0.2
  %v2137 = vmul.f32 %v1975, 0.2
  %v2138 = vmul.f32 %v1976, 0.2
  %v2139 = vmul.f32 %v1977, 0.2
  %v2140 = vmul.f32 %v1978, 0.2
  %v2141 = vmul.f32 %v1979, 0.2
  %v2142 = vmul.f32 %v1980, 0.2
  %v2143 = vmul.f32 %v1981, 0.2
  %v2144 = vmul.f32 %v1982, 0.2
  %v2145 = vmul.f32 %v1983, 0.2
  %v2146 = vmul.f32 %v1984, 0.2
  %v2147 = vmul.f32 %v1985, 0.2
  %v2148 = vmul.f32 %v1986, 0.2
  %v2149 = vmul.f32 %v1987, 0.2
  %v2150 = vmul.f32 %v1988, 0.2
  %v2151 = vmul.f32 %v1989, 0.2
  %v2152 = vmul.f32 %v1990, 0.2
  %v2153 = vmul.f32 %v1991, 0.2
  %v2154 = vmul.f32 %v1992, 0.2
  %v2155 = vmul.f32 %v1993, 0.2
  %v2156 = vmul.f32 %v1994, 0.2
  %v2157 = vmul.f32 %v1995, 0.2
  %v2158 = vmul.f32 %v1996, 0.2
  %v2159 = vmul.f32 %v1997, 0.2
  %v2160 = vmul.f32 %v1998, 0.2
  %v2161 = vmul.f32 %v1999, 0.2
  %v2162 = vmul.f32 %v2000, 0.2
  %v2163 = vmul.f32 %v2001, 0.2
  %v2164 = vmul.f32 %v2002, 0.2
  %v2165 = vmul.f32 %v2003, 0.2
  %v2166 = vmul.f32 %v2004, 0.2
  %v2167 = vmul.f32 %v2005, 0.2
  %v2168 = vsel %vm2006, %v1925, %v2087
  %v2169 = vsel %vm2007, %v1926, %v2088
  %v2170 = vsel %vm2008, %v1927, %v2089
  %v2171 = vsel %vm2009, %v1928, %v2090
  %v2172 = vsel %vm2010, %v1929, %v2091
  %v2173 = vsel %vm2011, %v1930, %v2092
  %v2174 = vsel %vm2012, %v1931, %v2093
  %v2175 = vsel %vm2013, %v1932, %v2094
  %v2176 = vsel %vm2014, %v1933, %v2095
  %v2177 = vsel %vm2015, %v1934, %v2096
  %v2178 = vsel %vm2016, %v1935, %v2097
  %v2179 = vsel %vm2017, %v1936, %v2098
  %v2180 = vsel %vm2018, %v1937, %v2099
  %v2181 = vsel %vm2019, %v1938, %v2100
  %v2182 = vsel %vm2020, %v1939, %v2101
  %v2183 = vsel %vm2021, %v1940, %v2102
  %v2184 = vsel %vm2022, %v1941, %v2103
  %v2185 = vsel %vm2023, %v1942, %v2104
  %v2186 = vsel %vm2024, %v1943, %v2105
  %v2187 = vsel %vm2025, %v1944, %v2106
  %v2188 = vsel %vm2026, %v1945, %v2107
  %v2189 = vsel %vm2027, %v1946, %v2108
  %v2190 = vsel %vm2028, %v1947, %v2109
  %v2191 = vsel %vm2029, %v1948, %v2110
  %v2192 = vsel %vm2030, %v1949, %v2111
  %v2193 = vsel %vm2031, %v1950, %v2112
  %v2194 = vsel %vm2032, %v1951, %v2113
  %v2195 = vsel %vm2033, %v1952, %v2114
  %v2196 = vsel %vm2034, %v1953, %v2115
  %v2197 = vsel %vm2035, %v1954, %v2116
  %v2198 = vsel %vm2036, %v1955, %v2117
  %v2199 = vsel %vm2037, %v1956, %v2118
  %v2200 = vsel %vm2038, %v1957, %v2119
  %v2201 = vsel %vm2039, %v1958, %v2120
  %v2202 = vsel %vm2040, %v1959, %v2121
  %v2203 = vsel %vm2041, %v1960, %v2122
  %v2204 = vsel %vm2042, %v1961, %v2123
  %v2205 = vsel %vm2043, %v1962, %v2124
  %v2206 = vsel %vm2044, %v1963, %v2125
  %v2207 = vsel %vm2045, %v1964, %v2126
  %v2208 = vsel %vm2046, %v1965, %v2127
  %v2209 = vsel %vm2047, %v1966, %v2128
  %v2210 = vsel %vm2048, %v1967, %v2129
  %v2211 = vsel %vm2049, %v1968, %v2130
  %v2212 = vsel %vm2050, %v1969, %v2131
  %v2213 = vsel %vm2051, %v1970, %v2132
  %v2214 = vsel %vm2052, %v1971, %v2133
  %v2215 = vsel %vm2053, %v1972, %v2134
  %v2216 = vsel %vm2054, %v1973, %v2135
  %v2217 = vsel %vm2055, %v1974, %v2136
  %v2218 = vsel %vm2056, %v1975, %v2137
  %v2219 = vsel %vm2057, %v1976, %v2138
  %v2220 = vsel %vm2058, %v1977, %v2139
  %v2221 = vsel %vm2059, %v1978, %v2140
  %v2222 = vsel %vm2060, %v1979, %v2141
  %v2223 = vsel %vm2061, %v1980, %v2142
  %v2224 = vsel %vm2062, %v1981, %v2143
  %v2225 = vsel %vm2063, %v1982, %v2144
  %v2226 = vsel %vm2064, %v1983, %v2145
  %v2227 = vsel %vm2065, %v1984, %v2146
  %v2228 = vsel %vm2066, %v1985, %v2147
  %v2229 = vsel %vm2067, %v1986, %v2148
  %v2230 = vsel %vm2068, %v1987, %v2149
  %v2231 = vsel %vm2069, %v1988, %v2150
  %v2232 = vsel %vm2070, %v1989, %v2151
  %v2233 = vsel %vm2071, %v1990, %v2152
  %v2234 = vsel %vm2072, %v1991, %v2153
  %v2235 = vsel %vm2073, %v1992, %v2154
  %v2236 = vsel %vm2074, %v1993, %v2155
  %v2237 = vsel %vm2075, %v1994, %v2156
  %v2238 = vsel %vm2076, %v1995, %v2157
  %v2239 = vsel %vm2077, %v1996, %v2158
  %v2240 = vsel %vm2078, %v1997, %v2159
  %v2241 = vsel %vm2079, %v1998, %v2160
  %v2242 = vsel %vm2080, %v1999, %v2161
  %v2243 = vsel %vm2081, %v2000, %v2162
  %v2244 = vsel %vm2082, %v2001, %v2163
  %v2245 = vsel %vm2083, %v2002, %v2164
  %v2246 = vsel %vm2084, %v2003, %v2165
  %v2247 = vsel %vm2085, %v2004, %v2166
  %v2248 = vsel %vm2086, %v2005, %v2167
  %2249 = vst [vmem:[%s5] sm:$0xff] %v2168
  %2250 = vst [vmem:[%s5 + $0x8] sm:$0xff] %v2169
  %2251 = vst [vmem:[%s5 + $0x10] sm:$0xff] %v2170
  %2252 = vst [vmem:[%s5 + $0x18] sm:$0xff] %v2171
  %2253 = vst [vmem:[%s5 + $0x20] sm:$0xff] %v2172
  %2254 = vst [vmem:[%s5 + $0x28] sm:$0xff] %v2173
  %2255 = vst [vmem:[%s5 + $0x30] sm:$0xff] %v2174
  %2256 = vst [vmem:[%s5 + $0x38] sm:$0xff] %v2175
  %2257 = vst [vmem:[%s5 + $0x40] sm:$0xff] %v2176
  %2258 = vst [vmem:[%s5 + $0x48] sm:$0xff] %v2177
  %2259 = vst [vmem:[%s5 + $0x50] sm:$0xff] %v2178
  %2260 = vst [vmem:[%s5 + $0x58] sm:$0xff] %v2179
  %2261 = vst [vmem:[%s5 + $0x60] sm:$0xff] %v2180
  %2262 = vst [vmem:[%s5 + $0x68] sm:$0xff] %v2181
  %2263 = vst [vmem:[%s5 + $0x70] sm:$0xff] %v2182
  %2264 = vst [vmem:[%s5 + $0x78] sm:$0xff] %v2183
  %2265 = vst [vmem:[%s5 + $0x80] sm:$0xff] %v2184
  %2266 = vst [vmem:[%s5 + $0x88] sm:$0xff] %v2185
  %2267 = vst [vmem:[%s5 + $0x90] sm:$0xff] %v2186
  %2268 = vst [vmem:[%s5 + $0x98] sm:$0xff] %v2187
  %2269 = vst [vmem:[%s5 + $0xa0] sm:$0xff] %v2188
  %2270 = vst [vmem:[%s5 + $0xa8] sm:$0xff] %v2189
  %2271 = vst [vmem:[%s5 + $0xb0] sm:$0xff] %v2190
  %2272 = vst [vmem:[%s5 + $0xb8] sm:$0xff] %v2191
  %2273 = vst [vmem:[%s5 + $0xc0] sm:$0xff] %v2192
  %2274 = vst [vmem:[%s5 + $0xc8] sm:$0xff] %v2193
  %2275 = vst [vmem:[%s5 + $0xd0] sm:$0xff] %v2194
  %2276 = vst [vmem:[%s5 + $0xd8] sm:$0xff] %v2195
  %2277 = vst [vmem:[%s5 + $0xe0] sm:$0xff] %v2196
  %2278 = vst [vmem:[%s5 + $0xe8] sm:$0xff] %v2197
  %2279 = vst [vmem:[%s5 + $0xf0] sm:$0xff] %v2198
  %2280 = vst [vmem:[%s5 + $0xf8] sm:$0xff] %v2199
  %2281 = vst [vmem:[%s5 + $0x100] sm:$0xff] %v2200
  %2282 = vst [vmem:[%s5 + $0x108] sm:$0xff] %v2201
  %2283 = vst [vmem:[%s5 + $0x110] sm:$0xff] %v2202
  %2284 = vst [vmem:[%s5 + $0x118] sm:$0xff] %v2203
  %2285 = vst [vmem:[%s5 + $0x120] sm:$0xff] %v2204
  %2286 = vst [vmem:[%s5 + $0x128] sm:$0xff] %v2205
  %2287 = vst [vmem:[%s5 + $0x130] sm:$0xff] %v2206
  %2288 = vst [vmem:[%s5 + $0x138] sm:$0xff] %v2207
  %2289 = vst [vmem:[%s5 + $0x140] sm:$0xff] %v2208
  %2290 = vst [vmem:[%s5 + $0x148] sm:$0xff] %v2209
  %2291 = vst [vmem:[%s5 + $0x150] sm:$0xff] %v2210
  %2292 = vst [vmem:[%s5 + $0x158] sm:$0xff] %v2211
  %2293 = vst [vmem:[%s5 + $0x160] sm:$0xff] %v2212
  %2294 = vst [vmem:[%s5 + $0x168] sm:$0xff] %v2213
  %2295 = vst [vmem:[%s5 + $0x170] sm:$0xff] %v2214
  %2296 = vst [vmem:[%s5 + $0x178] sm:$0xff] %v2215
  %2297 = vst [vmem:[%s5 + $0x180] sm:$0xff] %v2216
  %2298 = vst [vmem:[%s5 + $0x188] sm:$0xff] %v2217
  %2299 = vst [vmem:[%s5 + $0x190] sm:$0xff] %v2218
  %2300 = vst [vmem:[%s5 + $0x198] sm:$0xff] %v2219
  %2301 = vst [vmem:[%s5 + $0x1a0] sm:$0xff] %v2220
  %2302 = vst [vmem:[%s5 + $0x1a8] sm:$0xff] %v2221
  %2303 = vst [vmem:[%s5 + $0x1b0] sm:$0xff] %v2222
  %2304 = vst [vmem:[%s5 + $0x1b8] sm:$0xff] %v2223
  %2305 = vst [vmem:[%s5 + $0x1c0] sm:$0xff] %v2224
  %2306 = vst [vmem:[%s5 + $0x1c8] sm:$0xff] %v2225
  %2307 = vst [vmem:[%s5 + $0x1d0] sm:$0xff] %v2226
  %2308 = vst [vmem:[%s5 + $0x1d8] sm:$0xff] %v2227
  %2309 = vst [vmem:[%s5 + $0x1e0] sm:$0xff] %v2228
  %2310 = vst [vmem:[%s5 + $0x1e8] sm:$0xff] %v2229
  %2311 = vst [vmem:[%s5 + $0x1f0] sm:$0xff] %v2230
  %2312 = vst [vmem:[%s5 + $0x1f8] sm:$0xff] %v2231
  %2313 = vst [vmem:[%s5 + $0x200] sm:$0xff] %v2232
  %2314 = vst [vmem:[%s5 + $0x208] sm:$0xff] %v2233
  %2315 = vst [vmem:[%s5 + $0x210] sm:$0xff] %v2234
  %2316 = vst [vmem:[%s5 + $0x218] sm:$0xff] %v2235
  %2317 = vst [vmem:[%s5 + $0x220] sm:$0xff] %v2236
  %2318 = vst [vmem:[%s5 + $0x228] sm:$0xff] %v2237
  %2319 = vst [vmem:[%s5 + $0x230] sm:$0xff] %v2238
  %2320 = vst [vmem:[%s5 + $0x238] sm:$0xff] %v2239
  %2321 = vst [vmem:[%s5 + $0x240] sm:$0xff] %v2240
  %2322 = vst [vmem:[%s5 + $0x248] sm:$0xff] %v2241
  %2323 = vst [vmem:[%s5 + $0x250] sm:$0xff] %v2242
  %2324 = vst [vmem:[%s5 + $0x258] sm:$0xff] %v2243
  %2325 = vst [vmem:[%s5 + $0x260] sm:$0xff] %v2244
  %2326 = vst [vmem:[%s5 + $0x268] sm:$0xff] %v2245
  %2327 = vst [vmem:[%s5 + $0x270] sm:$0xff] %v2246
  %2328 = vst [vmem:[%s5 + $0x278] sm:$0xff] %v2247
  %2329 = vst [vmem:[%s5 + $0x280] sm:$0xff] %v2248
  // Predicated region
  $region22: #{_lambda_.5} parent=0 // pred_check
    _
  $region23: #{_lambda_.5} parent=0 // pred_check_branch
    %2331 = sbr.rel (0) target = $region25
  $region24: #{_lambda_.5} parent=0 // pred_region
    _
  $region25: #{_lambda_.5} parent=0 // pred_fallthru
    _
  // Predicated region
  $region26: #{_lambda_.5} parent=0 // pred_check
    _
  $region27: #{_lambda_.5} parent=0 // pred_check_branch
    %2333 = sbr.rel (0) target = $region29
  $region28: #{_lambda_.5} parent=0 // pred_region
    _
  $region29: #{_lambda_.5} parent=0 // pred_fallthru
    _

// kernel: _lambda_.7
$region0: #{_lambda_.7}
  #allocation0 [shape = 'u32[]', space=smem, size = 0x4, offset = 0x4, fixed_abs, tag = 'smem constant byte address 0x4 - core index']
  #allocation1 [shape = 'u32[144,128]{1,0:T(1,128)}', space=vmem, size = 0x12000, scoped, tag = 'internal scratch']
  #allocation2 [shape = 'f32[1,1]{1,0:T(1,128)S(1)}', space=vmem, size = 0x200, scoped, tag = 'scoped memory for _lambda_.7']
  %s0 = inlined_call_operand.vmem [shape: f32[2,1024], index: 0, kind: input, shape index: {}]
  %s1 = inlined_call_operand.vmem [shape: f32[1,1024], index: 1, kind: input, shape index: {}]
  %s2 = inlined_call_operand.<no memory space> [shape: f32[1,1], index: 2, kind: input, shape index: {}]
  %s3 = inlined_call_operand.vmem [shape: f32[2,1], index: 3, kind: output, shape index: {}]
  %s4 = sld [smem:[#allocation0]]
  $region34: #{_lambda_.7} parent=0
    _
  %s6 = ssub.s32 1, %s4
  %s7 = scalar_select 0, %s6, %s4
  %v8 = vstv %s2
  %9 = vst [vmem:[#allocation2] sm:$0x1] %v8
  // Predicated region
  $region2: #{_lambda_.7} parent=0 // pred_check
    _
  $region3: #{_lambda_.7} parent=0 // pred_check_branch
    %11 = sbr.rel (0) target = $region5
  $region4: #{_lambda_.7} parent=0 // pred_region
    _
  $region5: #{_lambda_.7} parent=0 // pred_fallthru
    _
  // Predicated region
  $region6: #{_lambda_.7} parent=0 // pred_check
    _
  $region7: #{_lambda_.7} parent=0 // pred_check_branch
    %13 = sbr.rel (0) target = $region9
  $region8: #{_lambda_.7} parent=0 // pred_region
    _
  $region9: #{_lambda_.7} parent=0 // pred_fallthru
    _
  // Predicated region
  $region10: #{_lambda_.7} parent=0 // pred_check
    _
  $region11: #{_lambda_.7} parent=0 // pred_check_branch
    %15 = sbr.rel (0) target = $region13
  $region12: #{_lambda_.7} parent=0 // pred_region
    _
  $region13: #{_lambda_.7} parent=0 // pred_fallthru
    _
  %v16 = vld [vmem:[%s0] sm:$0xff]
  %v17 = vld [vmem:[%s0 + $0x8] sm:$0xff]
  %v18 = vld [vmem:[%s1] sm:$0xff]
  %v20 = vlaneseq
  %v21 = vshrl.u32 %v20, 7
  %v22 = vsub.s32 0, %v21
  %v23 = vrot.slane %v18, %v22
  %v24 = vlaneseq
  %v25 = vshrl.u32 %v24, 7
  %v26 = vsub.s32 1, %v25
  %v27 = vrot.slane %v18, %v26
  %v28 = vlaneseq
  %v29 = vshrl.u32 %v28, 7
  %v30 = vsub.s32 2, %v29
  %v31 = vrot.slane %v18, %v30
  %v32 = vlaneseq
  %v33 = vshrl.u32 %v32, 7
  %v34 = vsub.s32 3, %v33
  %v35 = vrot.slane %v18, %v34
  %v36 = vlaneseq
  %v37 = vshrl.u32 %v36, 7
  %v38 = vsub.s32 4, %v37
  %v39 = vrot.slane %v18, %v38
  %v40 = vlaneseq
  %v41 = vshrl.u32 %v40, 7
  %v42 = vsub.s32 5, %v41
  %v43 = vrot.slane %v18, %v42
  %v44 = vlaneseq
  %v45 = vshrl.u32 %v44, 7
  %v46 = vsub.s32 6, %v45
  %v47 = vrot.slane %v18, %v46
  %v48 = vlaneseq
  %v49 = vshrl.u32 %v48, 7
  %v50 = vsub.s32 7, %v49
  %v51 = vrot.slane %v18, %v50
  %v52 = vcombine.low %v23, %v27
  %v53 = vcombine.low %v31, %v35
  %v55 = vunpack.c.l.s4 1983009808
  %v56 = vunpack.c.0.s8 %v55
  %v57 = vlaneseq
  %v58 = vshrl.u32 %v57, 7
  %v59 = vsub.s32 %v56, %v58
  %v60 = vrot.slane %v52, %v59
  %v62 = vunpack.c.l.s4 1983009808
  %v63 = vunpack.c.0.s8 %v62
  %v64 = vlaneseq
  %v65 = vshrl.u32 %v64, 7
  %v66 = vsub.s32 %v63, %v65
  %v67 = vrot.slane %v53, %v66
  %v68 = vcombine.low %v60, %v67
  %v69 = vcombine.low %v39, %v43
  %v70 = vcombine.low %v47, %v51
  %v72 = vunpack.c.l.s4 1983009808
  %v73 = vunpack.c.0.s8 %v72
  %v74 = vlaneseq
  %v75 = vshrl.u32 %v74, 7
  %v76 = vsub.s32 %v73, %v75
  %v77 = vrot.slane %v69, %v76
  %v79 = vunpack.c.l.s4 1983009808
  %v80 = vunpack.c.0.s8 %v79
  %v81 = vlaneseq
  %v82 = vshrl.u32 %v81, 7
  %v83 = vsub.s32 %v80, %v82
  %v84 = vrot.slane %v70, %v83
  %v85 = vcombine.low %v77, %v84
  %v88 = vmul.f32 %v16, %v68
  %v89 = vmul.f32 %v17, %v85
  %v92 = vcombine.high %v88, %v88
  %v94 = vunpack.c.l.s4 1983009808
  %v95 = vunpack.c.0.s8 %v94
  %v96 = vlaneseq
  %v97 = vshrl.u32 %v96, 7
  %v98 = vsub.s32 %v95, %v97
  %v99 = vrot.slane %v88, %v98
  %v101 = vunpack.c.l.s4 1983009808
  %v102 = vunpack.c.0.s8 %v101
  %v103 = vlaneseq
  %v104 = vshrl.u32 %v103, 7
  %v105 = vsub.s32 %v102, %v104
  %v106 = vrot.slane %v92, %v105
  %v107 = vcombine.high %v99, %v99
  %v108 = vcombine.high %v106, %v106
  %v109 = vcombine.high %v89, %v89
  %v111 = vunpack.c.l.s4 1983009808
  %v112 = vunpack.c.0.s8 %v111
  %v113 = vlaneseq
  %v114 = vshrl.u32 %v113, 7
  %v115 = vsub.s32 %v112, %v114
  %v116 = vrot.slane %v89, %v115
  %v118 = vunpack.c.l.s4 1983009808
  %v119 = vunpack.c.0.s8 %v118
  %v120 = vlaneseq
  %v121 = vshrl.u32 %v120, 7
  %v122 = vsub.s32 %v119, %v121
  %v123 = vrot.slane %v109, %v122
  %v124 = vcombine.high %v116, %v116
  %v125 = vcombine.high %v123, %v123
  %vm134 = vcmask 1041408
  %v135 = vsel %vm134, %v99, 0.0
  %v136 = vsel %vm134, %v107, 0.0
  %v137 = vadd.f32 %v135, %v136
  %v138 = vsel %vm134, %v106, 0.0
  %v139 = vadd.f32 %v137, %v138
  %v140 = vsel %vm134, %v108, 0.0
  %v141 = vadd.f32 %v139, %v140
  %v142 = vsel %vm134, %v116, 0.0
  %v143 = vadd.f32 %v141, %v142
  %v144 = vsel %vm134, %v124, 0.0
  %v145 = vadd.f32 %v143, %v144
  %v146 = vsel %vm134, %v123, 0.0
  %v147 = vadd.f32 %v145, %v146
  %v148 = vsel %vm134, %v125, 0.0
  %v149 = vadd.f32 %v147, %v148
  %150 = vadd.xlane.f32.xlu0 %v149
  %v151 = vpop.xlane.xlu0 %150
  %p152 = scmp.eq.s32.totalorder 0, 0
  // Predicated region
  $region14: #{_lambda_.7} parent=0 // pred_check
    %p153 = pneg %p152
  $region15: #{_lambda_.7} parent=0 // pred_check_branch
    %155 = sbr.rel (%p153) target = $region17
  $region16: #{_lambda_.7} parent=0 // pred_region
    %vm156 = vcmask 1024
    %157 = vst.msk [vmem:[%s3] sm:$0x3] %vm156, %v151
  $region17: #{_lambda_.7} parent=0 // pred_fallthru
    _
  %p158 = scmp.ne.s32.totalorder 0, 0
  // Predicated region
  $region18: #{_lambda_.7} parent=0 // pred_check
    %p159 = pneg %p158
  $region19: #{_lambda_.7} parent=0 // pred_check_branch
    %161 = sbr.rel (%p159) target = $region21
  $region20: #{_lambda_.7} parent=0 // pred_region
    %v162 = vld [vmem:[%s3] sm:$0x3]
    %v163 = vadd.f32 %v162, %v151
    %vm164 = vcmask 1024
    %165 = vst.msk [vmem:[%s3] sm:$0x3] %vm164, %v163
  $region21: #{_lambda_.7} parent=0 // pred_fallthru
    _
  // Predicated region
  $region22: #{_lambda_.7} parent=0 // pred_check
    %p166 = pneg %p152
  $region23: #{_lambda_.7} parent=0 // pred_check_branch
    %168 = sbr.rel (%p166) target = $region25
  $region24: #{_lambda_.7} parent=0 // pred_region
    %v169 = vld [vmem:[%s3] sm:$0x3]
    %v170 = vld [vmem:[#allocation2] sm:$0x1]
    %v172 = vlaneseq
    %v173 = vshrl.u32 %v172, 7
    %v174 = vsub.s32 0, %v173
    %v175 = vrot.slane %v170, %v174
    %v177 = vadd.f32 %v169, %v175
    %v178 = vxor.u32 %v177, 2147483648
    %v179 = vmul.f32 %v178, 1.442695
    %v180 = vpow.pop %v179
    %v181 = vadd.f32 %v180, 1.0
    %v182 = vrcp.pop %v181
    %v183 = vmul.f32 1.0, %v182
    %vm184 = vcmask 1024
    %185 = vst.msk [vmem:[%s3] sm:$0x3] %vm184, %v183
  $region25: #{_lambda_.7} parent=0 // pred_fallthru
    _
  // Predicated region
  $region26: #{_lambda_.7} parent=0 // pred_check
    _
  $region27: #{_lambda_.7} parent=0 // pred_check_branch
    %187 = sbr.rel (0) target = $region29
  $region28: #{_lambda_.7} parent=0 // pred_region
    _
  $region29: #{_lambda_.7} parent=0 // pred_fallthru
    _
  // Predicated region
  $region30: #{_lambda_.7} parent=0 // pred_check
    _
  $region31: #{_lambda_.7} parent=0 // pred_check_branch
    %189 = sbr.rel (0) target = $region33
  $region32: #{_lambda_.7} parent=0 // pred_region
    _
  $region33: #{_lambda_.7} parent=0 // pred_fallthru
    _

// kernel: _lambda_.6
$region0: #{_lambda_.6}
  #allocation0 [shape = 'u32[]', space=smem, size = 0x4, offset = 0x4, fixed_abs, tag = 'smem constant byte address 0x4 - core index']
  #allocation1 [shape = 'u32[144,128]{1,0:T(1,128)}', space=vmem, size = 0x12000, scoped, tag = 'internal scratch']
  %s0 = inlined_call_operand.vmem [shape: f32[2,41472], index: 0, kind: input, shape index: {}]
  %s1 = inlined_call_operand.hbm [shape: f32[1024,41472], index: 1, kind: input, shape index: {}]
  %s2 = inlined_call_operand.vmem [shape: f32[1,1024], index: 2, kind: input, shape index: {}]
  %s3 = inlined_call_operand.vmem [shape: f32[2,1024], index: 3, kind: output, shape index: {}]
  %s4 = sld [smem:[#allocation0]]
  $region61: #{_lambda_.6} parent=0
    _
  %s6 = ssub.s32 1, %s4
  %s7 = scalar_select 0, %s6, %s4
  $region1: #{_lambda_.6} parent=0
    #allocation2 [shape = 'u8[9437184]{0}', space=vmem, size = 0x900000, scoped, tag = 'input window, operand 1']
    #allocation3 [shape = 's32[2]{0}', space=sflag, size = 0x8, scoped, tag = 'scoped memory for _lambda_.6']
    %8 = vsyncpa [#allocation3], 0
    %s9 = scalar_lea.sflag [#allocation3], 1
    %10 = vsyncpa %s9, 0
    loop: start=0, step=1, limit=38
    $region2: #{_lambda_.6} parent=1 // loop_pre_header
      _
    $region3: #{_lambda_.6} parent=1 // loop_header
      %s12 = sphi 0, %s16
      %p13 = scmp.ge.s32.totalorder %s12, 38
      %s19 = sphi 0, %s31
      %s20 = sphi 0, %s27
      %s21 = sphi 0, %s19
      %s22 = sphi 0, %s20
      %s23 = sphi 0, %s21
      %s24 = sphi 0, %s22
      %s34 = sphi 0, %s36
      %s37 = sphi 0, %s34
      %s38 = sphi 0, %s37
      %s54 = sphi 0, %s38
      %s62 = sphi 0, %s64
      %s65 = sphi 0, %s62
      %s66 = sphi 0, %s65
      %s82 = sphi 0, %s66
      %s88 = sphi 0, %s90
      %s91 = sphi 0, %s88
      %s92 = sphi 0, %s91
      %s108 = sphi 0, %s92
      %s114 = sphi 0, %s116
      %s117 = sphi 0, %s114
      %s118 = sphi 0, %s117
      %s134 = sphi 0, %s118
    $region4: #{_lambda_.6} parent=1 // loop_header_branch
      %15 = sbr.rel (%p13) target = $region8
    $region5: #{_lambda_.6} parent=1 // loop_body
      %s17 = ssub.s32 %s12, 1
      %s18 = ssub.s32 %s12, 2
      %s25 = sadd.s32 1, %s20
      %p26 = scmp.ge.s32.totalorder %s25, 18
      %s27 = scalar_select %p26, 0, %s25
      %s28 = sadd.s32 1, %s19
      %s29 = scalar_select %p26, %s28, %s19
      %p30 = scmp.ge.s32.totalorder %s29, 2
      %s31 = scalar_select %p30, 0, %s29
      %s32 = ssub.s32 %s20, %s27
      %p33 = scmp.eq.s32.totalorder %s32, 0
      %s35 = sadd.s32 %s34, 1
      %s36 = scalar_select %p33, %s34, %s35
      %p39 = pneg %p33
      %p40 = scmp.eq.s32.totalorder %s12, 35
      %p41 = por %p39, %p40
      %p42 = scmp.ne.s32.totalorder %s34, %s37
      %p43 = scmp.eq.s32.totalorder %s12, 0
      %p44 = por %p42, %p43
      %p45 = scmp.ne.s32.totalorder %s34, %s37
      %p46 = scmp.eq.s32.totalorder %s17, 35
      %p47 = por %p45, %p46
      %p48 = scmp.ne.s32.totalorder %s37, %s38
      %p49 = scmp.eq.s32.totalorder %s17, 0
      %p50 = por %p48, %p49
      %p51 = scmp.ne.s32.totalorder %s37, %s38
      %p52 = scmp.eq.s32.totalorder %s18, 35
      %p53 = por %p51, %p52
      %p55 = scmp.ne.s32.totalorder %s38, %s54
      %p56 = scmp.eq.s32.totalorder %s18, 0
      %p57 = por %p55, %p56
      %s58 = ssub.s32 %s19, %s31
      %s59 = ssub.s32 %s20, %s27
      %s60 = sor.u32 %s58, %s59
      %p61 = scmp.eq.s32.totalorder %s60, 0
      %s63 = sadd.s32 %s62, 1
      %s64 = scalar_select %p61, %s62, %s63
      %p67 = pneg %p61
      %p68 = scmp.eq.s32.totalorder %s12, 35
      %p69 = por %p67, %p68
      %p70 = scmp.ne.s32.totalorder %s62, %s65
      %p71 = scmp.eq.s32.totalorder %s12, 0
      %p72 = por %p70, %p71
      %p73 = scmp.ne.s32.totalorder %s62, %s65
      %p74 = scmp.eq.s32.totalorder %s17, 35
      %p75 = por %p73, %p74
      %p76 = scmp.ne.s32.totalorder %s65, %s66
      %p77 = scmp.eq.s32.totalorder %s17, 0
      %p78 = por %p76, %p77
      %p79 = scmp.ne.s32.totalorder %s65, %s66
      %p80 = scmp.eq.s32.totalorder %s18, 35
      %p81 = por %p79, %p80
      %p83 = scmp.ne.s32.totalorder %s66, %s82
      %p84 = scmp.eq.s32.totalorder %s18, 0
      %p85 = por %p83, %p84
      %s86 = ssub.s32 %s19, %s31
      %p87 = scmp.eq.s32.totalorder %s86, 0
      %s89 = sadd.s32 %s88, 1
      %s90 = scalar_select %p87, %s88, %s89
      %p93 = pneg %p87
      %p94 = scmp.eq.s32.totalorder %s12, 35
      %p95 = por %p93, %p94
      %p96 = scmp.ne.s32.totalorder %s88, %s91
      %p97 = scmp.eq.s32.totalorder %s12, 0
      %p98 = por %p96, %p97
      %p99 = scmp.ne.s32.totalorder %s88, %s91
      %p100 = scmp.eq.s32.totalorder %s17, 35
      %p101 = por %p99, %p100
      %p102 = scmp.ne.s32.totalorder %s91, %s92
      %p103 = scmp.eq.s32.totalorder %s17, 0
      %p104 = por %p102, %p103
      %p105 = scmp.ne.s32.totalorder %s91, %s92
      %p106 = scmp.eq.s32.totalorder %s18, 35
      %p107 = por %p105, %p106
      %p109 = scmp.ne.s32.totalorder %s92, %s108
      %p110 = scmp.eq.s32.totalorder %s18, 0
      %p111 = por %p109, %p110
      %s112 = ssub.s32 %s19, %s31
      %p113 = scmp.eq.s32.totalorder %s112, 0
      %s115 = sadd.s32 %s114, 1
      %s116 = scalar_select %p113, %s114, %s115
      %p119 = pneg %p113
      %p120 = scmp.eq.s32.totalorder %s12, 35
      %p121 = por %p119, %p120
      %p122 = scmp.ne.s32.totalorder %s114, %s117
      %p123 = scmp.eq.s32.totalorder %s12, 0
      %p124 = por %p122, %p123
      %p125 = scmp.ne.s32.totalorder %s114, %s117
      %p126 = scmp.eq.s32.totalorder %s17, 35
      %p127 = por %p125, %p126
      %p128 = scmp.ne.s32.totalorder %s117, %s118
      %p129 = scmp.eq.s32.totalorder %s17, 0
      %p130 = por %p128, %p129
      %p131 = scmp.ne.s32.totalorder %s117, %s118
      %p132 = scmp.eq.s32.totalorder %s18, 35
      %p133 = por %p131, %p132
      %p135 = scmp.ne.s32.totalorder %s118, %s134
      %p136 = scmp.eq.s32.totalorder %s18, 0
      %p137 = por %p135, %p136
      %p138 = scmp.le.s32.totalorder 1, %s12
      %p139 = scmp.lt.s32.totalorder %s12, 37
      %p140 = pnand %p138, %p139
      %p141 = pneg %p140
      // Predicated region
      $region9: #{_lambda_.6} parent=5 // pred_check
        _
      $region10: #{_lambda_.6} parent=5 // pred_check_branch
        %143 = sbr.rel (%p140) target = $region12
      $region11: #{_lambda_.6} parent=5 // pred_region
        %s144 = ssub.s32 %s12, 1
      $region12: #{_lambda_.6} parent=5 // pred_fallthru
        _
      %p145 = scmp.lt.s32.totalorder %s12, 36
      // Predicated region
      $region13: #{_lambda_.6} parent=5 // pred_check
        %p146 = pneg %p145
      $region14: #{_lambda_.6} parent=5 // pred_check_branch
        %148 = sbr.rel (%p146) target = $region16
      $region15: #{_lambda_.6} parent=5 // pred_region
        // Predicated region
        $region17: #{_lambda_.6} parent=15 // pred_check
          %p149 = pneg %p44
        $region18: #{_lambda_.6} parent=15 // pred_check_branch
          %151 = sbr.rel (%p149) target = $region20
        $region19: #{_lambda_.6} parent=15 // pred_region
          %s152 = smul.u32 18, %s20
          %p153 = scmp.lt.s32.totalorder %s152, 323
          %s154 = scalar_select %p153, %s152, 323
          %s155 = smul.addr %s154, 2
          %s156 = scalar_lea.vmem %s0, %s155
          %s157 = smul.u32 18, %s20
        $region20: #{_lambda_.6} parent=15 // pred_fallthru
          _
        // Predicated region
        $region21: #{_lambda_.6} parent=15 // pred_check
          %p158 = pneg %p72
        $region22: #{_lambda_.6} parent=15 // pred_check_branch
          %160 = sbr.rel (%p158) target = $region24
        $region23: #{_lambda_.6} parent=15 // pred_region
          %s161 = sand.u32 %s62, 1
          %s162 = scalar_lea.sflag [#allocation3], %s161
          %s163 = sand.u32 %s62, 1
          %s164 = smul.addr %s163, 9216
          %s165 = scalar_lea.vmem [#allocation2], %s164
          %s166 = smul.u32 64, %s19
          %s167 = smul.u32 18, %s20
          %s169 = ssub.s32 147456, 147456
          %170 = vsyncadd %s162, %s169
          %s171 = smul.addr %s166, 324
          %s172 = sadd.s32 %s167, %s171
          %s173 = smul.addr %s172, 128
          %s174 = scalar_lea.hbm %s1, %s173
          %s175 = sshll.u32 %s165, 4
          %s176 = int_to_ptr.vmem [resolvable:$true] %s175
          %181 = dma.hbm_to_vmem [thread:$0]  %s174, 147456, %s176, %s162, 41472, 2304, 144
        $region24: #{_lambda_.6} parent=15 // pred_fallthru
          _
        // Predicated region
        $region25: #{_lambda_.6} parent=15 // pred_check
          %p182 = pneg %p98
        $region26: #{_lambda_.6} parent=15 // pred_check_branch
          %184 = sbr.rel (%p182) target = $region28
        $region27: #{_lambda_.6} parent=15 // pred_region
          %s185 = smul.u32 4, %s19
          %p186 = scmp.lt.s32.totalorder %s185, 7
          %s187 = scalar_select %p186, %s185, 7
          %s188 = scalar_lea.vmem %s2, %s187
          %s189 = smul.u32 4, %s19
        $region28: #{_lambda_.6} parent=15 // pred_fallthru
          _
      $region16: #{_lambda_.6} parent=5 // pred_fallthru
        _
      %p190 = scmp.le.s32.totalorder 1, %s12
      %p191 = scmp.lt.s32.totalorder %s12, 37
      %p192 = pnand %p190, %p191
      %p193 = pneg %p192
      // Predicated region
      $region29: #{_lambda_.6} parent=5 // pred_check
        _
      $region30: #{_lambda_.6} parent=5 // pred_check_branch
        %195 = sbr.rel (%p192) target = $region32
      $region31: #{_lambda_.6} parent=5 // pred_region
        %s196 = ssub.s32 %s12, 1
        %s197 = sand.u32 %s65, 1
        %s198 = scalar_lea.sflag [#allocation3], %s197
        %s199 = sand.u32 %s65, 1
        %s200 = smul.addr %s199, 9216
        %s201 = scalar_lea.vmem [#allocation2], %s200
        // Predicated region
        $region33: #{_lambda_.6} parent=31 // pred_check
          %p202 = pneg %p78
        $region34: #{_lambda_.6} parent=31 // pred_check_branch
          %204 = sbr.rel (%p202) target = $region36
        $region35: #{_lambda_.6} parent=31 // pred_region
          %205 = dma.done %s198, 147456
        $region36: #{_lambda_.6} parent=31 // pred_fallthru
          _
        %s206 = smul.u32 18, %s22
        %p207 = scmp.lt.s32.totalorder %s206, 323
        %s208 = scalar_select %p207, %s206, 323
        %s209 = smul.addr %s208, 2
        %s210 = scalar_lea.vmem %s0, %s209
        %p211 = pneg %p50
        %p212 = pneg %p47
        %s213 = sand.u32 %s65, 1
        %s214 = scalar_lea.sflag [#allocation3], %s213
        %s215 = sand.u32 %s65, 1
        %s216 = smul.addr %s215, 9216
        %s217 = scalar_lea.vmem [#allocation2], %s216
        %p218 = pneg %p78
        %p219 = pneg %p75
        %s220 = smul.u32 4, %s21
        %p221 = scmp.lt.s32.totalorder %s220, 7
        %s222 = scalar_select %p221, %s220, 7
        %s223 = scalar_lea.vmem %s2, %s222
        %p224 = pneg %p104
        %p225 = pneg %p101
        %p226 = pneg %p130
        %p227 = pneg %p127
        %s228 = smul.u32 4, %s21
        %p229 = scmp.lt.s32.totalorder %s228, 7
        %s230 = scalar_select %p229, %s228, 7
        %s231 = smul.addr %s230, 2
        %s232 = scalar_lea.vmem %s3, %s231
        %s233 = smul.u32 18, %s22
        %p234 = scmp.lt.s32.totalorder %s233, 323
        %s235 = scalar_select %p234, %s233, 323
        %s236 = smul.addr %s235, 2
        %s237 = scalar_lea.vmem %s0, %s236
        %s238 = smul.u32 18, %s22
        %s239 = smul.u32 64, %s21
        %s240 = smul.u32 18, %s22
        %s241 = smul.u32 4, %s21
        %p242 = scmp.lt.s32.totalorder %s241, 7
        %s243 = scalar_select %p242, %s241, 7
        %s244 = scalar_lea.vmem %s2, %s243
        %s245 = smul.u32 4, %s21
        %s246 = smul.u32 4, %s21
        %p247 = scmp.lt.s32.totalorder %s246, 7
        %s248 = scalar_select %p247, %s246, 7
        %s249 = smul.addr %s248, 2
        %s250 = scalar_lea.vmem %s3, %s249
        %s251 = smul.u32 4, %s21
        %v252 = vld [vmem:[%s237] sm:$0xff]
        %v253 = vld [vmem:[%s237 + $0x8] sm:$0xff]
        %v254 = vld [vmem:[%s237 + $0x10] sm:$0xff]
        %v255 = vld [vmem:[%s237 + $0x18] sm:$0xff]
        %v256 = vld [vmem:[%s237 + $0x20] sm:$0xf]
        %v257 = vld [vmem:[%s201] sm:$0xff]
        %v258 = vld [vmem:[%s201 + $0x8] sm:$0xff]
        %v259 = vld [vmem:[%s201 + $0x10] sm:$0xff]
        %v260 = vld [vmem:[%s201 + $0x18] sm:$0xff]
        %v261 = vld [vmem:[%s201 + $0x20] sm:$0xff]
        %v262 = vld [vmem:[%s201 + $0x28] sm:$0xff]
        %v263 = vld [vmem:[%s201 + $0x30] sm:$0xff]
        %v264 = vld [vmem:[%s201 + $0x38] sm:$0xff]
        %v265 = vld [vmem:[%s201 + $0x40] sm:$0xff]
        %v266 = vld [vmem:[%s201 + $0x48] sm:$0xff]
        %v267 = vld [vmem:[%s201 + $0x50] sm:$0xff]
        %v268 = vld [vmem:[%s201 + $0x58] sm:$0xff]
        %v269 = vld [vmem:[%s201 + $0x60] sm:$0xff]
        %v270 = vld [vmem:[%s201 + $0x68] sm:$0xff]
        %v271 = vld [vmem:[%s201 + $0x70] sm:$0xff]
        %v272 = vld [vmem:[%s201 + $0x78] sm:$0xff]
        %v273 = vld [vmem:[%s201 + $0x80] sm:$0xff]
        %v274 = vld [vmem:[%s201 + $0x88] sm:$0xff]
        %v275 = vld [vmem:[%s201 + $0x90] sm:$0xff]
        %v276 = vld [vmem:[%s201 + $0x98] sm:$0xff]
        %v277 = vld [vmem:[%s201 + $0xa0] sm:$0xff]
        %v278 = vld [vmem:[%s201 + $0xa8] sm:$0xff]
        %v279 = vld [vmem:[%s201 + $0xb0] sm:$0xff]
        %v280 = vld [vmem:[%s201 + $0xb8] sm:$0xff]
        %v281 = vld [vmem:[%s201 + $0xc0] sm:$0xff]
        %v282 = vld [vmem:[%s201 + $0xc8] sm:$0xff]
        %v283 = vld [vmem:[%s201 + $0xd0] sm:$0xff]
        %v284 = vld [vmem:[%s201 + $0xd8] sm:$0xff]
        %v285 = vld [vmem:[%s201 + $0xe0] sm:$0xff]
        %v286 = vld [vmem:[%s201 + $0xe8] sm:$0xff]
        %v287 = vld [vmem:[%s201 + $0xf0] sm:$0xff]
        %v288 = vld [vmem:[%s201 + $0xf8] sm:$0xff]
        %v289 = vld [vmem:[%s201 + $0x100] sm:$0xff]
        %v290 = vld [vmem:[%s201 + $0x108] sm:$0xff]
        %v291 = vld [vmem:[%s201 + $0x110] sm:$0xff]
        %v292 = vld [vmem:[%s201 + $0x118] sm:$0xff]
        %v293 = vld [vmem:[%s201 + $0x120] sm:$0xff]
        %v294 = vld [vmem:[%s201 + $0x128] sm:$0xff]
        %v295 = vld [vmem:[%s201 + $0x130] sm:$0xff]
        %v296 = vld [vmem:[%s201 + $0x138] sm:$0xff]
        %v297 = vld [vmem:[%s201 + $0x140] sm:$0xff]
        %v298 = vld [vmem:[%s201 + $0x148] sm:$0xff]
        %v299 = vld [vmem:[%s201 + $0x150] sm:$0xff]
        %v300 = vld [vmem:[%s201 + $0x158] sm:$0xff]
        %v301 = vld [vmem:[%s201 + $0x160] sm:$0xff]
        %v302 = vld [vmem:[%s201 + $0x168] sm:$0xff]
        %v303 = vld [vmem:[%s201 + $0x170] sm:$0xff]
        %v304 = vld [vmem:[%s201 + $0x178] sm:$0xff]
        %v305 = vld [vmem:[%s201 + $0x180] sm:$0xff]
        %v306 = vld [vmem:[%s201 + $0x188] sm:$0xff]
        %v307 = vld [vmem:[%s201 + $0x190] sm:$0xff]
        %v308 = vld [vmem:[%s201 + $0x198] sm:$0xff]
        %v309 = vld [vmem:[%s201 + $0x1a0] sm:$0xff]
        %v310 = vld [vmem:[%s201 + $0x1a8] sm:$0xff]
        %v311 = vld [vmem:[%s201 + $0x1b0] sm:$0xff]
        %v312 = vld [vmem:[%s201 + $0x1b8] sm:$0xff]
        %v313 = vld [vmem:[%s201 + $0x1c0] sm:$0xff]
        %v314 = vld [vmem:[%s201 + $0x1c8] sm:$0xff]
        %v315 = vld [vmem:[%s201 + $0x1d0] sm:$0xff]
        %v316 = vld [vmem:[%s201 + $0x1d8] sm:$0xff]
        %v317 = vld [vmem:[%s201 + $0x1e0] sm:$0xff]
        %v318 = vld [vmem:[%s201 + $0x1e8] sm:$0xff]
        %v319 = vld [vmem:[%s201 + $0x1f0] sm:$0xff]
        %v320 = vld [vmem:[%s201 + $0x1f8] sm:$0xff]
        %v321 = vld [vmem:[%s201 + $0x200] sm:$0xff]
        %v322 = vld [vmem:[%s201 + $0x208] sm:$0xff]
        %v323 = vld [vmem:[%s201 + $0x210] sm:$0xff]
        %v324 = vld [vmem:[%s201 + $0x218] sm:$0xff]
        %v325 = vld [vmem:[%s201 + $0x220] sm:$0xff]
        %v326 = vld [vmem:[%s201 + $0x228] sm:$0xff]
        %v327 = vld [vmem:[%s201 + $0x230] sm:$0xff]
        %v328 = vld [vmem:[%s201 + $0x238] sm:$0xff]
        %v329 = vld [vmem:[%s201 + $0x240] sm:$0xff]
        %v330 = vld [vmem:[%s201 + $0x248] sm:$0xff]
        %v331 = vld [vmem:[%s201 + $0x250] sm:$0xff]
        %v332 = vld [vmem:[%s201 + $0x258] sm:$0xff]
        %v333 = vld [vmem:[%s201 + $0x260] sm:$0xff]
        %v334 = vld [vmem:[%s201 + $0x268] sm:$0xff]
        %v335 = vld [vmem:[%s201 + $0x270] sm:$0xff]
        %v336 = vld [vmem:[%s201 + $0x278] sm:$0xff]
        %v337 = vld [vmem:[%s201 + $0x280] sm:$0xff]
        %v338 = vld [vmem:[%s201 + $0x288] sm:$0xff]
        %v339 = vld [vmem:[%s201 + $0x290] sm:$0xff]
        %v340 = vld [vmem:[%s201 + $0x298] sm:$0xff]
        %v341 = vld [vmem:[%s201 + $0x2a0] sm:$0xff]
        %v342 = vld [vmem:[%s201 + $0x2a8] sm:$0xff]
        %v343 = vld [vmem:[%s201 + $0x2b0] sm:$0xff]
        %v344 = vld [vmem:[%s201 + $0x2b8] sm:$0xff]
        %v345 = vld [vmem:[%s201 + $0x2c0] sm:$0xff]
        %v346 = vld [vmem:[%s201 + $0x2c8] sm:$0xff]
        %v347 = vld [vmem:[%s201 + $0x2d0] sm:$0xff]
        %v348 = vld [vmem:[%s201 + $0x2d8] sm:$0xff]
        %v349 = vld [vmem:[%s201 + $0x2e0] sm:$0xff]
        %v350 = vld [vmem:[%s201 + $0x2e8] sm:$0xff]
        %v351 = vld [vmem:[%s201 + $0x2f0] sm:$0xff]
        %v352 = vld [vmem:[%s201 + $0x2f8] sm:$0xff]
        %v353 = vld [vmem:[%s201 + $0x300] sm:$0xff]
        %v354 = vld [vmem:[%s201 + $0x308] sm:$0xff]
        %v355 = vld [vmem:[%s201 + $0x310] sm:$0xff]
        %v356 = vld [vmem:[%s201 + $0x318] sm:$0xff]
        %v357 = vld [vmem:[%s201 + $0x320] sm:$0xff]
        %v358 = vld [vmem:[%s201 + $0x328] sm:$0xff]
        %v359 = vld [vmem:[%s201 + $0x330] sm:$0xff]
        %v360 = vld [vmem:[%s201 + $0x338] sm:$0xff]
        %v361 = vld [vmem:[%s201 + $0x340] sm:$0xff]
        %v362 = vld [vmem:[%s201 + $0x348] sm:$0xff]
        %v363 = vld [vmem:[%s201 + $0x350] sm:$0xff]
        %v364 = vld [vmem:[%s201 + $0x358] sm:$0xff]
        %v365 = vld [vmem:[%s201 + $0x360] sm:$0xff]
        %v366 = vld [vmem:[%s201 + $0x368] sm:$0xff]
        %v367 = vld [vmem:[%s201 + $0x370] sm:$0xff]
        %v368 = vld [vmem:[%s201 + $0x378] sm:$0xff]
        %v369 = vld [vmem:[%s201 + $0x380] sm:$0xff]
        %v370 = vld [vmem:[%s201 + $0x388] sm:$0xff]
        %v371 = vld [vmem:[%s201 + $0x390] sm:$0xff]
        %v372 = vld [vmem:[%s201 + $0x398] sm:$0xff]
        %v373 = vld [vmem:[%s201 + $0x3a0] sm:$0xff]
        %v374 = vld [vmem:[%s201 + $0x3a8] sm:$0xff]
        %v375 = vld [vmem:[%s201 + $0x3b0] sm:$0xff]
        %v376 = vld [vmem:[%s201 + $0x3b8] sm:$0xff]
        %v377 = vld [vmem:[%s201 + $0x3c0] sm:$0xff]
        %v378 = vld [vmem:[%s201 + $0x3c8] sm:$0xff]
        %v379 = vld [vmem:[%s201 + $0x3d0] sm:$0xff]
        %v380 = vld [vmem:[%s201 + $0x3d8] sm:$0xff]
        %v381 = vld [vmem:[%s201 + $0x3e0] sm:$0xff]
        %v382 = vld [vmem:[%s201 + $0x3e8] sm:$0xff]
        %v383 = vld [vmem:[%s201 + $0x3f0] sm:$0xff]
        %v384 = vld [vmem:[%s201 + $0x3f8] sm:$0xff]
        %v385 = vld [vmem:[%s201 + $0x400] sm:$0xff]
        %v386 = vld [vmem:[%s201 + $0x408] sm:$0xff]
        %v387 = vld [vmem:[%s201 + $0x410] sm:$0xff]
        %v388 = vld [vmem:[%s201 + $0x418] sm:$0xff]
        %v389 = vld [vmem:[%s201 + $0x420] sm:$0xff]
        %v390 = vld [vmem:[%s201 + $0x428] sm:$0xff]
        %v391 = vld [vmem:[%s201 + $0x430] sm:$0xff]
        %v392 = vld [vmem:[%s201 + $0x438] sm:$0xff]
        %v393 = vld [vmem:[%s201 + $0x440] sm:$0xff]
        %v394 = vld [vmem:[%s201 + $0x448] sm:$0xff]
        %v395 = vld [vmem:[%s201 + $0x450] sm:$0xff]
        %v396 = vld [vmem:[%s201 + $0x458] sm:$0xff]
        %v397 = vld [vmem:[%s201 + $0x460] sm:$0xff]
        %v398 = vld [vmem:[%s201 + $0x468] sm:$0xff]
        %v399 = vld [vmem:[%s201 + $0x470] sm:$0xff]
        %v400 = vld [vmem:[%s201 + $0x478] sm:$0xff]
        %v401 = vld [vmem:[%s201 + $0x480] sm:$0xff]
        %v402 = vld [vmem:[%s201 + $0x488] sm:$0xff]
        %v403 = vld [vmem:[%s201 + $0x490] sm:$0xff]
        %v404 = vld [vmem:[%s201 + $0x498] sm:$0xff]
        %v405 = vld [vmem:[%s201 + $0x4a0] sm:$0xff]
        %v406 = vld [vmem:[%s201 + $0x4a8] sm:$0xff]
        %v407 = vld [vmem:[%s201 + $0x4b0] sm:$0xff]
        %v408 = vld [vmem:[%s201 + $0x4b8] sm:$0xff]
        %v409 = vld [vmem:[%s201 + $0x4c0] sm:$0xff]
        %v410 = vld [vmem:[%s201 + $0x4c8] sm:$0xff]
        %v411 = vld [vmem:[%s201 + $0x4d0] sm:$0xff]
        %v412 = vld [vmem:[%s201 + $0x4d8] sm:$0xff]
        %v413 = vld [vmem:[%s201 + $0x4e0] sm:$0xff]
        %v414 = vld [vmem:[%s201 + $0x4e8] sm:$0xff]
        %v415 = vld [vmem:[%s201 + $0x4f0] sm:$0xff]
        %v416 = vld [vmem:[%s201 + $0x4f8] sm:$0xff]
        %v417 = vld [vmem:[%s201 + $0x500] sm:$0xff]
        %v418 = vld [vmem:[%s201 + $0x508] sm:$0xff]
        %v419 = vld [vmem:[%s201 + $0x510] sm:$0xff]
        %v420 = vld [vmem:[%s201 + $0x518] sm:$0xff]
        %v421 = vld [vmem:[%s201 + $0x520] sm:$0xff]
        %v422 = vld [vmem:[%s201 + $0x528] sm:$0xff]
        %v423 = vld [vmem:[%s201 + $0x530] sm:$0xff]
        %v424 = vld [vmem:[%s201 + $0x538] sm:$0xff]
        %v425 = vld [vmem:[%s201 + $0x540] sm:$0xff]
        %v426 = vld [vmem:[%s201 + $0x548] sm:$0xff]
        %v427 = vld [vmem:[%s201 + $0x550] sm:$0xff]
        %v428 = vld [vmem:[%s201 + $0x558] sm:$0xff]
        %v429 = vld [vmem:[%s201 + $0x560] sm:$0xff]
        %v430 = vld [vmem:[%s201 + $0x568] sm:$0xff]
        %v431 = vld [vmem:[%s201 + $0x570] sm:$0xff]
        %v432 = vld [vmem:[%s201 + $0x578] sm:$0xff]
        %v433 = vld [vmem:[%s201 + $0x580] sm:$0xff]
        %v434 = vld [vmem:[%s201 + $0x588] sm:$0xff]
        %v435 = vld [vmem:[%s201 + $0x590] sm:$0xff]
        %v436 = vld [vmem:[%s201 + $0x598] sm:$0xff]
        %v437 = vld [vmem:[%s201 + $0x5a0] sm:$0xff]
        %v438 = vld [vmem:[%s201 + $0x5a8] sm:$0xff]
        %v439 = vld [vmem:[%s201 + $0x5b0] sm:$0xff]
        %v440 = vld [vmem:[%s201 + $0x5b8] sm:$0xff]
        %v441 = vld [vmem:[%s201 + $0x5c0] sm:$0xff]
        %v442 = vld [vmem:[%s201 + $0x5c8] sm:$0xff]
        %v443 = vld [vmem:[%s201 + $0x5d0] sm:$0xff]
        %v444 = vld [vmem:[%s201 + $0x5d8] sm:$0xff]
        %v445 = vld [vmem:[%s201 + $0x5e0] sm:$0xff]
        %v446 = vld [vmem:[%s201 + $0x5e8] sm:$0xff]
        %v447 = vld [vmem:[%s201 + $0x5f0] sm:$0xff]
        %v448 = vld [vmem:[%s201 + $0x5f8] sm:$0xff]
        %v449 = vld [vmem:[%s201 + $0x600] sm:$0xff]
        %v450 = vld [vmem:[%s201 + $0x608] sm:$0xff]
        %v451 = vld [vmem:[%s201 + $0x610] sm:$0xff]
        %v452 = vld [vmem:[%s201 + $0x618] sm:$0xff]
        %v453 = vld [vmem:[%s201 + $0x620] sm:$0xff]
        %v454 = vld [vmem:[%s201 + $0x628] sm:$0xff]
        %v455 = vld [vmem:[%s201 + $0x630] sm:$0xff]
        %v456 = vld [vmem:[%s201 + $0x638] sm:$0xff]
        %v457 = vld [vmem:[%s201 + $0x640] sm:$0xff]
        %v458 = vld [vmem:[%s201 + $0x648] sm:$0xff]
        %v459 = vld [vmem:[%s201 + $0x650] sm:$0xff]
        %v460 = vld [vmem:[%s201 + $0x658] sm:$0xff]
        %v461 = vld [vmem:[%s201 + $0x660] sm:$0xff]
        %v462 = vld [vmem:[%s201 + $0x668] sm:$0xff]
        %v463 = vld [vmem:[%s201 + $0x670] sm:$0xff]
        %v464 = vld [vmem:[%s201 + $0x678] sm:$0xff]
        %v465 = vld [vmem:[%s201 + $0x680] sm:$0xff]
        %v466 = vld [vmem:[%s201 + $0x688] sm:$0xff]
        %v467 = vld [vmem:[%s201 + $0x690] sm:$0xff]
        %v468 = vld [vmem:[%s201 + $0x698] sm:$0xff]
        %v469 = vld [vmem:[%s201 + $0x6a0] sm:$0xff]
        %v470 = vld [vmem:[%s201 + $0x6a8] sm:$0xff]
        %v471 = vld [vmem:[%s201 + $0x6b0] sm:$0xff]
        %v472 = vld [vmem:[%s201 + $0x6b8] sm:$0xff]
        %v473 = vld [vmem:[%s201 + $0x6c0] sm:$0xff]
        %v474 = vld [vmem:[%s201 + $0x6c8] sm:$0xff]
        %v475 = vld [vmem:[%s201 + $0x6d0] sm:$0xff]
        %v476 = vld [vmem:[%s201 + $0x6d8] sm:$0xff]
        %v477 = vld [vmem:[%s201 + $0x6e0] sm:$0xff]
        %v478 = vld [vmem:[%s201 + $0x6e8] sm:$0xff]
        %v479 = vld [vmem:[%s201 + $0x6f0] sm:$0xff]
        %v480 = vld [vmem:[%s201 + $0x6f8] sm:$0xff]
        %v481 = vld [vmem:[%s201 + $0x700] sm:$0xff]
        %v482 = vld [vmem:[%s201 + $0x708] sm:$0xff]
        %v483 = vld [vmem:[%s201 + $0x710] sm:$0xff]
        %v484 = vld [vmem:[%s201 + $0x718] sm:$0xff]
        %v485 = vld [vmem:[%s201 + $0x720] sm:$0xff]
        %v486 = vld [vmem:[%s201 + $0x728] sm:$0xff]
        %v487 = vld [vmem:[%s201 + $0x730] sm:$0xff]
        %v488 = vld [vmem:[%s201 + $0x738] sm:$0xff]
        %v489 = vld [vmem:[%s201 + $0x740] sm:$0xff]
        %v490 = vld [vmem:[%s201 + $0x748] sm:$0xff]
        %v491 = vld [vmem:[%s201 + $0x750] sm:$0xff]
        %v492 = vld [vmem:[%s201 + $0x758] sm:$0xff]
        %v493 = vld [vmem:[%s201 + $0x760] sm:$0xff]
        %v494 = vld [vmem:[%s201 + $0x768] sm:$0xff]
        %v495 = vld [vmem:[%s201 + $0x770] sm:$0xff]
        %v496 = vld [vmem:[%s201 + $0x778] sm:$0xff]
        %v497 = vld [vmem:[%s201 + $0x780] sm:$0xff]
        %v498 = vld [vmem:[%s201 + $0x788] sm:$0xff]
        %v499 = vld [vmem:[%s201 + $0x790] sm:$0xff]
        %v500 = vld [vmem:[%s201 + $0x798] sm:$0xff]
        %v501 = vld [vmem:[%s201 + $0x7a0] sm:$0xff]
        %v502 = vld [vmem:[%s201 + $0x7a8] sm:$0xff]
        %v503 = vld [vmem:[%s201 + $0x7b0] sm:$0xff]
        %v504 = vld [vmem:[%s201 + $0x7b8] sm:$0xff]
        %v505 = vld [vmem:[%s201 + $0x7c0] sm:$0xff]
        %v506 = vld [vmem:[%s201 + $0x7c8] sm:$0xff]
        %v507 = vld [vmem:[%s201 + $0x7d0] sm:$0xff]
        %v508 = vld [vmem:[%s201 + $0x7d8] sm:$0xff]
        %v509 = vld [vmem:[%s201 + $0x7e0] sm:$0xff]
        %v510 = vld [vmem:[%s201 + $0x7e8] sm:$0xff]
        %v511 = vld [vmem:[%s201 + $0x7f0] sm:$0xff]
        %v512 = vld [vmem:[%s201 + $0x7f8] sm:$0xff]
        %v513 = vld [vmem:[%s201 + $0x800] sm:$0xff]
        %v514 = vld [vmem:[%s201 + $0x808] sm:$0xff]
        %v515 = vld [vmem:[%s201 + $0x810] sm:$0xff]
        %v516 = vld [vmem:[%s201 + $0x818] sm:$0xff]
        %v517 = vld [vmem:[%s201 + $0x820] sm:$0xff]
        %v518 = vld [vmem:[%s201 + $0x828] sm:$0xff]
        %v519 = vld [vmem:[%s201 + $0x830] sm:$0xff]
        %v520 = vld [vmem:[%s201 + $0x838] sm:$0xff]
        %v521 = vld [vmem:[%s201 + $0x840] sm:$0xff]
        %v522 = vld [vmem:[%s201 + $0x848] sm:$0xff]
        %v523 = vld [vmem:[%s201 + $0x850] sm:$0xff]
        %v524 = vld [vmem:[%s201 + $0x858] sm:$0xff]
        %v525 = vld [vmem:[%s201 + $0x860] sm:$0xff]
        %v526 = vld [vmem:[%s201 + $0x868] sm:$0xff]
        %v527 = vld [vmem:[%s201 + $0x870] sm:$0xff]
        %v528 = vld [vmem:[%s201 + $0x878] sm:$0xff]
        %v529 = vld [vmem:[%s201 + $0x880] sm:$0xff]
        %v530 = vld [vmem:[%s201 + $0x888] sm:$0xff]
        %v531 = vld [vmem:[%s201 + $0x890] sm:$0xff]
        %v532 = vld [vmem:[%s201 + $0x898] sm:$0xff]
        %v533 = vld [vmem:[%s201 + $0x8a0] sm:$0xff]
        %v534 = vld [vmem:[%s201 + $0x8a8] sm:$0xff]
        %v535 = vld [vmem:[%s201 + $0x8b0] sm:$0xff]
        %v536 = vld [vmem:[%s201 + $0x8b8] sm:$0xff]
        %v537 = vld [vmem:[%s201 + $0x8c0] sm:$0xff]
        %v538 = vld [vmem:[%s201 + $0x8c8] sm:$0xff]
        %v539 = vld [vmem:[%s201 + $0x8d0] sm:$0xff]
        %v540 = vld [vmem:[%s201 + $0x8d8] sm:$0xff]
        %v541 = vld [vmem:[%s201 + $0x8e0] sm:$0xff]
        %v542 = vld [vmem:[%s201 + $0x8e8] sm:$0xff]
        %v543 = vld [vmem:[%s201 + $0x8f0] sm:$0xff]
        %v544 = vld [vmem:[%s201 + $0x8f8] sm:$0xff]
        %v545 = vld [vmem:[%s201 + $0x900] sm:$0xff]
        %v546 = vld [vmem:[%s201 + $0x908] sm:$0xff]
        %v547 = vld [vmem:[%s201 + $0x910] sm:$0xff]
        %v548 = vld [vmem:[%s201 + $0x918] sm:$0xff]
        %v549 = vld [vmem:[%s201 + $0x920] sm:$0xff]
        %v550 = vld [vmem:[%s201 + $0x928] sm:$0xff]
        %v551 = vld [vmem:[%s201 + $0x930] sm:$0xff]
        %v552 = vld [vmem:[%s201 + $0x938] sm:$0xff]
        %v553 = vld [vmem:[%s201 + $0x940] sm:$0xff]
        %v554 = vld [vmem:[%s201 + $0x948] sm:$0xff]
        %v555 = vld [vmem:[%s201 + $0x950] sm:$0xff]
        %v556 = vld [vmem:[%s201 + $0x958] sm:$0xff]
        %v557 = vld [vmem:[%s201 + $0x960] sm:$0xff]
        %v558 = vld [vmem:[%s201 + $0x968] sm:$0xff]
        %v559 = vld [vmem:[%s201 + $0x970] sm:$0xff]
        %v560 = vld [vmem:[%s201 + $0x978] sm:$0xff]
        %v561 = vld [vmem:[%s201 + $0x980] sm:$0xff]
        %v562 = vld [vmem:[%s201 + $0x988] sm:$0xff]
        %v563 = vld [vmem:[%s201 + $0x990] sm:$0xff]
        %v564 = vld [vmem:[%s201 + $0x998] sm:$0xff]
        %v565 = vld [vmem:[%s201 + $0x9a0] sm:$0xff]
        %v566 = vld [vmem:[%s201 + $0x9a8] sm:$0xff]
        %v567 = vld [vmem:[%s201 + $0x9b0] sm:$0xff]
        %v568 = vld [vmem:[%s201 + $0x9b8] sm:$0xff]
        %v569 = vld [vmem:[%s201 + $0x9c0] sm:$0xff]
        %v570 = vld [vmem:[%s201 + $0x9c8] sm:$0xff]
        %v571 = vld [vmem:[%s201 + $0x9d0] sm:$0xff]
        %v572 = vld [vmem:[%s201 + $0x9d8] sm:$0xff]
        %v573 = vld [vmem:[%s201 + $0x9e0] sm:$0xff]
        %v574 = vld [vmem:[%s201 + $0x9e8] sm:$0xff]
        %v575 = vld [vmem:[%s201 + $0x9f0] sm:$0xff]
        %v576 = vld [vmem:[%s201 + $0x9f8] sm:$0xff]
        %v577 = vld [vmem:[%s201 + $0xa00] sm:$0xff]
        %v578 = vld [vmem:[%s201 + $0xa08] sm:$0xff]
        %v579 = vld [vmem:[%s201 + $0xa10] sm:$0xff]
        %v580 = vld [vmem:[%s201 + $0xa18] sm:$0xff]
        %v581 = vld [vmem:[%s201 + $0xa20] sm:$0xff]
        %v582 = vld [vmem:[%s201 + $0xa28] sm:$0xff]
        %v583 = vld [vmem:[%s201 + $0xa30] sm:$0xff]
        %v584 = vld [vmem:[%s201 + $0xa38] sm:$0xff]
        %v585 = vld [vmem:[%s201 + $0xa40] sm:$0xff]
        %v586 = vld [vmem:[%s201 + $0xa48] sm:$0xff]
        %v587 = vld [vmem:[%s201 + $0xa50] sm:$0xff]
        %v588 = vld [vmem:[%s201 + $0xa58] sm:$0xff]
        %v589 = vld [vmem:[%s201 + $0xa60] sm:$0xff]
        %v590 = vld [vmem:[%s201 + $0xa68] sm:$0xff]
        %v591 = vld [vmem:[%s201 + $0xa70] sm:$0xff]
        %v592 = vld [vmem:[%s201 + $0xa78] sm:$0xff]
        %v593 = vld [vmem:[%s201 + $0xa80] sm:$0xff]
        %v594 = vld [vmem:[%s201 + $0xa88] sm:$0xff]
        %v595 = vld [vmem:[%s201 + $0xa90] sm:$0xff]
        %v596 = vld [vmem:[%s201 + $0xa98] sm:$0xff]
        %v597 = vld [vmem:[%s201 + $0xaa0] sm:$0xff]
        %v598 = vld [vmem:[%s201 + $0xaa8] sm:$0xff]
        %v599 = vld [vmem:[%s201 + $0xab0] sm:$0xff]
        %v600 = vld [vmem:[%s201 + $0xab8] sm:$0xff]
        %v601 = vld [vmem:[%s201 + $0xac0] sm:$0xff]
        %v602 = vld [vmem:[%s201 + $0xac8] sm:$0xff]
        %v603 = vld [vmem:[%s201 + $0xad0] sm:$0xff]
        %v604 = vld [vmem:[%s201 + $0xad8] sm:$0xff]
        %v605 = vld [vmem:[%s201 + $0xae0] sm:$0xff]
        %v606 = vld [vmem:[%s201 + $0xae8] sm:$0xff]
        %v607 = vld [vmem:[%s201 + $0xaf0] sm:$0xff]
        %v608 = vld [vmem:[%s201 + $0xaf8] sm:$0xff]
        %v609 = vld [vmem:[%s201 + $0xb00] sm:$0xff]
        %v610 = vld [vmem:[%s201 + $0xb08] sm:$0xff]
        %v611 = vld [vmem:[%s201 + $0xb10] sm:$0xff]
        %v612 = vld [vmem:[%s201 + $0xb18] sm:$0xff]
        %v613 = vld [vmem:[%s201 + $0xb20] sm:$0xff]
        %v614 = vld [vmem:[%s201 + $0xb28] sm:$0xff]
        %v615 = vld [vmem:[%s201 + $0xb30] sm:$0xff]
        %v616 = vld [vmem:[%s201 + $0xb38] sm:$0xff]
        %v617 = vld [vmem:[%s201 + $0xb40] sm:$0xff]
        %v618 = vld [vmem:[%s201 + $0xb48] sm:$0xff]
        %v619 = vld [vmem:[%s201 + $0xb50] sm:$0xff]
        %v620 = vld [vmem:[%s201 + $0xb58] sm:$0xff]
        %v621 = vld [vmem:[%s201 + $0xb60] sm:$0xff]
        %v622 = vld [vmem:[%s201 + $0xb68] sm:$0xff]
        %v623 = vld [vmem:[%s201 + $0xb70] sm:$0xff]
        %v624 = vld [vmem:[%s201 + $0xb78] sm:$0xff]
        %v625 = vld [vmem:[%s201 + $0xb80] sm:$0xff]
        %v626 = vld [vmem:[%s201 + $0xb88] sm:$0xff]
        %v627 = vld [vmem:[%s201 + $0xb90] sm:$0xff]
        %v628 = vld [vmem:[%s201 + $0xb98] sm:$0xff]
        %v629 = vld [vmem:[%s201 + $0xba0] sm:$0xff]
        %v630 = vld [vmem:[%s201 + $0xba8] sm:$0xff]
        %v631 = vld [vmem:[%s201 + $0xbb0] sm:$0xff]
        %v632 = vld [vmem:[%s201 + $0xbb8] sm:$0xff]
        %v633 = vld [vmem:[%s201 + $0xbc0] sm:$0xff]
        %v634 = vld [vmem:[%s201 + $0xbc8] sm:$0xff]
        %v635 = vld [vmem:[%s201 + $0xbd0] sm:$0xff]
        %v636 = vld [vmem:[%s201 + $0xbd8] sm:$0xff]
        %v637 = vld [vmem:[%s201 + $0xbe0] sm:$0xff]
        %v638 = vld [vmem:[%s201 + $0xbe8] sm:$0xff]
        %v639 = vld [vmem:[%s201 + $0xbf0] sm:$0xff]
        %v640 = vld [vmem:[%s201 + $0xbf8] sm:$0xff]
        %v641 = vld [vmem:[%s201 + $0xc00] sm:$0xff]
        %v642 = vld [vmem:[%s201 + $0xc08] sm:$0xff]
        %v643 = vld [vmem:[%s201 + $0xc10] sm:$0xff]
        %v644 = vld [vmem:[%s201 + $0xc18] sm:$0xff]
        %v645 = vld [vmem:[%s201 + $0xc20] sm:$0xff]
        %v646 = vld [vmem:[%s201 + $0xc28] sm:$0xff]
        %v647 = vld [vmem:[%s201 + $0xc30] sm:$0xff]
        %v648 = vld [vmem:[%s201 + $0xc38] sm:$0xff]
        %v649 = vld [vmem:[%s201 + $0xc40] sm:$0xff]
        %v650 = vld [vmem:[%s201 + $0xc48] sm:$0xff]
        %v651 = vld [vmem:[%s201 + $0xc50] sm:$0xff]
        %v652 = vld [vmem:[%s201 + $0xc58] sm:$0xff]
        %v653 = vld [vmem:[%s201 + $0xc60] sm:$0xff]
        %v654 = vld [vmem:[%s201 + $0xc68] sm:$0xff]
        %v655 = vld [vmem:[%s201 + $0xc70] sm:$0xff]
        %v656 = vld [vmem:[%s201 + $0xc78] sm:$0xff]
        %v657 = vld [vmem:[%s201 + $0xc80] sm:$0xff]
        %v658 = vld [vmem:[%s201 + $0xc88] sm:$0xff]
        %v659 = vld [vmem:[%s201 + $0xc90] sm:$0xff]
        %v660 = vld [vmem:[%s201 + $0xc98] sm:$0xff]
        %v661 = vld [vmem:[%s201 + $0xca0] sm:$0xff]
        %v662 = vld [vmem:[%s201 + $0xca8] sm:$0xff]
        %v663 = vld [vmem:[%s201 + $0xcb0] sm:$0xff]
        %v664 = vld [vmem:[%s201 + $0xcb8] sm:$0xff]
        %v665 = vld [vmem:[%s201 + $0xcc0] sm:$0xff]
        %v666 = vld [vmem:[%s201 + $0xcc8] sm:$0xff]
        %v667 = vld [vmem:[%s201 + $0xcd0] sm:$0xff]
        %v668 = vld [vmem:[%s201 + $0xcd8] sm:$0xff]
        %v669 = vld [vmem:[%s201 + $0xce0] sm:$0xff]
        %v670 = vld [vmem:[%s201 + $0xce8] sm:$0xff]
        %v671 = vld [vmem:[%s201 + $0xcf0] sm:$0xff]
        %v672 = vld [vmem:[%s201 + $0xcf8] sm:$0xff]
        %v673 = vld [vmem:[%s201 + $0xd00] sm:$0xff]
        %v674 = vld [vmem:[%s201 + $0xd08] sm:$0xff]
        %v675 = vld [vmem:[%s201 + $0xd10] sm:$0xff]
        %v676 = vld [vmem:[%s201 + $0xd18] sm:$0xff]
        %v677 = vld [vmem:[%s201 + $0xd20] sm:$0xff]
        %v678 = vld [vmem:[%s201 + $0xd28] sm:$0xff]
        %v679 = vld [vmem:[%s201 + $0xd30] sm:$0xff]
        %v680 = vld [vmem:[%s201 + $0xd38] sm:$0xff]
        %v681 = vld [vmem:[%s201 + $0xd40] sm:$0xff]
        %v682 = vld [vmem:[%s201 + $0xd48] sm:$0xff]
        %v683 = vld [vmem:[%s201 + $0xd50] sm:$0xff]
        %v684 = vld [vmem:[%s201 + $0xd58] sm:$0xff]
        %v685 = vld [vmem:[%s201 + $0xd60] sm:$0xff]
        %v686 = vld [vmem:[%s201 + $0xd68] sm:$0xff]
        %v687 = vld [vmem:[%s201 + $0xd70] sm:$0xff]
        %v688 = vld [vmem:[%s201 + $0xd78] sm:$0xff]
        %v689 = vld [vmem:[%s201 + $0xd80] sm:$0xff]
        %v690 = vld [vmem:[%s201 + $0xd88] sm:$0xff]
        %v691 = vld [vmem:[%s201 + $0xd90] sm:$0xff]
        %v692 = vld [vmem:[%s201 + $0xd98] sm:$0xff]
        %v693 = vld [vmem:[%s201 + $0xda0] sm:$0xff]
        %v694 = vld [vmem:[%s201 + $0xda8] sm:$0xff]
        %v695 = vld [vmem:[%s201 + $0xdb0] sm:$0xff]
        %v696 = vld [vmem:[%s201 + $0xdb8] sm:$0xff]
        %v697 = vld [vmem:[%s201 + $0xdc0] sm:$0xff]
        %v698 = vld [vmem:[%s201 + $0xdc8] sm:$0xff]
        %v699 = vld [vmem:[%s201 + $0xdd0] sm:$0xff]
        %v700 = vld [vmem:[%s201 + $0xdd8] sm:$0xff]
        %v701 = vld [vmem:[%s201 + $0xde0] sm:$0xff]
        %v702 = vld [vmem:[%s201 + $0xde8] sm:$0xff]
        %v703 = vld [vmem:[%s201 + $0xdf0] sm:$0xff]
        %v704 = vld [vmem:[%s201 + $0xdf8] sm:$0xff]
        %v705 = vld [vmem:[%s201 + $0xe00] sm:$0xff]
        %v706 = vld [vmem:[%s201 + $0xe08] sm:$0xff]
        %v707 = vld [vmem:[%s201 + $0xe10] sm:$0xff]
        %v708 = vld [vmem:[%s201 + $0xe18] sm:$0xff]
        %v709 = vld [vmem:[%s201 + $0xe20] sm:$0xff]
        %v710 = vld [vmem:[%s201 + $0xe28] sm:$0xff]
        %v711 = vld [vmem:[%s201 + $0xe30] sm:$0xff]
        %v712 = vld [vmem:[%s201 + $0xe38] sm:$0xff]
        %v713 = vld [vmem:[%s201 + $0xe40] sm:$0xff]
        %v714 = vld [vmem:[%s201 + $0xe48] sm:$0xff]
        %v715 = vld [vmem:[%s201 + $0xe50] sm:$0xff]
        %v716 = vld [vmem:[%s201 + $0xe58] sm:$0xff]
        %v717 = vld [vmem:[%s201 + $0xe60] sm:$0xff]
        %v718 = vld [vmem:[%s201 + $0xe68] sm:$0xff]
        %v719 = vld [vmem:[%s201 + $0xe70] sm:$0xff]
        %v720 = vld [vmem:[%s201 + $0xe78] sm:$0xff]
        %v721 = vld [vmem:[%s201 + $0xe80] sm:$0xff]
        %v722 = vld [vmem:[%s201 + $0xe88] sm:$0xff]
        %v723 = vld [vmem:[%s201 + $0xe90] sm:$0xff]
        %v724 = vld [vmem:[%s201 + $0xe98] sm:$0xff]
        %v725 = vld [vmem:[%s201 + $0xea0] sm:$0xff]
        %v726 = vld [vmem:[%s201 + $0xea8] sm:$0xff]
        %v727 = vld [vmem:[%s201 + $0xeb0] sm:$0xff]
        %v728 = vld [vmem:[%s201 + $0xeb8] sm:$0xff]
        %v729 = vld [vmem:[%s201 + $0xec0] sm:$0xff]
        %v730 = vld [vmem:[%s201 + $0xec8] sm:$0xff]
        %v731 = vld [vmem:[%s201 + $0xed0] sm:$0xff]
        %v732 = vld [vmem:[%s201 + $0xed8] sm:$0xff]
        %v733 = vld [vmem:[%s201 + $0xee0] sm:$0xff]
        %v734 = vld [vmem:[%s201 + $0xee8] sm:$0xff]
        %v735 = vld [vmem:[%s201 + $0xef0] sm:$0xff]
        %v736 = vld [vmem:[%s201 + $0xef8] sm:$0xff]
        %v737 = vld [vmem:[%s201 + $0xf00] sm:$0xff]
        %v738 = vld [vmem:[%s201 + $0xf08] sm:$0xff]
        %v739 = vld [vmem:[%s201 + $0xf10] sm:$0xff]
        %v740 = vld [vmem:[%s201 + $0xf18] sm:$0xff]
        %v741 = vld [vmem:[%s201 + $0xf20] sm:$0xff]
        %v742 = vld [vmem:[%s201 + $0xf28] sm:$0xff]
        %v743 = vld [vmem:[%s201 + $0xf30] sm:$0xff]
        %v744 = vld [vmem:[%s201 + $0xf38] sm:$0xff]
        %v745 = vld [vmem:[%s201 + $0xf40] sm:$0xff]
        %v746 = vld [vmem:[%s201 + $0xf48] sm:$0xff]
        %v747 = vld [vmem:[%s201 + $0xf50] sm:$0xff]
        %v748 = vld [vmem:[%s201 + $0xf58] sm:$0xff]
        %v749 = vld [vmem:[%s201 + $0xf60] sm:$0xff]
        %v750 = vld [vmem:[%s201 + $0xf68] sm:$0xff]
        %v751 = vld [vmem:[%s201 + $0xf70] sm:$0xff]
        %v752 = vld [vmem:[%s201 + $0xf78] sm:$0xff]
        %v753 = vld [vmem:[%s201 + $0xf80] sm:$0xff]
        %v754 = vld [vmem:[%s201 + $0xf88] sm:$0xff]
        %v755 = vld [vmem:[%s201 + $0xf90] sm:$0xff]
        %v756 = vld [vmem:[%s201 + $0xf98] sm:$0xff]
        %v757 = vld [vmem:[%s201 + $0xfa0] sm:$0xff]
        %v758 = vld [vmem:[%s201 + $0xfa8] sm:$0xff]
        %v759 = vld [vmem:[%s201 + $0xfb0] sm:$0xff]
        %v760 = vld [vmem:[%s201 + $0xfb8] sm:$0xff]
        %v761 = vld [vmem:[%s201 + $0xfc0] sm:$0xff]
        %v762 = vld [vmem:[%s201 + $0xfc8] sm:$0xff]
        %v763 = vld [vmem:[%s201 + $0xfd0] sm:$0xff]
        %v764 = vld [vmem:[%s201 + $0xfd8] sm:$0xff]
        %v765 = vld [vmem:[%s201 + $0xfe0] sm:$0xff]
        %v766 = vld [vmem:[%s201 + $0xfe8] sm:$0xff]
        %v767 = vld [vmem:[%s201 + $0xff0] sm:$0xff]
        %v768 = vld [vmem:[%s201 + $0xff8] sm:$0xff]
        %v769 = vld [vmem:[%s201 + $0x1000] sm:$0xff]
        %v770 = vld [vmem:[%s201 + $0x1008] sm:$0xff]
        %v771 = vld [vmem:[%s201 + $0x1010] sm:$0xff]
        %v772 = vld [vmem:[%s201 + $0x1018] sm:$0xff]
        %v773 = vld [vmem:[%s201 + $0x1020] sm:$0xff]
        %v774 = vld [vmem:[%s201 + $0x1028] sm:$0xff]
        %v775 = vld [vmem:[%s201 + $0x1030] sm:$0xff]
        %v776 = vld [vmem:[%s201 + $0x1038] sm:$0xff]
        %v777 = vld [vmem:[%s201 + $0x1040] sm:$0xff]
        %v778 = vld [vmem:[%s201 + $0x1048] sm:$0xff]
        %v779 = vld [vmem:[%s201 + $0x1050] sm:$0xff]
        %v780 = vld [vmem:[%s201 + $0x1058] sm:$0xff]
        %v781 = vld [vmem:[%s201 + $0x1060] sm:$0xff]
        %v782 = vld [vmem:[%s201 + $0x1068] sm:$0xff]
        %v783 = vld [vmem:[%s201 + $0x1070] sm:$0xff]
        %v784 = vld [vmem:[%s201 + $0x1078] sm:$0xff]
        %v785 = vld [vmem:[%s201 + $0x1080] sm:$0xff]
        %v786 = vld [vmem:[%s201 + $0x1088] sm:$0xff]
        %v787 = vld [vmem:[%s201 + $0x1090] sm:$0xff]
        %v788 = vld [vmem:[%s201 + $0x1098] sm:$0xff]
        %v789 = vld [vmem:[%s201 + $0x10a0] sm:$0xff]
        %v790 = vld [vmem:[%s201 + $0x10a8] sm:$0xff]
        %v791 = vld [vmem:[%s201 + $0x10b0] sm:$0xff]
        %v792 = vld [vmem:[%s201 + $0x10b8] sm:$0xff]
        %v793 = vld [vmem:[%s201 + $0x10c0] sm:$0xff]
        %v794 = vld [vmem:[%s201 + $0x10c8] sm:$0xff]
        %v795 = vld [vmem:[%s201 + $0x10d0] sm:$0xff]
        %v796 = vld [vmem:[%s201 + $0x10d8] sm:$0xff]
        %v797 = vld [vmem:[%s201 + $0x10e0] sm:$0xff]
        %v798 = vld [vmem:[%s201 + $0x10e8] sm:$0xff]
        %v799 = vld [vmem:[%s201 + $0x10f0] sm:$0xff]
        %v800 = vld [vmem:[%s201 + $0x10f8] sm:$0xff]
        %v801 = vld [vmem:[%s201 + $0x1100] sm:$0xff]
        %v802 = vld [vmem:[%s201 + $0x1108] sm:$0xff]
        %v803 = vld [vmem:[%s201 + $0x1110] sm:$0xff]
        %v804 = vld [vmem:[%s201 + $0x1118] sm:$0xff]
        %v805 = vld [vmem:[%s201 + $0x1120] sm:$0xff]
        %v806 = vld [vmem:[%s201 + $0x1128] sm:$0xff]
        %v807 = vld [vmem:[%s201 + $0x1130] sm:$0xff]
        %v808 = vld [vmem:[%s201 + $0x1138] sm:$0xff]
        %v809 = vld [vmem:[%s201 + $0x1140] sm:$0xff]
        %v810 = vld [vmem:[%s201 + $0x1148] sm:$0xff]
        %v811 = vld [vmem:[%s201 + $0x1150] sm:$0xff]
        %v812 = vld [vmem:[%s201 + $0x1158] sm:$0xff]
        %v813 = vld [vmem:[%s201 + $0x1160] sm:$0xff]
        %v814 = vld [vmem:[%s201 + $0x1168] sm:$0xff]
        %v815 = vld [vmem:[%s201 + $0x1170] sm:$0xff]
        %v816 = vld [vmem:[%s201 + $0x1178] sm:$0xff]
        %v817 = vld [vmem:[%s201 + $0x1180] sm:$0xff]
        %v818 = vld [vmem:[%s201 + $0x1188] sm:$0xff]
        %v819 = vld [vmem:[%s201 + $0x1190] sm:$0xff]
        %v820 = vld [vmem:[%s201 + $0x1198] sm:$0xff]
        %v821 = vld [vmem:[%s201 + $0x11a0] sm:$0xff]
        %v822 = vld [vmem:[%s201 + $0x11a8] sm:$0xff]
        %v823 = vld [vmem:[%s201 + $0x11b0] sm:$0xff]
        %v824 = vld [vmem:[%s201 + $0x11b8] sm:$0xff]
        %v825 = vld [vmem:[%s201 + $0x11c0] sm:$0xff]
        %v826 = vld [vmem:[%s201 + $0x11c8] sm:$0xff]
        %v827 = vld [vmem:[%s201 + $0x11d0] sm:$0xff]
        %v828 = vld [vmem:[%s201 + $0x11d8] sm:$0xff]
        %v829 = vld [vmem:[%s201 + $0x11e0] sm:$0xff]
        %v830 = vld [vmem:[%s201 + $0x11e8] sm:$0xff]
        %v831 = vld [vmem:[%s201 + $0x11f0] sm:$0xff]
        %v832 = vld [vmem:[%s201 + $0x11f8] sm:$0xff]
        %v833 = vld [vmem:[%s201 + $0x1200] sm:$0xff]
        %v834 = vld [vmem:[%s201 + $0x1208] sm:$0xff]
        %v835 = vld [vmem:[%s201 + $0x1210] sm:$0xff]
        %v836 = vld [vmem:[%s201 + $0x1218] sm:$0xff]
        %v837 = vld [vmem:[%s201 + $0x1220] sm:$0xff]
        %v838 = vld [vmem:[%s201 + $0x1228] sm:$0xff]
        %v839 = vld [vmem:[%s201 + $0x1230] sm:$0xff]
        %v840 = vld [vmem:[%s201 + $0x1238] sm:$0xff]
        %v841 = vld [vmem:[%s201 + $0x1240] sm:$0xff]
        %v842 = vld [vmem:[%s201 + $0x1248] sm:$0xff]
        %v843 = vld [vmem:[%s201 + $0x1250] sm:$0xff]
        %v844 = vld [vmem:[%s201 + $0x1258] sm:$0xff]
        %v845 = vld [vmem:[%s201 + $0x1260] sm:$0xff]
        %v846 = vld [vmem:[%s201 + $0x1268] sm:$0xff]
        %v847 = vld [vmem:[%s201 + $0x1270] sm:$0xff]
        %v848 = vld [vmem:[%s201 + $0x1278] sm:$0xff]
        %v849 = vld [vmem:[%s201 + $0x1280] sm:$0xff]
        %v850 = vld [vmem:[%s201 + $0x1288] sm:$0xff]
        %v851 = vld [vmem:[%s201 + $0x1290] sm:$0xff]
        %v852 = vld [vmem:[%s201 + $0x1298] sm:$0xff]
        %v853 = vld [vmem:[%s201 + $0x12a0] sm:$0xff]
        %v854 = vld [vmem:[%s201 + $0x12a8] sm:$0xff]
        %v855 = vld [vmem:[%s201 + $0x12b0] sm:$0xff]
        %v856 = vld [vmem:[%s201 + $0x12b8] sm:$0xff]
        %v857 = vld [vmem:[%s201 + $0x12c0] sm:$0xff]
        %v858 = vld [vmem:[%s201 + $0x12c8] sm:$0xff]
        %v859 = vld [vmem:[%s201 + $0x12d0] sm:$0xff]
        %v860 = vld [vmem:[%s201 + $0x12d8] sm:$0xff]
        %v861 = vld [vmem:[%s201 + $0x12e0] sm:$0xff]
        %v862 = vld [vmem:[%s201 + $0x12e8] sm:$0xff]
        %v863 = vld [vmem:[%s201 + $0x12f0] sm:$0xff]
        %v864 = vld [vmem:[%s201 + $0x12f8] sm:$0xff]
        %v865 = vld [vmem:[%s201 + $0x1300] sm:$0xff]
        %v866 = vld [vmem:[%s201 + $0x1308] sm:$0xff]
        %v867 = vld [vmem:[%s201 + $0x1310] sm:$0xff]
        %v868 = vld [vmem:[%s201 + $0x1318] sm:$0xff]
        %v869 = vld [vmem:[%s201 + $0x1320] sm:$0xff]
        %v870 = vld [vmem:[%s201 + $0x1328] sm:$0xff]
        %v871 = vld [vmem:[%s201 + $0x1330] sm:$0xff]
        %v872 = vld [vmem:[%s201 + $0x1338] sm:$0xff]
        %v873 = vld [vmem:[%s201 + $0x1340] sm:$0xff]
        %v874 = vld [vmem:[%s201 + $0x1348] sm:$0xff]
        %v875 = vld [vmem:[%s201 + $0x1350] sm:$0xff]
        %v876 = vld [vmem:[%s201 + $0x1358] sm:$0xff]
        %v877 = vld [vmem:[%s201 + $0x1360] sm:$0xff]
        %v878 = vld [vmem:[%s201 + $0x1368] sm:$0xff]
        %v879 = vld [vmem:[%s201 + $0x1370] sm:$0xff]
        %v880 = vld [vmem:[%s201 + $0x1378] sm:$0xff]
        %v881 = vld [vmem:[%s201 + $0x1380] sm:$0xff]
        %v882 = vld [vmem:[%s201 + $0x1388] sm:$0xff]
        %v883 = vld [vmem:[%s201 + $0x1390] sm:$0xff]
        %v884 = vld [vmem:[%s201 + $0x1398] sm:$0xff]
        %v885 = vld [vmem:[%s201 + $0x13a0] sm:$0xff]
        %v886 = vld [vmem:[%s201 + $0x13a8] sm:$0xff]
        %v887 = vld [vmem:[%s201 + $0x13b0] sm:$0xff]
        %v888 = vld [vmem:[%s201 + $0x13b8] sm:$0xff]
        %v889 = vld [vmem:[%s201 + $0x13c0] sm:$0xff]
        %v890 = vld [vmem:[%s201 + $0x13c8] sm:$0xff]
        %v891 = vld [vmem:[%s201 + $0x13d0] sm:$0xff]
        %v892 = vld [vmem:[%s201 + $0x13d8] sm:$0xff]
        %v893 = vld [vmem:[%s201 + $0x13e0] sm:$0xff]
        %v894 = vld [vmem:[%s201 + $0x13e8] sm:$0xff]
        %v895 = vld [vmem:[%s201 + $0x13f0] sm:$0xff]
        %v896 = vld [vmem:[%s201 + $0x13f8] sm:$0xff]
        %v897 = vld [vmem:[%s201 + $0x1400] sm:$0xff]
        %v898 = vld [vmem:[%s201 + $0x1408] sm:$0xff]
        %v899 = vld [vmem:[%s201 + $0x1410] sm:$0xff]
        %v900 = vld [vmem:[%s201 + $0x1418] sm:$0xff]
        %v901 = vld [vmem:[%s201 + $0x1420] sm:$0xff]
        %v902 = vld [vmem:[%s201 + $0x1428] sm:$0xff]
        %v903 = vld [vmem:[%s201 + $0x1430] sm:$0xff]
        %v904 = vld [vmem:[%s201 + $0x1438] sm:$0xff]
        %v905 = vld [vmem:[%s201 + $0x1440] sm:$0xff]
        %v906 = vld [vmem:[%s201 + $0x1448] sm:$0xff]
        %v907 = vld [vmem:[%s201 + $0x1450] sm:$0xff]
        %v908 = vld [vmem:[%s201 + $0x1458] sm:$0xff]
        %v909 = vld [vmem:[%s201 + $0x1460] sm:$0xff]
        %v910 = vld [vmem:[%s201 + $0x1468] sm:$0xff]
        %v911 = vld [vmem:[%s201 + $0x1470] sm:$0xff]
        %v912 = vld [vmem:[%s201 + $0x1478] sm:$0xff]
        %v913 = vld [vmem:[%s201 + $0x1480] sm:$0xff]
        %v914 = vld [vmem:[%s201 + $0x1488] sm:$0xff]
        %v915 = vld [vmem:[%s201 + $0x1490] sm:$0xff]
        %v916 = vld [vmem:[%s201 + $0x1498] sm:$0xff]
        %v917 = vld [vmem:[%s201 + $0x14a0] sm:$0xff]
        %v918 = vld [vmem:[%s201 + $0x14a8] sm:$0xff]
        %v919 = vld [vmem:[%s201 + $0x14b0] sm:$0xff]
        %v920 = vld [vmem:[%s201 + $0x14b8] sm:$0xff]
        %v921 = vld [vmem:[%s201 + $0x14c0] sm:$0xff]
        %v922 = vld [vmem:[%s201 + $0x14c8] sm:$0xff]
        %v923 = vld [vmem:[%s201 + $0x14d0] sm:$0xff]
        %v924 = vld [vmem:[%s201 + $0x14d8] sm:$0xff]
        %v925 = vld [vmem:[%s201 + $0x14e0] sm:$0xff]
        %v926 = vld [vmem:[%s201 + $0x14e8] sm:$0xff]
        %v927 = vld [vmem:[%s201 + $0x14f0] sm:$0xff]
        %v928 = vld [vmem:[%s201 + $0x14f8] sm:$0xff]
        %v929 = vld [vmem:[%s201 + $0x1500] sm:$0xff]
        %v930 = vld [vmem:[%s201 + $0x1508] sm:$0xff]
        %v931 = vld [vmem:[%s201 + $0x1510] sm:$0xff]
        %v932 = vld [vmem:[%s201 + $0x1518] sm:$0xff]
        %v933 = vld [vmem:[%s201 + $0x1520] sm:$0xff]
        %v934 = vld [vmem:[%s201 + $0x1528] sm:$0xff]
        %v935 = vld [vmem:[%s201 + $0x1530] sm:$0xff]
        %v936 = vld [vmem:[%s201 + $0x1538] sm:$0xff]
        %v937 = vld [vmem:[%s201 + $0x1540] sm:$0xff]
        %v938 = vld [vmem:[%s201 + $0x1548] sm:$0xff]
        %v939 = vld [vmem:[%s201 + $0x1550] sm:$0xff]
        %v940 = vld [vmem:[%s201 + $0x1558] sm:$0xff]
        %v941 = vld [vmem:[%s201 + $0x1560] sm:$0xff]
        %v942 = vld [vmem:[%s201 + $0x1568] sm:$0xff]
        %v943 = vld [vmem:[%s201 + $0x1570] sm:$0xff]
        %v944 = vld [vmem:[%s201 + $0x1578] sm:$0xff]
        %v945 = vld [vmem:[%s201 + $0x1580] sm:$0xff]
        %v946 = vld [vmem:[%s201 + $0x1588] sm:$0xff]
        %v947 = vld [vmem:[%s201 + $0x1590] sm:$0xff]
        %v948 = vld [vmem:[%s201 + $0x1598] sm:$0xff]
        %v949 = vld [vmem:[%s201 + $0x15a0] sm:$0xff]
        %v950 = vld [vmem:[%s201 + $0x15a8] sm:$0xff]
        %v951 = vld [vmem:[%s201 + $0x15b0] sm:$0xff]
        %v952 = vld [vmem:[%s201 + $0x15b8] sm:$0xff]
        %v953 = vld [vmem:[%s201 + $0x15c0] sm:$0xff]
        %v954 = vld [vmem:[%s201 + $0x15c8] sm:$0xff]
        %v955 = vld [vmem:[%s201 + $0x15d0] sm:$0xff]
        %v956 = vld [vmem:[%s201 + $0x15d8] sm:$0xff]
        %v957 = vld [vmem:[%s201 + $0x15e0] sm:$0xff]
        %v958 = vld [vmem:[%s201 + $0x15e8] sm:$0xff]
        %v959 = vld [vmem:[%s201 + $0x15f0] sm:$0xff]
        %v960 = vld [vmem:[%s201 + $0x15f8] sm:$0xff]
        %v961 = vld [vmem:[%s201 + $0x1600] sm:$0xff]
        %v962 = vld [vmem:[%s201 + $0x1608] sm:$0xff]
        %v963 = vld [vmem:[%s201 + $0x1610] sm:$0xff]
        %v964 = vld [vmem:[%s201 + $0x1618] sm:$0xff]
        %v965 = vld [vmem:[%s201 + $0x1620] sm:$0xff]
        %v966 = vld [vmem:[%s201 + $0x1628] sm:$0xff]
        %v967 = vld [vmem:[%s201 + $0x1630] sm:$0xff]
        %v968 = vld [vmem:[%s201 + $0x1638] sm:$0xff]
        %v969 = vld [vmem:[%s201 + $0x1640] sm:$0xff]
        %v970 = vld [vmem:[%s201 + $0x1648] sm:$0xff]
        %v971 = vld [vmem:[%s201 + $0x1650] sm:$0xff]
        %v972 = vld [vmem:[%s201 + $0x1658] sm:$0xff]
        %v973 = vld [vmem:[%s201 + $0x1660] sm:$0xff]
        %v974 = vld [vmem:[%s201 + $0x1668] sm:$0xff]
        %v975 = vld [vmem:[%s201 + $0x1670] sm:$0xff]
        %v976 = vld [vmem:[%s201 + $0x1678] sm:$0xff]
        %v977 = vld [vmem:[%s201 + $0x1680] sm:$0xff]
        %v978 = vld [vmem:[%s201 + $0x1688] sm:$0xff]
        %v979 = vld [vmem:[%s201 + $0x1690] sm:$0xff]
        %v980 = vld [vmem:[%s201 + $0x1698] sm:$0xff]
        %v981 = vld [vmem:[%s201 + $0x16a0] sm:$0xff]
        %v982 = vld [vmem:[%s201 + $0x16a8] sm:$0xff]
        %v983 = vld [vmem:[%s201 + $0x16b0] sm:$0xff]
        %v984 = vld [vmem:[%s201 + $0x16b8] sm:$0xff]
        %v985 = vld [vmem:[%s201 + $0x16c0] sm:$0xff]
        %v986 = vld [vmem:[%s201 + $0x16c8] sm:$0xff]
        %v987 = vld [vmem:[%s201 + $0x16d0] sm:$0xff]
        %v988 = vld [vmem:[%s201 + $0x16d8] sm:$0xff]
        %v989 = vld [vmem:[%s201 + $0x16e0] sm:$0xff]
        %v990 = vld [vmem:[%s201 + $0x16e8] sm:$0xff]
        %v991 = vld [vmem:[%s201 + $0x16f0] sm:$0xff]
        %v992 = vld [vmem:[%s201 + $0x16f8] sm:$0xff]
        %v993 = vld [vmem:[%s201 + $0x1700] sm:$0xff]
        %v994 = vld [vmem:[%s201 + $0x1708] sm:$0xff]
        %v995 = vld [vmem:[%s201 + $0x1710] sm:$0xff]
        %v996 = vld [vmem:[%s201 + $0x1718] sm:$0xff]
        %v997 = vld [vmem:[%s201 + $0x1720] sm:$0xff]
        %v998 = vld [vmem:[%s201 + $0x1728] sm:$0xff]
        %v999 = vld [vmem:[%s201 + $0x1730] sm:$0xff]
        %v1000 = vld [vmem:[%s201 + $0x1738] sm:$0xff]
        %v1001 = vld [vmem:[%s201 + $0x1740] sm:$0xff]
        %v1002 = vld [vmem:[%s201 + $0x1748] sm:$0xff]
        %v1003 = vld [vmem:[%s201 + $0x1750] sm:$0xff]
        %v1004 = vld [vmem:[%s201 + $0x1758] sm:$0xff]
        %v1005 = vld [vmem:[%s201 + $0x1760] sm:$0xff]
        %v1006 = vld [vmem:[%s201 + $0x1768] sm:$0xff]
        %v1007 = vld [vmem:[%s201 + $0x1770] sm:$0xff]
        %v1008 = vld [vmem:[%s201 + $0x1778] sm:$0xff]
        %v1009 = vld [vmem:[%s201 + $0x1780] sm:$0xff]
        %v1010 = vld [vmem:[%s201 + $0x1788] sm:$0xff]
        %v1011 = vld [vmem:[%s201 + $0x1790] sm:$0xff]
        %v1012 = vld [vmem:[%s201 + $0x1798] sm:$0xff]
        %v1013 = vld [vmem:[%s201 + $0x17a0] sm:$0xff]
        %v1014 = vld [vmem:[%s201 + $0x17a8] sm:$0xff]
        %v1015 = vld [vmem:[%s201 + $0x17b0] sm:$0xff]
        %v1016 = vld [vmem:[%s201 + $0x17b8] sm:$0xff]
        %v1017 = vld [vmem:[%s201 + $0x17c0] sm:$0xff]
        %v1018 = vld [vmem:[%s201 + $0x17c8] sm:$0xff]
        %v1019 = vld [vmem:[%s201 + $0x17d0] sm:$0xff]
        %v1020 = vld [vmem:[%s201 + $0x17d8] sm:$0xff]
        %v1021 = vld [vmem:[%s201 + $0x17e0] sm:$0xff]
        %v1022 = vld [vmem:[%s201 + $0x17e8] sm:$0xff]
        %v1023 = vld [vmem:[%s201 + $0x17f0] sm:$0xff]
        %v1024 = vld [vmem:[%s201 + $0x17f8] sm:$0xff]
        %v1025 = vld [vmem:[%s201 + $0x1800] sm:$0xff]
        %v1026 = vld [vmem:[%s201 + $0x1808] sm:$0xff]
        %v1027 = vld [vmem:[%s201 + $0x1810] sm:$0xff]
        %v1028 = vld [vmem:[%s201 + $0x1818] sm:$0xff]
        %v1029 = vld [vmem:[%s201 + $0x1820] sm:$0xff]
        %v1030 = vld [vmem:[%s201 + $0x1828] sm:$0xff]
        %v1031 = vld [vmem:[%s201 + $0x1830] sm:$0xff]
        %v1032 = vld [vmem:[%s201 + $0x1838] sm:$0xff]
        %v1033 = vld [vmem:[%s201 + $0x1840] sm:$0xff]
        %v1034 = vld [vmem:[%s201 + $0x1848] sm:$0xff]
        %v1035 = vld [vmem:[%s201 + $0x1850] sm:$0xff]
        %v1036 = vld [vmem:[%s201 + $0x1858] sm:$0xff]
        %v1037 = vld [vmem:[%s201 + $0x1860] sm:$0xff]
        %v1038 = vld [vmem:[%s201 + $0x1868] sm:$0xff]
        %v1039 = vld [vmem:[%s201 + $0x1870] sm:$0xff]
        %v1040 = vld [vmem:[%s201 + $0x1878] sm:$0xff]
        %v1041 = vld [vmem:[%s201 + $0x1880] sm:$0xff]
        %v1042 = vld [vmem:[%s201 + $0x1888] sm:$0xff]
        %v1043 = vld [vmem:[%s201 + $0x1890] sm:$0xff]
        %v1044 = vld [vmem:[%s201 + $0x1898] sm:$0xff]
        %v1045 = vld [vmem:[%s201 + $0x18a0] sm:$0xff]
        %v1046 = vld [vmem:[%s201 + $0x18a8] sm:$0xff]
        %v1047 = vld [vmem:[%s201 + $0x18b0] sm:$0xff]
        %v1048 = vld [vmem:[%s201 + $0x18b8] sm:$0xff]
        %v1049 = vld [vmem:[%s201 + $0x18c0] sm:$0xff]
        %v1050 = vld [vmem:[%s201 + $0x18c8] sm:$0xff]
        %v1051 = vld [vmem:[%s201 + $0x18d0] sm:$0xff]
        %v1052 = vld [vmem:[%s201 + $0x18d8] sm:$0xff]
        %v1053 = vld [vmem:[%s201 + $0x18e0] sm:$0xff]
        %v1054 = vld [vmem:[%s201 + $0x18e8] sm:$0xff]
        %v1055 = vld [vmem:[%s201 + $0x18f0] sm:$0xff]
        %v1056 = vld [vmem:[%s201 + $0x18f8] sm:$0xff]
        %v1057 = vld [vmem:[%s201 + $0x1900] sm:$0xff]
        %v1058 = vld [vmem:[%s201 + $0x1908] sm:$0xff]
        %v1059 = vld [vmem:[%s201 + $0x1910] sm:$0xff]
        %v1060 = vld [vmem:[%s201 + $0x1918] sm:$0xff]
        %v1061 = vld [vmem:[%s201 + $0x1920] sm:$0xff]
        %v1062 = vld [vmem:[%s201 + $0x1928] sm:$0xff]
        %v1063 = vld [vmem:[%s201 + $0x1930] sm:$0xff]
        %v1064 = vld [vmem:[%s201 + $0x1938] sm:$0xff]
        %v1065 = vld [vmem:[%s201 + $0x1940] sm:$0xff]
        %v1066 = vld [vmem:[%s201 + $0x1948] sm:$0xff]
        %v1067 = vld [vmem:[%s201 + $0x1950] sm:$0xff]
        %v1068 = vld [vmem:[%s201 + $0x1958] sm:$0xff]
        %v1069 = vld [vmem:[%s201 + $0x1960] sm:$0xff]
        %v1070 = vld [vmem:[%s201 + $0x1968] sm:$0xff]
        %v1071 = vld [vmem:[%s201 + $0x1970] sm:$0xff]
        %v1072 = vld [vmem:[%s201 + $0x1978] sm:$0xff]
        %v1073 = vld [vmem:[%s201 + $0x1980] sm:$0xff]
        %v1074 = vld [vmem:[%s201 + $0x1988] sm:$0xff]
        %v1075 = vld [vmem:[%s201 + $0x1990] sm:$0xff]
        %v1076 = vld [vmem:[%s201 + $0x1998] sm:$0xff]
        %v1077 = vld [vmem:[%s201 + $0x19a0] sm:$0xff]
        %v1078 = vld [vmem:[%s201 + $0x19a8] sm:$0xff]
        %v1079 = vld [vmem:[%s201 + $0x19b0] sm:$0xff]
        %v1080 = vld [vmem:[%s201 + $0x19b8] sm:$0xff]
        %v1081 = vld [vmem:[%s201 + $0x19c0] sm:$0xff]
        %v1082 = vld [vmem:[%s201 + $0x19c8] sm:$0xff]
        %v1083 = vld [vmem:[%s201 + $0x19d0] sm:$0xff]
        %v1084 = vld [vmem:[%s201 + $0x19d8] sm:$0xff]
        %v1085 = vld [vmem:[%s201 + $0x19e0] sm:$0xff]
        %v1086 = vld [vmem:[%s201 + $0x19e8] sm:$0xff]
        %v1087 = vld [vmem:[%s201 + $0x19f0] sm:$0xff]
        %v1088 = vld [vmem:[%s201 + $0x19f8] sm:$0xff]
        %v1089 = vld [vmem:[%s201 + $0x1a00] sm:$0xff]
        %v1090 = vld [vmem:[%s201 + $0x1a08] sm:$0xff]
        %v1091 = vld [vmem:[%s201 + $0x1a10] sm:$0xff]
        %v1092 = vld [vmem:[%s201 + $0x1a18] sm:$0xff]
        %v1093 = vld [vmem:[%s201 + $0x1a20] sm:$0xff]
        %v1094 = vld [vmem:[%s201 + $0x1a28] sm:$0xff]
        %v1095 = vld [vmem:[%s201 + $0x1a30] sm:$0xff]
        %v1096 = vld [vmem:[%s201 + $0x1a38] sm:$0xff]
        %v1097 = vld [vmem:[%s201 + $0x1a40] sm:$0xff]
        %v1098 = vld [vmem:[%s201 + $0x1a48] sm:$0xff]
        %v1099 = vld [vmem:[%s201 + $0x1a50] sm:$0xff]
        %v1100 = vld [vmem:[%s201 + $0x1a58] sm:$0xff]
        %v1101 = vld [vmem:[%s201 + $0x1a60] sm:$0xff]
        %v1102 = vld [vmem:[%s201 + $0x1a68] sm:$0xff]
        %v1103 = vld [vmem:[%s201 + $0x1a70] sm:$0xff]
        %v1104 = vld [vmem:[%s201 + $0x1a78] sm:$0xff]
        %v1105 = vld [vmem:[%s201 + $0x1a80] sm:$0xff]
        %v1106 = vld [vmem:[%s201 + $0x1a88] sm:$0xff]
        %v1107 = vld [vmem:[%s201 + $0x1a90] sm:$0xff]
        %v1108 = vld [vmem:[%s201 + $0x1a98] sm:$0xff]
        %v1109 = vld [vmem:[%s201 + $0x1aa0] sm:$0xff]
        %v1110 = vld [vmem:[%s201 + $0x1aa8] sm:$0xff]
        %v1111 = vld [vmem:[%s201 + $0x1ab0] sm:$0xff]
        %v1112 = vld [vmem:[%s201 + $0x1ab8] sm:$0xff]
        %v1113 = vld [vmem:[%s201 + $0x1ac0] sm:$0xff]
        %v1114 = vld [vmem:[%s201 + $0x1ac8] sm:$0xff]
        %v1115 = vld [vmem:[%s201 + $0x1ad0] sm:$0xff]
        %v1116 = vld [vmem:[%s201 + $0x1ad8] sm:$0xff]
        %v1117 = vld [vmem:[%s201 + $0x1ae0] sm:$0xff]
        %v1118 = vld [vmem:[%s201 + $0x1ae8] sm:$0xff]
        %v1119 = vld [vmem:[%s201 + $0x1af0] sm:$0xff]
        %v1120 = vld [vmem:[%s201 + $0x1af8] sm:$0xff]
        %v1121 = vld [vmem:[%s201 + $0x1b00] sm:$0xff]
        %v1122 = vld [vmem:[%s201 + $0x1b08] sm:$0xff]
        %v1123 = vld [vmem:[%s201 + $0x1b10] sm:$0xff]
        %v1124 = vld [vmem:[%s201 + $0x1b18] sm:$0xff]
        %v1125 = vld [vmem:[%s201 + $0x1b20] sm:$0xff]
        %v1126 = vld [vmem:[%s201 + $0x1b28] sm:$0xff]
        %v1127 = vld [vmem:[%s201 + $0x1b30] sm:$0xff]
        %v1128 = vld [vmem:[%s201 + $0x1b38] sm:$0xff]
        %v1129 = vld [vmem:[%s201 + $0x1b40] sm:$0xff]
        %v1130 = vld [vmem:[%s201 + $0x1b48] sm:$0xff]
        %v1131 = vld [vmem:[%s201 + $0x1b50] sm:$0xff]
        %v1132 = vld [vmem:[%s201 + $0x1b58] sm:$0xff]
        %v1133 = vld [vmem:[%s201 + $0x1b60] sm:$0xff]
        %v1134 = vld [vmem:[%s201 + $0x1b68] sm:$0xff]
        %v1135 = vld [vmem:[%s201 + $0x1b70] sm:$0xff]
        %v1136 = vld [vmem:[%s201 + $0x1b78] sm:$0xff]
        %v1137 = vld [vmem:[%s201 + $0x1b80] sm:$0xff]
        %v1138 = vld [vmem:[%s201 + $0x1b88] sm:$0xff]
        %v1139 = vld [vmem:[%s201 + $0x1b90] sm:$0xff]
        %v1140 = vld [vmem:[%s201 + $0x1b98] sm:$0xff]
        %v1141 = vld [vmem:[%s201 + $0x1ba0] sm:$0xff]
        %v1142 = vld [vmem:[%s201 + $0x1ba8] sm:$0xff]
        %v1143 = vld [vmem:[%s201 + $0x1bb0] sm:$0xff]
        %v1144 = vld [vmem:[%s201 + $0x1bb8] sm:$0xff]
        %v1145 = vld [vmem:[%s201 + $0x1bc0] sm:$0xff]
        %v1146 = vld [vmem:[%s201 + $0x1bc8] sm:$0xff]
        %v1147 = vld [vmem:[%s201 + $0x1bd0] sm:$0xff]
        %v1148 = vld [vmem:[%s201 + $0x1bd8] sm:$0xff]
        %v1149 = vld [vmem:[%s201 + $0x1be0] sm:$0xff]
        %v1150 = vld [vmem:[%s201 + $0x1be8] sm:$0xff]
        %v1151 = vld [vmem:[%s201 + $0x1bf0] sm:$0xff]
        %v1152 = vld [vmem:[%s201 + $0x1bf8] sm:$0xff]
        %v1153 = vld [vmem:[%s201 + $0x1c00] sm:$0xff]
        %v1154 = vld [vmem:[%s201 + $0x1c08] sm:$0xff]
        %v1155 = vld [vmem:[%s201 + $0x1c10] sm:$0xff]
        %v1156 = vld [vmem:[%s201 + $0x1c18] sm:$0xff]
        %v1157 = vld [vmem:[%s201 + $0x1c20] sm:$0xff]
        %v1158 = vld [vmem:[%s201 + $0x1c28] sm:$0xff]
        %v1159 = vld [vmem:[%s201 + $0x1c30] sm:$0xff]
        %v1160 = vld [vmem:[%s201 + $0x1c38] sm:$0xff]
        %v1161 = vld [vmem:[%s201 + $0x1c40] sm:$0xff]
        %v1162 = vld [vmem:[%s201 + $0x1c48] sm:$0xff]
        %v1163 = vld [vmem:[%s201 + $0x1c50] sm:$0xff]
        %v1164 = vld [vmem:[%s201 + $0x1c58] sm:$0xff]
        %v1165 = vld [vmem:[%s201 + $0x1c60] sm:$0xff]
        %v1166 = vld [vmem:[%s201 + $0x1c68] sm:$0xff]
        %v1167 = vld [vmem:[%s201 + $0x1c70] sm:$0xff]
        %v1168 = vld [vmem:[%s201 + $0x1c78] sm:$0xff]
        %v1169 = vld [vmem:[%s201 + $0x1c80] sm:$0xff]
        %v1170 = vld [vmem:[%s201 + $0x1c88] sm:$0xff]
        %v1171 = vld [vmem:[%s201 + $0x1c90] sm:$0xff]
        %v1172 = vld [vmem:[%s201 + $0x1c98] sm:$0xff]
        %v1173 = vld [vmem:[%s201 + $0x1ca0] sm:$0xff]
        %v1174 = vld [vmem:[%s201 + $0x1ca8] sm:$0xff]
        %v1175 = vld [vmem:[%s201 + $0x1cb0] sm:$0xff]
        %v1176 = vld [vmem:[%s201 + $0x1cb8] sm:$0xff]
        %v1177 = vld [vmem:[%s201 + $0x1cc0] sm:$0xff]
        %v1178 = vld [vmem:[%s201 + $0x1cc8] sm:$0xff]
        %v1179 = vld [vmem:[%s201 + $0x1cd0] sm:$0xff]
        %v1180 = vld [vmem:[%s201 + $0x1cd8] sm:$0xff]
        %v1181 = vld [vmem:[%s201 + $0x1ce0] sm:$0xff]
        %v1182 = vld [vmem:[%s201 + $0x1ce8] sm:$0xff]
        %v1183 = vld [vmem:[%s201 + $0x1cf0] sm:$0xff]
        %v1184 = vld [vmem:[%s201 + $0x1cf8] sm:$0xff]
        %v1185 = vld [vmem:[%s201 + $0x1d00] sm:$0xff]
        %v1186 = vld [vmem:[%s201 + $0x1d08] sm:$0xff]
        %v1187 = vld [vmem:[%s201 + $0x1d10] sm:$0xff]
        %v1188 = vld [vmem:[%s201 + $0x1d18] sm:$0xff]
        %v1189 = vld [vmem:[%s201 + $0x1d20] sm:$0xff]
        %v1190 = vld [vmem:[%s201 + $0x1d28] sm:$0xff]
        %v1191 = vld [vmem:[%s201 + $0x1d30] sm:$0xff]
        %v1192 = vld [vmem:[%s201 + $0x1d38] sm:$0xff]
        %v1193 = vld [vmem:[%s201 + $0x1d40] sm:$0xff]
        %v1194 = vld [vmem:[%s201 + $0x1d48] sm:$0xff]
        %v1195 = vld [vmem:[%s201 + $0x1d50] sm:$0xff]
        %v1196 = vld [vmem:[%s201 + $0x1d58] sm:$0xff]
        %v1197 = vld [vmem:[%s201 + $0x1d60] sm:$0xff]
        %v1198 = vld [vmem:[%s201 + $0x1d68] sm:$0xff]
        %v1199 = vld [vmem:[%s201 + $0x1d70] sm:$0xff]
        %v1200 = vld [vmem:[%s201 + $0x1d78] sm:$0xff]
        %v1201 = vld [vmem:[%s201 + $0x1d80] sm:$0xff]
        %v1202 = vld [vmem:[%s201 + $0x1d88] sm:$0xff]
        %v1203 = vld [vmem:[%s201 + $0x1d90] sm:$0xff]
        %v1204 = vld [vmem:[%s201 + $0x1d98] sm:$0xff]
        %v1205 = vld [vmem:[%s201 + $0x1da0] sm:$0xff]
        %v1206 = vld [vmem:[%s201 + $0x1da8] sm:$0xff]
        %v1207 = vld [vmem:[%s201 + $0x1db0] sm:$0xff]
        %v1208 = vld [vmem:[%s201 + $0x1db8] sm:$0xff]
        %v1209 = vld [vmem:[%s201 + $0x1dc0] sm:$0xff]
        %v1210 = vld [vmem:[%s201 + $0x1dc8] sm:$0xff]
        %v1211 = vld [vmem:[%s201 + $0x1dd0] sm:$0xff]
        %v1212 = vld [vmem:[%s201 + $0x1dd8] sm:$0xff]
        %v1213 = vld [vmem:[%s201 + $0x1de0] sm:$0xff]
        %v1214 = vld [vmem:[%s201 + $0x1de8] sm:$0xff]
        %v1215 = vld [vmem:[%s201 + $0x1df0] sm:$0xff]
        %v1216 = vld [vmem:[%s201 + $0x1df8] sm:$0xff]
        %v1217 = vld [vmem:[%s201 + $0x1e00] sm:$0xff]
        %v1218 = vld [vmem:[%s201 + $0x1e08] sm:$0xff]
        %v1219 = vld [vmem:[%s201 + $0x1e10] sm:$0xff]
        %v1220 = vld [vmem:[%s201 + $0x1e18] sm:$0xff]
        %v1221 = vld [vmem:[%s201 + $0x1e20] sm:$0xff]
        %v1222 = vld [vmem:[%s201 + $0x1e28] sm:$0xff]
        %v1223 = vld [vmem:[%s201 + $0x1e30] sm:$0xff]
        %v1224 = vld [vmem:[%s201 + $0x1e38] sm:$0xff]
        %v1225 = vld [vmem:[%s201 + $0x1e40] sm:$0xff]
        %v1226 = vld [vmem:[%s201 + $0x1e48] sm:$0xff]
        %v1227 = vld [vmem:[%s201 + $0x1e50] sm:$0xff]
        %v1228 = vld [vmem:[%s201 + $0x1e58] sm:$0xff]
        %v1229 = vld [vmem:[%s201 + $0x1e60] sm:$0xff]
        %v1230 = vld [vmem:[%s201 + $0x1e68] sm:$0xff]
        %v1231 = vld [vmem:[%s201 + $0x1e70] sm:$0xff]
        %v1232 = vld [vmem:[%s201 + $0x1e78] sm:$0xff]
        %v1233 = vld [vmem:[%s201 + $0x1e80] sm:$0xff]
        %v1234 = vld [vmem:[%s201 + $0x1e88] sm:$0xff]
        %v1235 = vld [vmem:[%s201 + $0x1e90] sm:$0xff]
        %v1236 = vld [vmem:[%s201 + $0x1e98] sm:$0xff]
        %v1237 = vld [vmem:[%s201 + $0x1ea0] sm:$0xff]
        %v1238 = vld [vmem:[%s201 + $0x1ea8] sm:$0xff]
        %v1239 = vld [vmem:[%s201 + $0x1eb0] sm:$0xff]
        %v1240 = vld [vmem:[%s201 + $0x1eb8] sm:$0xff]
        %v1241 = vld [vmem:[%s201 + $0x1ec0] sm:$0xff]
        %v1242 = vld [vmem:[%s201 + $0x1ec8] sm:$0xff]
        %v1243 = vld [vmem:[%s201 + $0x1ed0] sm:$0xff]
        %v1244 = vld [vmem:[%s201 + $0x1ed8] sm:$0xff]
        %v1245 = vld [vmem:[%s201 + $0x1ee0] sm:$0xff]
        %v1246 = vld [vmem:[%s201 + $0x1ee8] sm:$0xff]
        %v1247 = vld [vmem:[%s201 + $0x1ef0] sm:$0xff]
        %v1248 = vld [vmem:[%s201 + $0x1ef8] sm:$0xff]
        %v1249 = vld [vmem:[%s201 + $0x1f00] sm:$0xff]
        %v1250 = vld [vmem:[%s201 + $0x1f08] sm:$0xff]
        %v1251 = vld [vmem:[%s201 + $0x1f10] sm:$0xff]
        %v1252 = vld [vmem:[%s201 + $0x1f18] sm:$0xff]
        %v1253 = vld [vmem:[%s201 + $0x1f20] sm:$0xff]
        %v1254 = vld [vmem:[%s201 + $0x1f28] sm:$0xff]
        %v1255 = vld [vmem:[%s201 + $0x1f30] sm:$0xff]
        %v1256 = vld [vmem:[%s201 + $0x1f38] sm:$0xff]
        %v1257 = vld [vmem:[%s201 + $0x1f40] sm:$0xff]
        %v1258 = vld [vmem:[%s201 + $0x1f48] sm:$0xff]
        %v1259 = vld [vmem:[%s201 + $0x1f50] sm:$0xff]
        %v1260 = vld [vmem:[%s201 + $0x1f58] sm:$0xff]
        %v1261 = vld [vmem:[%s201 + $0x1f60] sm:$0xff]
        %v1262 = vld [vmem:[%s201 + $0x1f68] sm:$0xff]
        %v1263 = vld [vmem:[%s201 + $0x1f70] sm:$0xff]
        %v1264 = vld [vmem:[%s201 + $0x1f78] sm:$0xff]
        %v1265 = vld [vmem:[%s201 + $0x1f80] sm:$0xff]
        %v1266 = vld [vmem:[%s201 + $0x1f88] sm:$0xff]
        %v1267 = vld [vmem:[%s201 + $0x1f90] sm:$0xff]
        %v1268 = vld [vmem:[%s201 + $0x1f98] sm:$0xff]
        %v1269 = vld [vmem:[%s201 + $0x1fa0] sm:$0xff]
        %v1270 = vld [vmem:[%s201 + $0x1fa8] sm:$0xff]
        %v1271 = vld [vmem:[%s201 + $0x1fb0] sm:$0xff]
        %v1272 = vld [vmem:[%s201 + $0x1fb8] sm:$0xff]
        %v1273 = vld [vmem:[%s201 + $0x1fc0] sm:$0xff]
        %v1274 = vld [vmem:[%s201 + $0x1fc8] sm:$0xff]
        %v1275 = vld [vmem:[%s201 + $0x1fd0] sm:$0xff]
        %v1276 = vld [vmem:[%s201 + $0x1fd8] sm:$0xff]
        %v1277 = vld [vmem:[%s201 + $0x1fe0] sm:$0xff]
        %v1278 = vld [vmem:[%s201 + $0x1fe8] sm:$0xff]
        %v1279 = vld [vmem:[%s201 + $0x1ff0] sm:$0xff]
        %v1280 = vld [vmem:[%s201 + $0x1ff8] sm:$0xff]
        %v1281 = vld [vmem:[%s201 + $0x2000] sm:$0xff]
        %v1282 = vld [vmem:[%s201 + $0x2008] sm:$0xff]
        %v1283 = vld [vmem:[%s201 + $0x2010] sm:$0xff]
        %v1284 = vld [vmem:[%s201 + $0x2018] sm:$0xff]
        %v1285 = vld [vmem:[%s201 + $0x2020] sm:$0xff]
        %v1286 = vld [vmem:[%s201 + $0x2028] sm:$0xff]
        %v1287 = vld [vmem:[%s201 + $0x2030] sm:$0xff]
        %v1288 = vld [vmem:[%s201 + $0x2038] sm:$0xff]
        %v1289 = vld [vmem:[%s201 + $0x2040] sm:$0xff]
        %v1290 = vld [vmem:[%s201 + $0x2048] sm:$0xff]
        %v1291 = vld [vmem:[%s201 + $0x2050] sm:$0xff]
        %v1292 = vld [vmem:[%s201 + $0x2058] sm:$0xff]
        %v1293 = vld [vmem:[%s201 + $0x2060] sm:$0xff]
        %v1294 = vld [vmem:[%s201 + $0x2068] sm:$0xff]
        %v1295 = vld [vmem:[%s201 + $0x2070] sm:$0xff]
        %v1296 = vld [vmem:[%s201 + $0x2078] sm:$0xff]
        %v1297 = vld [vmem:[%s201 + $0x2080] sm:$0xff]
        %v1298 = vld [vmem:[%s201 + $0x2088] sm:$0xff]
        %v1299 = vld [vmem:[%s201 + $0x2090] sm:$0xff]
        %v1300 = vld [vmem:[%s201 + $0x2098] sm:$0xff]
        %v1301 = vld [vmem:[%s201 + $0x20a0] sm:$0xff]
        %v1302 = vld [vmem:[%s201 + $0x20a8] sm:$0xff]
        %v1303 = vld [vmem:[%s201 + $0x20b0] sm:$0xff]
        %v1304 = vld [vmem:[%s201 + $0x20b8] sm:$0xff]
        %v1305 = vld [vmem:[%s201 + $0x20c0] sm:$0xff]
        %v1306 = vld [vmem:[%s201 + $0x20c8] sm:$0xff]
        %v1307 = vld [vmem:[%s201 + $0x20d0] sm:$0xff]
        %v1308 = vld [vmem:[%s201 + $0x20d8] sm:$0xff]
        %v1309 = vld [vmem:[%s201 + $0x20e0] sm:$0xff]
        %v1310 = vld [vmem:[%s201 + $0x20e8] sm:$0xff]
        %v1311 = vld [vmem:[%s201 + $0x20f0] sm:$0xff]
        %v1312 = vld [vmem:[%s201 + $0x20f8] sm:$0xff]
        %v1313 = vld [vmem:[%s201 + $0x2100] sm:$0xff]
        %v1314 = vld [vmem:[%s201 + $0x2108] sm:$0xff]
        %v1315 = vld [vmem:[%s201 + $0x2110] sm:$0xff]
        %v1316 = vld [vmem:[%s201 + $0x2118] sm:$0xff]
        %v1317 = vld [vmem:[%s201 + $0x2120] sm:$0xff]
        %v1318 = vld [vmem:[%s201 + $0x2128] sm:$0xff]
        %v1319 = vld [vmem:[%s201 + $0x2130] sm:$0xff]
        %v1320 = vld [vmem:[%s201 + $0x2138] sm:$0xff]
        %v1321 = vld [vmem:[%s201 + $0x2140] sm:$0xff]
        %v1322 = vld [vmem:[%s201 + $0x2148] sm:$0xff]
        %v1323 = vld [vmem:[%s201 + $0x2150] sm:$0xff]
        %v1324 = vld [vmem:[%s201 + $0x2158] sm:$0xff]
        %v1325 = vld [vmem:[%s201 + $0x2160] sm:$0xff]
        %v1326 = vld [vmem:[%s201 + $0x2168] sm:$0xff]
        %v1327 = vld [vmem:[%s201 + $0x2170] sm:$0xff]
        %v1328 = vld [vmem:[%s201 + $0x2178] sm:$0xff]
        %v1329 = vld [vmem:[%s201 + $0x2180] sm:$0xff]
        %v1330 = vld [vmem:[%s201 + $0x2188] sm:$0xff]
        %v1331 = vld [vmem:[%s201 + $0x2190] sm:$0xff]
        %v1332 = vld [vmem:[%s201 + $0x2198] sm:$0xff]
        %v1333 = vld [vmem:[%s201 + $0x21a0] sm:$0xff]
        %v1334 = vld [vmem:[%s201 + $0x21a8] sm:$0xff]
        %v1335 = vld [vmem:[%s201 + $0x21b0] sm:$0xff]
        %v1336 = vld [vmem:[%s201 + $0x21b8] sm:$0xff]
        %v1337 = vld [vmem:[%s201 + $0x21c0] sm:$0xff]
        %v1338 = vld [vmem:[%s201 + $0x21c8] sm:$0xff]
        %v1339 = vld [vmem:[%s201 + $0x21d0] sm:$0xff]
        %v1340 = vld [vmem:[%s201 + $0x21d8] sm:$0xff]
        %v1341 = vld [vmem:[%s201 + $0x21e0] sm:$0xff]
        %v1342 = vld [vmem:[%s201 + $0x21e8] sm:$0xff]
        %v1343 = vld [vmem:[%s201 + $0x21f0] sm:$0xff]
        %v1344 = vld [vmem:[%s201 + $0x21f8] sm:$0xff]
        %v1345 = vld [vmem:[%s201 + $0x2200] sm:$0xff]
        %v1346 = vld [vmem:[%s201 + $0x2208] sm:$0xff]
        %v1347 = vld [vmem:[%s201 + $0x2210] sm:$0xff]
        %v1348 = vld [vmem:[%s201 + $0x2218] sm:$0xff]
        %v1349 = vld [vmem:[%s201 + $0x2220] sm:$0xff]
        %v1350 = vld [vmem:[%s201 + $0x2228] sm:$0xff]
        %v1351 = vld [vmem:[%s201 + $0x2230] sm:$0xff]
        %v1352 = vld [vmem:[%s201 + $0x2238] sm:$0xff]
        %v1353 = vld [vmem:[%s201 + $0x2240] sm:$0xff]
        %v1354 = vld [vmem:[%s201 + $0x2248] sm:$0xff]
        %v1355 = vld [vmem:[%s201 + $0x2250] sm:$0xff]
        %v1356 = vld [vmem:[%s201 + $0x2258] sm:$0xff]
        %v1357 = vld [vmem:[%s201 + $0x2260] sm:$0xff]
        %v1358 = vld [vmem:[%s201 + $0x2268] sm:$0xff]
        %v1359 = vld [vmem:[%s201 + $0x2270] sm:$0xff]
        %v1360 = vld [vmem:[%s201 + $0x2278] sm:$0xff]
        %v1361 = vld [vmem:[%s201 + $0x2280] sm:$0xff]
        %v1362 = vld [vmem:[%s201 + $0x2288] sm:$0xff]
        %v1363 = vld [vmem:[%s201 + $0x2290] sm:$0xff]
        %v1364 = vld [vmem:[%s201 + $0x2298] sm:$0xff]
        %v1365 = vld [vmem:[%s201 + $0x22a0] sm:$0xff]
        %v1366 = vld [vmem:[%s201 + $0x22a8] sm:$0xff]
        %v1367 = vld [vmem:[%s201 + $0x22b0] sm:$0xff]
        %v1368 = vld [vmem:[%s201 + $0x22b8] sm:$0xff]
        %v1369 = vld [vmem:[%s201 + $0x22c0] sm:$0xff]
        %v1370 = vld [vmem:[%s201 + $0x22c8] sm:$0xff]
        %v1371 = vld [vmem:[%s201 + $0x22d0] sm:$0xff]
        %v1372 = vld [vmem:[%s201 + $0x22d8] sm:$0xff]
        %v1373 = vld [vmem:[%s201 + $0x22e0] sm:$0xff]
        %v1374 = vld [vmem:[%s201 + $0x22e8] sm:$0xff]
        %v1375 = vld [vmem:[%s201 + $0x22f0] sm:$0xff]
        %v1376 = vld [vmem:[%s201 + $0x22f8] sm:$0xff]
        %v1377 = vld [vmem:[%s201 + $0x2300] sm:$0xff]
        %v1378 = vld [vmem:[%s201 + $0x2308] sm:$0xff]
        %v1379 = vld [vmem:[%s201 + $0x2310] sm:$0xff]
        %v1380 = vld [vmem:[%s201 + $0x2318] sm:$0xff]
        %v1381 = vld [vmem:[%s201 + $0x2320] sm:$0xff]
        %v1382 = vld [vmem:[%s201 + $0x2328] sm:$0xff]
        %v1383 = vld [vmem:[%s201 + $0x2330] sm:$0xff]
        %v1384 = vld [vmem:[%s201 + $0x2338] sm:$0xff]
        %v1385 = vld [vmem:[%s201 + $0x2340] sm:$0xff]
        %v1386 = vld [vmem:[%s201 + $0x2348] sm:$0xff]
        %v1387 = vld [vmem:[%s201 + $0x2350] sm:$0xff]
        %v1388 = vld [vmem:[%s201 + $0x2358] sm:$0xff]
        %v1389 = vld [vmem:[%s201 + $0x2360] sm:$0xff]
        %v1390 = vld [vmem:[%s201 + $0x2368] sm:$0xff]
        %v1391 = vld [vmem:[%s201 + $0x2370] sm:$0xff]
        %v1392 = vld [vmem:[%s201 + $0x2378] sm:$0xff]
        %v1393 = vld [vmem:[%s201 + $0x2380] sm:$0xff]
        %v1394 = vld [vmem:[%s201 + $0x2388] sm:$0xff]
        %v1395 = vld [vmem:[%s201 + $0x2390] sm:$0xff]
        %v1396 = vld [vmem:[%s201 + $0x2398] sm:$0xff]
        %v1397 = vld [vmem:[%s201 + $0x23a0] sm:$0xff]
        %v1398 = vld [vmem:[%s201 + $0x23a8] sm:$0xff]
        %v1399 = vld [vmem:[%s201 + $0x23b0] sm:$0xff]
        %v1400 = vld [vmem:[%s201 + $0x23b8] sm:$0xff]
        %v1401 = vld [vmem:[%s201 + $0x23c0] sm:$0xff]
        %v1402 = vld [vmem:[%s201 + $0x23c8] sm:$0xff]
        %v1403 = vld [vmem:[%s201 + $0x23d0] sm:$0xff]
        %v1404 = vld [vmem:[%s201 + $0x23d8] sm:$0xff]
        %v1405 = vld [vmem:[%s201 + $0x23e0] sm:$0xff]
        %v1406 = vld [vmem:[%s201 + $0x23e8] sm:$0xff]
        %v1407 = vld [vmem:[%s201 + $0x23f0] sm:$0xff]
        %v1408 = vld [vmem:[%s201 + $0x23f8] sm:$0xff]
        %v1414 = vcombine.high %v252, %v252
        %v1416 = vunpack.c.l.s4 1983009808
        %v1417 = vunpack.c.0.s8 %v1416
        %v1418 = vlaneseq
        %v1419 = vshrl.u32 %v1418, 7
        %v1420 = vsub.s32 %v1417, %v1419
        %v1421 = vrot.slane %v252, %v1420
        %v1423 = vunpack.c.l.s4 1983009808
        %v1424 = vunpack.c.0.s8 %v1423
        %v1425 = vlaneseq
        %v1426 = vshrl.u32 %v1425, 7
        %v1427 = vsub.s32 %v1424, %v1426
        %v1428 = vrot.slane %v1414, %v1427
        %v1429 = vcombine.high %v1421, %v1421
        %v1430 = vcombine.high %v1428, %v1428
        %v1431 = vcombine.high %v253, %v253
        %v1433 = vunpack.c.l.s4 1983009808
        %v1434 = vunpack.c.0.s8 %v1433
        %v1435 = vlaneseq
        %v1436 = vshrl.u32 %v1435, 7
        %v1437 = vsub.s32 %v1434, %v1436
        %v1438 = vrot.slane %v253, %v1437
        %v1440 = vunpack.c.l.s4 1983009808
        %v1441 = vunpack.c.0.s8 %v1440
        %v1442 = vlaneseq
        %v1443 = vshrl.u32 %v1442, 7
        %v1444 = vsub.s32 %v1441, %v1443
        %v1445 = vrot.slane %v1431, %v1444
        %v1446 = vcombine.high %v1438, %v1438
        %v1447 = vcombine.high %v1445, %v1445
        %v1448 = vcombine.high %v254, %v254
        %v1450 = vunpack.c.l.s4 1983009808
        %v1451 = vunpack.c.0.s8 %v1450
        %v1452 = vlaneseq
        %v1453 = vshrl.u32 %v1452, 7
        %v1454 = vsub.s32 %v1451, %v1453
        %v1455 = vrot.slane %v254, %v1454
        %v1457 = vunpack.c.l.s4 1983009808
        %v1458 = vunpack.c.0.s8 %v1457
        %v1459 = vlaneseq
        %v1460 = vshrl.u32 %v1459, 7
        %v1461 = vsub.s32 %v1458, %v1460
        %v1462 = vrot.slane %v1448, %v1461
        %v1463 = vcombine.high %v1455, %v1455
        %v1464 = vcombine.high %v1462, %v1462
        %v1465 = vcombine.high %v255, %v255
        %v1467 = vunpack.c.l.s4 1983009808
        %v1468 = vunpack.c.0.s8 %v1467
        %v1469 = vlaneseq
        %v1470 = vshrl.u32 %v1469, 7
        %v1471 = vsub.s32 %v1468, %v1470
        %v1472 = vrot.slane %v255, %v1471
        %v1474 = vunpack.c.l.s4 1983009808
        %v1475 = vunpack.c.0.s8 %v1474
        %v1476 = vlaneseq
        %v1477 = vshrl.u32 %v1476, 7
        %v1478 = vsub.s32 %v1475, %v1477
        %v1479 = vrot.slane %v1465, %v1478
        %v1480 = vcombine.high %v1472, %v1472
        %v1481 = vcombine.high %v1479, %v1479
        %v1483 = vunpack.c.l.s4 1983009808
        %v1484 = vunpack.c.0.s8 %v1483
        %v1485 = vlaneseq
        %v1486 = vshrl.u32 %v1485, 7
        %v1487 = vsub.s32 %v1484, %v1486
        %v1488 = vrot.slane %v256, %v1487
        %v1489 = vcombine.high %v1488, %v1488
        %1508 = vmatprep.subr.mxu0 %v258
        %1509 = vmatpush1.xpose.msra.mxu0 %v257
        %1510 = vmatprep.subr.mxu0 %v276
        %1511 = vmatpush1.xpose.msra.mxu0 %v275
        %1512 = vmatprep.subr.mxu0 %v294
        %1513 = vmatpush1.xpose.msra.mxu0 %v293
        %1514 = vmatprep.subr.mxu0 %v312
        %1515 = vmatpush1.xpose.msra.mxu0 %v311
        %1516 = vmatprep.subr.mxu0 %v330
        %1517 = vmatpush1.xpose.msra.mxu0 %v329
        %1518 = vmatprep.subr.mxu0 %v348
        %1519 = vmatpush1.xpose.msra.mxu0 %v347
        %1520 = vmatprep.subr.mxu0 %v366
        %1521 = vmatpush1.xpose.msra.mxu0 %v365
        %1522 = vmatprep.subr.mxu0 %v384
        %1523 = vmatpush1.xpose.msra.mxu0 %v383
        %1524 = vmatprep.subr.mxu0 %v402
        %1525 = vmatpush1.xpose.msra.mxu0 %v401
        %1526 = vmatprep.subr.mxu0 %v420
        %1527 = vmatpush1.xpose.msra.mxu0 %v419
        %1528 = vmatprep.subr.mxu0 %v438
        %1529 = vmatpush1.xpose.msra.mxu0 %v437
        %1530 = vmatprep.subr.mxu0 %v456
        %1531 = vmatpush1.xpose.msra.mxu0 %v455
        %1532 = vmatprep.subr.mxu0 %v474
        %1533 = vmatpush1.xpose.msra.mxu0 %v473
        %1534 = vmatprep.subr.mxu0 %v492
        %1535 = vmatpush1.xpose.msra.mxu0 %v491
        %1536 = vmatprep.subr.mxu0 %v510
        %1537 = vmatpush1.xpose.msra.mxu0 %v509
        %1538 = vmatprep.subr.mxu0 %v528
        %1539 = vmatpush1.xpose.msra.mxu0 %v527
        %1540 = vmatprep.subr.mxu0 %v546
        %1541 = vmatpush1.xpose.msra.mxu0 %v545
        %1542 = vmatprep.subr.mxu0 %v564
        %1543 = vmatpush1.xpose.msra.mxu0 %v563
        %1544 = vmatprep.subr.mxu0 %v582
        %1545 = vmatpush1.xpose.msra.mxu0 %v581
        %1546 = vmatprep.subr.mxu0 %v600
        %1547 = vmatpush1.xpose.msra.mxu0 %v599
        %1548 = vmatprep.subr.mxu0 %v618
        %1549 = vmatpush1.xpose.msra.mxu0 %v617
        %1550 = vmatprep.subr.mxu0 %v636
        %1551 = vmatpush1.xpose.msra.mxu0 %v635
        %1552 = vmatprep.subr.mxu0 %v654
        %1553 = vmatpush1.xpose.msra.mxu0 %v653
        %1554 = vmatprep.subr.mxu0 %v672
        %1555 = vmatpush1.xpose.msra.mxu0 %v671
        %1556 = vmatprep.subr.mxu0 %v690
        %1557 = vmatpush1.xpose.msra.mxu0 %v689
        %1558 = vmatprep.subr.mxu0 %v708
        %1559 = vmatpush1.xpose.msra.mxu0 %v707
        %1560 = vmatprep.subr.mxu0 %v726
        %1561 = vmatpush1.xpose.msra.mxu0 %v725
        %1562 = vmatprep.subr.mxu0 %v744
        %1563 = vmatpush1.xpose.msra.mxu0 %v743
        %1564 = vmatprep.subr.mxu0 %v762
        %1565 = vmatpush1.xpose.msra.mxu0 %v761
        %1566 = vmatprep.subr.mxu0 %v780
        %1567 = vmatpush1.xpose.msra.mxu0 %v779
        %1568 = vmatprep.subr.mxu0 %v798
        %1569 = vmatpush1.xpose.msra.mxu0 %v797
        %1570 = vmatprep.subr.mxu0 %v816
        %1571 = vmatpush1.xpose.msra.mxu0 %v815
        %1572 = vmatprep.mubr.f32.mxu0 %v1429
        %1573 = vmatmul.mubr.f32.gmra.mrb[0].mxu0 %v1421
        %v1574 = vpop.f32.mrb[0].mxu0
        %v1575 = vadd.f32 0.0, %v1574
        %v1576 = vpop.f32.mrb[0].mxu0
        %v1577 = vadd.f32 0.0, %v1576
        %1578 = vdwg.mxu0
        %1579 = vmatprep.subr.mxu0 %v260
        %1580 = vmatpush1.xpose.msra.mxu0 %v259
        %1581 = vmatprep.subr.mxu0 %v278
        %1582 = vmatpush1.xpose.msra.mxu0 %v277
        %1583 = vmatprep.subr.mxu0 %v296
        %1584 = vmatpush1.xpose.msra.mxu0 %v295
        %1585 = vmatprep.subr.mxu0 %v314
        %1586 = vmatpush1.xpose.msra.mxu0 %v313
        %1587 = vmatprep.subr.mxu0 %v332
        %1588 = vmatpush1.xpose.msra.mxu0 %v331
        %1589 = vmatprep.subr.mxu0 %v350
        %1590 = vmatpush1.xpose.msra.mxu0 %v349
        %1591 = vmatprep.subr.mxu0 %v368
        %1592 = vmatpush1.xpose.msra.mxu0 %v367
        %1593 = vmatprep.subr.mxu0 %v386
        %1594 = vmatpush1.xpose.msra.mxu0 %v385
        %1595 = vmatprep.subr.mxu0 %v404
        %1596 = vmatpush1.xpose.msra.mxu0 %v403
        %1597 = vmatprep.subr.mxu0 %v422
        %1598 = vmatpush1.xpose.msra.mxu0 %v421
        %1599 = vmatprep.subr.mxu0 %v440
        %1600 = vmatpush1.xpose.msra.mxu0 %v439
        %1601 = vmatprep.subr.mxu0 %v458
        %1602 = vmatpush1.xpose.msra.mxu0 %v457
        %1603 = vmatprep.subr.mxu0 %v476
        %1604 = vmatpush1.xpose.msra.mxu0 %v475
        %1605 = vmatprep.subr.mxu0 %v494
        %1606 = vmatpush1.xpose.msra.mxu0 %v493
        %1607 = vmatprep.subr.mxu0 %v512
        %1608 = vmatpush1.xpose.msra.mxu0 %v511
        %1609 = vmatprep.subr.mxu0 %v530
        %1610 = vmatpush1.xpose.msra.mxu0 %v529
        %1611 = vmatprep.subr.mxu0 %v548
        %1612 = vmatpush1.xpose.msra.mxu0 %v547
        %1613 = vmatprep.subr.mxu0 %v566
        %1614 = vmatpush1.xpose.msra.mxu0 %v565
        %1615 = vmatprep.subr.mxu0 %v584
        %1616 = vmatpush1.xpose.msra.mxu0 %v583
        %1617 = vmatprep.subr.mxu0 %v602
        %1618 = vmatpush1.xpose.msra.mxu0 %v601
        %1619 = vmatprep.subr.mxu0 %v620
        %1620 = vmatpush1.xpose.msra.mxu0 %v619
        %1621 = vmatprep.subr.mxu0 %v638
        %1622 = vmatpush1.xpose.msra.mxu0 %v637
        %1623 = vmatprep.subr.mxu0 %v656
        %1624 = vmatpush1.xpose.msra.mxu0 %v655
        %1625 = vmatprep.subr.mxu0 %v674
        %1626 = vmatpush1.xpose.msra.mxu0 %v673
        %1627 = vmatprep.subr.mxu0 %v692
        %1628 = vmatpush1.xpose.msra.mxu0 %v691
        %1629 = vmatprep.subr.mxu0 %v710
        %1630 = vmatpush1.xpose.msra.mxu0 %v709
        %1631 = vmatprep.subr.mxu0 %v728
        %1632 = vmatpush1.xpose.msra.mxu0 %v727
        %1633 = vmatprep.subr.mxu0 %v746
        %1634 = vmatpush1.xpose.msra.mxu0 %v745
        %1635 = vmatprep.subr.mxu0 %v764
        %1636 = vmatpush1.xpose.msra.mxu0 %v763
        %1637 = vmatprep.subr.mxu0 %v782
        %1638 = vmatpush1.xpose.msra.mxu0 %v781
        %1639 = vmatprep.subr.mxu0 %v800
        %1640 = vmatpush1.xpose.msra.mxu0 %v799
        %1641 = vmatprep.subr.mxu0 %v818
        %1642 = vmatpush1.xpose.msra.mxu0 %v817
        %1643 = vmatprep.mubr.f32.mxu0 %v1430
        %1644 = vmatmul.mubr.f32.gmra.mrb[0].mxu0 %v1428
        %v1645 = vpop.f32.mrb[0].mxu0
        %v1646 = vadd.f32 %v1575, %v1645
        %v1647 = vpop.f32.mrb[0].mxu0
        %v1648 = vadd.f32 %v1577, %v1647
        %1649 = vdwg.mxu0
        %1650 = vmatprep.subr.mxu0 %v262
        %1651 = vmatpush1.xpose.msra.mxu0 %v261
        %1652 = vmatprep.subr.mxu0 %v280
        %1653 = vmatpush1.xpose.msra.mxu0 %v279
        %1654 = vmatprep.subr.mxu0 %v298
        %1655 = vmatpush1.xpose.msra.mxu0 %v297
        %1656 = vmatprep.subr.mxu0 %v316
        %1657 = vmatpush1.xpose.msra.mxu0 %v315
        %1658 = vmatprep.subr.mxu0 %v334
        %1659 = vmatpush1.xpose.msra.mxu0 %v333
        %1660 = vmatprep.subr.mxu0 %v352
        %1661 = vmatpush1.xpose.msra.mxu0 %v351
        %1662 = vmatprep.subr.mxu0 %v370
        %1663 = vmatpush1.xpose.msra.mxu0 %v369
        %1664 = vmatprep.subr.mxu0 %v388
        %1665 = vmatpush1.xpose.msra.mxu0 %v387
        %1666 = vmatprep.subr.mxu0 %v406
        %1667 = vmatpush1.xpose.msra.mxu0 %v405
        %1668 = vmatprep.subr.mxu0 %v424
        %1669 = vmatpush1.xpose.msra.mxu0 %v423
        %1670 = vmatprep.subr.mxu0 %v442
        %1671 = vmatpush1.xpose.msra.mxu0 %v441
        %1672 = vmatprep.subr.mxu0 %v460
        %1673 = vmatpush1.xpose.msra.mxu0 %v459
        %1674 = vmatprep.subr.mxu0 %v478
        %1675 = vmatpush1.xpose.msra.mxu0 %v477
        %1676 = vmatprep.subr.mxu0 %v496
        %1677 = vmatpush1.xpose.msra.mxu0 %v495
        %1678 = vmatprep.subr.mxu0 %v514
        %1679 = vmatpush1.xpose.msra.mxu0 %v513
        %1680 = vmatprep.subr.mxu0 %v532
        %1681 = vmatpush1.xpose.msra.mxu0 %v531
        %1682 = vmatprep.subr.mxu0 %v550
        %1683 = vmatpush1.xpose.msra.mxu0 %v549
        %1684 = vmatprep.subr.mxu0 %v568
        %1685 = vmatpush1.xpose.msra.mxu0 %v567
        %1686 = vmatprep.subr.mxu0 %v586
        %1687 = vmatpush1.xpose.msra.mxu0 %v585
        %1688 = vmatprep.subr.mxu0 %v604
        %1689 = vmatpush1.xpose.msra.mxu0 %v603
        %1690 = vmatprep.subr.mxu0 %v622
        %1691 = vmatpush1.xpose.msra.mxu0 %v621
        %1692 = vmatprep.subr.mxu0 %v640
        %1693 = vmatpush1.xpose.msra.mxu0 %v639
        %1694 = vmatprep.subr.mxu0 %v658
        %1695 = vmatpush1.xpose.msra.mxu0 %v657
        %1696 = vmatprep.subr.mxu0 %v676
        %1697 = vmatpush1.xpose.msra.mxu0 %v675
        %1698 = vmatprep.subr.mxu0 %v694
        %1699 = vmatpush1.xpose.msra.mxu0 %v693
        %1700 = vmatprep.subr.mxu0 %v712
        %1701 = vmatpush1.xpose.msra.mxu0 %v711
        %1702 = vmatprep.subr.mxu0 %v730
        %1703 = vmatpush1.xpose.msra.mxu0 %v729
        %1704 = vmatprep.subr.mxu0 %v748
        %1705 = vmatpush1.xpose.msra.mxu0 %v747
        %1706 = vmatprep.subr.mxu0 %v766
        %1707 = vmatpush1.xpose.msra.mxu0 %v765
        %1708 = vmatprep.subr.mxu0 %v784
        %1709 = vmatpush1.xpose.msra.mxu0 %v783
        %1710 = vmatprep.subr.mxu0 %v802
        %1711 = vmatpush1.xpose.msra.mxu0 %v801
        %1712 = vmatprep.subr.mxu0 %v820
        %1713 = vmatpush1.xpose.msra.mxu0 %v819
        %1714 = vmatprep.mubr.f32.mxu0 %v1446
        %1715 = vmatmul.mubr.f32.gmra.mrb[0].mxu0 %v1438
        %v1716 = vpop.f32.mrb[0].mxu0
        %v1717 = vadd.f32 %v1646, %v1716
        %v1718 = vpop.f32.mrb[0].mxu0
        %v1719 = vadd.f32 %v1648, %v1718
        %1720 = vdwg.mxu0
        %1721 = vmatprep.subr.mxu0 %v264
        %1722 = vmatpush1.xpose.msra.mxu0 %v263
        %1723 = vmatprep.subr.mxu0 %v282
        %1724 = vmatpush1.xpose.msra.mxu0 %v281
        %1725 = vmatprep.subr.mxu0 %v300
        %1726 = vmatpush1.xpose.msra.mxu0 %v299
        %1727 = vmatprep.subr.mxu0 %v318
        %1728 = vmatpush1.xpose.msra.mxu0 %v317
        %1729 = vmatprep.subr.mxu0 %v336
        %1730 = vmatpush1.xpose.msra.mxu0 %v335
        %1731 = vmatprep.subr.mxu0 %v354
        %1732 = vmatpush1.xpose.msra.mxu0 %v353
        %1733 = vmatprep.subr.mxu0 %v372
        %1734 = vmatpush1.xpose.msra.mxu0 %v371
        %1735 = vmatprep.subr.mxu0 %v390
        %1736 = vmatpush1.xpose.msra.mxu0 %v389
        %1737 = vmatprep.subr.mxu0 %v408
        %1738 = vmatpush1.xpose.msra.mxu0 %v407
        %1739 = vmatprep.subr.mxu0 %v426
        %1740 = vmatpush1.xpose.msra.mxu0 %v425
        %1741 = vmatprep.subr.mxu0 %v444
        %1742 = vmatpush1.xpose.msra.mxu0 %v443
        %1743 = vmatprep.subr.mxu0 %v462
        %1744 = vmatpush1.xpose.msra.mxu0 %v461
        %1745 = vmatprep.subr.mxu0 %v480
        %1746 = vmatpush1.xpose.msra.mxu0 %v479
        %1747 = vmatprep.subr.mxu0 %v498
        %1748 = vmatpush1.xpose.msra.mxu0 %v497
        %1749 = vmatprep.subr.mxu0 %v516
        %1750 = vmatpush1.xpose.msra.mxu0 %v515
        %1751 = vmatprep.subr.mxu0 %v534
        %1752 = vmatpush1.xpose.msra.mxu0 %v533
        %1753 = vmatprep.subr.mxu0 %v552
        %1754 = vmatpush1.xpose.msra.mxu0 %v551
        %1755 = vmatprep.subr.mxu0 %v570
        %1756 = vmatpush1.xpose.msra.mxu0 %v569
        %1757 = vmatprep.subr.mxu0 %v588
        %1758 = vmatpush1.xpose.msra.mxu0 %v587
        %1759 = vmatprep.subr.mxu0 %v606
        %1760 = vmatpush1.xpose.msra.mxu0 %v605
        %1761 = vmatprep.subr.mxu0 %v624
        %1762 = vmatpush1.xpose.msra.mxu0 %v623
        %1763 = vmatprep.subr.mxu0 %v642
        %1764 = vmatpush1.xpose.msra.mxu0 %v641
        %1765 = vmatprep.subr.mxu0 %v660
        %1766 = vmatpush1.xpose.msra.mxu0 %v659
        %1767 = vmatprep.subr.mxu0 %v678
        %1768 = vmatpush1.xpose.msra.mxu0 %v677
        %1769 = vmatprep.subr.mxu0 %v696
        %1770 = vmatpush1.xpose.msra.mxu0 %v695
        %1771 = vmatprep.subr.mxu0 %v714
        %1772 = vmatpush1.xpose.msra.mxu0 %v713
        %1773 = vmatprep.subr.mxu0 %v732
        %1774 = vmatpush1.xpose.msra.mxu0 %v731
        %1775 = vmatprep.subr.mxu0 %v750
        %1776 = vmatpush1.xpose.msra.mxu0 %v749
        %1777 = vmatprep.subr.mxu0 %v768
        %1778 = vmatpush1.xpose.msra.mxu0 %v767
        %1779 = vmatprep.subr.mxu0 %v786
        %1780 = vmatpush1.xpose.msra.mxu0 %v785
        %1781 = vmatprep.subr.mxu0 %v804
        %1782 = vmatpush1.xpose.msra.mxu0 %v803
        %1783 = vmatprep.subr.mxu0 %v822
        %1784 = vmatpush1.xpose.msra.mxu0 %v821
        %1785 = vmatprep.mubr.f32.mxu0 %v1447
        %1786 = vmatmul.mubr.f32.gmra.mrb[0].mxu0 %v1445
        %v1787 = vpop.f32.mrb[0].mxu0
        %v1788 = vadd.f32 %v1717, %v1787
        %v1789 = vpop.f32.mrb[0].mxu0
        %v1790 = vadd.f32 %v1719, %v1789
        %1791 = vdwg.mxu0
        %1792 = vmatprep.subr.mxu0 %v266
        %1793 = vmatpush1.xpose.msra.mxu0 %v265
        %1794 = vmatprep.subr.mxu0 %v284
        %1795 = vmatpush1.xpose.msra.mxu0 %v283
        %1796 = vmatprep.subr.mxu0 %v302
        %1797 = vmatpush1.xpose.msra.mxu0 %v301
        %1798 = vmatprep.subr.mxu0 %v320
        %1799 = vmatpush1.xpose.msra.mxu0 %v319
        %1800 = vmatprep.subr.mxu0 %v338
        %1801 = vmatpush1.xpose.msra.mxu0 %v337
        %1802 = vmatprep.subr.mxu0 %v356
        %1803 = vmatpush1.xpose.msra.mxu0 %v355
        %1804 = vmatprep.subr.mxu0 %v374
        %1805 = vmatpush1.xpose.msra.mxu0 %v373
        %1806 = vmatprep.subr.mxu0 %v392
        %1807 = vmatpush1.xpose.msra.mxu0 %v391
        %1808 = vmatprep.subr.mxu0 %v410
        %1809 = vmatpush1.xpose.msra.mxu0 %v409
        %1810 = vmatprep.subr.mxu0 %v428
        %1811 = vmatpush1.xpose.msra.mxu0 %v427
        %1812 = vmatprep.subr.mxu0 %v446
        %1813 = vmatpush1.xpose.msra.mxu0 %v445
        %1814 = vmatprep.subr.mxu0 %v464
        %1815 = vmatpush1.xpose.msra.mxu0 %v463
        %1816 = vmatprep.subr.mxu0 %v482
        %1817 = vmatpush1.xpose.msra.mxu0 %v481
        %1818 = vmatprep.subr.mxu0 %v500
        %1819 = vmatpush1.xpose.msra.mxu0 %v499
        %1820 = vmatprep.subr.mxu0 %v518
        %1821 = vmatpush1.xpose.msra.mxu0 %v517
        %1822 = vmatprep.subr.mxu0 %v536
        %1823 = vmatpush1.xpose.msra.mxu0 %v535
        %1824 = vmatprep.subr.mxu0 %v554
        %1825 = vmatpush1.xpose.msra.mxu0 %v553
        %1826 = vmatprep.subr.mxu0 %v572
        %1827 = vmatpush1.xpose.msra.mxu0 %v571
        %1828 = vmatprep.subr.mxu0 %v590
        %1829 = vmatpush1.xpose.msra.mxu0 %v589
        %1830 = vmatprep.subr.mxu0 %v608
        %1831 = vmatpush1.xpose.msra.mxu0 %v607
        %1832 = vmatprep.subr.mxu0 %v626
        %1833 = vmatpush1.xpose.msra.mxu0 %v625
        %1834 = vmatprep.subr.mxu0 %v644
        %1835 = vmatpush1.xpose.msra.mxu0 %v643
        %1836 = vmatprep.subr.mxu0 %v662
        %1837 = vmatpush1.xpose.msra.mxu0 %v661
        %1838 = vmatprep.subr.mxu0 %v680
        %1839 = vmatpush1.xpose.msra.mxu0 %v679
        %1840 = vmatprep.subr.mxu0 %v698
        %1841 = vmatpush1.xpose.msra.mxu0 %v697
        %1842 = vmatprep.subr.mxu0 %v716
        %1843 = vmatpush1.xpose.msra.mxu0 %v715
        %1844 = vmatprep.subr.mxu0 %v734
        %1845 = vmatpush1.xpose.msra.mxu0 %v733
        %1846 = vmatprep.subr.mxu0 %v752
        %1847 = vmatpush1.xpose.msra.mxu0 %v751
        %1848 = vmatprep.subr.mxu0 %v770
        %1849 = vmatpush1.xpose.msra.mxu0 %v769
        %1850 = vmatprep.subr.mxu0 %v788
        %1851 = vmatpush1.xpose.msra.mxu0 %v787
        %1852 = vmatprep.subr.mxu0 %v806
        %1853 = vmatpush1.xpose.msra.mxu0 %v805
        %1854 = vmatprep.subr.mxu0 %v824
        %1855 = vmatpush1.xpose.msra.mxu0 %v823
        %1856 = vmatprep.mubr.f32.mxu0 %v1463
        %1857 = vmatmul.mubr.f32.gmra.mrb[0].mxu0 %v1455
        %v1858 = vpop.f32.mrb[0].mxu0
        %v1859 = vadd.f32 %v1788, %v1858
        %v1860 = vpop.f32.mrb[0].mxu0
        %v1861 = vadd.f32 %v1790, %v1860
        %1862 = vdwg.mxu0
        %1863 = vmatprep.subr.mxu0 %v268
        %1864 = vmatpush1.xpose.msra.mxu0 %v267
        %1865 = vmatprep.subr.mxu0 %v286
        %1866 = vmatpush1.xpose.msra.mxu0 %v285
        %1867 = vmatprep.subr.mxu0 %v304
        %1868 = vmatpush1.xpose.msra.mxu0 %v303
        %1869 = vmatprep.subr.mxu0 %v322
        %1870 = vmatpush1.xpose.msra.mxu0 %v321
        %1871 = vmatprep.subr.mxu0 %v340
        %1872 = vmatpush1.xpose.msra.mxu0 %v339
        %1873 = vmatprep.subr.mxu0 %v358
        %1874 = vmatpush1.xpose.msra.mxu0 %v357
        %1875 = vmatprep.subr.mxu0 %v376
        %1876 = vmatpush1.xpose.msra.mxu0 %v375
        %1877 = vmatprep.subr.mxu0 %v394
        %1878 = vmatpush1.xpose.msra.mxu0 %v393
        %1879 = vmatprep.subr.mxu0 %v412
        %1880 = vmatpush1.xpose.msra.mxu0 %v411
        %1881 = vmatprep.subr.mxu0 %v430
        %1882 = vmatpush1.xpose.msra.mxu0 %v429
        %1883 = vmatprep.subr.mxu0 %v448
        %1884 = vmatpush1.xpose.msra.mxu0 %v447
        %1885 = vmatprep.subr.mxu0 %v466
        %1886 = vmatpush1.xpose.msra.mxu0 %v465
        %1887 = vmatprep.subr.mxu0 %v484
        %1888 = vmatpush1.xpose.msra.mxu0 %v483
        %1889 = vmatprep.subr.mxu0 %v502
        %1890 = vmatpush1.xpose.msra.mxu0 %v501
        %1891 = vmatprep.subr.mxu0 %v520
        %1892 = vmatpush1.xpose.msra.mxu0 %v519
        %1893 = vmatprep.subr.mxu0 %v538
        %1894 = vmatpush1.xpose.msra.mxu0 %v537
        %1895 = vmatprep.subr.mxu0 %v556
        %1896 = vmatpush1.xpose.msra.mxu0 %v555
        %1897 = vmatprep.subr.mxu0 %v574
        %1898 = vmatpush1.xpose.msra.mxu0 %v573
        %1899 = vmatprep.subr.mxu0 %v592
        %1900 = vmatpush1.xpose.msra.mxu0 %v591
        %1901 = vmatprep.subr.mxu0 %v610
        %1902 = vmatpush1.xpose.msra.mxu0 %v609
        %1903 = vmatprep.subr.mxu0 %v628
        %1904 = vmatpush1.xpose.msra.mxu0 %v627
        %1905 = vmatprep.subr.mxu0 %v646
        %1906 = vmatpush1.xpose.msra.mxu0 %v645
        %1907 = vmatprep.subr.mxu0 %v664
        %1908 = vmatpush1.xpose.msra.mxu0 %v663
        %1909 = vmatprep.subr.mxu0 %v682
        %1910 = vmatpush1.xpose.msra.mxu0 %v681
        %1911 = vmatprep.subr.mxu0 %v700
        %1912 = vmatpush1.xpose.msra.mxu0 %v699
        %1913 = vmatprep.subr.mxu0 %v718
        %1914 = vmatpush1.xpose.msra.mxu0 %v717
        %1915 = vmatprep.subr.mxu0 %v736
        %1916 = vmatpush1.xpose.msra.mxu0 %v735
        %1917 = vmatprep.subr.mxu0 %v754
        %1918 = vmatpush1.xpose.msra.mxu0 %v753
        %1919 = vmatprep.subr.mxu0 %v772
        %1920 = vmatpush1.xpose.msra.mxu0 %v771
        %1921 = vmatprep.subr.mxu0 %v790
        %1922 = vmatpush1.xpose.msra.mxu0 %v789
        %1923 = vmatprep.subr.mxu0 %v808
        %1924 = vmatpush1.xpose.msra.mxu0 %v807
        %1925 = vmatprep.subr.mxu0 %v826
        %1926 = vmatpush1.xpose.msra.mxu0 %v825
        %1927 = vmatprep.mubr.f32.mxu0 %v1464
        %1928 = vmatmul.mubr.f32.gmra.mrb[0].mxu0 %v1462
        %v1929 = vpop.f32.mrb[0].mxu0
        %v1930 = vadd.f32 %v1859, %v1929
        %v1931 = vpop.f32.mrb[0].mxu0
        %v1932 = vadd.f32 %v1861, %v1931
        %1933 = vdwg.mxu0
        %1934 = vmatprep.subr.mxu0 %v270
        %1935 = vmatpush1.xpose.msra.mxu0 %v269
        %1936 = vmatprep.subr.mxu0 %v288
        %1937 = vmatpush1.xpose.msra.mxu0 %v287
        %1938 = vmatprep.subr.mxu0 %v306
        %1939 = vmatpush1.xpose.msra.mxu0 %v305
        %1940 = vmatprep.subr.mxu0 %v324
        %1941 = vmatpush1.xpose.msra.mxu0 %v323
        %1942 = vmatprep.subr.mxu0 %v342
        %1943 = vmatpush1.xpose.msra.mxu0 %v341
        %1944 = vmatprep.subr.mxu0 %v360
        %1945 = vmatpush1.xpose.msra.mxu0 %v359
        %1946 = vmatprep.subr.mxu0 %v378
        %1947 = vmatpush1.xpose.msra.mxu0 %v377
        %1948 = vmatprep.subr.mxu0 %v396
        %1949 = vmatpush1.xpose.msra.mxu0 %v395
        %1950 = vmatprep.subr.mxu0 %v414
        %1951 = vmatpush1.xpose.msra.mxu0 %v413
        %1952 = vmatprep.subr.mxu0 %v432
        %1953 = vmatpush1.xpose.msra.mxu0 %v431
        %1954 = vmatprep.subr.mxu0 %v450
        %1955 = vmatpush1.xpose.msra.mxu0 %v449
        %1956 = vmatprep.subr.mxu0 %v468
        %1957 = vmatpush1.xpose.msra.mxu0 %v467
        %1958 = vmatprep.subr.mxu0 %v486
        %1959 = vmatpush1.xpose.msra.mxu0 %v485
        %1960 = vmatprep.subr.mxu0 %v504
        %1961 = vmatpush1.xpose.msra.mxu0 %v503
        %1962 = vmatprep.subr.mxu0 %v522
        %1963 = vmatpush1.xpose.msra.mxu0 %v521
        %1964 = vmatprep.subr.mxu0 %v540
        %1965 = vmatpush1.xpose.msra.mxu0 %v539
        %1966 = vmatprep.subr.mxu0 %v558
        %1967 = vmatpush1.xpose.msra.mxu0 %v557
        %1968 = vmatprep.subr.mxu0 %v576
        %1969 = vmatpush1.xpose.msra.mxu0 %v575
        %1970 = vmatprep.subr.mxu0 %v594
        %1971 = vmatpush1.xpose.msra.mxu0 %v593
        %1972 = vmatprep.subr.mxu0 %v612
        %1973 = vmatpush1.xpose.msra.mxu0 %v611
        %1974 = vmatprep.subr.mxu0 %v630
        %1975 = vmatpush1.xpose.msra.mxu0 %v629
        %1976 = vmatprep.subr.mxu0 %v648
        %1977 = vmatpush1.xpose.msra.mxu0 %v647
        %1978 = vmatprep.subr.mxu0 %v666
        %1979 = vmatpush1.xpose.msra.mxu0 %v665
        %1980 = vmatprep.subr.mxu0 %v684
        %1981 = vmatpush1.xpose.msra.mxu0 %v683
        %1982 = vmatprep.subr.mxu0 %v702
        %1983 = vmatpush1.xpose.msra.mxu0 %v701
        %1984 = vmatprep.subr.mxu0 %v720
        %1985 = vmatpush1.xpose.msra.mxu0 %v719
        %1986 = vmatprep.subr.mxu0 %v738
        %1987 = vmatpush1.xpose.msra.mxu0 %v737
        %1988 = vmatprep.subr.mxu0 %v756
        %1989 = vmatpush1.xpose.msra.mxu0 %v755
        %1990 = vmatprep.subr.mxu0 %v774
        %1991 = vmatpush1.xpose.msra.mxu0 %v773
        %1992 = vmatprep.subr.mxu0 %v792
        %1993 = vmatpush1.xpose.msra.mxu0 %v791
        %1994 = vmatprep.subr.mxu0 %v810
        %1995 = vmatpush1.xpose.msra.mxu0 %v809
        %1996 = vmatprep.subr.mxu0 %v828
        %1997 = vmatpush1.xpose.msra.mxu0 %v827
        %1998 = vmatprep.mubr.f32.mxu0 %v1480
        %1999 = vmatmul.mubr.f32.gmra.mrb[0].mxu0 %v1472
        %v2000 = vpop.f32.mrb[0].mxu0
        %v2001 = vadd.f32 %v1930, %v2000
        %v2002 = vpop.f32.mrb[0].mxu0
        %v2003 = vadd.f32 %v1932, %v2002
        %2004 = vdwg.mxu0
        %2005 = vmatprep.subr.mxu0 %v272
        %2006 = vmatpush1.xpose.msra.mxu0 %v271
        %2007 = vmatprep.subr.mxu0 %v290
        %2008 = vmatpush1.xpose.msra.mxu0 %v289
        %2009 = vmatprep.subr.mxu0 %v308
        %2010 = vmatpush1.xpose.msra.mxu0 %v307
        %2011 = vmatprep.subr.mxu0 %v326
        %2012 = vmatpush1.xpose.msra.mxu0 %v325
        %2013 = vmatprep.subr.mxu0 %v344
        %2014 = vmatpush1.xpose.msra.mxu0 %v343
        %2015 = vmatprep.subr.mxu0 %v362
        %2016 = vmatpush1.xpose.msra.mxu0 %v361
        %2017 = vmatprep.subr.mxu0 %v380
        %2018 = vmatpush1.xpose.msra.mxu0 %v379
        %2019 = vmatprep.subr.mxu0 %v398
        %2020 = vmatpush1.xpose.msra.mxu0 %v397
        %2021 = vmatprep.subr.mxu0 %v416
        %2022 = vmatpush1.xpose.msra.mxu0 %v415
        %2023 = vmatprep.subr.mxu0 %v434
        %2024 = vmatpush1.xpose.msra.mxu0 %v433
        %2025 = vmatprep.subr.mxu0 %v452
        %2026 = vmatpush1.xpose.msra.mxu0 %v451
        %2027 = vmatprep.subr.mxu0 %v470
        %2028 = vmatpush1.xpose.msra.mxu0 %v469
        %2029 = vmatprep.subr.mxu0 %v488
        %2030 = vmatpush1.xpose.msra.mxu0 %v487
        %2031 = vmatprep.subr.mxu0 %v506
        %2032 = vmatpush1.xpose.msra.mxu0 %v505
        %2033 = vmatprep.subr.mxu0 %v524
        %2034 = vmatpush1.xpose.msra.mxu0 %v523
        %2035 = vmatprep.subr.mxu0 %v542
        %2036 = vmatpush1.xpose.msra.mxu0 %v541
        %2037 = vmatprep.subr.mxu0 %v560
        %2038 = vmatpush1.xpose.msra.mxu0 %v559
        %2039 = vmatprep.subr.mxu0 %v578
        %2040 = vmatpush1.xpose.msra.mxu0 %v577
        %2041 = vmatprep.subr.mxu0 %v596
        %2042 = vmatpush1.xpose.msra.mxu0 %v595
        %2043 = vmatprep.subr.mxu0 %v614
        %2044 = vmatpush1.xpose.msra.mxu0 %v613
        %2045 = vmatprep.subr.mxu0 %v632
        %2046 = vmatpush1.xpose.msra.mxu0 %v631
        %2047 = vmatprep.subr.mxu0 %v650
        %2048 = vmatpush1.xpose.msra.mxu0 %v649
        %2049 = vmatprep.subr.mxu0 %v668
        %2050 = vmatpush1.xpose.msra.mxu0 %v667
        %2051 = vmatprep.subr.mxu0 %v686
        %2052 = vmatpush1.xpose.msra.mxu0 %v685
        %2053 = vmatprep.subr.mxu0 %v704
        %2054 = vmatpush1.xpose.msra.mxu0 %v703
        %2055 = vmatprep.subr.mxu0 %v722
        %2056 = vmatpush1.xpose.msra.mxu0 %v721
        %2057 = vmatprep.subr.mxu0 %v740
        %2058 = vmatpush1.xpose.msra.mxu0 %v739
        %2059 = vmatprep.subr.mxu0 %v758
        %2060 = vmatpush1.xpose.msra.mxu0 %v757
        %2061 = vmatprep.subr.mxu0 %v776
        %2062 = vmatpush1.xpose.msra.mxu0 %v775
        %2063 = vmatprep.subr.mxu0 %v794
        %2064 = vmatpush1.xpose.msra.mxu0 %v793
        %2065 = vmatprep.subr.mxu0 %v812
        %2066 = vmatpush1.xpose.msra.mxu0 %v811
        %2067 = vmatprep.subr.mxu0 %v830
        %2068 = vmatpush1.xpose.msra.mxu0 %v829
        %2069 = vmatprep.mubr.f32.mxu0 %v1481
        %2070 = vmatmul.mubr.f32.gmra.mrb[0].mxu0 %v1479
        %v2071 = vpop.f32.mrb[0].mxu0
        %v2072 = vadd.f32 %v2001, %v2071
        %v2073 = vpop.f32.mrb[0].mxu0
        %v2074 = vadd.f32 %v2003, %v2073
        %2075 = vdwg.mxu0
        %2076 = vmatprep.subr.mxu0 %v274
        %2077 = vmatpush1.xpose.msra.mxu0 %v273
        %2078 = vmatprep.subr.mxu0 %v292
        %2079 = vmatpush1.xpose.msra.mxu0 %v291
        %2080 = vmatprep.subr.mxu0 %v310
        %2081 = vmatpush1.xpose.msra.mxu0 %v309
        %2082 = vmatprep.subr.mxu0 %v328
        %2083 = vmatpush1.xpose.msra.mxu0 %v327
        %2084 = vmatprep.subr.mxu0 %v346
        %2085 = vmatpush1.xpose.msra.mxu0 %v345
        %2086 = vmatprep.subr.mxu0 %v364
        %2087 = vmatpush1.xpose.msra.mxu0 %v363
        %2088 = vmatprep.subr.mxu0 %v382
        %2089 = vmatpush1.xpose.msra.mxu0 %v381
        %2090 = vmatprep.subr.mxu0 %v400
        %2091 = vmatpush1.xpose.msra.mxu0 %v399
        %2092 = vmatprep.subr.mxu0 %v418
        %2093 = vmatpush1.xpose.msra.mxu0 %v417
        %2094 = vmatprep.subr.mxu0 %v436
        %2095 = vmatpush1.xpose.msra.mxu0 %v435
        %2096 = vmatprep.subr.mxu0 %v454
        %2097 = vmatpush1.xpose.msra.mxu0 %v453
        %2098 = vmatprep.subr.mxu0 %v472
        %2099 = vmatpush1.xpose.msra.mxu0 %v471
        %2100 = vmatprep.subr.mxu0 %v490
        %2101 = vmatpush1.xpose.msra.mxu0 %v489
        %2102 = vmatprep.subr.mxu0 %v508
        %2103 = vmatpush1.xpose.msra.mxu0 %v507
        %2104 = vmatprep.subr.mxu0 %v526
        %2105 = vmatpush1.xpose.msra.mxu0 %v525
        %2106 = vmatprep.subr.mxu0 %v544
        %2107 = vmatpush1.xpose.msra.mxu0 %v543
        %2108 = vmatprep.subr.mxu0 %v562
        %2109 = vmatpush1.xpose.msra.mxu0 %v561
        %2110 = vmatprep.subr.mxu0 %v580
        %2111 = vmatpush1.xpose.msra.mxu0 %v579
        %2112 = vmatprep.subr.mxu0 %v598
        %2113 = vmatpush1.xpose.msra.mxu0 %v597
        %2114 = vmatprep.subr.mxu0 %v616
        %2115 = vmatpush1.xpose.msra.mxu0 %v615
        %2116 = vmatprep.subr.mxu0 %v634
        %2117 = vmatpush1.xpose.msra.mxu0 %v633
        %2118 = vmatprep.subr.mxu0 %v652
        %2119 = vmatpush1.xpose.msra.mxu0 %v651
        %2120 = vmatprep.subr.mxu0 %v670
        %2121 = vmatpush1.xpose.msra.mxu0 %v669
        %2122 = vmatprep.subr.mxu0 %v688
        %2123 = vmatpush1.xpose.msra.mxu0 %v687
        %2124 = vmatprep.subr.mxu0 %v706
        %2125 = vmatpush1.xpose.msra.mxu0 %v705
        %2126 = vmatprep.subr.mxu0 %v724
        %2127 = vmatpush1.xpose.msra.mxu0 %v723
        %2128 = vmatprep.subr.mxu0 %v742
        %2129 = vmatpush1.xpose.msra.mxu0 %v741
        %2130 = vmatprep.subr.mxu0 %v760
        %2131 = vmatpush1.xpose.msra.mxu0 %v759
        %2132 = vmatprep.subr.mxu0 %v778
        %2133 = vmatpush1.xpose.msra.mxu0 %v777
        %2134 = vmatprep.subr.mxu0 %v796
        %2135 = vmatpush1.xpose.msra.mxu0 %v795
        %2136 = vmatprep.subr.mxu0 %v814
        %2137 = vmatpush1.xpose.msra.mxu0 %v813
        %2138 = vmatprep.subr.mxu0 %v832
        %2139 = vmatpush1.xpose.msra.mxu0 %v831
        %2140 = vmatprep.mubr.f32.mxu0 %v1489
        %2141 = vmatmul.mubr.f32.gmra.mrb[0].mxu0 %v1488
        %v2142 = vpop.f32.mrb[0].mxu0
        %v2143 = vadd.f32 %v2072, %v2142
        %v2144 = vpop.f32.mrb[0].mxu0
        %v2145 = vadd.f32 %v2074, %v2144
        %2146 = vdwg.mxu0
        %2147 = vmatprep.subr.mxu0 %v834
        %2148 = vmatpush1.xpose.msra.mxu0 %v833
        %2149 = vmatprep.subr.mxu0 %v852
        %2150 = vmatpush1.xpose.msra.mxu0 %v851
        %2151 = vmatprep.subr.mxu0 %v870
        %2152 = vmatpush1.xpose.msra.mxu0 %v869
        %2153 = vmatprep.subr.mxu0 %v888
        %2154 = vmatpush1.xpose.msra.mxu0 %v887
        %2155 = vmatprep.subr.mxu0 %v906
        %2156 = vmatpush1.xpose.msra.mxu0 %v905
        %2157 = vmatprep.subr.mxu0 %v924
        %2158 = vmatpush1.xpose.msra.mxu0 %v923
        %2159 = vmatprep.subr.mxu0 %v942
        %2160 = vmatpush1.xpose.msra.mxu0 %v941
        %2161 = vmatprep.subr.mxu0 %v960
        %2162 = vmatpush1.xpose.msra.mxu0 %v959
        %2163 = vmatprep.subr.mxu0 %v978
        %2164 = vmatpush1.xpose.msra.mxu0 %v977
        %2165 = vmatprep.subr.mxu0 %v996
        %2166 = vmatpush1.xpose.msra.mxu0 %v995
        %2167 = vmatprep.subr.mxu0 %v1014
        %2168 = vmatpush1.xpose.msra.mxu0 %v1013
        %2169 = vmatprep.subr.mxu0 %v1032
        %2170 = vmatpush1.xpose.msra.mxu0 %v1031
        %2171 = vmatprep.subr.mxu0 %v1050
        %2172 = vmatpush1.xpose.msra.mxu0 %v1049
        %2173 = vmatprep.subr.mxu0 %v1068
        %2174 = vmatpush1.xpose.msra.mxu0 %v1067
        %2175 = vmatprep.subr.mxu0 %v1086
        %2176 = vmatpush1.xpose.msra.mxu0 %v1085
        %2177 = vmatprep.subr.mxu0 %v1104
        %2178 = vmatpush1.xpose.msra.mxu0 %v1103
        %2179 = vmatprep.subr.mxu0 %v1122
        %2180 = vmatpush1.xpose.msra.mxu0 %v1121
        %2181 = vmatprep.subr.mxu0 %v1140
        %2182 = vmatpush1.xpose.msra.mxu0 %v1139
        %2183 = vmatprep.subr.mxu0 %v1158
        %2184 = vmatpush1.xpose.msra.mxu0 %v1157
        %2185 = vmatprep.subr.mxu0 %v1176
        %2186 = vmatpush1.xpose.msra.mxu0 %v1175
        %2187 = vmatprep.subr.mxu0 %v1194
        %2188 = vmatpush1.xpose.msra.mxu0 %v1193
        %2189 = vmatprep.subr.mxu0 %v1212
        %2190 = vmatpush1.xpose.msra.mxu0 %v1211
        %2191 = vmatprep.subr.mxu0 %v1230
        %2192 = vmatpush1.xpose.msra.mxu0 %v1229
        %2193 = vmatprep.subr.mxu0 %v1248
        %2194 = vmatpush1.xpose.msra.mxu0 %v1247
        %2195 = vmatprep.subr.mxu0 %v1266
        %2196 = vmatpush1.xpose.msra.mxu0 %v1265
        %2197 = vmatprep.subr.mxu0 %v1284
        %2198 = vmatpush1.xpose.msra.mxu0 %v1283
        %2199 = vmatprep.subr.mxu0 %v1302
        %2200 = vmatpush1.xpose.msra.mxu0 %v1301
        %2201 = vmatprep.subr.mxu0 %v1320
        %2202 = vmatpush1.xpose.msra.mxu0 %v1319
        %2203 = vmatprep.subr.mxu0 %v1338
        %2204 = vmatpush1.xpose.msra.mxu0 %v1337
        %2205 = vmatprep.subr.mxu0 %v1356
        %2206 = vmatpush1.xpose.msra.mxu0 %v1355
        %2207 = vmatprep.subr.mxu0 %v1374
        %2208 = vmatpush1.xpose.msra.mxu0 %v1373
        %2209 = vmatprep.subr.mxu0 %v1392
        %2210 = vmatpush1.xpose.msra.mxu0 %v1391
        %2211 = vmatprep.mubr.f32.mxu0 %v1429
        %2212 = vmatmul.mubr.f32.gmra.mrb[0].mxu0 %v1421
        %v2213 = vpop.f32.mrb[0].mxu0
        %v2214 = vadd.f32 0.0, %v2213
        %v2215 = vpop.f32.mrb[0].mxu0
        %v2216 = vadd.f32 0.0, %v2215
        %2217 = vdwg.mxu0
        %2218 = vmatprep.subr.mxu0 %v836
        %2219 = vmatpush1.xpose.msra.mxu0 %v835
        %2220 = vmatprep.subr.mxu0 %v854
        %2221 = vmatpush1.xpose.msra.mxu0 %v853
        %2222 = vmatprep.subr.mxu0 %v872
        %2223 = vmatpush1.xpose.msra.mxu0 %v871
        %2224 = vmatprep.subr.mxu0 %v890
        %2225 = vmatpush1.xpose.msra.mxu0 %v889
        %2226 = vmatprep.subr.mxu0 %v908
        %2227 = vmatpush1.xpose.msra.mxu0 %v907
        %2228 = vmatprep.subr.mxu0 %v926
        %2229 = vmatpush1.xpose.msra.mxu0 %v925
        %2230 = vmatprep.subr.mxu0 %v944
        %2231 = vmatpush1.xpose.msra.mxu0 %v943
        %2232 = vmatprep.subr.mxu0 %v962
        %2233 = vmatpush1.xpose.msra.mxu0 %v961
        %2234 = vmatprep.subr.mxu0 %v980
        %2235 = vmatpush1.xpose.msra.mxu0 %v979
        %2236 = vmatprep.subr.mxu0 %v998
        %2237 = vmatpush1.xpose.msra.mxu0 %v997
        %2238 = vmatprep.subr.mxu0 %v1016
        %2239 = vmatpush1.xpose.msra.mxu0 %v1015
        %2240 = vmatprep.subr.mxu0 %v1034
        %2241 = vmatpush1.xpose.msra.mxu0 %v1033
        %2242 = vmatprep.subr.mxu0 %v1052
        %2243 = vmatpush1.xpose.msra.mxu0 %v1051
        %2244 = vmatprep.subr.mxu0 %v1070
        %2245 = vmatpush1.xpose.msra.mxu0 %v1069
        %2246 = vmatprep.subr.mxu0 %v1088
        %2247 = vmatpush1.xpose.msra.mxu0 %v1087
        %2248 = vmatprep.subr.mxu0 %v1106
        %2249 = vmatpush1.xpose.msra.mxu0 %v1105
        %2250 = vmatprep.subr.mxu0 %v1124
        %2251 = vmatpush1.xpose.msra.mxu0 %v1123
        %2252 = vmatprep.subr.mxu0 %v1142
        %2253 = vmatpush1.xpose.msra.mxu0 %v1141
        %2254 = vmatprep.subr.mxu0 %v1160
        %2255 = vmatpush1.xpose.msra.mxu0 %v1159
        %2256 = vmatprep.subr.mxu0 %v1178
        %2257 = vmatpush1.xpose.msra.mxu0 %v1177
        %2258 = vmatprep.subr.mxu0 %v1196
        %2259 = vmatpush1.xpose.msra.mxu0 %v1195
        %2260 = vmatprep.subr.mxu0 %v1214
        %2261 = vmatpush1.xpose.msra.mxu0 %v1213
        %2262 = vmatprep.subr.mxu0 %v1232
        %2263 = vmatpush1.xpose.msra.mxu0 %v1231
        %2264 = vmatprep.subr.mxu0 %v1250
        %2265 = vmatpush1.xpose.msra.mxu0 %v1249
        %2266 = vmatprep.subr.mxu0 %v1268
        %2267 = vmatpush1.xpose.msra.mxu0 %v1267
        %2268 = vmatprep.subr.mxu0 %v1286
        %2269 = vmatpush1.xpose.msra.mxu0 %v1285
        %2270 = vmatprep.subr.mxu0 %v1304
        %2271 = vmatpush1.xpose.msra.mxu0 %v1303
        %2272 = vmatprep.subr.mxu0 %v1322
        %2273 = vmatpush1.xpose.msra.mxu0 %v1321
        %2274 = vmatprep.subr.mxu0 %v1340
        %2275 = vmatpush1.xpose.msra.mxu0 %v1339
        %2276 = vmatprep.subr.mxu0 %v1358
        %2277 = vmatpush1.xpose.msra.mxu0 %v1357
        %2278 = vmatprep.subr.mxu0 %v1376
        %2279 = vmatpush1.xpose.msra.mxu0 %v1375
        %2280 = vmatprep.subr.mxu0 %v1394
        %2281 = vmatpush1.xpose.msra.mxu0 %v1393
        %2282 = vmatprep.mubr.f32.mxu0 %v1430
        %2283 = vmatmul.mubr.f32.gmra.mrb[0].mxu0 %v1428
        %v2284 = vpop.f32.mrb[0].mxu0
        %v2285 = vadd.f32 %v2214, %v2284
        %v2286 = vpop.f32.mrb[0].mxu0
        %v2287 = vadd.f32 %v2216, %v2286
        %2288 = vdwg.mxu0
        %2289 = vmatprep.subr.mxu0 %v838
        %2290 = vmatpush1.xpose.msra.mxu0 %v837
        %2291 = vmatprep.subr.mxu0 %v856
        %2292 = vmatpush1.xpose.msra.mxu0 %v855
        %2293 = vmatprep.subr.mxu0 %v874
        %2294 = vmatpush1.xpose.msra.mxu0 %v873
        %2295 = vmatprep.subr.mxu0 %v892
        %2296 = vmatpush1.xpose.msra.mxu0 %v891
        %2297 = vmatprep.subr.mxu0 %v910
        %2298 = vmatpush1.xpose.msra.mxu0 %v909
        %2299 = vmatprep.subr.mxu0 %v928
        %2300 = vmatpush1.xpose.msra.mxu0 %v927
        %2301 = vmatprep.subr.mxu0 %v946
        %2302 = vmatpush1.xpose.msra.mxu0 %v945
        %2303 = vmatprep.subr.mxu0 %v964
        %2304 = vmatpush1.xpose.msra.mxu0 %v963
        %2305 = vmatprep.subr.mxu0 %v982
        %2306 = vmatpush1.xpose.msra.mxu0 %v981
        %2307 = vmatprep.subr.mxu0 %v1000
        %2308 = vmatpush1.xpose.msra.mxu0 %v999
        %2309 = vmatprep.subr.mxu0 %v1018
        %2310 = vmatpush1.xpose.msra.mxu0 %v1017
        %2311 = vmatprep.subr.mxu0 %v1036
        %2312 = vmatpush1.xpose.msra.mxu0 %v1035
        %2313 = vmatprep.subr.mxu0 %v1054
        %2314 = vmatpush1.xpose.msra.mxu0 %v1053
        %2315 = vmatprep.subr.mxu0 %v1072
        %2316 = vmatpush1.xpose.msra.mxu0 %v1071
        %2317 = vmatprep.subr.mxu0 %v1090
        %2318 = vmatpush1.xpose.msra.mxu0 %v1089
        %2319 = vmatprep.subr.mxu0 %v1108
        %2320 = vmatpush1.xpose.msra.mxu0 %v1107
        %2321 = vmatprep.subr.mxu0 %v1126
        %2322 = vmatpush1.xpose.msra.mxu0 %v1125
        %2323 = vmatprep.subr.mxu0 %v1144
        %2324 = vmatpush1.xpose.msra.mxu0 %v1143
        %2325 = vmatprep.subr.mxu0 %v1162
        %2326 = vmatpush1.xpose.msra.mxu0 %v1161
        %2327 = vmatprep.subr.mxu0 %v1180
        %2328 = vmatpush1.xpose.msra.mxu0 %v1179
        %2329 = vmatprep.subr.mxu0 %v1198
        %2330 = vmatpush1.xpose.msra.mxu0 %v1197
        %2331 = vmatprep.subr.mxu0 %v1216
        %2332 = vmatpush1.xpose.msra.mxu0 %v1215
        %2333 = vmatprep.subr.mxu0 %v1234
        %2334 = vmatpush1.xpose.msra.mxu0 %v1233
        %2335 = vmatprep.subr.mxu0 %v1252
        %2336 = vmatpush1.xpose.msra.mxu0 %v1251
        %2337 = vmatprep.subr.mxu0 %v1270
        %2338 = vmatpush1.xpose.msra.mxu0 %v1269
        %2339 = vmatprep.subr.mxu0 %v1288
        %2340 = vmatpush1.xpose.msra.mxu0 %v1287
        %2341 = vmatprep.subr.mxu0 %v1306
        %2342 = vmatpush1.xpose.msra.mxu0 %v1305
        %2343 = vmatprep.subr.mxu0 %v1324
        %2344 = vmatpush1.xpose.msra.mxu0 %v1323
        %2345 = vmatprep.subr.mxu0 %v1342
        %2346 = vmatpush1.xpose.msra.mxu0 %v1341
        %2347 = vmatprep.subr.mxu0 %v1360
        %2348 = vmatpush1.xpose.msra.mxu0 %v1359
        %2349 = vmatprep.subr.mxu0 %v1378
        %2350 = vmatpush1.xpose.msra.mxu0 %v1377
        %2351 = vmatprep.subr.mxu0 %v1396
        %2352 = vmatpush1.xpose.msra.mxu0 %v1395
        %2353 = vmatprep.mubr.f32.mxu0 %v1446
        %2354 = vmatmul.mubr.f32.gmra.mrb[0].mxu0 %v1438
        %v2355 = vpop.f32.mrb[0].mxu0
        %v2356 = vadd.f32 %v2285, %v2355
        %v2357 = vpop.f32.mrb[0].mxu0
        %v2358 = vadd.f32 %v2287, %v2357
        %2359 = vdwg.mxu0
        %2360 = vmatprep.subr.mxu0 %v840
        %2361 = vmatpush1.xpose.msra.mxu0 %v839
        %2362 = vmatprep.subr.mxu0 %v858
        %2363 = vmatpush1.xpose.msra.mxu0 %v857
        %2364 = vmatprep.subr.mxu0 %v876
        %2365 = vmatpush1.xpose.msra.mxu0 %v875
        %2366 = vmatprep.subr.mxu0 %v894
        %2367 = vmatpush1.xpose.msra.mxu0 %v893
        %2368 = vmatprep.subr.mxu0 %v912
        %2369 = vmatpush1.xpose.msra.mxu0 %v911
        %2370 = vmatprep.subr.mxu0 %v930
        %2371 = vmatpush1.xpose.msra.mxu0 %v929
        %2372 = vmatprep.subr.mxu0 %v948
        %2373 = vmatpush1.xpose.msra.mxu0 %v947
        %2374 = vmatprep.subr.mxu0 %v966
        %2375 = vmatpush1.xpose.msra.mxu0 %v965
        %2376 = vmatprep.subr.mxu0 %v984
        %2377 = vmatpush1.xpose.msra.mxu0 %v983
        %2378 = vmatprep.subr.mxu0 %v1002
        %2379 = vmatpush1.xpose.msra.mxu0 %v1001
        %2380 = vmatprep.subr.mxu0 %v1020
        %2381 = vmatpush1.xpose.msra.mxu0 %v1019
        %2382 = vmatprep.subr.mxu0 %v1038
        %2383 = vmatpush1.xpose.msra.mxu0 %v1037
        %2384 = vmatprep.subr.mxu0 %v1056
        %2385 = vmatpush1.xpose.msra.mxu0 %v1055
        %2386 = vmatprep.subr.mxu0 %v1074
        %2387 = vmatpush1.xpose.msra.mxu0 %v1073
        %2388 = vmatprep.subr.mxu0 %v1092
        %2389 = vmatpush1.xpose.msra.mxu0 %v1091
        %2390 = vmatprep.subr.mxu0 %v1110
        %2391 = vmatpush1.xpose.msra.mxu0 %v1109
        %2392 = vmatprep.subr.mxu0 %v1128
        %2393 = vmatpush1.xpose.msra.mxu0 %v1127
        %2394 = vmatprep.subr.mxu0 %v1146
        %2395 = vmatpush1.xpose.msra.mxu0 %v1145
        %2396 = vmatprep.subr.mxu0 %v1164
        %2397 = vmatpush1.xpose.msra.mxu0 %v1163
        %2398 = vmatprep.subr.mxu0 %v1182
        %2399 = vmatpush1.xpose.msra.mxu0 %v1181
        %2400 = vmatprep.subr.mxu0 %v1200
        %2401 = vmatpush1.xpose.msra.mxu0 %v1199
        %2402 = vmatprep.subr.mxu0 %v1218
        %2403 = vmatpush1.xpose.msra.mxu0 %v1217
        %2404 = vmatprep.subr.mxu0 %v1236
        %2405 = vmatpush1.xpose.msra.mxu0 %v1235
        %2406 = vmatprep.subr.mxu0 %v1254
        %2407 = vmatpush1.xpose.msra.mxu0 %v1253
        %2408 = vmatprep.subr.mxu0 %v1272
        %2409 = vmatpush1.xpose.msra.mxu0 %v1271
        %2410 = vmatprep.subr.mxu0 %v1290
        %2411 = vmatpush1.xpose.msra.mxu0 %v1289
        %2412 = vmatprep.subr.mxu0 %v1308
        %2413 = vmatpush1.xpose.msra.mxu0 %v1307
        %2414 = vmatprep.subr.mxu0 %v1326
        %2415 = vmatpush1.xpose.msra.mxu0 %v1325
        %2416 = vmatprep.subr.mxu0 %v1344
        %2417 = vmatpush1.xpose.msra.mxu0 %v1343
        %2418 = vmatprep.subr.mxu0 %v1362
        %2419 = vmatpush1.xpose.msra.mxu0 %v1361
        %2420 = vmatprep.subr.mxu0 %v1380
        %2421 = vmatpush1.xpose.msra.mxu0 %v1379
        %2422 = vmatprep.subr.mxu0 %v1398
        %2423 = vmatpush1.xpose.msra.mxu0 %v1397
        %2424 = vmatprep.mubr.f32.mxu0 %v1447
        %2425 = vmatmul.mubr.f32.gmra.mrb[0].mxu0 %v1445
        %v2426 = vpop.f32.mrb[0].mxu0
        %v2427 = vadd.f32 %v2356, %v2426
        %v2428 = vpop.f32.mrb[0].mxu0
        %v2429 = vadd.f32 %v2358, %v2428
        %2430 = vdwg.mxu0
        %2431 = vmatprep.subr.mxu0 %v842
        %2432 = vmatpush1.xpose.msra.mxu0 %v841
        %2433 = vmatprep.subr.mxu0 %v860
        %2434 = vmatpush1.xpose.msra.mxu0 %v859
        %2435 = vmatprep.subr.mxu0 %v878
        %2436 = vmatpush1.xpose.msra.mxu0 %v877
        %2437 = vmatprep.subr.mxu0 %v896
        %2438 = vmatpush1.xpose.msra.mxu0 %v895
        %2439 = vmatprep.subr.mxu0 %v914
        %2440 = vmatpush1.xpose.msra.mxu0 %v913
        %2441 = vmatprep.subr.mxu0 %v932
        %2442 = vmatpush1.xpose.msra.mxu0 %v931
        %2443 = vmatprep.subr.mxu0 %v950
        %2444 = vmatpush1.xpose.msra.mxu0 %v949
        %2445 = vmatprep.subr.mxu0 %v968
        %2446 = vmatpush1.xpose.msra.mxu0 %v967
        %2447 = vmatprep.subr.mxu0 %v986
        %2448 = vmatpush1.xpose.msra.mxu0 %v985
        %2449 = vmatprep.subr.mxu0 %v1004
        %2450 = vmatpush1.xpose.msra.mxu0 %v1003
        %2451 = vmatprep.subr.mxu0 %v1022
        %2452 = vmatpush1.xpose.msra.mxu0 %v1021
        %2453 = vmatprep.subr.mxu0 %v1040
        %2454 = vmatpush1.xpose.msra.mxu0 %v1039
        %2455 = vmatprep.subr.mxu0 %v1058
        %2456 = vmatpush1.xpose.msra.mxu0 %v1057
        %2457 = vmatprep.subr.mxu0 %v1076
        %2458 = vmatpush1.xpose.msra.mxu0 %v1075
        %2459 = vmatprep.subr.mxu0 %v1094
        %2460 = vmatpush1.xpose.msra.mxu0 %v1093
        %2461 = vmatprep.subr.mxu0 %v1112
        %2462 = vmatpush1.xpose.msra.mxu0 %v1111
        %2463 = vmatprep.subr.mxu0 %v1130
        %2464 = vmatpush1.xpose.msra.mxu0 %v1129
        %2465 = vmatprep.subr.mxu0 %v1148
        %2466 = vmatpush1.xpose.msra.mxu0 %v1147
        %2467 = vmatprep.subr.mxu0 %v1166
        %2468 = vmatpush1.xpose.msra.mxu0 %v1165
        %2469 = vmatprep.subr.mxu0 %v1184
        %2470 = vmatpush1.xpose.msra.mxu0 %v1183
        %2471 = vmatprep.subr.mxu0 %v1202
        %2472 = vmatpush1.xpose.msra.mxu0 %v1201
        %2473 = vmatprep.subr.mxu0 %v1220
        %2474 = vmatpush1.xpose.msra.mxu0 %v1219
        %2475 = vmatprep.subr.mxu0 %v1238
        %2476 = vmatpush1.xpose.msra.mxu0 %v1237
        %2477 = vmatprep.subr.mxu0 %v1256
        %2478 = vmatpush1.xpose.msra.mxu0 %v1255
        %2479 = vmatprep.subr.mxu0 %v1274
        %2480 = vmatpush1.xpose.msra.mxu0 %v1273
        %2481 = vmatprep.subr.mxu0 %v1292
        %2482 = vmatpush1.xpose.msra.mxu0 %v1291
        %2483 = vmatprep.subr.mxu0 %v1310
        %2484 = vmatpush1.xpose.msra.mxu0 %v1309
        %2485 = vmatprep.subr.mxu0 %v1328
        %2486 = vmatpush1.xpose.msra.mxu0 %v1327
        %2487 = vmatprep.subr.mxu0 %v1346
        %2488 = vmatpush1.xpose.msra.mxu0 %v1345
        %2489 = vmatprep.subr.mxu0 %v1364
        %2490 = vmatpush1.xpose.msra.mxu0 %v1363
        %2491 = vmatprep.subr.mxu0 %v1382
        %2492 = vmatpush1.xpose.msra.mxu0 %v1381
        %2493 = vmatprep.subr.mxu0 %v1400
        %2494 = vmatpush1.xpose.msra.mxu0 %v1399
        %2495 = vmatprep.mubr.f32.mxu0 %v1463
        %2496 = vmatmul.mubr.f32.gmra.mrb[0].mxu0 %v1455
        %v2497 = vpop.f32.mrb[0].mxu0
        %v2498 = vadd.f32 %v2427, %v2497
        %v2499 = vpop.f32.mrb[0].mxu0
        %v2500 = vadd.f32 %v2429, %v2499
        %2501 = vdwg.mxu0
        %2502 = vmatprep.subr.mxu0 %v844
        %2503 = vmatpush1.xpose.msra.mxu0 %v843
        %2504 = vmatprep.subr.mxu0 %v862
        %2505 = vmatpush1.xpose.msra.mxu0 %v861
        %2506 = vmatprep.subr.mxu0 %v880
        %2507 = vmatpush1.xpose.msra.mxu0 %v879
        %2508 = vmatprep.subr.mxu0 %v898
        %2509 = vmatpush1.xpose.msra.mxu0 %v897
        %2510 = vmatprep.subr.mxu0 %v916
        %2511 = vmatpush1.xpose.msra.mxu0 %v915
        %2512 = vmatprep.subr.mxu0 %v934
        %2513 = vmatpush1.xpose.msra.mxu0 %v933
        %2514 = vmatprep.subr.mxu0 %v952
        %2515 = vmatpush1.xpose.msra.mxu0 %v951
        %2516 = vmatprep.subr.mxu0 %v970
        %2517 = vmatpush1.xpose.msra.mxu0 %v969
        %2518 = vmatprep.subr.mxu0 %v988
        %2519 = vmatpush1.xpose.msra.mxu0 %v987
        %2520 = vmatprep.subr.mxu0 %v1006
        %2521 = vmatpush1.xpose.msra.mxu0 %v1005
        %2522 = vmatprep.subr.mxu0 %v1024
        %2523 = vmatpush1.xpose.msra.mxu0 %v1023
        %2524 = vmatprep.subr.mxu0 %v1042
        %2525 = vmatpush1.xpose.msra.mxu0 %v1041
        %2526 = vmatprep.subr.mxu0 %v1060
        %2527 = vmatpush1.xpose.msra.mxu0 %v1059
        %2528 = vmatprep.subr.mxu0 %v1078
        %2529 = vmatpush1.xpose.msra.mxu0 %v1077
        %2530 = vmatprep.subr.mxu0 %v1096
        %2531 = vmatpush1.xpose.msra.mxu0 %v1095
        %2532 = vmatprep.subr.mxu0 %v1114
        %2533 = vmatpush1.xpose.msra.mxu0 %v1113
        %2534 = vmatprep.subr.mxu0 %v1132
        %2535 = vmatpush1.xpose.msra.mxu0 %v1131
        %2536 = vmatprep.subr.mxu0 %v1150
        %2537 = vmatpush1.xpose.msra.mxu0 %v1149
        %2538 = vmatprep.subr.mxu0 %v1168
        %2539 = vmatpush1.xpose.msra.mxu0 %v1167
        %2540 = vmatprep.subr.mxu0 %v1186
        %2541 = vmatpush1.xpose.msra.mxu0 %v1185
        %2542 = vmatprep.subr.mxu0 %v1204
        %2543 = vmatpush1.xpose.msra.mxu0 %v1203
        %2544 = vmatprep.subr.mxu0 %v1222
        %2545 = vmatpush1.xpose.msra.mxu0 %v1221
        %2546 = vmatprep.subr.mxu0 %v1240
        %2547 = vmatpush1.xpose.msra.mxu0 %v1239
        %2548 = vmatprep.subr.mxu0 %v1258
        %2549 = vmatpush1.xpose.msra.mxu0 %v1257
        %2550 = vmatprep.subr.mxu0 %v1276
        %2551 = vmatpush1.xpose.msra.mxu0 %v1275
        %2552 = vmatprep.subr.mxu0 %v1294
        %2553 = vmatpush1.xpose.msra.mxu0 %v1293
        %2554 = vmatprep.subr.mxu0 %v1312
        %2555 = vmatpush1.xpose.msra.mxu0 %v1311
        %2556 = vmatprep.subr.mxu0 %v1330
        %2557 = vmatpush1.xpose.msra.mxu0 %v1329
        %2558 = vmatprep.subr.mxu0 %v1348
        %2559 = vmatpush1.xpose.msra.mxu0 %v1347
        %2560 = vmatprep.subr.mxu0 %v1366
        %2561 = vmatpush1.xpose.msra.mxu0 %v1365
        %2562 = vmatprep.subr.mxu0 %v1384
        %2563 = vmatpush1.xpose.msra.mxu0 %v1383
        %2564 = vmatprep.subr.mxu0 %v1402
        %2565 = vmatpush1.xpose.msra.mxu0 %v1401
        %2566 = vmatprep.mubr.f32.mxu0 %v1464
        %2567 = vmatmul.mubr.f32.gmra.mrb[0].mxu0 %v1462
        %v2568 = vpop.f32.mrb[0].mxu0
        %v2569 = vadd.f32 %v2498, %v2568
        %v2570 = vpop.f32.mrb[0].mxu0
        %v2571 = vadd.f32 %v2500, %v2570
        %2572 = vdwg.mxu0
        %2573 = vmatprep.subr.mxu0 %v846
        %2574 = vmatpush1.xpose.msra.mxu0 %v845
        %2575 = vmatprep.subr.mxu0 %v864
        %2576 = vmatpush1.xpose.msra.mxu0 %v863
        %2577 = vmatprep.subr.mxu0 %v882
        %2578 = vmatpush1.xpose.msra.mxu0 %v881
        %2579 = vmatprep.subr.mxu0 %v900
        %2580 = vmatpush1.xpose.msra.mxu0 %v899
        %2581 = vmatprep.subr.mxu0 %v918
        %2582 = vmatpush1.xpose.msra.mxu0 %v917
        %2583 = vmatprep.subr.mxu0 %v936
        %2584 = vmatpush1.xpose.msra.mxu0 %v935
        %2585 = vmatprep.subr.mxu0 %v954
        %2586 = vmatpush1.xpose.msra.mxu0 %v953
        %2587 = vmatprep.subr.mxu0 %v972
        %2588 = vmatpush1.xpose.msra.mxu0 %v971
        %2589 = vmatprep.subr.mxu0 %v990
        %2590 = vmatpush1.xpose.msra.mxu0 %v989
        %2591 = vmatprep.subr.mxu0 %v1008
        %2592 = vmatpush1.xpose.msra.mxu0 %v1007
        %2593 = vmatprep.subr.mxu0 %v1026
        %2594 = vmatpush1.xpose.msra.mxu0 %v1025
        %2595 = vmatprep.subr.mxu0 %v1044
        %2596 = vmatpush1.xpose.msra.mxu0 %v1043
        %2597 = vmatprep.subr.mxu0 %v1062
        %2598 = vmatpush1.xpose.msra.mxu0 %v1061
        %2599 = vmatprep.subr.mxu0 %v1080
        %2600 = vmatpush1.xpose.msra.mxu0 %v1079
        %2601 = vmatprep.subr.mxu0 %v1098
        %2602 = vmatpush1.xpose.msra.mxu0 %v1097
        %2603 = vmatprep.subr.mxu0 %v1116
        %2604 = vmatpush1.xpose.msra.mxu0 %v1115
        %2605 = vmatprep.subr.mxu0 %v1134
        %2606 = vmatpush1.xpose.msra.mxu0 %v1133
        %2607 = vmatprep.subr.mxu0 %v1152
        %2608 = vmatpush1.xpose.msra.mxu0 %v1151
        %2609 = vmatprep.subr.mxu0 %v1170
        %2610 = vmatpush1.xpose.msra.mxu0 %v1169
        %2611 = vmatprep.subr.mxu0 %v1188
        %2612 = vmatpush1.xpose.msra.mxu0 %v1187
        %2613 = vmatprep.subr.mxu0 %v1206
        %2614 = vmatpush1.xpose.msra.mxu0 %v1205
        %2615 = vmatprep.subr.mxu0 %v1224
        %2616 = vmatpush1.xpose.msra.mxu0 %v1223
        %2617 = vmatprep.subr.mxu0 %v1242
        %2618 = vmatpush1.xpose.msra.mxu0 %v1241
        %2619 = vmatprep.subr.mxu0 %v1260
        %2620 = vmatpush1.xpose.msra.mxu0 %v1259
        %2621 = vmatprep.subr.mxu0 %v1278
        %2622 = vmatpush1.xpose.msra.mxu0 %v1277
        %2623 = vmatprep.subr.mxu0 %v1296
        %2624 = vmatpush1.xpose.msra.mxu0 %v1295
        %2625 = vmatprep.subr.mxu0 %v1314
        %2626 = vmatpush1.xpose.msra.mxu0 %v1313
        %2627 = vmatprep.subr.mxu0 %v1332
        %2628 = vmatpush1.xpose.msra.mxu0 %v1331
        %2629 = vmatprep.subr.mxu0 %v1350
        %2630 = vmatpush1.xpose.msra.mxu0 %v1349
        %2631 = vmatprep.subr.mxu0 %v1368
        %2632 = vmatpush1.xpose.msra.mxu0 %v1367
        %2633 = vmatprep.subr.mxu0 %v1386
        %2634 = vmatpush1.xpose.msra.mxu0 %v1385
        %2635 = vmatprep.subr.mxu0 %v1404
        %2636 = vmatpush1.xpose.msra.mxu0 %v1403
        %2637 = vmatprep.mubr.f32.mxu0 %v1480
        %2638 = vmatmul.mubr.f32.gmra.mrb[0].mxu0 %v1472
        %v2639 = vpop.f32.mrb[0].mxu0
        %v2640 = vadd.f32 %v2569, %v2639
        %v2641 = vpop.f32.mrb[0].mxu0
        %v2642 = vadd.f32 %v2571, %v2641
        %2643 = vdwg.mxu0
        %2644 = vmatprep.subr.mxu0 %v848
        %2645 = vmatpush1.xpose.msra.mxu0 %v847
        %2646 = vmatprep.subr.mxu0 %v866
        %2647 = vmatpush1.xpose.msra.mxu0 %v865
        %2648 = vmatprep.subr.mxu0 %v884
        %2649 = vmatpush1.xpose.msra.mxu0 %v883
        %2650 = vmatprep.subr.mxu0 %v902
        %2651 = vmatpush1.xpose.msra.mxu0 %v901
        %2652 = vmatprep.subr.mxu0 %v920
        %2653 = vmatpush1.xpose.msra.mxu0 %v919
        %2654 = vmatprep.subr.mxu0 %v938
        %2655 = vmatpush1.xpose.msra.mxu0 %v937
        %2656 = vmatprep.subr.mxu0 %v956
        %2657 = vmatpush1.xpose.msra.mxu0 %v955
        %2658 = vmatprep.subr.mxu0 %v974
        %2659 = vmatpush1.xpose.msra.mxu0 %v973
        %2660 = vmatprep.subr.mxu0 %v992
        %2661 = vmatpush1.xpose.msra.mxu0 %v991
        %2662 = vmatprep.subr.mxu0 %v1010
        %2663 = vmatpush1.xpose.msra.mxu0 %v1009
        %2664 = vmatprep.subr.mxu0 %v1028
        %2665 = vmatpush1.xpose.msra.mxu0 %v1027
        %2666 = vmatprep.subr.mxu0 %v1046
        %2667 = vmatpush1.xpose.msra.mxu0 %v1045
        %2668 = vmatprep.subr.mxu0 %v1064
        %2669 = vmatpush1.xpose.msra.mxu0 %v1063
        %2670 = vmatprep.subr.mxu0 %v1082
        %2671 = vmatpush1.xpose.msra.mxu0 %v1081
        %2672 = vmatprep.subr.mxu0 %v1100
        %2673 = vmatpush1.xpose.msra.mxu0 %v1099
        %2674 = vmatprep.subr.mxu0 %v1118
        %2675 = vmatpush1.xpose.msra.mxu0 %v1117
        %2676 = vmatprep.subr.mxu0 %v1136
        %2677 = vmatpush1.xpose.msra.mxu0 %v1135
        %2678 = vmatprep.subr.mxu0 %v1154
        %2679 = vmatpush1.xpose.msra.mxu0 %v1153
        %2680 = vmatprep.subr.mxu0 %v1172
        %2681 = vmatpush1.xpose.msra.mxu0 %v1171
        %2682 = vmatprep.subr.mxu0 %v1190
        %2683 = vmatpush1.xpose.msra.mxu0 %v1189
        %2684 = vmatprep.subr.mxu0 %v1208
        %2685 = vmatpush1.xpose.msra.mxu0 %v1207
        %2686 = vmatprep.subr.mxu0 %v1226
        %2687 = vmatpush1.xpose.msra.mxu0 %v1225
        %2688 = vmatprep.subr.mxu0 %v1244
        %2689 = vmatpush1.xpose.msra.mxu0 %v1243
        %2690 = vmatprep.subr.mxu0 %v1262
        %2691 = vmatpush1.xpose.msra.mxu0 %v1261
        %2692 = vmatprep.subr.mxu0 %v1280
        %2693 = vmatpush1.xpose.msra.mxu0 %v1279
        %2694 = vmatprep.subr.mxu0 %v1298
        %2695 = vmatpush1.xpose.msra.mxu0 %v1297
        %2696 = vmatprep.subr.mxu0 %v1316
        %2697 = vmatpush1.xpose.msra.mxu0 %v1315
        %2698 = vmatprep.subr.mxu0 %v1334
        %2699 = vmatpush1.xpose.msra.mxu0 %v1333
        %2700 = vmatprep.subr.mxu0 %v1352
        %2701 = vmatpush1.xpose.msra.mxu0 %v1351
        %2702 = vmatprep.subr.mxu0 %v1370
        %2703 = vmatpush1.xpose.msra.mxu0 %v1369
        %2704 = vmatprep.subr.mxu0 %v1388
        %2705 = vmatpush1.xpose.msra.mxu0 %v1387
        %2706 = vmatprep.subr.mxu0 %v1406
        %2707 = vmatpush1.xpose.msra.mxu0 %v1405
        %2708 = vmatprep.mubr.f32.mxu0 %v1481
        %2709 = vmatmul.mubr.f32.gmra.mrb[0].mxu0 %v1479
        %v2710 = vpop.f32.mrb[0].mxu0
        %v2711 = vadd.f32 %v2640, %v2710
        %v2712 = vpop.f32.mrb[0].mxu0
        %v2713 = vadd.f32 %v2642, %v2712
        %2714 = vdwg.mxu0
        %2715 = vmatprep.subr.mxu0 %v850
        %2716 = vmatpush1.xpose.msra.mxu0 %v849
        %2717 = vmatprep.subr.mxu0 %v868
        %2718 = vmatpush1.xpose.msra.mxu0 %v867
        %2719 = vmatprep.subr.mxu0 %v886
        %2720 = vmatpush1.xpose.msra.mxu0 %v885
        %2721 = vmatprep.subr.mxu0 %v904
        %2722 = vmatpush1.xpose.msra.mxu0 %v903
        %2723 = vmatprep.subr.mxu0 %v922
        %2724 = vmatpush1.xpose.msra.mxu0 %v921
        %2725 = vmatprep.subr.mxu0 %v940
        %2726 = vmatpush1.xpose.msra.mxu0 %v939
        %2727 = vmatprep.subr.mxu0 %v958
        %2728 = vmatpush1.xpose.msra.mxu0 %v957
        %2729 = vmatprep.subr.mxu0 %v976
        %2730 = vmatpush1.xpose.msra.mxu0 %v975
        %2731 = vmatprep.subr.mxu0 %v994
        %2732 = vmatpush1.xpose.msra.mxu0 %v993
        %2733 = vmatprep.subr.mxu0 %v1012
        %2734 = vmatpush1.xpose.msra.mxu0 %v1011
        %2735 = vmatprep.subr.mxu0 %v1030
        %2736 = vmatpush1.xpose.msra.mxu0 %v1029
        %2737 = vmatprep.subr.mxu0 %v1048
        %2738 = vmatpush1.xpose.msra.mxu0 %v1047
        %2739 = vmatprep.subr.mxu0 %v1066
        %2740 = vmatpush1.xpose.msra.mxu0 %v1065
        %2741 = vmatprep.subr.mxu0 %v1084
        %2742 = vmatpush1.xpose.msra.mxu0 %v1083
        %2743 = vmatprep.subr.mxu0 %v1102
        %2744 = vmatpush1.xpose.msra.mxu0 %v1101
        %2745 = vmatprep.subr.mxu0 %v1120
        %2746 = vmatpush1.xpose.msra.mxu0 %v1119
        %2747 = vmatprep.subr.mxu0 %v1138
        %2748 = vmatpush1.xpose.msra.mxu0 %v1137
        %2749 = vmatprep.subr.mxu0 %v1156
        %2750 = vmatpush1.xpose.msra.mxu0 %v1155
        %2751 = vmatprep.subr.mxu0 %v1174
        %2752 = vmatpush1.xpose.msra.mxu0 %v1173
        %2753 = vmatprep.subr.mxu0 %v1192
        %2754 = vmatpush1.xpose.msra.mxu0 %v1191
        %2755 = vmatprep.subr.mxu0 %v1210
        %2756 = vmatpush1.xpose.msra.mxu0 %v1209
        %2757 = vmatprep.subr.mxu0 %v1228
        %2758 = vmatpush1.xpose.msra.mxu0 %v1227
        %2759 = vmatprep.subr.mxu0 %v1246
        %2760 = vmatpush1.xpose.msra.mxu0 %v1245
        %2761 = vmatprep.subr.mxu0 %v1264
        %2762 = vmatpush1.xpose.msra.mxu0 %v1263
        %2763 = vmatprep.subr.mxu0 %v1282
        %2764 = vmatpush1.xpose.msra.mxu0 %v1281
        %2765 = vmatprep.subr.mxu0 %v1300
        %2766 = vmatpush1.xpose.msra.mxu0 %v1299
        %2767 = vmatprep.subr.mxu0 %v1318
        %2768 = vmatpush1.xpose.msra.mxu0 %v1317
        %2769 = vmatprep.subr.mxu0 %v1336
        %2770 = vmatpush1.xpose.msra.mxu0 %v1335
        %2771 = vmatprep.subr.mxu0 %v1354
        %2772 = vmatpush1.xpose.msra.mxu0 %v1353
        %2773 = vmatprep.subr.mxu0 %v1372
        %2774 = vmatpush1.xpose.msra.mxu0 %v1371
        %2775 = vmatprep.subr.mxu0 %v1390
        %2776 = vmatpush1.xpose.msra.mxu0 %v1389
        %2777 = vmatprep.subr.mxu0 %v1408
        %2778 = vmatpush1.xpose.msra.mxu0 %v1407
        %2779 = vmatprep.mubr.f32.mxu0 %v1489
        %2780 = vmatmul.mubr.f32.gmra.mrb[0].mxu0 %v1488
        %v2781 = vpop.f32.mrb[0].mxu0
        %v2782 = vadd.f32 %v2711, %v2781
        %v2783 = vpop.f32.mrb[0].mxu0
        %v2784 = vadd.f32 %v2713, %v2783
        %2785 = vdwg.mxu0
        %p2786 = scmp.eq.s32.totalorder %s22, 0
        // Predicated region
        $region37: #{_lambda_.6} parent=31 // pred_check
          %p2787 = pneg %p2786
        $region38: #{_lambda_.6} parent=31 // pred_check_branch
          %2789 = sbr.rel (%p2787) target = $region40
        $region39: #{_lambda_.6} parent=31 // pred_region
          %v2794 = vcombine.low %v2143, %v2145
          %v2795 = vcombine.low %v2782, %v2784
          %v2797 = vunpack.c.l.s4 1983009808
          %v2798 = vunpack.c.0.s8 %v2797
          %v2799 = vlaneseq
          %v2800 = vshrl.u32 %v2799, 7
          %v2801 = vsub.s32 %v2798, %v2800
          %v2802 = vrot.slane %v2794, %v2801
          %v2804 = vunpack.c.l.s4 1983009808
          %v2805 = vunpack.c.0.s8 %v2804
          %v2806 = vlaneseq
          %v2807 = vshrl.u32 %v2806, 7
          %v2808 = vsub.s32 %v2805, %v2807
          %v2809 = vrot.slane %v2795, %v2808
          %v2810 = vcombine.low %v2802, %v2809
          %2812 = vst [vmem:[%s250] sm:$0xff] %v2810
        $region40: #{_lambda_.6} parent=31 // pred_fallthru
          _
        %p2813 = scmp.ne.s32.totalorder %s22, 0
        // Predicated region
        $region41: #{_lambda_.6} parent=31 // pred_check
          %p2814 = pneg %p2813
        $region42: #{_lambda_.6} parent=31 // pred_check_branch
          %2816 = sbr.rel (%p2814) target = $region44
        $region43: #{_lambda_.6} parent=31 // pred_region
          %v2817 = vld [vmem:[%s250] sm:$0xff]
          %v2822 = vcombine.low %v2143, %v2145
          %v2823 = vcombine.low %v2782, %v2784
          %v2825 = vunpack.c.l.s4 1983009808
          %v2826 = vunpack.c.0.s8 %v2825
          %v2827 = vlaneseq
          %v2828 = vshrl.u32 %v2827, 7
          %v2829 = vsub.s32 %v2826, %v2828
          %v2830 = vrot.slane %v2822, %v2829
          %v2832 = vunpack.c.l.s4 1983009808
          %v2833 = vunpack.c.0.s8 %v2832
          %v2834 = vlaneseq
          %v2835 = vshrl.u32 %v2834, 7
          %v2836 = vsub.s32 %v2833, %v2835
          %v2837 = vrot.slane %v2823, %v2836
          %v2838 = vcombine.low %v2830, %v2837
          %v2840 = vadd.f32 %v2817, %v2838
          %2841 = vst [vmem:[%s250] sm:$0xff] %v2840
        $region44: #{_lambda_.6} parent=31 // pred_fallthru
          _
        %p2842 = scmp.eq.s32.totalorder %s22, 17
        // Predicated region
        $region45: #{_lambda_.6} parent=31 // pred_check
          %p2843 = pneg %p2842
        $region46: #{_lambda_.6} parent=31 // pred_check_branch
          %2845 = sbr.rel (%p2843) target = $region48
        $region47: #{_lambda_.6} parent=31 // pred_region
          %v2846 = vld [vmem:[%s250] sm:$0xff]
          %v2847 = vld [vmem:[%s244] sm:$0xf]
          %v2849 = vlaneseq
          %v2850 = vshrl.u32 %v2849, 7
          %v2851 = vsub.s32 0, %v2850
          %v2852 = vrot.slane %v2847, %v2851
          %v2853 = vlaneseq
          %v2854 = vshrl.u32 %v2853, 7
          %v2855 = vsub.s32 1, %v2854
          %v2856 = vrot.slane %v2847, %v2855
          %v2857 = vlaneseq
          %v2858 = vshrl.u32 %v2857, 7
          %v2859 = vsub.s32 2, %v2858
          %v2860 = vrot.slane %v2847, %v2859
          %v2861 = vlaneseq
          %v2862 = vshrl.u32 %v2861, 7
          %v2863 = vsub.s32 3, %v2862
          %v2864 = vrot.slane %v2847, %v2863
          %v2865 = vcombine.low %v2852, %v2856
          %v2866 = vcombine.low %v2860, %v2864
          %v2868 = vunpack.c.l.s4 1983009808
          %v2869 = vunpack.c.0.s8 %v2868
          %v2870 = vlaneseq
          %v2871 = vshrl.u32 %v2870, 7
          %v2872 = vsub.s32 %v2869, %v2871
          %v2873 = vrot.slane %v2865, %v2872
          %v2875 = vunpack.c.l.s4 1983009808
          %v2876 = vunpack.c.0.s8 %v2875
          %v2877 = vlaneseq
          %v2878 = vshrl.u32 %v2877, 7
          %v2879 = vsub.s32 %v2876, %v2878
          %v2880 = vrot.slane %v2866, %v2879
          %v2881 = vcombine.low %v2873, %v2880
          %v2883 = vadd.f32 %v2846, %v2881
          %vm2884 = vcmp.ge.f32.partialorder %v2883, 0.0
          %v2885 = vmul.f32 %v2883, 0.2
          %v2886 = vsel %vm2884, %v2883, %v2885
          %2887 = vst [vmem:[%s250] sm:$0xff] %v2886
        $region48: #{_lambda_.6} parent=31 // pred_fallthru
          _
        %s2888 = smul.u32 4, %s21
        %p2889 = scmp.lt.s32.totalorder %s2888, 7
        %s2890 = scalar_select %p2889, %s2888, 7
        %s2891 = smul.addr %s2890, 2
        %s2892 = scalar_lea.vmem %s3, %s2891
        // Predicated region
        $region49: #{_lambda_.6} parent=31 // pred_check
          %p2893 = pneg %p127
        $region50: #{_lambda_.6} parent=31 // pred_check_branch
          %2895 = sbr.rel (%p2893) target = $region52
        $region51: #{_lambda_.6} parent=31 // pred_region
          %s2896 = smul.u32 4, %s21
        $region52: #{_lambda_.6} parent=31 // pred_fallthru
          _
      $region32: #{_lambda_.6} parent=5 // pred_fallthru
        _
      %p2897 = scmp.le.s32.totalorder 2, %s12
      // Predicated region
      $region53: #{_lambda_.6} parent=5 // pred_check
        %p2898 = pneg %p2897
      $region54: #{_lambda_.6} parent=5 // pred_check_branch
        %2900 = sbr.rel (%p2898) target = $region56
      $region55: #{_lambda_.6} parent=5 // pred_region
        %s2901 = ssub.s32 %s12, 2
        // Predicated region
        $region57: #{_lambda_.6} parent=55 // pred_check
          %p2902 = pneg %p133
        $region58: #{_lambda_.6} parent=55 // pred_check_branch
          %2904 = sbr.rel (%p2902) target = $region60
        $region59: #{_lambda_.6} parent=55 // pred_region
          %s2905 = smul.u32 4, %s23
          %p2906 = scmp.lt.s32.totalorder %s2905, 7
          %s2907 = scalar_select %p2906, %s2905, 7
          %s2908 = smul.addr %s2907, 2
          %s2909 = scalar_lea.vmem %s3, %s2908
        $region60: #{_lambda_.6} parent=55 // pred_fallthru
          _
      $region56: #{_lambda_.6} parent=5 // pred_fallthru
        _
    $region6: #{_lambda_.6} parent=1 // loop_footer
      %s16 = sadd.s32 1, %s12
    $region7: #{_lambda_.6} parent=1 // loop_footer_branch
      %11 = sbr.rel target = $region3
    $region8: #{_lambda_.6} parent=1 // loop_exit
      _
    %2910 = vsyncpa [#allocation3], 1
    %s2911 = scalar_lea.sflag [#allocation3], 1
    %2912 = vsyncpa %s2911, 1

</llo_original>
